<compile_context>
chip_gen: v6e
topology: v6e:2x2x1
jax: 0.10.0
libtpu: 0.0.40
codegen_flags: <defaults>
</compile_context>

<pallas_src>
import functools

import jax
import jax.numpy as jnp
from jax.experimental import pallas as pl
from jax.experimental.pallas import tpu as pltpu

C_PAD = 128                      # lane-dense hidden channel width
VMEM_LIMIT = 32 * 1024 * 1024    # safe on v5e (128M), v6e (128M), v7x (64M)


# ----------------------------------------------------------------------------
# Conv kernel: relu(conv_valid(x) + b) * bn_scale + bn_shift, one image / step
# ----------------------------------------------------------------------------
def _conv_kernel(x_ref, w_ref, aux_ref, o_ref, *, kh, kw, oh, ow):
    """x_ref: (1,H,W,Cin) bf16 | w_ref: (KH*KW,Cin,Cout) bf16 |
    aux_ref: (3,Cout) f32 rows=[bias, bn_scale, bn_shift] | o_ref: (1,OH,OW,Cout) bf16."""
    oc = o_ref.shape[-1]
    bias = aux_ref[0:1, :]       # hoisted out of the row loop
    scale = aux_ref[1:2, :]
    shift = aux_ref[2:3, :]

    def row(h, carry):
        acc = jnp.zeros((ow, oc), jnp.float32)
        for t in range(kh * kw):                      # static unroll over taps
            i, j = t // kw, t % kw
            tap = x_ref[0, h + i, pl.ds(j, ow), :]    # (OW, Cin) bf16 VMEM load
            acc = acc + jnp.dot(tap, w_ref[t],
                                preferred_element_type=jnp.float32)
        y = jnp.maximum(acc + bias, 0.0) * scale + shift   # relu -> folded BN
        o_ref[0, h] = y.astype(o_ref.dtype)
        return carry

    jax.lax.fori_loop(0, oh, row, 0)


def conv_layer(x, w_taps, aux, kh, kw):
    """x: (N,H,W,Cin) bf16; w_taps: (KH*KW,Cin,Cout) bf16; aux: (3,Cout) f32."""
    n, h, w, c = x.shape
    oh, ow = h - kh + 1, w - kw + 1
    ntaps, c_in, oc = w_taps.shape
    assert c == c_in and ntaps == kh * kw
    kernel = functools.partial(_conv_kernel, kh=kh, kw=kw, oh=oh, ow=ow)
    return pl.pallas_call(
        kernel,
        out_shape=jax.ShapeDtypeStruct((n, oh, ow, oc), jnp.bfloat16),
        grid=(n,),
        in_specs=[
            pl.BlockSpec((1, h, w, c), lambda b: (b, 0, 0, 0)),
            pl.BlockSpec((ntaps, c_in, oc), lambda b: (0, 0, 0)),
            pl.BlockSpec((3, oc), lambda b: (0, 0)),
        ],
        out_specs=pl.BlockSpec((1, oh, ow, oc), lambda b: (b, 0, 0, 0)),
        compiler_params=pltpu.CompilerParams(
            dimension_semantics=("parallel",),
            vmem_limit_bytes=VMEM_LIMIT),
    )(x, w_taps, aux)


# ----------------------------------------------------------------------------
# Fused tail: conv5(3x3->1x1) -> bn5 -> conv6(1x1) -> bn6 -> fc1+relu -> fc2
# ----------------------------------------------------------------------------
def _tail_kernel(x_ref, w5_ref, w6_ref, wf1_ref, wf2_ref, aux_ref, o_ref):
    """x_ref: (TM, 3*3*128) bf16 | weights bf16 (K,128) | aux: (8,128) f32
    rows=[b5,s5,t5,b6,s6,t6,bf1,bf2] | o_ref: (TM,128) f32 (first 10 cols valid)."""
    f32 = jnp.float32
    b5, s5, t5 = aux_ref[0:1, :], aux_ref[1:2, :], aux_ref[2:3, :]
    b6, s6, t6 = aux_ref[3:4, :], aux_ref[4:5, :], aux_ref[5:6, :]
    bf1, bf2 = aux_ref[6:7, :], aux_ref[7:8, :]

    h = jnp.dot(x_ref[...], w5_ref[...], preferred_element_type=f32)
    h = jnp.maximum(h + b5, 0.0) * s5 + t5                    # relu -> bn5
    h = jnp.dot(h.astype(jnp.bfloat16), w6_ref[...], preferred_element_type=f32)
    h = jnp.maximum(h + b6, 0.0) * s6 + t6                    # relu -> bn6
    # flatten is identity at 1x1 spatial
    h = jnp.dot(h.astype(jnp.bfloat16), wf1_ref[...], preferred_element_type=f32)
    h = jnp.maximum(h + bf1, 0.0)                             # fc1 + relu
    h = jnp.dot(h.astype(jnp.bfloat16), wf2_ref[...], preferred_element_type=f32)
    o_ref[...] = (h + bf2).astype(o_ref.dtype)                # fc2 (no relu)


def tail_fused(x2d, w5, w6, wf1, wf2, aux):
    m, k = x2d.shape
    n_pad = wf2.shape[1]
    tm = m if m <= 256 else 256
    return pl.pallas_call(
        _tail_kernel,
        out_shape=jax.ShapeDtypeStruct((m, n_pad), jnp.float32),
        grid=(pl.cdiv(m, tm),),
        in_specs=[
            pl.BlockSpec((tm, k), lambda i: (i, 0)),
            pl.BlockSpec(w5.shape, lambda i: (0, 0)),
            pl.BlockSpec(w6.shape, lambda i: (0, 0)),
            pl.BlockSpec(wf1.shape, lambda i: (0, 0)),
            pl.BlockSpec(wf2.shape, lambda i: (0, 0)),
            pl.BlockSpec(aux.shape, lambda i: (0, 0)),
        ],
        out_specs=pl.BlockSpec((tm, n_pad), lambda i: (i, 0)),
        compiler_params=pltpu.CompilerParams(
            dimension_semantics=("parallel",),
            vmem_limit_bytes=VMEM_LIMIT),
    )(x2d, w5, w6, wf1, wf2, aux)


# ----------------------------------------------------------------------------
# Cheap XLA glue
# ----------------------------------------------------------------------------
def maxpool2(x_nhwc):
    n, h, w, c = x_nhwc.shape
    x = x_nhwc[:, : (h // 2) * 2, : (w // 2) * 2, :]
    x = x.reshape(n, h // 2, 2, w // 2, 2, c)
    return x.max(axis=(2, 4))


# ----------------------------------------------------------------------------
# Deterministic params (torch shapes) + one-time packing/folding for kernels
# ----------------------------------------------------------------------------
def conv_params(key, oc, ic, kh, kw):
    kw_, kb = jax.random.split(key)
    bound = 1.0 / float(ic * kh * kw) ** 0.5
    w = jax.random.uniform(kw_, (oc, ic, kh, kw), jnp.float32, -bound, bound)
    b = jax.random.uniform(kb, (oc,), jnp.float32, -bound, bound)
    return w, b


def bn_params(key, c):
    k1, k2, k3, k4 = jax.random.split(key, 4)
    gamma = 1.0 + 0.1 * jax.random.normal(k1, (c,), jnp.float32)
    beta = 0.1 * jax.random.normal(k2, (c,), jnp.float32)
    mean = 0.1 * jax.random.normal(k3, (c,), jnp.float32)
    var = 1.0 + 0.1 * jax.random.uniform(k4, (c,), jnp.float32)
    return gamma, beta, mean, var


def linear_params(key, out_f, in_f):
    kw_, kb = jax.random.split(key)
    bound = 1.0 / float(in_f) ** 0.5
    w = jax.random.uniform(kw_, (out_f, in_f), jnp.float32, -bound, bound)
    b = jax.random.uniform(kb, (out_f,), jnp.float32, -bound, bound)
    return w, b


def pack_conv(w_oihw, c_pad, oc_pad):
    """torch (OC,IC,KH,KW) -> tap-major (KH*KW, C_pad, OC_pad) bf16, zero padded."""
    oc, ic, kh, kw = w_oihw.shape
    w = jnp.transpose(w_oihw, (2, 3, 1, 0))                    # (KH,KW,IC,OC)
    w = jnp.pad(w, ((0, 0), (0, 0), (0, c_pad - ic), (0, oc_pad - oc)))
    return w.reshape(kh * kw, c_pad, oc_pad).astype(jnp.bfloat16)


def pack_aux(b, bn, oc_pad, eps=1e-5):
    """Fold BatchNorm running stats; rows = [bias, bn_scale, bn_shift], padded."""
    gamma, beta, mean, var = bn
    scale = gamma / jnp.sqrt(var + eps)
    shift = beta - mean * scale
    pad = oc_pad - b.shape[0]
    return jnp.stack([
        jnp.pad(b, (0, pad)),
        jnp.pad(scale, (0, pad), constant_values=1.0),
        jnp.pad(shift, (0, pad)),
    ]).astype(jnp.float32)


def pack_fc(w, b, k_pad, n_pad):
    out_f, in_f = w.shape
    wt = jnp.pad(jnp.transpose(w), ((0, k_pad - in_f), (0, n_pad - out_f)))
    bp = jnp.pad(b, (0, n_pad - out_f)).astype(jnp.float32)
    return wt.astype(jnp.bfloat16), bp


def init_params(key, dim):
    ks = jax.random.split(key, 14)
    c_in_pad = ((dim + 7) // 8) * 8          # conv1 K = 5*5*c_in_pad, multiple of 8

    w1, b1 = conv_params(ks[0], 32, dim, 5, 5);  bn1 = bn_params(ks[1], 32)
    w2, b2 = conv_params(ks[2], 32, 32, 5, 5);   bn2 = bn_params(ks[3], 32)
    w3, b3 = conv_params(ks[4], 64, 32, 3, 3);   bn3 = bn_params(ks[5], 64)
    w4, b4 = conv_params(ks[6], 64, 64, 3, 3);   bn4 = bn_params(ks[7], 64)
    w5, b5 = conv_params(ks[8], 128, 64, 3, 3);  bn5 = bn_params(ks[9], 128)
    w6, b6 = conv_params(ks[10], 128, 128, 1, 1); bn6 = bn_params(ks[11], 128)
    fc1_w, fc1_b = linear_params(ks[12], 100, 128)
    fc2_w, fc2_b = linear_params(ks[13], 10, 100)

    p = {}
    p["w1"] = pack_conv(w1, c_in_pad, C_PAD); p["aux1"] = pack_aux(b1, bn1, C_PAD)
    p["w2"] = pack_conv(w2, C_PAD, C_PAD);    p["aux2"] = pack_aux(b2, bn2, C_PAD)
    p["w3"] = pack_conv(w3, C_PAD, C_PAD);    p["aux3"] = pack_aux(b3, bn3, C_PAD)
    p["w4"] = pack_conv(w4, C_PAD, C_PAD);    p["aux4"] = pack_aux(b4, bn4, C_PAD)
    # fused tail weights: conv5 (3*3*128, 128), conv6 (128, 128), fc1/fc2 padded
    p["w5"] = pack_conv(w5, C_PAD, C_PAD).reshape(3 * 3 * C_PAD, C_PAD)
    p["w6"] = pack_conv(w6, C_PAD, C_PAD).reshape(1 * 1 * C_PAD, C_PAD)
    wf1, bf1 = pack_fc(fc1_w, fc1_b, C_PAD, C_PAD)
    wf2, bf2 = pack_fc(fc2_w, fc2_b, C_PAD, C_PAD)
    p["wf1"], p["wf2"] = wf1, wf2
    p["aux_tail"] = jnp.concatenate(
        [pack_aux(b5, bn5, C_PAD), pack_aux(b6, bn6, C_PAD),
         bf1[None, :], bf2[None, :]], axis=0)                 # (8, 128) f32
    return p


# ----------------------------------------------------------------------------
# Forward pass (matches MnistNet.forward, eval mode); 28x28 input required.
# ----------------------------------------------------------------------------
def mnist_net_forward(x_nchw, p):
    x = jnp.transpose(x_nchw, (0, 2, 3, 1))                   # NCHW -> NHWC
    cin_pad = p["w1"].shape[1]
    x = jnp.pad(x, ((0, 0), (0, 0), (0, 0), (0, cin_pad - x.shape[-1])))
    x = x.astype(jnp.bfloat16)

    x = conv_layer(x, p["w1"], p["aux1"], 5, 5)               # relu -> bn1
    x = conv_layer(x, p["w2"], p["aux2"], 5, 5)               # relu -> bn2
    x = maxpool2(x)                                           # max_pool2d(., 2)
    # Dropout2d(p=0.2): identity in eval mode.
    x = conv_layer(x, p["w3"], p["aux3"], 3, 3)               # relu -> bn3
    x = conv_layer(x, p["w4"], p["aux4"], 3, 3)               # relu -> bn4
    x = maxpool2(x)                                           # + dropout (identity)

    x = x.reshape(x.shape[0], -1)                             # (N, 3*3*128) bf16
    out = tail_fused(x, p["w5"], p["w6"], p["wf1"], p["wf2"], p["aux_tail"])
    return out[:, :10]


if __name__ == "__main__":
    key = jax.random.PRNGKey(0)
    kx, kp = jax.random.split(key)

    dim = 1
    # 28x28 spatial is required: the conv/pool stack maps 28x28 -> 1x1 with
    # 128 channels, matching fc1 = Linear(128, 100).
    x = jax.random.normal(kx, (2, dim, 28, 28), jnp.float32)
    params = init_params(kp, dim)

    fwd = jax.jit(mnist_net_forward)
    out = jax.block_until_ready(fwd(x, params))
    assert out.shape == (2, 10), out.shape
    assert bool(jnp.all(jnp.isfinite(out)))
    print("KERNEL_OK")
</pallas_src>

<mosaic_0001>
module attributes {stable_mosaic.version = 11 : i64} {
  func.func @_conv_kernel(%arg0: i32, %arg1: memref<1x28x28x8xbf16, #tpu.memory_space<vmem>>, %arg2: memref<25x8x128xbf16, #tpu.memory_space<vmem>>, %arg3: memref<3x128xf32, #tpu.memory_space<vmem>>, %arg4: memref<1x24x24x128xbf16, #tpu.memory_space<vmem>>) attributes {dimension_semantics = [#tpu.dimension_semantics<parallel>], iteration_bounds = array<i64: 2>, scalar_prefetch = 0 : i64, scratch_operands = 0 : i64, tpu.core_type = #tpu.core_type<tc>, window_params = [{transform_indices = @transform_0, window_bounds = array<i64: 1, 28, 28, 8>}, {pipeline_mode = #tpu.pipeline_mode<synchronous>, transform_indices = @transform_1, window_bounds = array<i64: 25, 8, 128>}, {pipeline_mode = #tpu.pipeline_mode<synchronous>, transform_indices = @transform_2, window_bounds = array<i64: 3, 128>}, {transform_indices = @transform_3, window_bounds = array<i64: 1, 24, 24, 128>}]} {
    %c0 = arith.constant 0 : index
    %c0_0 = arith.constant 0 : index
    %0 = vector.load %arg3[%c0, %c0_0] : memref<3x128xf32, #tpu.memory_space<vmem>>, vector<1x128xf32>
    %c1 = arith.constant 1 : index
    %c0_1 = arith.constant 0 : index
    %1 = vector.load %arg3[%c1, %c0_1] : memref<3x128xf32, #tpu.memory_space<vmem>>, vector<1x128xf32>
    %c2 = arith.constant 2 : index
    %c0_2 = arith.constant 0 : index
    %2 = vector.load %arg3[%c2, %c0_2] : memref<3x128xf32, #tpu.memory_space<vmem>>, vector<1x128xf32>
    %c0_i32 = arith.constant 0 : i32
    %c24_i32 = arith.constant 24 : i32
    %3 = arith.addi %c0_i32, %c24_i32 : i32
    %c1_i32 = arith.constant 1 : i32
    scf.for %arg5 = %c0_i32 to %3 step %c1_i32  : i32 {
      %cst = arith.constant 0.000000e+00 : f32
      %4 = vector.broadcast %cst : f32 to vector<24x128xf32>
      %c0_i32_4 = arith.constant 0 : i32
      %5 = arith.addi %arg5, %c0_i32_4 : i32
      %c0_5 = arith.constant 0 : index
      %6 = arith.index_cast %5 : i32 to index
      %c0_6 = arith.constant 0 : index
      %c0_7 = arith.constant 0 : index
      %7 = vector.load %arg1[%c0_5, %6, %c0_6, %c0_7] : memref<1x28x28x8xbf16, #tpu.memory_space<vmem>>, vector<1x1x24x8xbf16>
      %8 = vector.shape_cast %7 : vector<1x1x24x8xbf16> to vector<24x8xbf16>
      %c0_8 = arith.constant 0 : index
      %c0_9 = arith.constant 0 : index
      %c0_10 = arith.constant 0 : index
      %9 = vector.load %arg2[%c0_8, %c0_9, %c0_10] : memref<25x8x128xbf16, #tpu.memory_space<vmem>>, vector<1x8x128xbf16>
      %10 = vector.shape_cast %9 : vector<1x8x128xbf16> to vector<8x128xbf16>
      %cst_11 = arith.constant dense<0.000000e+00> : vector<24x128xf32>
      %11 = tpu.matmul %8, %10, %cst_11 {dimension_numbers = #tpu.dot_dimension_numbers<[1], [0], [0], [1], [0, 0, 1, 1], [], []>} : vector<24x8xbf16>, vector<8x128xbf16>, vector<24x128xf32> -> vector<24x128xf32>
      %12 = arith.addf %4, %11 : vector<24x128xf32>
      %c0_i32_12 = arith.constant 0 : i32
      %13 = arith.addi %arg5, %c0_i32_12 : i32
      %c0_13 = arith.constant 0 : index
      %14 = arith.index_cast %13 : i32 to index
      %c1_14 = arith.constant 1 : index
      %c0_15 = arith.constant 0 : index
      %15 = vector.load %arg1[%c0_13, %14, %c1_14, %c0_15] : memref<1x28x28x8xbf16, #tpu.memory_space<vmem>>, vector<1x1x24x8xbf16>
      %16 = vector.shape_cast %15 : vector<1x1x24x8xbf16> to vector<24x8xbf16>
      %c1_16 = arith.constant 1 : index
      %c0_17 = arith.constant 0 : index
      %c0_18 = arith.constant 0 : index
      %17 = vector.load %arg2[%c1_16, %c0_17, %c0_18] : memref<25x8x128xbf16, #tpu.memory_space<vmem>>, vector<1x8x128xbf16>
      %18 = vector.shape_cast %17 : vector<1x8x128xbf16> to vector<8x128xbf16>
      %cst_19 = arith.constant dense<0.000000e+00> : vector<24x128xf32>
      %19 = tpu.matmul %16, %18, %cst_19 {dimension_numbers = #tpu.dot_dimension_numbers<[1], [0], [0], [1], [0, 0, 1, 1], [], []>} : vector<24x8xbf16>, vector<8x128xbf16>, vector<24x128xf32> -> vector<24x128xf32>
      %20 = arith.addf %12, %19 : vector<24x128xf32>
      %c0_i32_20 = arith.constant 0 : i32
      %21 = arith.addi %arg5, %c0_i32_20 : i32
      %c0_21 = arith.constant 0 : index
      %22 = arith.index_cast %21 : i32 to index
      %c2_22 = arith.constant 2 : index
      %c0_23 = arith.constant 0 : index
      %23 = vector.load %arg1[%c0_21, %22, %c2_22, %c0_23] : memref<1x28x28x8xbf16, #tpu.memory_space<vmem>>, vector<1x1x24x8xbf16>
      %24 = vector.shape_cast %23 : vector<1x1x24x8xbf16> to vector<24x8xbf16>
      %c2_24 = arith.constant 2 : index
      %c0_25 = arith.constant 0 : index
      %c0_26 = arith.constant 0 : index
      %25 = vector.load %arg2[%c2_24, %c0_25, %c0_26] : memref<25x8x128xbf16, #tpu.memory_space<vmem>>, vector<1x8x128xbf16>
      %26 = vector.shape_cast %25 : vector<1x8x128xbf16> to vector<8x128xbf16>
      %cst_27 = arith.constant dense<0.000000e+00> : vector<24x128xf32>
      %27 = tpu.matmul %24, %26, %cst_27 {dimension_numbers = #tpu.dot_dimension_numbers<[1], [0], [0], [1], [0, 0, 1, 1], [], []>} : vector<24x8xbf16>, vector<8x128xbf16>, vector<24x128xf32> -> vector<24x128xf32>
      %28 = arith.addf %20, %27 : vector<24x128xf32>
      %c0_i32_28 = arith.constant 0 : i32
      %29 = arith.addi %arg5, %c0_i32_28 : i32
      %c0_29 = arith.constant 0 : index
      %30 = arith.index_cast %29 : i32 to index
      %c3 = arith.constant 3 : index
      %c0_30 = arith.constant 0 : index
      %31 = vector.load %arg1[%c0_29, %30, %c3, %c0_30] : memref<1x28x28x8xbf16, #tpu.memory_space<vmem>>, vector<1x1x24x8xbf16>
      %32 = vector.shape_cast %31 : vector<1x1x24x8xbf16> to vector<24x8xbf16>
      %c3_31 = arith.constant 3 : index
      %c0_32 = arith.constant 0 : index
      %c0_33 = arith.constant 0 : index
      %33 = vector.load %arg2[%c3_31, %c0_32, %c0_33] : memref<25x8x128xbf16, #tpu.memory_space<vmem>>, vector<1x8x128xbf16>
      %34 = vector.shape_cast %33 : vector<1x8x128xbf16> to vector<8x128xbf16>
      %cst_34 = arith.constant dense<0.000000e+00> : vector<24x128xf32>
      %35 = tpu.matmul %32, %34, %cst_34 {dimension_numbers = #tpu.dot_dimension_numbers<[1], [0], [0], [1], [0, 0, 1, 1], [], []>} : vector<24x8xbf16>, vector<8x128xbf16>, vector<24x128xf32> -> vector<24x128xf32>
      %36 = arith.addf %28, %35 : vector<24x128xf32>
      %c0_i32_35 = arith.constant 0 : i32
      %37 = arith.addi %arg5, %c0_i32_35 : i32
      %c0_36 = arith.constant 0 : index
      %38 = arith.index_cast %37 : i32 to index
      %c4 = arith.constant 4 : index
      %c0_37 = arith.constant 0 : index
      %39 = vector.load %arg1[%c0_36, %38, %c4, %c0_37] : memref<1x28x28x8xbf16, #tpu.memory_space<vmem>>, vector<1x1x24x8xbf16>
      %40 = vector.shape_cast %39 : vector<1x1x24x8xbf16> to vector<24x8xbf16>
      %c4_38 = arith.constant 4 : index
      %c0_39 = arith.constant 0 : index
      %c0_40 = arith.constant 0 : index
      %41 = vector.load %arg2[%c4_38, %c0_39, %c0_40] : memref<25x8x128xbf16, #tpu.memory_space<vmem>>, vector<1x8x128xbf16>
      %42 = vector.shape_cast %41 : vector<1x8x128xbf16> to vector<8x128xbf16>
      %cst_41 = arith.constant dense<0.000000e+00> : vector<24x128xf32>
      %43 = tpu.matmul %40, %42, %cst_41 {dimension_numbers = #tpu.dot_dimension_numbers<[1], [0], [0], [1], [0, 0, 1, 1], [], []>} : vector<24x8xbf16>, vector<8x128xbf16>, vector<24x128xf32> -> vector<24x128xf32>
      %44 = arith.addf %36, %43 : vector<24x128xf32>
      %c1_i32_42 = arith.constant 1 : i32
      %45 = arith.addi %arg5, %c1_i32_42 : i32
      %c0_43 = arith.constant 0 : index
      %46 = arith.index_cast %45 : i32 to index
      %c0_44 = arith.constant 0 : index
      %c0_45 = arith.constant 0 : index
      %47 = vector.load %arg1[%c0_43, %46, %c0_44, %c0_45] : memref<1x28x28x8xbf16, #tpu.memory_space<vmem>>, vector<1x1x24x8xbf16>
      %48 = vector.shape_cast %47 : vector<1x1x24x8xbf16> to vector<24x8xbf16>
      %c5 = arith.constant 5 : index
      %c0_46 = arith.constant 0 : index
      %c0_47 = arith.constant 0 : index
      %49 = vector.load %arg2[%c5, %c0_46, %c0_47] : memref<25x8x128xbf16, #tpu.memory_space<vmem>>, vector<1x8x128xbf16>
      %50 = vector.shape_cast %49 : vector<1x8x128xbf16> to vector<8x128xbf16>
      %cst_48 = arith.constant dense<0.000000e+00> : vector<24x128xf32>
      %51 = tpu.matmul %48, %50, %cst_48 {dimension_numbers = #tpu.dot_dimension_numbers<[1], [0], [0], [1], [0, 0, 1, 1], [], []>} : vector<24x8xbf16>, vector<8x128xbf16>, vector<24x128xf32> -> vector<24x128xf32>
      %52 = arith.addf %44, %51 : vector<24x128xf32>
      %c1_i32_49 = arith.constant 1 : i32
      %53 = arith.addi %arg5, %c1_i32_49 : i32
      %c0_50 = arith.constant 0 : index
      %54 = arith.index_cast %53 : i32 to index
      %c1_51 = arith.constant 1 : index
      %c0_52 = arith.constant 0 : index
      %55 = vector.load %arg1[%c0_50, %54, %c1_51, %c0_52] : memref<1x28x28x8xbf16, #tpu.memory_space<vmem>>, vector<1x1x24x8xbf16>
      %56 = vector.shape_cast %55 : vector<1x1x24x8xbf16> to vector<24x8xbf16>
      %c6 = arith.constant 6 : index
      %c0_53 = arith.constant 0 : index
      %c0_54 = arith.constant 0 : index
      %57 = vector.load %arg2[%c6, %c0_53, %c0_54] : memref<25x8x128xbf16, #tpu.memory_space<vmem>>, vector<1x8x128xbf16>
      %58 = vector.shape_cast %57 : vector<1x8x128xbf16> to vector<8x128xbf16>
      %cst_55 = arith.constant dense<0.000000e+00> : vector<24x128xf32>
      %59 = tpu.matmul %56, %58, %cst_55 {dimension_numbers = #tpu.dot_dimension_numbers<[1], [0], [0], [1], [0, 0, 1, 1], [], []>} : vector<24x8xbf16>, vector<8x128xbf16>, vector<24x128xf32> -> vector<24x128xf32>
      %60 = arith.addf %52, %59 : vector<24x128xf32>
      %c1_i32_56 = arith.constant 1 : i32
      %61 = arith.addi %arg5, %c1_i32_56 : i32
      %c0_57 = arith.constant 0 : index
      %62 = arith.index_cast %61 : i32 to index
      %c2_58 = arith.constant 2 : index
      %c0_59 = arith.constant 0 : index
      %63 = vector.load %arg1[%c0_57, %62, %c2_58, %c0_59] : memref<1x28x28x8xbf16, #tpu.memory_space<vmem>>, vector<1x1x24x8xbf16>
      %64 = vector.shape_cast %63 : vector<1x1x24x8xbf16> to vector<24x8xbf16>
      %c7 = arith.constant 7 : index
      %c0_60 = arith.constant 0 : index
      %c0_61 = arith.constant 0 : index
      %65 = vector.load %arg2[%c7, %c0_60, %c0_61] : memref<25x8x128xbf16, #tpu.memory_space<vmem>>, vector<1x8x128xbf16>
      %66 = vector.shape_cast %65 : vector<1x8x128xbf16> to vector<8x128xbf16>
      %cst_62 = arith.constant dense<0.000000e+00> : vector<24x128xf32>
      %67 = tpu.matmul %64, %66, %cst_62 {dimension_numbers = #tpu.dot_dimension_numbers<[1], [0], [0], [1], [0, 0, 1, 1], [], []>} : vector<24x8xbf16>, vector<8x128xbf16>, vector<24x128xf32> -> vector<24x128xf32>
      %68 = arith.addf %60, %67 : vector<24x128xf32>
      %c1_i32_63 = arith.constant 1 : i32
      %69 = arith.addi %arg5, %c1_i32_63 : i32
      %c0_64 = arith.constant 0 : index
      %70 = arith.index_cast %69 : i32 to index
      %c3_65 = arith.constant 3 : index
      %c0_66 = arith.constant 0 : index
      %71 = vector.load %arg1[%c0_64, %70, %c3_65, %c0_66] : memref<1x28x28x8xbf16, #tpu.memory_space<vmem>>, vector<1x1x24x8xbf16>
      %72 = vector.shape_cast %71 : vector<1x1x24x8xbf16> to vector<24x8xbf16>
      %c8 = arith.constant 8 : index
      %c0_67 = arith.constant 0 : index
      %c0_68 = arith.constant 0 : index
      %73 = vector.load %arg2[%c8, %c0_67, %c0_68] : memref<25x8x128xbf16, #tpu.memory_space<vmem>>, vector<1x8x128xbf16>
      %74 = vector.shape_cast %73 : vector<1x8x128xbf16> to vector<8x128xbf16>
      %cst_69 = arith.constant dense<0.000000e+00> : vector<24x128xf32>
      %75 = tpu.matmul %72, %74, %cst_69 {dimension_numbers = #tpu.dot_dimension_numbers<[1], [0], [0], [1], [0, 0, 1, 1], [], []>} : vector<24x8xbf16>, vector<8x128xbf16>, vector<24x128xf32> -> vector<24x128xf32>
      %76 = arith.addf %68, %75 : vector<24x128xf32>
      %c1_i32_70 = arith.constant 1 : i32
      %77 = arith.addi %arg5, %c1_i32_70 : i32
      %c0_71 = arith.constant 0 : index
      %78 = arith.index_cast %77 : i32 to index
      %c4_72 = arith.constant 4 : index
      %c0_73 = arith.constant 0 : index
      %79 = vector.load %arg1[%c0_71, %78, %c4_72, %c0_73] : memref<1x28x28x8xbf16, #tpu.memory_space<vmem>>, vector<1x1x24x8xbf16>
      %80 = vector.shape_cast %79 : vector<1x1x24x8xbf16> to vector<24x8xbf16>
      %c9 = arith.constant 9 : index
      %c0_74 = arith.constant 0 : index
      %c0_75 = arith.constant 0 : index
      %81 = vector.load %arg2[%c9, %c0_74, %c0_75] : memref<25x8x128xbf16, #tpu.memory_space<vmem>>, vector<1x8x128xbf16>
      %82 = vector.shape_cast %81 : vector<1x8x128xbf16> to vector<8x128xbf16>
      %cst_76 = arith.constant dense<0.000000e+00> : vector<24x128xf32>
      %83 = tpu.matmul %80, %82, %cst_76 {dimension_numbers = #tpu.dot_dimension_numbers<[1], [0], [0], [1], [0, 0, 1, 1], [], []>} : vector<24x8xbf16>, vector<8x128xbf16>, vector<24x128xf32> -> vector<24x128xf32>
      %84 = arith.addf %76, %83 : vector<24x128xf32>
      %c2_i32 = arith.constant 2 : i32
      %85 = arith.addi %arg5, %c2_i32 : i32
      %c0_77 = arith.constant 0 : index
      %86 = arith.index_cast %85 : i32 to index
      %c0_78 = arith.constant 0 : index
      %c0_79 = arith.constant 0 : index
      %87 = vector.load %arg1[%c0_77, %86, %c0_78, %c0_79] : memref<1x28x28x8xbf16, #tpu.memory_space<vmem>>, vector<1x1x24x8xbf16>
      %88 = vector.shape_cast %87 : vector<1x1x24x8xbf16> to vector<24x8xbf16>
      %c10 = arith.constant 10 : index
      %c0_80 = arith.constant 0 : index
      %c0_81 = arith.constant 0 : index
      %89 = vector.load %arg2[%c10, %c0_80, %c0_81] : memref<25x8x128xbf16, #tpu.memory_space<vmem>>, vector<1x8x128xbf16>
      %90 = vector.shape_cast %89 : vector<1x8x128xbf16> to vector<8x128xbf16>
      %cst_82 = arith.constant dense<0.000000e+00> : vector<24x128xf32>
      %91 = tpu.matmul %88, %90, %cst_82 {dimension_numbers = #tpu.dot_dimension_numbers<[1], [0], [0], [1], [0, 0, 1, 1], [], []>} : vector<24x8xbf16>, vector<8x128xbf16>, vector<24x128xf32> -> vector<24x128xf32>
      %92 = arith.addf %84, %91 : vector<24x128xf32>
      %c2_i32_83 = arith.constant 2 : i32
      %93 = arith.addi %arg5, %c2_i32_83 : i32
      %c0_84 = arith.constant 0 : index
      %94 = arith.index_cast %93 : i32 to index
      %c1_85 = arith.constant 1 : index
      %c0_86 = arith.constant 0 : index
      %95 = vector.load %arg1[%c0_84, %94, %c1_85, %c0_86] : memref<1x28x28x8xbf16, #tpu.memory_space<vmem>>, vector<1x1x24x8xbf16>
      %96 = vector.shape_cast %95 : vector<1x1x24x8xbf16> to vector<24x8xbf16>
      %c11 = arith.constant 11 : index
      %c0_87 = arith.constant 0 : index
      %c0_88 = arith.constant 0 : index
      %97 = vector.load %arg2[%c11, %c0_87, %c0_88] : memref<25x8x128xbf16, #tpu.memory_space<vmem>>, vector<1x8x128xbf16>
      %98 = vector.shape_cast %97 : vector<1x8x128xbf16> to vector<8x128xbf16>
      %cst_89 = arith.constant dense<0.000000e+00> : vector<24x128xf32>
      %99 = tpu.matmul %96, %98, %cst_89 {dimension_numbers = #tpu.dot_dimension_numbers<[1], [0], [0], [1], [0, 0, 1, 1], [], []>} : vector<24x8xbf16>, vector<8x128xbf16>, vector<24x128xf32> -> vector<24x128xf32>
      %100 = arith.addf %92, %99 : vector<24x128xf32>
      %c2_i32_90 = arith.constant 2 : i32
      %101 = arith.addi %arg5, %c2_i32_90 : i32
      %c0_91 = arith.constant 0 : index
      %102 = arith.index_cast %101 : i32 to index
      %c2_92 = arith.constant 2 : index
      %c0_93 = arith.constant 0 : index
      %103 = vector.load %arg1[%c0_91, %102, %c2_92, %c0_93] : memref<1x28x28x8xbf16, #tpu.memory_space<vmem>>, vector<1x1x24x8xbf16>
      %104 = vector.shape_cast %103 : vector<1x1x24x8xbf16> to vector<24x8xbf16>
      %c12 = arith.constant 12 : index
      %c0_94 = arith.constant 0 : index
      %c0_95 = arith.constant 0 : index
      %105 = vector.load %arg2[%c12, %c0_94, %c0_95] : memref<25x8x128xbf16, #tpu.memory_space<vmem>>, vector<1x8x128xbf16>
      %106 = vector.shape_cast %105 : vector<1x8x128xbf16> to vector<8x128xbf16>
      %cst_96 = arith.constant dense<0.000000e+00> : vector<24x128xf32>
      %107 = tpu.matmul %104, %106, %cst_96 {dimension_numbers = #tpu.dot_dimension_numbers<[1], [0], [0], [1], [0, 0, 1, 1], [], []>} : vector<24x8xbf16>, vector<8x128xbf16>, vector<24x128xf32> -> vector<24x128xf32>
      %108 = arith.addf %100, %107 : vector<24x128xf32>
      %c2_i32_97 = arith.constant 2 : i32
      %109 = arith.addi %arg5, %c2_i32_97 : i32
      %c0_98 = arith.constant 0 : index
      %110 = arith.index_cast %109 : i32 to index
      %c3_99 = arith.constant 3 : index
      %c0_100 = arith.constant 0 : index
      %111 = vector.load %arg1[%c0_98, %110, %c3_99, %c0_100] : memref<1x28x28x8xbf16, #tpu.memory_space<vmem>>, vector<1x1x24x8xbf16>
      %112 = vector.shape_cast %111 : vector<1x1x24x8xbf16> to vector<24x8xbf16>
      %c13 = arith.constant 13 : index
      %c0_101 = arith.constant 0 : index
      %c0_102 = arith.constant 0 : index
      %113 = vector.load %arg2[%c13, %c0_101, %c0_102] : memref<25x8x128xbf16, #tpu.memory_space<vmem>>, vector<1x8x128xbf16>
      %114 = vector.shape_cast %113 : vector<1x8x128xbf16> to vector<8x128xbf16>
      %cst_103 = arith.constant dense<0.000000e+00> : vector<24x128xf32>
      %115 = tpu.matmul %112, %114, %cst_103 {dimension_numbers = #tpu.dot_dimension_numbers<[1], [0], [0], [1], [0, 0, 1, 1], [], []>} : vector<24x8xbf16>, vector<8x128xbf16>, vector<24x128xf32> -> vector<24x128xf32>
      %116 = arith.addf %108, %115 : vector<24x128xf32>
      %c2_i32_104 = arith.constant 2 : i32
      %117 = arith.addi %arg5, %c2_i32_104 : i32
      %c0_105 = arith.constant 0 : index
      %118 = arith.index_cast %117 : i32 to index
      %c4_106 = arith.constant 4 : index
      %c0_107 = arith.constant 0 : index
      %119 = vector.load %arg1[%c0_105, %118, %c4_106, %c0_107] : memref<1x28x28x8xbf16, #tpu.memory_space<vmem>>, vector<1x1x24x8xbf16>
      %120 = vector.shape_cast %119 : vector<1x1x24x8xbf16> to vector<24x8xbf16>
      %c14 = arith.constant 14 : index
      %c0_108 = arith.constant 0 : index
      %c0_109 = arith.constant 0 : index
      %121 = vector.load %arg2[%c14, %c0_108, %c0_109] : memref<25x8x128xbf16, #tpu.memory_space<vmem>>, vector<1x8x128xbf16>
      %122 = vector.shape_cast %121 : vector<1x8x128xbf16> to vector<8x128xbf16>
      %cst_110 = arith.constant dense<0.000000e+00> : vector<24x128xf32>
      %123 = tpu.matmul %120, %122, %cst_110 {dimension_numbers = #tpu.dot_dimension_numbers<[1], [0], [0], [1], [0, 0, 1, 1], [], []>} : vector<24x8xbf16>, vector<8x128xbf16>, vector<24x128xf32> -> vector<24x128xf32>
      %124 = arith.addf %116, %123 : vector<24x128xf32>
      %c3_i32 = arith.constant 3 : i32
      %125 = arith.addi %arg5, %c3_i32 : i32
      %c0_111 = arith.constant 0 : index
      %126 = arith.index_cast %125 : i32 to index
      %c0_112 = arith.constant 0 : index
      %c0_113 = arith.constant 0 : index
      %127 = vector.load %arg1[%c0_111, %126, %c0_112, %c0_113] : memref<1x28x28x8xbf16, #tpu.memory_space<vmem>>, vector<1x1x24x8xbf16>
      %128 = vector.shape_cast %127 : vector<1x1x24x8xbf16> to vector<24x8xbf16>
      %c15 = arith.constant 15 : index
      %c0_114 = arith.constant 0 : index
      %c0_115 = arith.constant 0 : index
      %129 = vector.load %arg2[%c15, %c0_114, %c0_115] : memref<25x8x128xbf16, #tpu.memory_space<vmem>>, vector<1x8x128xbf16>
      %130 = vector.shape_cast %129 : vector<1x8x128xbf16> to vector<8x128xbf16>
      %cst_116 = arith.constant dense<0.000000e+00> : vector<24x128xf32>
      %131 = tpu.matmul %128, %130, %cst_116 {dimension_numbers = #tpu.dot_dimension_numbers<[1], [0], [0], [1], [0, 0, 1, 1], [], []>} : vector<24x8xbf16>, vector<8x128xbf16>, vector<24x128xf32> -> vector<24x128xf32>
      %132 = arith.addf %124, %131 : vector<24x128xf32>
      %c3_i32_117 = arith.constant 3 : i32
      %133 = arith.addi %arg5, %c3_i32_117 : i32
      %c0_118 = arith.constant 0 : index
      %134 = arith.index_cast %133 : i32 to index
      %c1_119 = arith.constant 1 : index
      %c0_120 = arith.constant 0 : index
      %135 = vector.load %arg1[%c0_118, %134, %c1_119, %c0_120] : memref<1x28x28x8xbf16, #tpu.memory_space<vmem>>, vector<1x1x24x8xbf16>
      %136 = vector.shape_cast %135 : vector<1x1x24x8xbf16> to vector<24x8xbf16>
      %c16 = arith.constant 16 : index
      %c0_121 = arith.constant 0 : index
      %c0_122 = arith.constant 0 : index
      %137 = vector.load %arg2[%c16, %c0_121, %c0_122] : memref<25x8x128xbf16, #tpu.memory_space<vmem>>, vector<1x8x128xbf16>
      %138 = vector.shape_cast %137 : vector<1x8x128xbf16> to vector<8x128xbf16>
      %cst_123 = arith.constant dense<0.000000e+00> : vector<24x128xf32>
      %139 = tpu.matmul %136, %138, %cst_123 {dimension_numbers = #tpu.dot_dimension_numbers<[1], [0], [0], [1], [0, 0, 1, 1], [], []>} : vector<24x8xbf16>, vector<8x128xbf16>, vector<24x128xf32> -> vector<24x128xf32>
      %140 = arith.addf %132, %139 : vector<24x128xf32>
      %c3_i32_124 = arith.constant 3 : i32
      %141 = arith.addi %arg5, %c3_i32_124 : i32
      %c0_125 = arith.constant 0 : index
      %142 = arith.index_cast %141 : i32 to index
      %c2_126 = arith.constant 2 : index
      %c0_127 = arith.constant 0 : index
      %143 = vector.load %arg1[%c0_125, %142, %c2_126, %c0_127] : memref<1x28x28x8xbf16, #tpu.memory_space<vmem>>, vector<1x1x24x8xbf16>
      %144 = vector.shape_cast %143 : vector<1x1x24x8xbf16> to vector<24x8xbf16>
      %c17 = arith.constant 17 : index
      %c0_128 = arith.constant 0 : index
      %c0_129 = arith.constant 0 : index
      %145 = vector.load %arg2[%c17, %c0_128, %c0_129] : memref<25x8x128xbf16, #tpu.memory_space<vmem>>, vector<1x8x128xbf16>
      %146 = vector.shape_cast %145 : vector<1x8x128xbf16> to vector<8x128xbf16>
      %cst_130 = arith.constant dense<0.000000e+00> : vector<24x128xf32>
      %147 = tpu.matmul %144, %146, %cst_130 {dimension_numbers = #tpu.dot_dimension_numbers<[1], [0], [0], [1], [0, 0, 1, 1], [], []>} : vector<24x8xbf16>, vector<8x128xbf16>, vector<24x128xf32> -> vector<24x128xf32>
      %148 = arith.addf %140, %147 : vector<24x128xf32>
      %c3_i32_131 = arith.constant 3 : i32
      %149 = arith.addi %arg5, %c3_i32_131 : i32
      %c0_132 = arith.constant 0 : index
      %150 = arith.index_cast %149 : i32 to index
      %c3_133 = arith.constant 3 : index
      %c0_134 = arith.constant 0 : index
      %151 = vector.load %arg1[%c0_132, %150, %c3_133, %c0_134] : memref<1x28x28x8xbf16, #tpu.memory_space<vmem>>, vector<1x1x24x8xbf16>
      %152 = vector.shape_cast %151 : vector<1x1x24x8xbf16> to vector<24x8xbf16>
      %c18 = arith.constant 18 : index
      %c0_135 = arith.constant 0 : index
      %c0_136 = arith.constant 0 : index
      %153 = vector.load %arg2[%c18, %c0_135, %c0_136] : memref<25x8x128xbf16, #tpu.memory_space<vmem>>, vector<1x8x128xbf16>
      %154 = vector.shape_cast %153 : vector<1x8x128xbf16> to vector<8x128xbf16>
      %cst_137 = arith.constant dense<0.000000e+00> : vector<24x128xf32>
      %155 = tpu.matmul %152, %154, %cst_137 {dimension_numbers = #tpu.dot_dimension_numbers<[1], [0], [0], [1], [0, 0, 1, 1], [], []>} : vector<24x8xbf16>, vector<8x128xbf16>, vector<24x128xf32> -> vector<24x128xf32>
      %156 = arith.addf %148, %155 : vector<24x128xf32>
      %c3_i32_138 = arith.constant 3 : i32
      %157 = arith.addi %arg5, %c3_i32_138 : i32
      %c0_139 = arith.constant 0 : index
      %158 = arith.index_cast %157 : i32 to index
      %c4_140 = arith.constant 4 : index
      %c0_141 = arith.constant 0 : index
      %159 = vector.load %arg1[%c0_139, %158, %c4_140, %c0_141] : memref<1x28x28x8xbf16, #tpu.memory_space<vmem>>, vector<1x1x24x8xbf16>
      %160 = vector.shape_cast %159 : vector<1x1x24x8xbf16> to vector<24x8xbf16>
      %c19 = arith.constant 19 : index
      %c0_142 = arith.constant 0 : index
      %c0_143 = arith.constant 0 : index
      %161 = vector.load %arg2[%c19, %c0_142, %c0_143] : memref<25x8x128xbf16, #tpu.memory_space<vmem>>, vector<1x8x128xbf16>
      %162 = vector.shape_cast %161 : vector<1x8x128xbf16> to vector<8x128xbf16>
      %cst_144 = arith.constant dense<0.000000e+00> : vector<24x128xf32>
      %163 = tpu.matmul %160, %162, %cst_144 {dimension_numbers = #tpu.dot_dimension_numbers<[1], [0], [0], [1], [0, 0, 1, 1], [], []>} : vector<24x8xbf16>, vector<8x128xbf16>, vector<24x128xf32> -> vector<24x128xf32>
      %164 = arith.addf %156, %163 : vector<24x128xf32>
      %c4_i32 = arith.constant 4 : i32
      %165 = arith.addi %arg5, %c4_i32 : i32
      %c0_145 = arith.constant 0 : index
      %166 = arith.index_cast %165 : i32 to index
      %c0_146 = arith.constant 0 : index
      %c0_147 = arith.constant 0 : index
      %167 = vector.load %arg1[%c0_145, %166, %c0_146, %c0_147] : memref<1x28x28x8xbf16, #tpu.memory_space<vmem>>, vector<1x1x24x8xbf16>
      %168 = vector.shape_cast %167 : vector<1x1x24x8xbf16> to vector<24x8xbf16>
      %c20 = arith.constant 20 : index
      %c0_148 = arith.constant 0 : index
      %c0_149 = arith.constant 0 : index
      %169 = vector.load %arg2[%c20, %c0_148, %c0_149] : memref<25x8x128xbf16, #tpu.memory_space<vmem>>, vector<1x8x128xbf16>
      %170 = vector.shape_cast %169 : vector<1x8x128xbf16> to vector<8x128xbf16>
      %cst_150 = arith.constant dense<0.000000e+00> : vector<24x128xf32>
      %171 = tpu.matmul %168, %170, %cst_150 {dimension_numbers = #tpu.dot_dimension_numbers<[1], [0], [0], [1], [0, 0, 1, 1], [], []>} : vector<24x8xbf16>, vector<8x128xbf16>, vector<24x128xf32> -> vector<24x128xf32>
      %172 = arith.addf %164, %171 : vector<24x128xf32>
      %c4_i32_151 = arith.constant 4 : i32
      %173 = arith.addi %arg5, %c4_i32_151 : i32
      %c0_152 = arith.constant 0 : index
      %174 = arith.index_cast %173 : i32 to index
      %c1_153 = arith.constant 1 : index
      %c0_154 = arith.constant 0 : index
      %175 = vector.load %arg1[%c0_152, %174, %c1_153, %c0_154] : memref<1x28x28x8xbf16, #tpu.memory_space<vmem>>, vector<1x1x24x8xbf16>
      %176 = vector.shape_cast %175 : vector<1x1x24x8xbf16> to vector<24x8xbf16>
      %c21 = arith.constant 21 : index
      %c0_155 = arith.constant 0 : index
      %c0_156 = arith.constant 0 : index
      %177 = vector.load %arg2[%c21, %c0_155, %c0_156] : memref<25x8x128xbf16, #tpu.memory_space<vmem>>, vector<1x8x128xbf16>
      %178 = vector.shape_cast %177 : vector<1x8x128xbf16> to vector<8x128xbf16>
      %cst_157 = arith.constant dense<0.000000e+00> : vector<24x128xf32>
      %179 = tpu.matmul %176, %178, %cst_157 {dimension_numbers = #tpu.dot_dimension_numbers<[1], [0], [0], [1], [0, 0, 1, 1], [], []>} : vector<24x8xbf16>, vector<8x128xbf16>, vector<24x128xf32> -> vector<24x128xf32>
      %180 = arith.addf %172, %179 : vector<24x128xf32>
      %c4_i32_158 = arith.constant 4 : i32
      %181 = arith.addi %arg5, %c4_i32_158 : i32
      %c0_159 = arith.constant 0 : index
      %182 = arith.index_cast %181 : i32 to index
      %c2_160 = arith.constant 2 : index
      %c0_161 = arith.constant 0 : index
      %183 = vector.load %arg1[%c0_159, %182, %c2_160, %c0_161] : memref<1x28x28x8xbf16, #tpu.memory_space<vmem>>, vector<1x1x24x8xbf16>
      %184 = vector.shape_cast %183 : vector<1x1x24x8xbf16> to vector<24x8xbf16>
      %c22 = arith.constant 22 : index
      %c0_162 = arith.constant 0 : index
      %c0_163 = arith.constant 0 : index
      %185 = vector.load %arg2[%c22, %c0_162, %c0_163] : memref<25x8x128xbf16, #tpu.memory_space<vmem>>, vector<1x8x128xbf16>
      %186 = vector.shape_cast %185 : vector<1x8x128xbf16> to vector<8x128xbf16>
      %cst_164 = arith.constant dense<0.000000e+00> : vector<24x128xf32>
      %187 = tpu.matmul %184, %186, %cst_164 {dimension_numbers = #tpu.dot_dimension_numbers<[1], [0], [0], [1], [0, 0, 1, 1], [], []>} : vector<24x8xbf16>, vector<8x128xbf16>, vector<24x128xf32> -> vector<24x128xf32>
      %188 = arith.addf %180, %187 : vector<24x128xf32>
      %c4_i32_165 = arith.constant 4 : i32
      %189 = arith.addi %arg5, %c4_i32_165 : i32
      %c0_166 = arith.constant 0 : index
      %190 = arith.index_cast %189 : i32 to index
      %c3_167 = arith.constant 3 : index
      %c0_168 = arith.constant 0 : index
      %191 = vector.load %arg1[%c0_166, %190, %c3_167, %c0_168] : memref<1x28x28x8xbf16, #tpu.memory_space<vmem>>, vector<1x1x24x8xbf16>
      %192 = vector.shape_cast %191 : vector<1x1x24x8xbf16> to vector<24x8xbf16>
      %c23 = arith.constant 23 : index
      %c0_169 = arith.constant 0 : index
      %c0_170 = arith.constant 0 : index
      %193 = vector.load %arg2[%c23, %c0_169, %c0_170] : memref<25x8x128xbf16, #tpu.memory_space<vmem>>, vector<1x8x128xbf16>
      %194 = vector.shape_cast %193 : vector<1x8x128xbf16> to vector<8x128xbf16>
      %cst_171 = arith.constant dense<0.000000e+00> : vector<24x128xf32>
      %195 = tpu.matmul %192, %194, %cst_171 {dimension_numbers = #tpu.dot_dimension_numbers<[1], [0], [0], [1], [0, 0, 1, 1], [], []>} : vector<24x8xbf16>, vector<8x128xbf16>, vector<24x128xf32> -> vector<24x128xf32>
      %196 = arith.addf %188, %195 : vector<24x128xf32>
      %c4_i32_172 = arith.constant 4 : i32
      %197 = arith.addi %arg5, %c4_i32_172 : i32
      %c0_173 = arith.constant 0 : index
      %198 = arith.index_cast %197 : i32 to index
      %c4_174 = arith.constant 4 : index
      %c0_175 = arith.constant 0 : index
      %199 = vector.load %arg1[%c0_173, %198, %c4_174, %c0_175] : memref<1x28x28x8xbf16, #tpu.memory_space<vmem>>, vector<1x1x24x8xbf16>
      %200 = vector.shape_cast %199 : vector<1x1x24x8xbf16> to vector<24x8xbf16>
      %c24 = arith.constant 24 : index
      %c0_176 = arith.constant 0 : index
      %c0_177 = arith.constant 0 : index
      %201 = vector.load %arg2[%c24, %c0_176, %c0_177] : memref<25x8x128xbf16, #tpu.memory_space<vmem>>, vector<1x8x128xbf16>
      %202 = vector.shape_cast %201 : vector<1x8x128xbf16> to vector<8x128xbf16>
      %cst_178 = arith.constant dense<0.000000e+00> : vector<24x128xf32>
      %203 = tpu.matmul %200, %202, %cst_178 {dimension_numbers = #tpu.dot_dimension_numbers<[1], [0], [0], [1], [0, 0, 1, 1], [], []>} : vector<24x8xbf16>, vector<8x128xbf16>, vector<24x128xf32> -> vector<24x128xf32>
      %204 = arith.addf %196, %203 : vector<24x128xf32>
      %205 = vector.broadcast %0 : vector<1x128xf32> to vector<24x128xf32>
      %206 = arith.addf %204, %205 : vector<24x128xf32>
      %cst_179 = arith.constant 0.000000e+00 : f32
      %207 = vector.broadcast %cst_179 : f32 to vector<24x128xf32>
      %208 = arith.maximumf %206, %207 : vector<24x128xf32>
      %209 = vector.broadcast %1 : vector<1x128xf32> to vector<24x128xf32>
      %210 = arith.mulf %208, %209 : vector<24x128xf32>
      %211 = vector.broadcast %2 : vector<1x128xf32> to vector<24x128xf32>
      %212 = arith.addf %210, %211 : vector<24x128xf32>
      %213 = arith.truncf %212 : vector<24x128xf32> to vector<24x128xbf16>
      %c0_180 = arith.constant 0 : index
      %214 = arith.index_cast %arg5 : i32 to index
      %c0_181 = arith.constant 0 : index
      %c0_182 = arith.constant 0 : index
      %215 = vector.load %arg4[%c0_180, %214, %c0_181, %c0_182] : memref<1x24x24x128xbf16, #tpu.memory_space<vmem>>, vector<1x1x24x128xbf16>
      %216 = vector.shape_cast %215 : vector<1x1x24x128xbf16> to vector<24x128xbf16>
      %217 = vector.shape_cast %213 : vector<24x128xbf16> to vector<1x1x24x128xbf16>
      tpu.vector_store %arg4[%c0_180, %214, %c0_181, %c0_182], %217 {strides = array<i32>} : memref<1x24x24x128xbf16, #tpu.memory_space<vmem>>, vector<1x1x24x128xbf16>,
    }
    %c24_i32_3 = arith.constant 24 : i32
    return
  }
  func.func @transform_0(%arg0: i32) -> (i32, i32, i32, i32) {
    %c0_i32 = arith.constant 0 : i32
    %c0_i32_0 = arith.constant 0 : i32
    %c0_i32_1 = arith.constant 0 : i32
    %c0_i32_2 = arith.constant 0 : i32
    return %arg0, %c0_i32, %c0_i32_0, %c0_i32_1 : i32, i32, i32, i32
  }
  func.func @transform_1(%arg0: i32) -> (i32, i32, i32) {
    %c0_i32 = arith.constant 0 : i32
    %c0_i32_0 = arith.constant 0 : i32
    %c0_i32_1 = arith.constant 0 : i32
    %c0_i32_2 = arith.constant 0 : i32
    return %c0_i32, %c0_i32_0, %c0_i32_1 : i32, i32, i32
  }
  func.func @transform_2(%arg0: i32) -> (i32, i32) {
    %c0_i32 = arith.constant 0 : i32
    %c0_i32_0 = arith.constant 0 : i32
    %c0_i32_1 = arith.constant 0 : i32
    return %c0_i32, %c0_i32_0 : i32, i32
  }
  func.func @transform_3(%arg0: i32) -> (i32, i32, i32, i32) {
    %c0_i32 = arith.constant 0 : i32
    %c0_i32_0 = arith.constant 0 : i32
    %c0_i32_1 = arith.constant 0 : i32
    %c0_i32_2 = arith.constant 0 : i32
    return %arg0, %c0_i32, %c0_i32_0, %c0_i32_1 : i32, i32, i32, i32
  }
}

module attributes {stable_mosaic.version = 11 : i64} {
  func.func @_conv_kernel(%arg0: i32, %arg1: memref<1x24x24x128xbf16, #tpu.memory_space<vmem>>, %arg2: memref<25x128x128xbf16, #tpu.memory_space<vmem>>, %arg3: memref<3x128xf32, #tpu.memory_space<vmem>>, %arg4: memref<1x20x20x128xbf16, #tpu.memory_space<vmem>>) attributes {dimension_semantics = [#tpu.dimension_semantics<parallel>], iteration_bounds = array<i64: 2>, scalar_prefetch = 0 : i64, scratch_operands = 0 : i64, tpu.core_type = #tpu.core_type<tc>, window_params = [{transform_indices = @transform_0, window_bounds = array<i64: 1, 24, 24, 128>}, {pipeline_mode = #tpu.pipeline_mode<synchronous>, transform_indices = @transform_1, window_bounds = array<i64: 25, 128, 128>}, {pipeline_mode = #tpu.pipeline_mode<synchronous>, transform_indices = @transform_2, window_bounds = array<i64: 3, 128>}, {transform_indices = @transform_3, window_bounds = array<i64: 1, 20, 20, 128>}]} {
    %c0 = arith.constant 0 : index
    %c0_0 = arith.constant 0 : index
    %0 = vector.load %arg3[%c0, %c0_0] : memref<3x128xf32, #tpu.memory_space<vmem>>, vector<1x128xf32>
    %c1 = arith.constant 1 : index
    %c0_1 = arith.constant 0 : index
    %1 = vector.load %arg3[%c1, %c0_1] : memref<3x128xf32, #tpu.memory_space<vmem>>, vector<1x128xf32>
    %c2 = arith.constant 2 : index
    %c0_2 = arith.constant 0 : index
    %2 = vector.load %arg3[%c2, %c0_2] : memref<3x128xf32, #tpu.memory_space<vmem>>, vector<1x128xf32>
    %c0_i32 = arith.constant 0 : i32
    %c20_i32 = arith.constant 20 : i32
    %3 = arith.addi %c0_i32, %c20_i32 : i32
    %c1_i32 = arith.constant 1 : i32
    scf.for %arg5 = %c0_i32 to %3 step %c1_i32  : i32 {
      %cst = arith.constant 0.000000e+00 : f32
      %4 = vector.broadcast %cst : f32 to vector<20x128xf32>
      %c0_i32_4 = arith.constant 0 : i32
      %5 = arith.addi %arg5, %c0_i32_4 : i32
      %c0_5 = arith.constant 0 : index
      %6 = arith.index_cast %5 : i32 to index
      %c0_6 = arith.constant 0 : index
      %c0_7 = arith.constant 0 : index
      %7 = vector.load %arg1[%c0_5, %6, %c0_6, %c0_7] : memref<1x24x24x128xbf16, #tpu.memory_space<vmem>>, vector<1x1x20x128xbf16>
      %8 = vector.shape_cast %7 : vector<1x1x20x128xbf16> to vector<20x128xbf16>
      %c0_8 = arith.constant 0 : index
      %c0_9 = arith.constant 0 : index
      %c0_10 = arith.constant 0 : index
      %9 = vector.load %arg2[%c0_8, %c0_9, %c0_10] : memref<25x128x128xbf16, #tpu.memory_space<vmem>>, vector<1x128x128xbf16>
      %10 = vector.shape_cast %9 : vector<1x128x128xbf16> to vector<128x128xbf16>
      %cst_11 = arith.constant dense<0.000000e+00> : vector<20x128xf32>
      %11 = tpu.matmul %8, %10, %cst_11 {dimension_numbers = #tpu.dot_dimension_numbers<[1], [0], [0], [1], [0, 0, 1, 1], [], []>} : vector<20x128xbf16>, vector<128x128xbf16>, vector<20x128xf32> -> vector<20x128xf32>
      %12 = arith.addf %4, %11 : vector<20x128xf32>
      %c0_i32_12 = arith.constant 0 : i32
      %13 = arith.addi %arg5, %c0_i32_12 : i32
      %c0_13 = arith.constant 0 : index
      %14 = arith.index_cast %13 : i32 to index
      %c1_14 = arith.constant 1 : index
      %c0_15 = arith.constant 0 : index
      %15 = vector.load %arg1[%c0_13, %14, %c1_14, %c0_15] : memref<1x24x24x128xbf16, #tpu.memory_space<vmem>>, vector<1x1x20x128xbf16>
      %16 = vector.shape_cast %15 : vector<1x1x20x128xbf16> to vector<20x128xbf16>
      %c1_16 = arith.constant 1 : index
      %c0_17 = arith.constant 0 : index
      %c0_18 = arith.constant 0 : index
      %17 = vector.load %arg2[%c1_16, %c0_17, %c0_18] : memref<25x128x128xbf16, #tpu.memory_space<vmem>>, vector<1x128x128xbf16>
      %18 = vector.shape_cast %17 : vector<1x128x128xbf16> to vector<128x128xbf16>
      %cst_19 = arith.constant dense<0.000000e+00> : vector<20x128xf32>
      %19 = tpu.matmul %16, %18, %cst_19 {dimension_numbers = #tpu.dot_dimension_numbers<[1], [0], [0], [1], [0, 0, 1, 1], [], []>} : vector<20x128xbf16>, vector<128x128xbf16>, vector<20x128xf32> -> vector<20x128xf32>
      %20 = arith.addf %12, %19 : vector<20x128xf32>
      %c0_i32_20 = arith.constant 0 : i32
      %21 = arith.addi %arg5, %c0_i32_20 : i32
      %c0_21 = arith.constant 0 : index
      %22 = arith.index_cast %21 : i32 to index
      %c2_22 = arith.constant 2 : index
      %c0_23 = arith.constant 0 : index
      %23 = vector.load %arg1[%c0_21, %22, %c2_22, %c0_23] : memref<1x24x24x128xbf16, #tpu.memory_space<vmem>>, vector<1x1x20x128xbf16>
      %24 = vector.shape_cast %23 : vector<1x1x20x128xbf16> to vector<20x128xbf16>
      %c2_24 = arith.constant 2 : index
      %c0_25 = arith.constant 0 : index
      %c0_26 = arith.constant 0 : index
      %25 = vector.load %arg2[%c2_24, %c0_25, %c0_26] : memref<25x128x128xbf16, #tpu.memory_space<vmem>>, vector<1x128x128xbf16>
      %26 = vector.shape_cast %25 : vector<1x128x128xbf16> to vector<128x128xbf16>
      %cst_27 = arith.constant dense<0.000000e+00> : vector<20x128xf32>
      %27 = tpu.matmul %24, %26, %cst_27 {dimension_numbers = #tpu.dot_dimension_numbers<[1], [0], [0], [1], [0, 0, 1, 1], [], []>} : vector<20x128xbf16>, vector<128x128xbf16>, vector<20x128xf32> -> vector<20x128xf32>
      %28 = arith.addf %20, %27 : vector<20x128xf32>
      %c0_i32_28 = arith.constant 0 : i32
      %29 = arith.addi %arg5, %c0_i32_28 : i32
      %c0_29 = arith.constant 0 : index
      %30 = arith.index_cast %29 : i32 to index
      %c3 = arith.constant 3 : index
      %c0_30 = arith.constant 0 : index
      %31 = vector.load %arg1[%c0_29, %30, %c3, %c0_30] : memref<1x24x24x128xbf16, #tpu.memory_space<vmem>>, vector<1x1x20x128xbf16>
      %32 = vector.shape_cast %31 : vector<1x1x20x128xbf16> to vector<20x128xbf16>
      %c3_31 = arith.constant 3 : index
      %c0_32 = arith.constant 0 : index
      %c0_33 = arith.constant 0 : index
      %33 = vector.load %arg2[%c3_31, %c0_32, %c0_33] : memref<25x128x128xbf16, #tpu.memory_space<vmem>>, vector<1x128x128xbf16>
      %34 = vector.shape_cast %33 : vector<1x128x128xbf16> to vector<128x128xbf16>
      %cst_34 = arith.constant dense<0.000000e+00> : vector<20x128xf32>
      %35 = tpu.matmul %32, %34, %cst_34 {dimension_numbers = #tpu.dot_dimension_numbers<[1], [0], [0], [1], [0, 0, 1, 1], [], []>} : vector<20x128xbf16>, vector<128x128xbf16>, vector<20x128xf32> -> vector<20x128xf32>
      %36 = arith.addf %28, %35 : vector<20x128xf32>
      %c0_i32_35 = arith.constant 0 : i32
      %37 = arith.addi %arg5, %c0_i32_35 : i32
      %c0_36 = arith.constant 0 : index
      %38 = arith.index_cast %37 : i32 to index
      %c4 = arith.constant 4 : index
      %c0_37 = arith.constant 0 : index
      %39 = vector.load %arg1[%c0_36, %38, %c4, %c0_37] : memref<1x24x24x128xbf16, #tpu.memory_space<vmem>>, vector<1x1x20x128xbf16>
      %40 = vector.shape_cast %39 : vector<1x1x20x128xbf16> to vector<20x128xbf16>
      %c4_38 = arith.constant 4 : index
      %c0_39 = arith.constant 0 : index
      %c0_40 = arith.constant 0 : index
      %41 = vector.load %arg2[%c4_38, %c0_39, %c0_40] : memref<25x128x128xbf16, #tpu.memory_space<vmem>>, vector<1x128x128xbf16>
      %42 = vector.shape_cast %41 : vector<1x128x128xbf16> to vector<128x128xbf16>
      %cst_41 = arith.constant dense<0.000000e+00> : vector<20x128xf32>
      %43 = tpu.matmul %40, %42, %cst_41 {dimension_numbers = #tpu.dot_dimension_numbers<[1], [0], [0], [1], [0, 0, 1, 1], [], []>} : vector<20x128xbf16>, vector<128x128xbf16>, vector<20x128xf32> -> vector<20x128xf32>
      %44 = arith.addf %36, %43 : vector<20x128xf32>
      %c1_i32_42 = arith.constant 1 : i32
      %45 = arith.addi %arg5, %c1_i32_42 : i32
      %c0_43 = arith.constant 0 : index
      %46 = arith.index_cast %45 : i32 to index
      %c0_44 = arith.constant 0 : index
      %c0_45 = arith.constant 0 : index
      %47 = vector.load %arg1[%c0_43, %46, %c0_44, %c0_45] : memref<1x24x24x128xbf16, #tpu.memory_space<vmem>>, vector<1x1x20x128xbf16>
      %48 = vector.shape_cast %47 : vector<1x1x20x128xbf16> to vector<20x128xbf16>
      %c5 = arith.constant 5 : index
      %c0_46 = arith.constant 0 : index
      %c0_47 = arith.constant 0 : index
      %49 = vector.load %arg2[%c5, %c0_46, %c0_47] : memref<25x128x128xbf16, #tpu.memory_space<vmem>>, vector<1x128x128xbf16>
      %50 = vector.shape_cast %49 : vector<1x128x128xbf16> to vector<128x128xbf16>
      %cst_48 = arith.constant dense<0.000000e+00> : vector<20x128xf32>
      %51 = tpu.matmul %48, %50, %cst_48 {dimension_numbers = #tpu.dot_dimension_numbers<[1], [0], [0], [1], [0, 0, 1, 1], [], []>} : vector<20x128xbf16>, vector<128x128xbf16>, vector<20x128xf32> -> vector<20x128xf32>
      %52 = arith.addf %44, %51 : vector<20x128xf32>
      %c1_i32_49 = arith.constant 1 : i32
      %53 = arith.addi %arg5, %c1_i32_49 : i32
      %c0_50 = arith.constant 0 : index
      %54 = arith.index_cast %53 : i32 to index
      %c1_51 = arith.constant 1 : index
      %c0_52 = arith.constant 0 : index
      %55 = vector.load %arg1[%c0_50, %54, %c1_51, %c0_52] : memref<1x24x24x128xbf16, #tpu.memory_space<vmem>>, vector<1x1x20x128xbf16>
      %56 = vector.shape_cast %55 : vector<1x1x20x128xbf16> to vector<20x128xbf16>
      %c6 = arith.constant 6 : index
      %c0_53 = arith.constant 0 : index
      %c0_54 = arith.constant 0 : index
      %57 = vector.load %arg2[%c6, %c0_53, %c0_54] : memref<25x128x128xbf16, #tpu.memory_space<vmem>>, vector<1x128x128xbf16>
      %58 = vector.shape_cast %57 : vector<1x128x128xbf16> to vector<128x128xbf16>
      %cst_55 = arith.constant dense<0.000000e+00> : vector<20x128xf32>
      %59 = tpu.matmul %56, %58, %cst_55 {dimension_numbers = #tpu.dot_dimension_numbers<[1], [0], [0], [1], [0, 0, 1, 1], [], []>} : vector<20x128xbf16>, vector<128x128xbf16>, vector<20x128xf32> -> vector<20x128xf32>
      %60 = arith.addf %52, %59 : vector<20x128xf32>
      %c1_i32_56 = arith.constant 1 : i32
      %61 = arith.addi %arg5, %c1_i32_56 : i32
      %c0_57 = arith.constant 0 : index
      %62 = arith.index_cast %61 : i32 to index
      %c2_58 = arith.constant 2 : index
      %c0_59 = arith.constant 0 : index
      %63 = vector.load %arg1[%c0_57, %62, %c2_58, %c0_59] : memref<1x24x24x128xbf16, #tpu.memory_space<vmem>>, vector<1x1x20x128xbf16>
      %64 = vector.shape_cast %63 : vector<1x1x20x128xbf16> to vector<20x128xbf16>
      %c7 = arith.constant 7 : index
      %c0_60 = arith.constant 0 : index
      %c0_61 = arith.constant 0 : index
      %65 = vector.load %arg2[%c7, %c0_60, %c0_61] : memref<25x128x128xbf16, #tpu.memory_space<vmem>>, vector<1x128x128xbf16>
      %66 = vector.shape_cast %65 : vector<1x128x128xbf16> to vector<128x128xbf16>
      %cst_62 = arith.constant dense<0.000000e+00> : vector<20x128xf32>
      %67 = tpu.matmul %64, %66, %cst_62 {dimension_numbers = #tpu.dot_dimension_numbers<[1], [0], [0], [1], [0, 0, 1, 1], [], []>} : vector<20x128xbf16>, vector<128x128xbf16>, vector<20x128xf32> -> vector<20x128xf32>
      %68 = arith.addf %60, %67 : vector<20x128xf32>
      %c1_i32_63 = arith.constant 1 : i32
      %69 = arith.addi %arg5, %c1_i32_63 : i32
      %c0_64 = arith.constant 0 : index
      %70 = arith.index_cast %69 : i32 to index
      %c3_65 = arith.constant 3 : index
      %c0_66 = arith.constant 0 : index
      %71 = vector.load %arg1[%c0_64, %70, %c3_65, %c0_66] : memref<1x24x24x128xbf16, #tpu.memory_space<vmem>>, vector<1x1x20x128xbf16>
      %72 = vector.shape_cast %71 : vector<1x1x20x128xbf16> to vector<20x128xbf16>
      %c8 = arith.constant 8 : index
      %c0_67 = arith.constant 0 : index
      %c0_68 = arith.constant 0 : index
      %73 = vector.load %arg2[%c8, %c0_67, %c0_68] : memref<25x128x128xbf16, #tpu.memory_space<vmem>>, vector<1x128x128xbf16>
      %74 = vector.shape_cast %73 : vector<1x128x128xbf16> to vector<128x128xbf16>
      %cst_69 = arith.constant dense<0.000000e+00> : vector<20x128xf32>
      %75 = tpu.matmul %72, %74, %cst_69 {dimension_numbers = #tpu.dot_dimension_numbers<[1], [0], [0], [1], [0, 0, 1, 1], [], []>} : vector<20x128xbf16>, vector<128x128xbf16>, vector<20x128xf32> -> vector<20x128xf32>
      %76 = arith.addf %68, %75 : vector<20x128xf32>
      %c1_i32_70 = arith.constant 1 : i32
      %77 = arith.addi %arg5, %c1_i32_70 : i32
      %c0_71 = arith.constant 0 : index
      %78 = arith.index_cast %77 : i32 to index
      %c4_72 = arith.constant 4 : index
      %c0_73 = arith.constant 0 : index
      %79 = vector.load %arg1[%c0_71, %78, %c4_72, %c0_73] : memref<1x24x24x128xbf16, #tpu.memory_space<vmem>>, vector<1x1x20x128xbf16>
      %80 = vector.shape_cast %79 : vector<1x1x20x128xbf16> to vector<20x128xbf16>
      %c9 = arith.constant 9 : index
      %c0_74 = arith.constant 0 : index
      %c0_75 = arith.constant 0 : index
      %81 = vector.load %arg2[%c9, %c0_74, %c0_75] : memref<25x128x128xbf16, #tpu.memory_space<vmem>>, vector<1x128x128xbf16>
      %82 = vector.shape_cast %81 : vector<1x128x128xbf16> to vector<128x128xbf16>
      %cst_76 = arith.constant dense<0.000000e+00> : vector<20x128xf32>
      %83 = tpu.matmul %80, %82, %cst_76 {dimension_numbers = #tpu.dot_dimension_numbers<[1], [0], [0], [1], [0, 0, 1, 1], [], []>} : vector<20x128xbf16>, vector<128x128xbf16>, vector<20x128xf32> -> vector<20x128xf32>
      %84 = arith.addf %76, %83 : vector<20x128xf32>
      %c2_i32 = arith.constant 2 : i32
      %85 = arith.addi %arg5, %c2_i32 : i32
      %c0_77 = arith.constant 0 : index
      %86 = arith.index_cast %85 : i32 to index
      %c0_78 = arith.constant 0 : index
      %c0_79 = arith.constant 0 : index
      %87 = vector.load %arg1[%c0_77, %86, %c0_78, %c0_79] : memref<1x24x24x128xbf16, #tpu.memory_space<vmem>>, vector<1x1x20x128xbf16>
      %88 = vector.shape_cast %87 : vector<1x1x20x128xbf16> to vector<20x128xbf16>
      %c10 = arith.constant 10 : index
      %c0_80 = arith.constant 0 : index
      %c0_81 = arith.constant 0 : index
      %89 = vector.load %arg2[%c10, %c0_80, %c0_81] : memref<25x128x128xbf16, #tpu.memory_space<vmem>>, vector<1x128x128xbf16>
      %90 = vector.shape_cast %89 : vector<1x128x128xbf16> to vector<128x128xbf16>
      %cst_82 = arith.constant dense<0.000000e+00> : vector<20x128xf32>
      %91 = tpu.matmul %88, %90, %cst_82 {dimension_numbers = #tpu.dot_dimension_numbers<[1], [0], [0], [1], [0, 0, 1, 1], [], []>} : vector<20x128xbf16>, vector<128x128xbf16>, vector<20x128xf32> -> vector<20x128xf32>
      %92 = arith.addf %84, %91 : vector<20x128xf32>
      %c2_i32_83 = arith.constant 2 : i32
      %93 = arith.addi %arg5, %c2_i32_83 : i32
      %c0_84 = arith.constant 0 : index
      %94 = arith.index_cast %93 : i32 to index
      %c1_85 = arith.constant 1 : index
      %c0_86 = arith.constant 0 : index
      %95 = vector.load %arg1[%c0_84, %94, %c1_85, %c0_86] : memref<1x24x24x128xbf16, #tpu.memory_space<vmem>>, vector<1x1x20x128xbf16>
      %96 = vector.shape_cast %95 : vector<1x1x20x128xbf16> to vector<20x128xbf16>
      %c11 = arith.constant 11 : index
      %c0_87 = arith.constant 0 : index
      %c0_88 = arith.constant 0 : index
      %97 = vector.load %arg2[%c11, %c0_87, %c0_88] : memref<25x128x128xbf16, #tpu.memory_space<vmem>>, vector<1x128x128xbf16>
      %98 = vector.shape_cast %97 : vector<1x128x128xbf16> to vector<128x128xbf16>
      %cst_89 = arith.constant dense<0.000000e+00> : vector<20x128xf32>
      %99 = tpu.matmul %96, %98, %cst_89 {dimension_numbers = #tpu.dot_dimension_numbers<[1], [0], [0], [1], [0, 0, 1, 1], [], []>} : vector<20x128xbf16>, vector<128x128xbf16>, vector<20x128xf32> -> vector<20x128xf32>
      %100 = arith.addf %92, %99 : vector<20x128xf32>
      %c2_i32_90 = arith.constant 2 : i32
      %101 = arith.addi %arg5, %c2_i32_90 : i32
      %c0_91 = arith.constant 0 : index
      %102 = arith.index_cast %101 : i32 to index
      %c2_92 = arith.constant 2 : index
      %c0_93 = arith.constant 0 : index
      %103 = vector.load %arg1[%c0_91, %102, %c2_92, %c0_93] : memref<1x24x24x128xbf16, #tpu.memory_space<vmem>>, vector<1x1x20x128xbf16>
      %104 = vector.shape_cast %103 : vector<1x1x20x128xbf16> to vector<20x128xbf16>
      %c12 = arith.constant 12 : index
      %c0_94 = arith.constant 0 : index
      %c0_95 = arith.constant 0 : index
      %105 = vector.load %arg2[%c12, %c0_94, %c0_95] : memref<25x128x128xbf16, #tpu.memory_space<vmem>>, vector<1x128x128xbf16>
      %106 = vector.shape_cast %105 : vector<1x128x128xbf16> to vector<128x128xbf16>
      %cst_96 = arith.constant dense<0.000000e+00> : vector<20x128xf32>
      %107 = tpu.matmul %104, %106, %cst_96 {dimension_numbers = #tpu.dot_dimension_numbers<[1], [0], [0], [1], [0, 0, 1, 1], [], []>} : vector<20x128xbf16>, vector<128x128xbf16>, vector<20x128xf32> -> vector<20x128xf32>
      %108 = arith.addf %100, %107 : vector<20x128xf32>
      %c2_i32_97 = arith.constant 2 : i32
      %109 = arith.addi %arg5, %c2_i32_97 : i32
      %c0_98 = arith.constant 0 : index
      %110 = arith.index_cast %109 : i32 to index
      %c3_99 = arith.constant 3 : index
      %c0_100 = arith.constant 0 : index
      %111 = vector.load %arg1[%c0_98, %110, %c3_99, %c0_100] : memref<1x24x24x128xbf16, #tpu.memory_space<vmem>>, vector<1x1x20x128xbf16>
      %112 = vector.shape_cast %111 : vector<1x1x20x128xbf16> to vector<20x128xbf16>
      %c13 = arith.constant 13 : index
      %c0_101 = arith.constant 0 : index
      %c0_102 = arith.constant 0 : index
      %113 = vector.load %arg2[%c13, %c0_101, %c0_102] : memref<25x128x128xbf16, #tpu.memory_space<vmem>>, vector<1x128x128xbf16>
      %114 = vector.shape_cast %113 : vector<1x128x128xbf16> to vector<128x128xbf16>
      %cst_103 = arith.constant dense<0.000000e+00> : vector<20x128xf32>
      %115 = tpu.matmul %112, %114, %cst_103 {dimension_numbers = #tpu.dot_dimension_numbers<[1], [0], [0], [1], [0, 0, 1, 1], [], []>} : vector<20x128xbf16>, vector<128x128xbf16>, vector<20x128xf32> -> vector<20x128xf32>
      %116 = arith.addf %108, %115 : vector<20x128xf32>
      %c2_i32_104 = arith.constant 2 : i32
      %117 = arith.addi %arg5, %c2_i32_104 : i32
      %c0_105 = arith.constant 0 : index
      %118 = arith.index_cast %117 : i32 to index
      %c4_106 = arith.constant 4 : index
      %c0_107 = arith.constant 0 : index
      %119 = vector.load %arg1[%c0_105, %118, %c4_106, %c0_107] : memref<1x24x24x128xbf16, #tpu.memory_space<vmem>>, vector<1x1x20x128xbf16>
      %120 = vector.shape_cast %119 : vector<1x1x20x128xbf16> to vector<20x128xbf16>
      %c14 = arith.constant 14 : index
      %c0_108 = arith.constant 0 : index
      %c0_109 = arith.constant 0 : index
      %121 = vector.load %arg2[%c14, %c0_108, %c0_109] : memref<25x128x128xbf16, #tpu.memory_space<vmem>>, vector<1x128x128xbf16>
      %122 = vector.shape_cast %121 : vector<1x128x128xbf16> to vector<128x128xbf16>
      %cst_110 = arith.constant dense<0.000000e+00> : vector<20x128xf32>
      %123 = tpu.matmul %120, %122, %cst_110 {dimension_numbers = #tpu.dot_dimension_numbers<[1], [0], [0], [1], [0, 0, 1, 1], [], []>} : vector<20x128xbf16>, vector<128x128xbf16>, vector<20x128xf32> -> vector<20x128xf32>
      %124 = arith.addf %116, %123 : vector<20x128xf32>
      %c3_i32 = arith.constant 3 : i32
      %125 = arith.addi %arg5, %c3_i32 : i32
      %c0_111 = arith.constant 0 : index
      %126 = arith.index_cast %125 : i32 to index
      %c0_112 = arith.constant 0 : index
      %c0_113 = arith.constant 0 : index
      %127 = vector.load %arg1[%c0_111, %126, %c0_112, %c0_113] : memref<1x24x24x128xbf16, #tpu.memory_space<vmem>>, vector<1x1x20x128xbf16>
      %128 = vector.shape_cast %127 : vector<1x1x20x128xbf16> to vector<20x128xbf16>
      %c15 = arith.constant 15 : index
      %c0_114 = arith.constant 0 : index
      %c0_115 = arith.constant 0 : index
      %129 = vector.load %arg2[%c15, %c0_114, %c0_115] : memref<25x128x128xbf16, #tpu.memory_space<vmem>>, vector<1x128x128xbf16>
      %130 = vector.shape_cast %129 : vector<1x128x128xbf16> to vector<128x128xbf16>
      %cst_116 = arith.constant dense<0.000000e+00> : vector<20x128xf32>
      %131 = tpu.matmul %128, %130, %cst_116 {dimension_numbers = #tpu.dot_dimension_numbers<[1], [0], [0], [1], [0, 0, 1, 1], [], []>} : vector<20x128xbf16>, vector<128x128xbf16>, vector<20x128xf32> -> vector<20x128xf32>
      %132 = arith.addf %124, %131 : vector<20x128xf32>
      %c3_i32_117 = arith.constant 3 : i32
      %133 = arith.addi %arg5, %c3_i32_117 : i32
      %c0_118 = arith.constant 0 : index
      %134 = arith.index_cast %133 : i32 to index
      %c1_119 = arith.constant 1 : index
      %c0_120 = arith.constant 0 : index
      %135 = vector.load %arg1[%c0_118, %134, %c1_119, %c0_120] : memref<1x24x24x128xbf16, #tpu.memory_space<vmem>>, vector<1x1x20x128xbf16>
      %136 = vector.shape_cast %135 : vector<1x1x20x128xbf16> to vector<20x128xbf16>
      %c16 = arith.constant 16 : index
      %c0_121 = arith.constant 0 : index
      %c0_122 = arith.constant 0 : index
      %137 = vector.load %arg2[%c16, %c0_121, %c0_122] : memref<25x128x128xbf16, #tpu.memory_space<vmem>>, vector<1x128x128xbf16>
      %138 = vector.shape_cast %137 : vector<1x128x128xbf16> to vector<128x128xbf16>
      %cst_123 = arith.constant dense<0.000000e+00> : vector<20x128xf32>
      %139 = tpu.matmul %136, %138, %cst_123 {dimension_numbers = #tpu.dot_dimension_numbers<[1], [0], [0], [1], [0, 0, 1, 1], [], []>} : vector<20x128xbf16>, vector<128x128xbf16>, vector<20x128xf32> -> vector<20x128xf32>
      %140 = arith.addf %132, %139 : vector<20x128xf32>
      %c3_i32_124 = arith.constant 3 : i32
      %141 = arith.addi %arg5, %c3_i32_124 : i32
      %c0_125 = arith.constant 0 : index
      %142 = arith.index_cast %141 : i32 to index
      %c2_126 = arith.constant 2 : index
      %c0_127 = arith.constant 0 : index
      %143 = vector.load %arg1[%c0_125, %142, %c2_126, %c0_127] : memref<1x24x24x128xbf16, #tpu.memory_space<vmem>>, vector<1x1x20x128xbf16>
      %144 = vector.shape_cast %143 : vector<1x1x20x128xbf16> to vector<20x128xbf16>
      %c17 = arith.constant 17 : index
      %c0_128 = arith.constant 0 : index
      %c0_129 = arith.constant 0 : index
      %145 = vector.load %arg2[%c17, %c0_128, %c0_129] : memref<25x128x128xbf16, #tpu.memory_space<vmem>>, vector<1x128x128xbf16>
      %146 = vector.shape_cast %145 : vector<1x128x128xbf16> to vector<128x128xbf16>
      %cst_130 = arith.constant dense<0.000000e+00> : vector<20x128xf32>
      %147 = tpu.matmul %144, %146, %cst_130 {dimension_numbers = #tpu.dot_dimension_numbers<[1], [0], [0], [1], [0, 0, 1, 1], [], []>} : vector<20x128xbf16>, vector<128x128xbf16>, vector<20x128xf32> -> vector<20x128xf32>
      %148 = arith.addf %140, %147 : vector<20x128xf32>
      %c3_i32_131 = arith.constant 3 : i32
      %149 = arith.addi %arg5, %c3_i32_131 : i32
      %c0_132 = arith.constant 0 : index
      %150 = arith.index_cast %149 : i32 to index
      %c3_133 = arith.constant 3 : index
      %c0_134 = arith.constant 0 : index
      %151 = vector.load %arg1[%c0_132, %150, %c3_133, %c0_134] : memref<1x24x24x128xbf16, #tpu.memory_space<vmem>>, vector<1x1x20x128xbf16>
      %152 = vector.shape_cast %151 : vector<1x1x20x128xbf16> to vector<20x128xbf16>
      %c18 = arith.constant 18 : index
      %c0_135 = arith.constant 0 : index
      %c0_136 = arith.constant 0 : index
      %153 = vector.load %arg2[%c18, %c0_135, %c0_136] : memref<25x128x128xbf16, #tpu.memory_space<vmem>>, vector<1x128x128xbf16>
      %154 = vector.shape_cast %153 : vector<1x128x128xbf16> to vector<128x128xbf16>
      %cst_137 = arith.constant dense<0.000000e+00> : vector<20x128xf32>
      %155 = tpu.matmul %152, %154, %cst_137 {dimension_numbers = #tpu.dot_dimension_numbers<[1], [0], [0], [1], [0, 0, 1, 1], [], []>} : vector<20x128xbf16>, vector<128x128xbf16>, vector<20x128xf32> -> vector<20x128xf32>
      %156 = arith.addf %148, %155 : vector<20x128xf32>
      %c3_i32_138 = arith.constant 3 : i32
      %157 = arith.addi %arg5, %c3_i32_138 : i32
      %c0_139 = arith.constant 0 : index
      %158 = arith.index_cast %157 : i32 to index
      %c4_140 = arith.constant 4 : index
      %c0_141 = arith.constant 0 : index
      %159 = vector.load %arg1[%c0_139, %158, %c4_140, %c0_141] : memref<1x24x24x128xbf16, #tpu.memory_space<vmem>>, vector<1x1x20x128xbf16>
      %160 = vector.shape_cast %159 : vector<1x1x20x128xbf16> to vector<20x128xbf16>
      %c19 = arith.constant 19 : index
      %c0_142 = arith.constant 0 : index
      %c0_143 = arith.constant 0 : index
      %161 = vector.load %arg2[%c19, %c0_142, %c0_143] : memref<25x128x128xbf16, #tpu.memory_space<vmem>>, vector<1x128x128xbf16>
      %162 = vector.shape_cast %161 : vector<1x128x128xbf16> to vector<128x128xbf16>
      %cst_144 = arith.constant dense<0.000000e+00> : vector<20x128xf32>
      %163 = tpu.matmul %160, %162, %cst_144 {dimension_numbers = #tpu.dot_dimension_numbers<[1], [0], [0], [1], [0, 0, 1, 1], [], []>} : vector<20x128xbf16>, vector<128x128xbf16>, vector<20x128xf32> -> vector<20x128xf32>
      %164 = arith.addf %156, %163 : vector<20x128xf32>
      %c4_i32 = arith.constant 4 : i32
      %165 = arith.addi %arg5, %c4_i32 : i32
      %c0_145 = arith.constant 0 : index
      %166 = arith.index_cast %165 : i32 to index
      %c0_146 = arith.constant 0 : index
      %c0_147 = arith.constant 0 : index
      %167 = vector.load %arg1[%c0_145, %166, %c0_146, %c0_147] : memref<1x24x24x128xbf16, #tpu.memory_space<vmem>>, vector<1x1x20x128xbf16>
      %168 = vector.shape_cast %167 : vector<1x1x20x128xbf16> to vector<20x128xbf16>
      %c20 = arith.constant 20 : index
      %c0_148 = arith.constant 0 : index
      %c0_149 = arith.constant 0 : index
      %169 = vector.load %arg2[%c20, %c0_148, %c0_149] : memref<25x128x128xbf16, #tpu.memory_space<vmem>>, vector<1x128x128xbf16>
      %170 = vector.shape_cast %169 : vector<1x128x128xbf16> to vector<128x128xbf16>
      %cst_150 = arith.constant dense<0.000000e+00> : vector<20x128xf32>
      %171 = tpu.matmul %168, %170, %cst_150 {dimension_numbers = #tpu.dot_dimension_numbers<[1], [0], [0], [1], [0, 0, 1, 1], [], []>} : vector<20x128xbf16>, vector<128x128xbf16>, vector<20x128xf32> -> vector<20x128xf32>
      %172 = arith.addf %164, %171 : vector<20x128xf32>
      %c4_i32_151 = arith.constant 4 : i32
      %173 = arith.addi %arg5, %c4_i32_151 : i32
      %c0_152 = arith.constant 0 : index
      %174 = arith.index_cast %173 : i32 to index
      %c1_153 = arith.constant 1 : index
      %c0_154 = arith.constant 0 : index
      %175 = vector.load %arg1[%c0_152, %174, %c1_153, %c0_154] : memref<1x24x24x128xbf16, #tpu.memory_space<vmem>>, vector<1x1x20x128xbf16>
      %176 = vector.shape_cast %175 : vector<1x1x20x128xbf16> to vector<20x128xbf16>
      %c21 = arith.constant 21 : index
      %c0_155 = arith.constant 0 : index
      %c0_156 = arith.constant 0 : index
      %177 = vector.load %arg2[%c21, %c0_155, %c0_156] : memref<25x128x128xbf16, #tpu.memory_space<vmem>>, vector<1x128x128xbf16>
      %178 = vector.shape_cast %177 : vector<1x128x128xbf16> to vector<128x128xbf16>
      %cst_157 = arith.constant dense<0.000000e+00> : vector<20x128xf32>
      %179 = tpu.matmul %176, %178, %cst_157 {dimension_numbers = #tpu.dot_dimension_numbers<[1], [0], [0], [1], [0, 0, 1, 1], [], []>} : vector<20x128xbf16>, vector<128x128xbf16>, vector<20x128xf32> -> vector<20x128xf32>
      %180 = arith.addf %172, %179 : vector<20x128xf32>
      %c4_i32_158 = arith.constant 4 : i32
      %181 = arith.addi %arg5, %c4_i32_158 : i32
      %c0_159 = arith.constant 0 : index
      %182 = arith.index_cast %181 : i32 to index
      %c2_160 = arith.constant 2 : index
      %c0_161 = arith.constant 0 : index
      %183 = vector.load %arg1[%c0_159, %182, %c2_160, %c0_161] : memref<1x24x24x128xbf16, #tpu.memory_space<vmem>>, vector<1x1x20x128xbf16>
      %184 = vector.shape_cast %183 : vector<1x1x20x128xbf16> to vector<20x128xbf16>
      %c22 = arith.constant 22 : index
      %c0_162 = arith.constant 0 : index
      %c0_163 = arith.constant 0 : index
      %185 = vector.load %arg2[%c22, %c0_162, %c0_163] : memref<25x128x128xbf16, #tpu.memory_space<vmem>>, vector<1x128x128xbf16>
      %186 = vector.shape_cast %185 : vector<1x128x128xbf16> to vector<128x128xbf16>
      %cst_164 = arith.constant dense<0.000000e+00> : vector<20x128xf32>
      %187 = tpu.matmul %184, %186, %cst_164 {dimension_numbers = #tpu.dot_dimension_numbers<[1], [0], [0], [1], [0, 0, 1, 1], [], []>} : vector<20x128xbf16>, vector<128x128xbf16>, vector<20x128xf32> -> vector<20x128xf32>
      %188 = arith.addf %180, %187 : vector<20x128xf32>
      %c4_i32_165 = arith.constant 4 : i32
      %189 = arith.addi %arg5, %c4_i32_165 : i32
      %c0_166 = arith.constant 0 : index
      %190 = arith.index_cast %189 : i32 to index
      %c3_167 = arith.constant 3 : index
      %c0_168 = arith.constant 0 : index
      %191 = vector.load %arg1[%c0_166, %190, %c3_167, %c0_168] : memref<1x24x24x128xbf16, #tpu.memory_space<vmem>>, vector<1x1x20x128xbf16>
      %192 = vector.shape_cast %191 : vector<1x1x20x128xbf16> to vector<20x128xbf16>
      %c23 = arith.constant 23 : index
      %c0_169 = arith.constant 0 : index
      %c0_170 = arith.constant 0 : index
      %193 = vector.load %arg2[%c23, %c0_169, %c0_170] : memref<25x128x128xbf16, #tpu.memory_space<vmem>>, vector<1x128x128xbf16>
      %194 = vector.shape_cast %193 : vector<1x128x128xbf16> to vector<128x128xbf16>
      %cst_171 = arith.constant dense<0.000000e+00> : vector<20x128xf32>
      %195 = tpu.matmul %192, %194, %cst_171 {dimension_numbers = #tpu.dot_dimension_numbers<[1], [0], [0], [1], [0, 0, 1, 1], [], []>} : vector<20x128xbf16>, vector<128x128xbf16>, vector<20x128xf32> -> vector<20x128xf32>
      %196 = arith.addf %188, %195 : vector<20x128xf32>
      %c4_i32_172 = arith.constant 4 : i32
      %197 = arith.addi %arg5, %c4_i32_172 : i32
      %c0_173 = arith.constant 0 : index
      %198 = arith.index_cast %197 : i32 to index
      %c4_174 = arith.constant 4 : index
      %c0_175 = arith.constant 0 : index
      %199 = vector.load %arg1[%c0_173, %198, %c4_174, %c0_175] : memref<1x24x24x128xbf16, #tpu.memory_space<vmem>>, vector<1x1x20x128xbf16>
      %200 = vector.shape_cast %199 : vector<1x1x20x128xbf16> to vector<20x128xbf16>
      %c24 = arith.constant 24 : index
      %c0_176 = arith.constant 0 : index
      %c0_177 = arith.constant 0 : index
      %201 = vector.load %arg2[%c24, %c0_176, %c0_177] : memref<25x128x128xbf16, #tpu.memory_space<vmem>>, vector<1x128x128xbf16>
      %202 = vector.shape_cast %201 : vector<1x128x128xbf16> to vector<128x128xbf16>
      %cst_178 = arith.constant dense<0.000000e+00> : vector<20x128xf32>
      %203 = tpu.matmul %200, %202, %cst_178 {dimension_numbers = #tpu.dot_dimension_numbers<[1], [0], [0], [1], [0, 0, 1, 1], [], []>} : vector<20x128xbf16>, vector<128x128xbf16>, vector<20x128xf32> -> vector<20x128xf32>
      %204 = arith.addf %196, %203 : vector<20x128xf32>
      %205 = vector.broadcast %0 : vector<1x128xf32> to vector<20x128xf32>
      %206 = arith.addf %204, %205 : vector<20x128xf32>
      %cst_179 = arith.constant 0.000000e+00 : f32
      %207 = vector.broadcast %cst_179 : f32 to vector<20x128xf32>
      %208 = arith.maximumf %206, %207 : vector<20x128xf32>
      %209 = vector.broadcast %1 : vector<1x128xf32> to vector<20x128xf32>
      %210 = arith.mulf %208, %209 : vector<20x128xf32>
      %211 = vector.broadcast %2 : vector<1x128xf32> to vector<20x128xf32>
      %212 = arith.addf %210, %211 : vector<20x128xf32>
      %213 = arith.truncf %212 : vector<20x128xf32> to vector<20x128xbf16>
      %c0_180 = arith.constant 0 : index
      %214 = arith.index_cast %arg5 : i32 to index
      %c0_181 = arith.constant 0 : index
      %c0_182 = arith.constant 0 : index
      %215 = vector.load %arg4[%c0_180, %214, %c0_181, %c0_182] : memref<1x20x20x128xbf16, #tpu.memory_space<vmem>>, vector<1x1x20x128xbf16>
      %216 = vector.shape_cast %215 : vector<1x1x20x128xbf16> to vector<20x128xbf16>
      %217 = vector.shape_cast %213 : vector<20x128xbf16> to vector<1x1x20x128xbf16>
      tpu.vector_store %arg4[%c0_180, %214, %c0_181, %c0_182], %217 {strides = array<i32>} : memref<1x20x20x128xbf16, #tpu.memory_space<vmem>>, vector<1x1x20x128xbf16>,
    }
    %c20_i32_3 = arith.constant 20 : i32
    return
  }
  func.func @transform_0(%arg0: i32) -> (i32, i32, i32, i32) {
    %c0_i32 = arith.constant 0 : i32
    %c0_i32_0 = arith.constant 0 : i32
    %c0_i32_1 = arith.constant 0 : i32
    %c0_i32_2 = arith.constant 0 : i32
    return %arg0, %c0_i32, %c0_i32_0, %c0_i32_1 : i32, i32, i32, i32
  }
  func.func @transform_1(%arg0: i32) -> (i32, i32, i32) {
    %c0_i32 = arith.constant 0 : i32
    %c0_i32_0 = arith.constant 0 : i32
    %c0_i32_1 = arith.constant 0 : i32
    %c0_i32_2 = arith.constant 0 : i32
    return %c0_i32, %c0_i32_0, %c0_i32_1 : i32, i32, i32
  }
  func.func @transform_2(%arg0: i32) -> (i32, i32) {
    %c0_i32 = arith.constant 0 : i32
    %c0_i32_0 = arith.constant 0 : i32
    %c0_i32_1 = arith.constant 0 : i32
    return %c0_i32, %c0_i32_0 : i32, i32
  }
  func.func @transform_3(%arg0: i32) -> (i32, i32, i32, i32) {
    %c0_i32 = arith.constant 0 : i32
    %c0_i32_0 = arith.constant 0 : i32
    %c0_i32_1 = arith.constant 0 : i32
    %c0_i32_2 = arith.constant 0 : i32
    return %arg0, %c0_i32, %c0_i32_0, %c0_i32_1 : i32, i32, i32, i32
  }
}

module attributes {stable_mosaic.version = 11 : i64} {
  func.func @_conv_kernel(%arg0: i32, %arg1: memref<1x10x10x128xbf16, #tpu.memory_space<vmem>>, %arg2: memref<9x128x128xbf16, #tpu.memory_space<vmem>>, %arg3: memref<3x128xf32, #tpu.memory_space<vmem>>, %arg4: memref<1x8x8x128xbf16, #tpu.memory_space<vmem>>) attributes {dimension_semantics = [#tpu.dimension_semantics<parallel>], iteration_bounds = array<i64: 2>, scalar_prefetch = 0 : i64, scratch_operands = 0 : i64, tpu.core_type = #tpu.core_type<tc>, window_params = [{transform_indices = @transform_0, window_bounds = array<i64: 1, 10, 10, 128>}, {pipeline_mode = #tpu.pipeline_mode<synchronous>, transform_indices = @transform_1, window_bounds = array<i64: 9, 128, 128>}, {pipeline_mode = #tpu.pipeline_mode<synchronous>, transform_indices = @transform_2, window_bounds = array<i64: 3, 128>}, {transform_indices = @transform_3, window_bounds = array<i64: 1, 8, 8, 128>}]} {
    %c0 = arith.constant 0 : index
    %c0_0 = arith.constant 0 : index
    %0 = vector.load %arg3[%c0, %c0_0] : memref<3x128xf32, #tpu.memory_space<vmem>>, vector<1x128xf32>
    %c1 = arith.constant 1 : index
    %c0_1 = arith.constant 0 : index
    %1 = vector.load %arg3[%c1, %c0_1] : memref<3x128xf32, #tpu.memory_space<vmem>>, vector<1x128xf32>
    %c2 = arith.constant 2 : index
    %c0_2 = arith.constant 0 : index
    %2 = vector.load %arg3[%c2, %c0_2] : memref<3x128xf32, #tpu.memory_space<vmem>>, vector<1x128xf32>
    %c0_i32 = arith.constant 0 : i32
    %c8_i32 = arith.constant 8 : i32
    %3 = arith.addi %c0_i32, %c8_i32 : i32
    %c1_i32 = arith.constant 1 : i32
    scf.for %arg5 = %c0_i32 to %3 step %c1_i32  : i32 {
      %cst = arith.constant 0.000000e+00 : f32
      %4 = vector.broadcast %cst : f32 to vector<8x128xf32>
      %c0_i32_4 = arith.constant 0 : i32
      %5 = arith.addi %arg5, %c0_i32_4 : i32
      %c0_5 = arith.constant 0 : index
      %6 = arith.index_cast %5 : i32 to index
      %c0_6 = arith.constant 0 : index
      %c0_7 = arith.constant 0 : index
      %7 = vector.load %arg1[%c0_5, %6, %c0_6, %c0_7] : memref<1x10x10x128xbf16, #tpu.memory_space<vmem>>, vector<1x1x8x128xbf16>
      %8 = vector.shape_cast %7 : vector<1x1x8x128xbf16> to vector<8x128xbf16>
      %c0_8 = arith.constant 0 : index
      %c0_9 = arith.constant 0 : index
      %c0_10 = arith.constant 0 : index
      %9 = vector.load %arg2[%c0_8, %c0_9, %c0_10] : memref<9x128x128xbf16, #tpu.memory_space<vmem>>, vector<1x128x128xbf16>
      %10 = vector.shape_cast %9 : vector<1x128x128xbf16> to vector<128x128xbf16>
      %cst_11 = arith.constant dense<0.000000e+00> : vector<8x128xf32>
      %11 = tpu.matmul %8, %10, %cst_11 {dimension_numbers = #tpu.dot_dimension_numbers<[1], [0], [0], [1], [0, 0, 1, 1], [], []>} : vector<8x128xbf16>, vector<128x128xbf16>, vector<8x128xf32> -> vector<8x128xf32>
      %12 = arith.addf %4, %11 : vector<8x128xf32>
      %c0_i32_12 = arith.constant 0 : i32
      %13 = arith.addi %arg5, %c0_i32_12 : i32
      %c0_13 = arith.constant 0 : index
      %14 = arith.index_cast %13 : i32 to index
      %c1_14 = arith.constant 1 : index
      %c0_15 = arith.constant 0 : index
      %15 = vector.load %arg1[%c0_13, %14, %c1_14, %c0_15] : memref<1x10x10x128xbf16, #tpu.memory_space<vmem>>, vector<1x1x8x128xbf16>
      %16 = vector.shape_cast %15 : vector<1x1x8x128xbf16> to vector<8x128xbf16>
      %c1_16 = arith.constant 1 : index
      %c0_17 = arith.constant 0 : index
      %c0_18 = arith.constant 0 : index
      %17 = vector.load %arg2[%c1_16, %c0_17, %c0_18] : memref<9x128x128xbf16, #tpu.memory_space<vmem>>, vector<1x128x128xbf16>
      %18 = vector.shape_cast %17 : vector<1x128x128xbf16> to vector<128x128xbf16>
      %cst_19 = arith.constant dense<0.000000e+00> : vector<8x128xf32>
      %19 = tpu.matmul %16, %18, %cst_19 {dimension_numbers = #tpu.dot_dimension_numbers<[1], [0], [0], [1], [0, 0, 1, 1], [], []>} : vector<8x128xbf16>, vector<128x128xbf16>, vector<8x128xf32> -> vector<8x128xf32>
      %20 = arith.addf %12, %19 : vector<8x128xf32>
      %c0_i32_20 = arith.constant 0 : i32
      %21 = arith.addi %arg5, %c0_i32_20 : i32
      %c0_21 = arith.constant 0 : index
      %22 = arith.index_cast %21 : i32 to index
      %c2_22 = arith.constant 2 : index
      %c0_23 = arith.constant 0 : index
      %23 = vector.load %arg1[%c0_21, %22, %c2_22, %c0_23] : memref<1x10x10x128xbf16, #tpu.memory_space<vmem>>, vector<1x1x8x128xbf16>
      %24 = vector.shape_cast %23 : vector<1x1x8x128xbf16> to vector<8x128xbf16>
      %c2_24 = arith.constant 2 : index
      %c0_25 = arith.constant 0 : index
      %c0_26 = arith.constant 0 : index
      %25 = vector.load %arg2[%c2_24, %c0_25, %c0_26] : memref<9x128x128xbf16, #tpu.memory_space<vmem>>, vector<1x128x128xbf16>
      %26 = vector.shape_cast %25 : vector<1x128x128xbf16> to vector<128x128xbf16>
      %cst_27 = arith.constant dense<0.000000e+00> : vector<8x128xf32>
      %27 = tpu.matmul %24, %26, %cst_27 {dimension_numbers = #tpu.dot_dimension_numbers<[1], [0], [0], [1], [0, 0, 1, 1], [], []>} : vector<8x128xbf16>, vector<128x128xbf16>, vector<8x128xf32> -> vector<8x128xf32>
      %28 = arith.addf %20, %27 : vector<8x128xf32>
      %c1_i32_28 = arith.constant 1 : i32
      %29 = arith.addi %arg5, %c1_i32_28 : i32
      %c0_29 = arith.constant 0 : index
      %30 = arith.index_cast %29 : i32 to index
      %c0_30 = arith.constant 0 : index
      %c0_31 = arith.constant 0 : index
      %31 = vector.load %arg1[%c0_29, %30, %c0_30, %c0_31] : memref<1x10x10x128xbf16, #tpu.memory_space<vmem>>, vector<1x1x8x128xbf16>
      %32 = vector.shape_cast %31 : vector<1x1x8x128xbf16> to vector<8x128xbf16>
      %c3 = arith.constant 3 : index
      %c0_32 = arith.constant 0 : index
      %c0_33 = arith.constant 0 : index
      %33 = vector.load %arg2[%c3, %c0_32, %c0_33] : memref<9x128x128xbf16, #tpu.memory_space<vmem>>, vector<1x128x128xbf16>
      %34 = vector.shape_cast %33 : vector<1x128x128xbf16> to vector<128x128xbf16>
      %cst_34 = arith.constant dense<0.000000e+00> : vector<8x128xf32>
      %35 = tpu.matmul %32, %34, %cst_34 {dimension_numbers = #tpu.dot_dimension_numbers<[1], [0], [0], [1], [0, 0, 1, 1], [], []>} : vector<8x128xbf16>, vector<128x128xbf16>, vector<8x128xf32> -> vector<8x128xf32>
      %36 = arith.addf %28, %35 : vector<8x128xf32>
      %c1_i32_35 = arith.constant 1 : i32
      %37 = arith.addi %arg5, %c1_i32_35 : i32
      %c0_36 = arith.constant 0 : index
      %38 = arith.index_cast %37 : i32 to index
      %c1_37 = arith.constant 1 : index
      %c0_38 = arith.constant 0 : index
      %39 = vector.load %arg1[%c0_36, %38, %c1_37, %c0_38] : memref<1x10x10x128xbf16, #tpu.memory_space<vmem>>, vector<1x1x8x128xbf16>
      %40 = vector.shape_cast %39 : vector<1x1x8x128xbf16> to vector<8x128xbf16>
      %c4 = arith.constant 4 : index
      %c0_39 = arith.constant 0 : index
      %c0_40 = arith.constant 0 : index
      %41 = vector.load %arg2[%c4, %c0_39, %c0_40] : memref<9x128x128xbf16, #tpu.memory_space<vmem>>, vector<1x128x128xbf16>
      %42 = vector.shape_cast %41 : vector<1x128x128xbf16> to vector<128x128xbf16>
      %cst_41 = arith.constant dense<0.000000e+00> : vector<8x128xf32>
      %43 = tpu.matmul %40, %42, %cst_41 {dimension_numbers = #tpu.dot_dimension_numbers<[1], [0], [0], [1], [0, 0, 1, 1], [], []>} : vector<8x128xbf16>, vector<128x128xbf16>, vector<8x128xf32> -> vector<8x128xf32>
      %44 = arith.addf %36, %43 : vector<8x128xf32>
      %c1_i32_42 = arith.constant 1 : i32
      %45 = arith.addi %arg5, %c1_i32_42 : i32
      %c0_43 = arith.constant 0 : index
      %46 = arith.index_cast %45 : i32 to index
      %c2_44 = arith.constant 2 : index
      %c0_45 = arith.constant 0 : index
      %47 = vector.load %arg1[%c0_43, %46, %c2_44, %c0_45] : memref<1x10x10x128xbf16, #tpu.memory_space<vmem>>, vector<1x1x8x128xbf16>
      %48 = vector.shape_cast %47 : vector<1x1x8x128xbf16> to vector<8x128xbf16>
      %c5 = arith.constant 5 : index
      %c0_46 = arith.constant 0 : index
      %c0_47 = arith.constant 0 : index
      %49 = vector.load %arg2[%c5, %c0_46, %c0_47] : memref<9x128x128xbf16, #tpu.memory_space<vmem>>, vector<1x128x128xbf16>
      %50 = vector.shape_cast %49 : vector<1x128x128xbf16> to vector<128x128xbf16>
      %cst_48 = arith.constant dense<0.000000e+00> : vector<8x128xf32>
      %51 = tpu.matmul %48, %50, %cst_48 {dimension_numbers = #tpu.dot_dimension_numbers<[1], [0], [0], [1], [0, 0, 1, 1], [], []>} : vector<8x128xbf16>, vector<128x128xbf16>, vector<8x128xf32> -> vector<8x128xf32>
      %52 = arith.addf %44, %51 : vector<8x128xf32>
      %c2_i32 = arith.constant 2 : i32
      %53 = arith.addi %arg5, %c2_i32 : i32
      %c0_49 = arith.constant 0 : index
      %54 = arith.index_cast %53 : i32 to index
      %c0_50 = arith.constant 0 : index
      %c0_51 = arith.constant 0 : index
      %55 = vector.load %arg1[%c0_49, %54, %c0_50, %c0_51] : memref<1x10x10x128xbf16, #tpu.memory_space<vmem>>, vector<1x1x8x128xbf16>
      %56 = vector.shape_cast %55 : vector<1x1x8x128xbf16> to vector<8x128xbf16>
      %c6 = arith.constant 6 : index
      %c0_52 = arith.constant 0 : index
      %c0_53 = arith.constant 0 : index
      %57 = vector.load %arg2[%c6, %c0_52, %c0_53] : memref<9x128x128xbf16, #tpu.memory_space<vmem>>, vector<1x128x128xbf16>
      %58 = vector.shape_cast %57 : vector<1x128x128xbf16> to vector<128x128xbf16>
      %cst_54 = arith.constant dense<0.000000e+00> : vector<8x128xf32>
      %59 = tpu.matmul %56, %58, %cst_54 {dimension_numbers = #tpu.dot_dimension_numbers<[1], [0], [0], [1], [0, 0, 1, 1], [], []>} : vector<8x128xbf16>, vector<128x128xbf16>, vector<8x128xf32> -> vector<8x128xf32>
      %60 = arith.addf %52, %59 : vector<8x128xf32>
      %c2_i32_55 = arith.constant 2 : i32
      %61 = arith.addi %arg5, %c2_i32_55 : i32
      %c0_56 = arith.constant 0 : index
      %62 = arith.index_cast %61 : i32 to index
      %c1_57 = arith.constant 1 : index
      %c0_58 = arith.constant 0 : index
      %63 = vector.load %arg1[%c0_56, %62, %c1_57, %c0_58] : memref<1x10x10x128xbf16, #tpu.memory_space<vmem>>, vector<1x1x8x128xbf16>
      %64 = vector.shape_cast %63 : vector<1x1x8x128xbf16> to vector<8x128xbf16>
      %c7 = arith.constant 7 : index
      %c0_59 = arith.constant 0 : index
      %c0_60 = arith.constant 0 : index
      %65 = vector.load %arg2[%c7, %c0_59, %c0_60] : memref<9x128x128xbf16, #tpu.memory_space<vmem>>, vector<1x128x128xbf16>
      %66 = vector.shape_cast %65 : vector<1x128x128xbf16> to vector<128x128xbf16>
      %cst_61 = arith.constant dense<0.000000e+00> : vector<8x128xf32>
      %67 = tpu.matmul %64, %66, %cst_61 {dimension_numbers = #tpu.dot_dimension_numbers<[1], [0], [0], [1], [0, 0, 1, 1], [], []>} : vector<8x128xbf16>, vector<128x128xbf16>, vector<8x128xf32> -> vector<8x128xf32>
      %68 = arith.addf %60, %67 : vector<8x128xf32>
      %c2_i32_62 = arith.constant 2 : i32
      %69 = arith.addi %arg5, %c2_i32_62 : i32
      %c0_63 = arith.constant 0 : index
      %70 = arith.index_cast %69 : i32 to index
      %c2_64 = arith.constant 2 : index
      %c0_65 = arith.constant 0 : index
      %71 = vector.load %arg1[%c0_63, %70, %c2_64, %c0_65] : memref<1x10x10x128xbf16, #tpu.memory_space<vmem>>, vector<1x1x8x128xbf16>
      %72 = vector.shape_cast %71 : vector<1x1x8x128xbf16> to vector<8x128xbf16>
      %c8 = arith.constant 8 : index
      %c0_66 = arith.constant 0 : index
      %c0_67 = arith.constant 0 : index
      %73 = vector.load %arg2[%c8, %c0_66, %c0_67] : memref<9x128x128xbf16, #tpu.memory_space<vmem>>, vector<1x128x128xbf16>
      %74 = vector.shape_cast %73 : vector<1x128x128xbf16> to vector<128x128xbf16>
      %cst_68 = arith.constant dense<0.000000e+00> : vector<8x128xf32>
      %75 = tpu.matmul %72, %74, %cst_68 {dimension_numbers = #tpu.dot_dimension_numbers<[1], [0], [0], [1], [0, 0, 1, 1], [], []>} : vector<8x128xbf16>, vector<128x128xbf16>, vector<8x128xf32> -> vector<8x128xf32>
      %76 = arith.addf %68, %75 : vector<8x128xf32>
      %77 = vector.broadcast %0 : vector<1x128xf32> to vector<8x128xf32>
      %78 = arith.addf %76, %77 : vector<8x128xf32>
      %cst_69 = arith.constant 0.000000e+00 : f32
      %79 = vector.broadcast %cst_69 : f32 to vector<8x128xf32>
      %80 = arith.maximumf %78, %79 : vector<8x128xf32>
      %81 = vector.broadcast %1 : vector<1x128xf32> to vector<8x128xf32>
      %82 = arith.mulf %80, %81 : vector<8x128xf32>
      %83 = vector.broadcast %2 : vector<1x128xf32> to vector<8x128xf32>
      %84 = arith.addf %82, %83 : vector<8x128xf32>
      %85 = arith.truncf %84 : vector<8x128xf32> to vector<8x128xbf16>
      %c0_70 = arith.constant 0 : index
      %86 = arith.index_cast %arg5 : i32 to index
      %c0_71 = arith.constant 0 : index
      %c0_72 = arith.constant 0 : index
      %87 = vector.load %arg4[%c0_70, %86, %c0_71, %c0_72] : memref<1x8x8x128xbf16, #tpu.memory_space<vmem>>, vector<1x1x8x128xbf16>
      %88 = vector.shape_cast %87 : vector<1x1x8x128xbf16> to vector<8x128xbf16>
      %89 = vector.shape_cast %85 : vector<8x128xbf16> to vector<1x1x8x128xbf16>
      tpu.vector_store %arg4[%c0_70, %86, %c0_71, %c0_72], %89 {strides = array<i32>} : memref<1x8x8x128xbf16, #tpu.memory_space<vmem>>, vector<1x1x8x128xbf16>,
    }
    %c8_i32_3 = arith.constant 8 : i32
    return
  }
  func.func @transform_0(%arg0: i32) -> (i32, i32, i32, i32) {
    %c0_i32 = arith.constant 0 : i32
    %c0_i32_0 = arith.constant 0 : i32
    %c0_i32_1 = arith.constant 0 : i32
    %c0_i32_2 = arith.constant 0 : i32
    return %arg0, %c0_i32, %c0_i32_0, %c0_i32_1 : i32, i32, i32, i32
  }
  func.func @transform_1(%arg0: i32) -> (i32, i32, i32) {
    %c0_i32 = arith.constant 0 : i32
    %c0_i32_0 = arith.constant 0 : i32
    %c0_i32_1 = arith.constant 0 : i32
    %c0_i32_2 = arith.constant 0 : i32
    return %c0_i32, %c0_i32_0, %c0_i32_1 : i32, i32, i32
  }
  func.func @transform_2(%arg0: i32) -> (i32, i32) {
    %c0_i32 = arith.constant 0 : i32
    %c0_i32_0 = arith.constant 0 : i32
    %c0_i32_1 = arith.constant 0 : i32
    return %c0_i32, %c0_i32_0 : i32, i32
  }
  func.func @transform_3(%arg0: i32) -> (i32, i32, i32, i32) {
    %c0_i32 = arith.constant 0 : i32
    %c0_i32_0 = arith.constant 0 : i32
    %c0_i32_1 = arith.constant 0 : i32
    %c0_i32_2 = arith.constant 0 : i32
    return %arg0, %c0_i32, %c0_i32_0, %c0_i32_1 : i32, i32, i32, i32
  }
}

module attributes {stable_mosaic.version = 11 : i64} {
  func.func @_conv_kernel(%arg0: i32, %arg1: memref<1x8x8x128xbf16, #tpu.memory_space<vmem>>, %arg2: memref<9x128x128xbf16, #tpu.memory_space<vmem>>, %arg3: memref<3x128xf32, #tpu.memory_space<vmem>>, %arg4: memref<1x6x6x128xbf16, #tpu.memory_space<vmem>>) attributes {dimension_semantics = [#tpu.dimension_semantics<parallel>], iteration_bounds = array<i64: 2>, scalar_prefetch = 0 : i64, scratch_operands = 0 : i64, tpu.core_type = #tpu.core_type<tc>, window_params = [{transform_indices = @transform_0, window_bounds = array<i64: 1, 8, 8, 128>}, {pipeline_mode = #tpu.pipeline_mode<synchronous>, transform_indices = @transform_1, window_bounds = array<i64: 9, 128, 128>}, {pipeline_mode = #tpu.pipeline_mode<synchronous>, transform_indices = @transform_2, window_bounds = array<i64: 3, 128>}, {transform_indices = @transform_3, window_bounds = array<i64: 1, 6, 6, 128>}]} {
    %c0 = arith.constant 0 : index
    %c0_0 = arith.constant 0 : index
    %0 = vector.load %arg3[%c0, %c0_0] : memref<3x128xf32, #tpu.memory_space<vmem>>, vector<1x128xf32>
    %c1 = arith.constant 1 : index
    %c0_1 = arith.constant 0 : index
    %1 = vector.load %arg3[%c1, %c0_1] : memref<3x128xf32, #tpu.memory_space<vmem>>, vector<1x128xf32>
    %c2 = arith.constant 2 : index
    %c0_2 = arith.constant 0 : index
    %2 = vector.load %arg3[%c2, %c0_2] : memref<3x128xf32, #tpu.memory_space<vmem>>, vector<1x128xf32>
    %c0_i32 = arith.constant 0 : i32
    %c6_i32 = arith.constant 6 : i32
    %3 = arith.addi %c0_i32, %c6_i32 : i32
    %c1_i32 = arith.constant 1 : i32
    scf.for %arg5 = %c0_i32 to %3 step %c1_i32  : i32 {
      %cst = arith.constant 0.000000e+00 : f32
      %4 = vector.broadcast %cst : f32 to vector<6x128xf32>
      %c0_i32_4 = arith.constant 0 : i32
      %5 = arith.addi %arg5, %c0_i32_4 : i32
      %c0_5 = arith.constant 0 : index
      %6 = arith.index_cast %5 : i32 to index
      %c0_6 = arith.constant 0 : index
      %c0_7 = arith.constant 0 : index
      %7 = vector.load %arg1[%c0_5, %6, %c0_6, %c0_7] : memref<1x8x8x128xbf16, #tpu.memory_space<vmem>>, vector<1x1x6x128xbf16>
      %8 = vector.shape_cast %7 : vector<1x1x6x128xbf16> to vector<6x128xbf16>
      %c0_8 = arith.constant 0 : index
      %c0_9 = arith.constant 0 : index
      %c0_10 = arith.constant 0 : index
      %9 = vector.load %arg2[%c0_8, %c0_9, %c0_10] : memref<9x128x128xbf16, #tpu.memory_space<vmem>>, vector<1x128x128xbf16>
      %10 = vector.shape_cast %9 : vector<1x128x128xbf16> to vector<128x128xbf16>
      %cst_11 = arith.constant dense<0.000000e+00> : vector<6x128xf32>
      %11 = tpu.matmul %8, %10, %cst_11 {dimension_numbers = #tpu.dot_dimension_numbers<[1], [0], [0], [1], [0, 0, 1, 1], [], []>} : vector<6x128xbf16>, vector<128x128xbf16>, vector<6x128xf32> -> vector<6x128xf32>
      %12 = arith.addf %4, %11 : vector<6x128xf32>
      %c0_i32_12 = arith.constant 0 : i32
      %13 = arith.addi %arg5, %c0_i32_12 : i32
      %c0_13 = arith.constant 0 : index
      %14 = arith.index_cast %13 : i32 to index
      %c1_14 = arith.constant 1 : index
      %c0_15 = arith.constant 0 : index
      %15 = vector.load %arg1[%c0_13, %14, %c1_14, %c0_15] : memref<1x8x8x128xbf16, #tpu.memory_space<vmem>>, vector<1x1x6x128xbf16>
      %16 = vector.shape_cast %15 : vector<1x1x6x128xbf16> to vector<6x128xbf16>
      %c1_16 = arith.constant 1 : index
      %c0_17 = arith.constant 0 : index
      %c0_18 = arith.constant 0 : index
      %17 = vector.load %arg2[%c1_16, %c0_17, %c0_18] : memref<9x128x128xbf16, #tpu.memory_space<vmem>>, vector<1x128x128xbf16>
      %18 = vector.shape_cast %17 : vector<1x128x128xbf16> to vector<128x128xbf16>
      %cst_19 = arith.constant dense<0.000000e+00> : vector<6x128xf32>
      %19 = tpu.matmul %16, %18, %cst_19 {dimension_numbers = #tpu.dot_dimension_numbers<[1], [0], [0], [1], [0, 0, 1, 1], [], []>} : vector<6x128xbf16>, vector<128x128xbf16>, vector<6x128xf32> -> vector<6x128xf32>
      %20 = arith.addf %12, %19 : vector<6x128xf32>
      %c0_i32_20 = arith.constant 0 : i32
      %21 = arith.addi %arg5, %c0_i32_20 : i32
      %c0_21 = arith.constant 0 : index
      %22 = arith.index_cast %21 : i32 to index
      %c2_22 = arith.constant 2 : index
      %c0_23 = arith.constant 0 : index
      %23 = vector.load %arg1[%c0_21, %22, %c2_22, %c0_23] : memref<1x8x8x128xbf16, #tpu.memory_space<vmem>>, vector<1x1x6x128xbf16>
      %24 = vector.shape_cast %23 : vector<1x1x6x128xbf16> to vector<6x128xbf16>
      %c2_24 = arith.constant 2 : index
      %c0_25 = arith.constant 0 : index
      %c0_26 = arith.constant 0 : index
      %25 = vector.load %arg2[%c2_24, %c0_25, %c0_26] : memref<9x128x128xbf16, #tpu.memory_space<vmem>>, vector<1x128x128xbf16>
      %26 = vector.shape_cast %25 : vector<1x128x128xbf16> to vector<128x128xbf16>
      %cst_27 = arith.constant dense<0.000000e+00> : vector<6x128xf32>
      %27 = tpu.matmul %24, %26, %cst_27 {dimension_numbers = #tpu.dot_dimension_numbers<[1], [0], [0], [1], [0, 0, 1, 1], [], []>} : vector<6x128xbf16>, vector<128x128xbf16>, vector<6x128xf32> -> vector<6x128xf32>
      %28 = arith.addf %20, %27 : vector<6x128xf32>
      %c1_i32_28 = arith.constant 1 : i32
      %29 = arith.addi %arg5, %c1_i32_28 : i32
      %c0_29 = arith.constant 0 : index
      %30 = arith.index_cast %29 : i32 to index
      %c0_30 = arith.constant 0 : index
      %c0_31 = arith.constant 0 : index
      %31 = vector.load %arg1[%c0_29, %30, %c0_30, %c0_31] : memref<1x8x8x128xbf16, #tpu.memory_space<vmem>>, vector<1x1x6x128xbf16>
      %32 = vector.shape_cast %31 : vector<1x1x6x128xbf16> to vector<6x128xbf16>
      %c3 = arith.constant 3 : index
      %c0_32 = arith.constant 0 : index
      %c0_33 = arith.constant 0 : index
      %33 = vector.load %arg2[%c3, %c0_32, %c0_33] : memref<9x128x128xbf16, #tpu.memory_space<vmem>>, vector<1x128x128xbf16>
      %34 = vector.shape_cast %33 : vector<1x128x128xbf16> to vector<128x128xbf16>
      %cst_34 = arith.constant dense<0.000000e+00> : vector<6x128xf32>
      %35 = tpu.matmul %32, %34, %cst_34 {dimension_numbers = #tpu.dot_dimension_numbers<[1], [0], [0], [1], [0, 0, 1, 1], [], []>} : vector<6x128xbf16>, vector<128x128xbf16>, vector<6x128xf32> -> vector<6x128xf32>
      %36 = arith.addf %28, %35 : vector<6x128xf32>
      %c1_i32_35 = arith.constant 1 : i32
      %37 = arith.addi %arg5, %c1_i32_35 : i32
      %c0_36 = arith.constant 0 : index
      %38 = arith.index_cast %37 : i32 to index
      %c1_37 = arith.constant 1 : index
      %c0_38 = arith.constant 0 : index
      %39 = vector.load %arg1[%c0_36, %38, %c1_37, %c0_38] : memref<1x8x8x128xbf16, #tpu.memory_space<vmem>>, vector<1x1x6x128xbf16>
      %40 = vector.shape_cast %39 : vector<1x1x6x128xbf16> to vector<6x128xbf16>
      %c4 = arith.constant 4 : index
      %c0_39 = arith.constant 0 : index
      %c0_40 = arith.constant 0 : index
      %41 = vector.load %arg2[%c4, %c0_39, %c0_40] : memref<9x128x128xbf16, #tpu.memory_space<vmem>>, vector<1x128x128xbf16>
      %42 = vector.shape_cast %41 : vector<1x128x128xbf16> to vector<128x128xbf16>
      %cst_41 = arith.constant dense<0.000000e+00> : vector<6x128xf32>
      %43 = tpu.matmul %40, %42, %cst_41 {dimension_numbers = #tpu.dot_dimension_numbers<[1], [0], [0], [1], [0, 0, 1, 1], [], []>} : vector<6x128xbf16>, vector<128x128xbf16>, vector<6x128xf32> -> vector<6x128xf32>
      %44 = arith.addf %36, %43 : vector<6x128xf32>
      %c1_i32_42 = arith.constant 1 : i32
      %45 = arith.addi %arg5, %c1_i32_42 : i32
      %c0_43 = arith.constant 0 : index
      %46 = arith.index_cast %45 : i32 to index
      %c2_44 = arith.constant 2 : index
      %c0_45 = arith.constant 0 : index
      %47 = vector.load %arg1[%c0_43, %46, %c2_44, %c0_45] : memref<1x8x8x128xbf16, #tpu.memory_space<vmem>>, vector<1x1x6x128xbf16>
      %48 = vector.shape_cast %47 : vector<1x1x6x128xbf16> to vector<6x128xbf16>
      %c5 = arith.constant 5 : index
      %c0_46 = arith.constant 0 : index
      %c0_47 = arith.constant 0 : index
      %49 = vector.load %arg2[%c5, %c0_46, %c0_47] : memref<9x128x128xbf16, #tpu.memory_space<vmem>>, vector<1x128x128xbf16>
      %50 = vector.shape_cast %49 : vector<1x128x128xbf16> to vector<128x128xbf16>
      %cst_48 = arith.constant dense<0.000000e+00> : vector<6x128xf32>
      %51 = tpu.matmul %48, %50, %cst_48 {dimension_numbers = #tpu.dot_dimension_numbers<[1], [0], [0], [1], [0, 0, 1, 1], [], []>} : vector<6x128xbf16>, vector<128x128xbf16>, vector<6x128xf32> -> vector<6x128xf32>
      %52 = arith.addf %44, %51 : vector<6x128xf32>
      %c2_i32 = arith.constant 2 : i32
      %53 = arith.addi %arg5, %c2_i32 : i32
      %c0_49 = arith.constant 0 : index
      %54 = arith.index_cast %53 : i32 to index
      %c0_50 = arith.constant 0 : index
      %c0_51 = arith.constant 0 : index
      %55 = vector.load %arg1[%c0_49, %54, %c0_50, %c0_51] : memref<1x8x8x128xbf16, #tpu.memory_space<vmem>>, vector<1x1x6x128xbf16>
      %56 = vector.shape_cast %55 : vector<1x1x6x128xbf16> to vector<6x128xbf16>
      %c6 = arith.constant 6 : index
      %c0_52 = arith.constant 0 : index
      %c0_53 = arith.constant 0 : index
      %57 = vector.load %arg2[%c6, %c0_52, %c0_53] : memref<9x128x128xbf16, #tpu.memory_space<vmem>>, vector<1x128x128xbf16>
      %58 = vector.shape_cast %57 : vector<1x128x128xbf16> to vector<128x128xbf16>
      %cst_54 = arith.constant dense<0.000000e+00> : vector<6x128xf32>
      %59 = tpu.matmul %56, %58, %cst_54 {dimension_numbers = #tpu.dot_dimension_numbers<[1], [0], [0], [1], [0, 0, 1, 1], [], []>} : vector<6x128xbf16>, vector<128x128xbf16>, vector<6x128xf32> -> vector<6x128xf32>
      %60 = arith.addf %52, %59 : vector<6x128xf32>
      %c2_i32_55 = arith.constant 2 : i32
      %61 = arith.addi %arg5, %c2_i32_55 : i32
      %c0_56 = arith.constant 0 : index
      %62 = arith.index_cast %61 : i32 to index
      %c1_57 = arith.constant 1 : index
      %c0_58 = arith.constant 0 : index
      %63 = vector.load %arg1[%c0_56, %62, %c1_57, %c0_58] : memref<1x8x8x128xbf16, #tpu.memory_space<vmem>>, vector<1x1x6x128xbf16>
      %64 = vector.shape_cast %63 : vector<1x1x6x128xbf16> to vector<6x128xbf16>
      %c7 = arith.constant 7 : index
      %c0_59 = arith.constant 0 : index
      %c0_60 = arith.constant 0 : index
      %65 = vector.load %arg2[%c7, %c0_59, %c0_60] : memref<9x128x128xbf16, #tpu.memory_space<vmem>>, vector<1x128x128xbf16>
      %66 = vector.shape_cast %65 : vector<1x128x128xbf16> to vector<128x128xbf16>
      %cst_61 = arith.constant dense<0.000000e+00> : vector<6x128xf32>
      %67 = tpu.matmul %64, %66, %cst_61 {dimension_numbers = #tpu.dot_dimension_numbers<[1], [0], [0], [1], [0, 0, 1, 1], [], []>} : vector<6x128xbf16>, vector<128x128xbf16>, vector<6x128xf32> -> vector<6x128xf32>
      %68 = arith.addf %60, %67 : vector<6x128xf32>
      %c2_i32_62 = arith.constant 2 : i32
      %69 = arith.addi %arg5, %c2_i32_62 : i32
      %c0_63 = arith.constant 0 : index
      %70 = arith.index_cast %69 : i32 to index
      %c2_64 = arith.constant 2 : index
      %c0_65 = arith.constant 0 : index
      %71 = vector.load %arg1[%c0_63, %70, %c2_64, %c0_65] : memref<1x8x8x128xbf16, #tpu.memory_space<vmem>>, vector<1x1x6x128xbf16>
      %72 = vector.shape_cast %71 : vector<1x1x6x128xbf16> to vector<6x128xbf16>
      %c8 = arith.constant 8 : index
      %c0_66 = arith.constant 0 : index
      %c0_67 = arith.constant 0 : index
      %73 = vector.load %arg2[%c8, %c0_66, %c0_67] : memref<9x128x128xbf16, #tpu.memory_space<vmem>>, vector<1x128x128xbf16>
      %74 = vector.shape_cast %73 : vector<1x128x128xbf16> to vector<128x128xbf16>
      %cst_68 = arith.constant dense<0.000000e+00> : vector<6x128xf32>
      %75 = tpu.matmul %72, %74, %cst_68 {dimension_numbers = #tpu.dot_dimension_numbers<[1], [0], [0], [1], [0, 0, 1, 1], [], []>} : vector<6x128xbf16>, vector<128x128xbf16>, vector<6x128xf32> -> vector<6x128xf32>
      %76 = arith.addf %68, %75 : vector<6x128xf32>
      %77 = vector.broadcast %0 : vector<1x128xf32> to vector<6x128xf32>
      %78 = arith.addf %76, %77 : vector<6x128xf32>
      %cst_69 = arith.constant 0.000000e+00 : f32
      %79 = vector.broadcast %cst_69 : f32 to vector<6x128xf32>
      %80 = arith.maximumf %78, %79 : vector<6x128xf32>
      %81 = vector.broadcast %1 : vector<1x128xf32> to vector<6x128xf32>
      %82 = arith.mulf %80, %81 : vector<6x128xf32>
      %83 = vector.broadcast %2 : vector<1x128xf32> to vector<6x128xf32>
      %84 = arith.addf %82, %83 : vector<6x128xf32>
      %85 = arith.truncf %84 : vector<6x128xf32> to vector<6x128xbf16>
      %c0_70 = arith.constant 0 : index
      %86 = arith.index_cast %arg5 : i32 to index
      %c0_71 = arith.constant 0 : index
      %c0_72 = arith.constant 0 : index
      %87 = vector.load %arg4[%c0_70, %86, %c0_71, %c0_72] : memref<1x6x6x128xbf16, #tpu.memory_space<vmem>>, vector<1x1x6x128xbf16>
      %88 = vector.shape_cast %87 : vector<1x1x6x128xbf16> to vector<6x128xbf16>
      %89 = vector.shape_cast %85 : vector<6x128xbf16> to vector<1x1x6x128xbf16>
      tpu.vector_store %arg4[%c0_70, %86, %c0_71, %c0_72], %89 {strides = array<i32>} : memref<1x6x6x128xbf16, #tpu.memory_space<vmem>>, vector<1x1x6x128xbf16>,
    }
    %c6_i32_3 = arith.constant 6 : i32
    return
  }
  func.func @transform_0(%arg0: i32) -> (i32, i32, i32, i32) {
    %c0_i32 = arith.constant 0 : i32
    %c0_i32_0 = arith.constant 0 : i32
    %c0_i32_1 = arith.constant 0 : i32
    %c0_i32_2 = arith.constant 0 : i32
    return %arg0, %c0_i32, %c0_i32_0, %c0_i32_1 : i32, i32, i32, i32
  }
  func.func @transform_1(%arg0: i32) -> (i32, i32, i32) {
    %c0_i32 = arith.constant 0 : i32
    %c0_i32_0 = arith.constant 0 : i32
    %c0_i32_1 = arith.constant 0 : i32
    %c0_i32_2 = arith.constant 0 : i32
    return %c0_i32, %c0_i32_0, %c0_i32_1 : i32, i32, i32
  }
  func.func @transform_2(%arg0: i32) -> (i32, i32) {
    %c0_i32 = arith.constant 0 : i32
    %c0_i32_0 = arith.constant 0 : i32
    %c0_i32_1 = arith.constant 0 : i32
    return %c0_i32, %c0_i32_0 : i32, i32
  }
  func.func @transform_3(%arg0: i32) -> (i32, i32, i32, i32) {
    %c0_i32 = arith.constant 0 : i32
    %c0_i32_0 = arith.constant 0 : i32
    %c0_i32_1 = arith.constant 0 : i32
    %c0_i32_2 = arith.constant 0 : i32
    return %arg0, %c0_i32, %c0_i32_0, %c0_i32_1 : i32, i32, i32, i32
  }
}

module attributes {stable_mosaic.version = 11 : i64} {
  func.func @_tail_kernel(%arg0: i32, %arg1: memref<2x1152xbf16, #tpu.memory_space<vmem>>, %arg2: memref<1152x128xbf16, #tpu.memory_space<vmem>>, %arg3: memref<128x128xbf16, #tpu.memory_space<vmem>>, %arg4: memref<128x128xbf16, #tpu.memory_space<vmem>>, %arg5: memref<128x128xbf16, #tpu.memory_space<vmem>>, %arg6: memref<8x128xf32, #tpu.memory_space<vmem>>, %arg7: memref<2x128xf32, #tpu.memory_space<vmem>>) attributes {dimension_semantics = [#tpu.dimension_semantics<parallel>], iteration_bounds = array<i64: 1>, scalar_prefetch = 0 : i64, scratch_operands = 0 : i64, tpu.core_type = #tpu.core_type<tc>, window_params = [{transform_indices = @transform_0, window_bounds = array<i64: 2, 1152>}, {pipeline_mode = #tpu.pipeline_mode<synchronous>, transform_indices = @transform_1, window_bounds = array<i64: 1152, 128>}, {pipeline_mode = #tpu.pipeline_mode<synchronous>, transform_indices = @transform_2, window_bounds = array<i64: 128, 128>}, {pipeline_mode = #tpu.pipeline_mode<synchronous>, transform_indices = @transform_3, window_bounds = array<i64: 128, 128>}, {pipeline_mode = #tpu.pipeline_mode<synchronous>, transform_indices = @transform_4, window_bounds = array<i64: 128, 128>}, {pipeline_mode = #tpu.pipeline_mode<synchronous>, transform_indices = @transform_5, window_bounds = array<i64: 8, 128>}, {transform_indices = @transform_6, window_bounds = array<i64: 2, 128>}]} {
    %c0 = arith.constant 0 : index
    %c0_0 = arith.constant 0 : index
    %0 = vector.load %arg6[%c0, %c0_0] : memref<8x128xf32, #tpu.memory_space<vmem>>, vector<1x128xf32>
    %c1 = arith.constant 1 : index
    %c0_1 = arith.constant 0 : index
    %1 = vector.load %arg6[%c1, %c0_1] : memref<8x128xf32, #tpu.memory_space<vmem>>, vector<1x128xf32>
    %c2 = arith.constant 2 : index
    %c0_2 = arith.constant 0 : index
    %2 = vector.load %arg6[%c2, %c0_2] : memref<8x128xf32, #tpu.memory_space<vmem>>, vector<1x128xf32>
    %c3 = arith.constant 3 : index
    %c0_3 = arith.constant 0 : index
    %3 = vector.load %arg6[%c3, %c0_3] : memref<8x128xf32, #tpu.memory_space<vmem>>, vector<1x128xf32>
    %c4 = arith.constant 4 : index
    %c0_4 = arith.constant 0 : index
    %4 = vector.load %arg6[%c4, %c0_4] : memref<8x128xf32, #tpu.memory_space<vmem>>, vector<1x128xf32>
    %c5 = arith.constant 5 : index
    %c0_5 = arith.constant 0 : index
    %5 = vector.load %arg6[%c5, %c0_5] : memref<8x128xf32, #tpu.memory_space<vmem>>, vector<1x128xf32>
    %c6 = arith.constant 6 : index
    %c0_6 = arith.constant 0 : index
    %6 = vector.load %arg6[%c6, %c0_6] : memref<8x128xf32, #tpu.memory_space<vmem>>, vector<1x128xf32>
    %c7 = arith.constant 7 : index
    %c0_7 = arith.constant 0 : index
    %7 = vector.load %arg6[%c7, %c0_7] : memref<8x128xf32, #tpu.memory_space<vmem>>, vector<1x128xf32>
    %c0_8 = arith.constant 0 : index
    %c0_9 = arith.constant 0 : index
    %8 = vector.load %arg1[%c0_8, %c0_9] : memref<2x1152xbf16, #tpu.memory_space<vmem>>, vector<2x1152xbf16>
    %c0_10 = arith.constant 0 : index
    %c0_11 = arith.constant 0 : index
    %9 = vector.load %arg2[%c0_10, %c0_11] : memref<1152x128xbf16, #tpu.memory_space<vmem>>, vector<1152x128xbf16>
    %cst = arith.constant dense<0.000000e+00> : vector<2x128xf32>
    %10 = tpu.matmul %8, %9, %cst {dimension_numbers = #tpu.dot_dimension_numbers<[1], [0], [0], [1], [0, 0, 1, 1], [], []>} : vector<2x1152xbf16>, vector<1152x128xbf16>, vector<2x128xf32> -> vector<2x128xf32>
    %11 = vector.broadcast %0 : vector<1x128xf32> to vector<2x128xf32>
    %12 = arith.addf %10, %11 : vector<2x128xf32>
    %cst_12 = arith.constant 0.000000e+00 : f32
    %13 = vector.broadcast %cst_12 : f32 to vector<2x128xf32>
    %14 = arith.maximumf %12, %13 : vector<2x128xf32>
    %15 = vector.broadcast %1 : vector<1x128xf32> to vector<2x128xf32>
    %16 = arith.mulf %14, %15 : vector<2x128xf32>
    %17 = vector.broadcast %2 : vector<1x128xf32> to vector<2x128xf32>
    %18 = arith.addf %16, %17 : vector<2x128xf32>
    %19 = arith.truncf %18 : vector<2x128xf32> to vector<2x128xbf16>
    %c0_13 = arith.constant 0 : index
    %c0_14 = arith.constant 0 : index
    %20 = vector.load %arg3[%c0_13, %c0_14] : memref<128x128xbf16, #tpu.memory_space<vmem>>, vector<128x128xbf16>
    %cst_15 = arith.constant dense<0.000000e+00> : vector<2x128xf32>
    %21 = tpu.matmul %19, %20, %cst_15 {dimension_numbers = #tpu.dot_dimension_numbers<[1], [0], [0], [1], [0, 0, 1, 1], [], []>} : vector<2x128xbf16>, vector<128x128xbf16>, vector<2x128xf32> -> vector<2x128xf32>
    %22 = vector.broadcast %3 : vector<1x128xf32> to vector<2x128xf32>
    %23 = arith.addf %21, %22 : vector<2x128xf32>
    %cst_16 = arith.constant 0.000000e+00 : f32
    %24 = vector.broadcast %cst_16 : f32 to vector<2x128xf32>
    %25 = arith.maximumf %23, %24 : vector<2x128xf32>
    %26 = vector.broadcast %4 : vector<1x128xf32> to vector<2x128xf32>
    %27 = arith.mulf %25, %26 : vector<2x128xf32>
    %28 = vector.broadcast %5 : vector<1x128xf32> to vector<2x128xf32>
    %29 = arith.addf %27, %28 : vector<2x128xf32>
    %30 = arith.truncf %29 : vector<2x128xf32> to vector<2x128xbf16>
    %c0_17 = arith.constant 0 : index
    %c0_18 = arith.constant 0 : index
    %31 = vector.load %arg4[%c0_17, %c0_18] : memref<128x128xbf16, #tpu.memory_space<vmem>>, vector<128x128xbf16>
    %cst_19 = arith.constant dense<0.000000e+00> : vector<2x128xf32>
    %32 = tpu.matmul %30, %31, %cst_19 {dimension_numbers = #tpu.dot_dimension_numbers<[1], [0], [0], [1], [0, 0, 1, 1], [], []>} : vector<2x128xbf16>, vector<128x128xbf16>, vector<2x128xf32> -> vector<2x128xf32>
    %33 = vector.broadcast %6 : vector<1x128xf32> to vector<2x128xf32>
    %34 = arith.addf %32, %33 : vector<2x128xf32>
    %cst_20 = arith.constant 0.000000e+00 : f32
    %35 = vector.broadcast %cst_20 : f32 to vector<2x128xf32>
    %36 = arith.maximumf %34, %35 : vector<2x128xf32>
    %37 = arith.truncf %36 : vector<2x128xf32> to vector<2x128xbf16>
    %c0_21 = arith.constant 0 : index
    %c0_22 = arith.constant 0 : index
    %38 = vector.load %arg5[%c0_21, %c0_22] : memref<128x128xbf16, #tpu.memory_space<vmem>>, vector<128x128xbf16>
    %cst_23 = arith.constant dense<0.000000e+00> : vector<2x128xf32>
    %39 = tpu.matmul %37, %38, %cst_23 {dimension_numbers = #tpu.dot_dimension_numbers<[1], [0], [0], [1], [0, 0, 1, 1], [], []>} : vector<2x128xbf16>, vector<128x128xbf16>, vector<2x128xf32> -> vector<2x128xf32>
    %40 = vector.broadcast %7 : vector<1x128xf32> to vector<2x128xf32>
    %41 = arith.addf %39, %40 : vector<2x128xf32>
    %c0_24 = arith.constant 0 : index
    %c0_25 = arith.constant 0 : index
    %42 = vector.load %arg7[%c0_24, %c0_25] : memref<2x128xf32, #tpu.memory_space<vmem>>, vector<2x128xf32>
    tpu.vector_store %arg7[%c0_24, %c0_25], %41 {strides = array<i32>} : memref<2x128xf32, #tpu.memory_space<vmem>>, vector<2x128xf32>,
    return
  }
  func.func @transform_0(%arg0: i32) -> (i32, i32) {
    %c0_i32 = arith.constant 0 : i32
    %c0_i32_0 = arith.constant 0 : i32
    return %arg0, %c0_i32 : i32, i32
  }
  func.func @transform_1(%arg0: i32) -> (i32, i32) {
    %c0_i32 = arith.constant 0 : i32
    %c0_i32_0 = arith.constant 0 : i32
    %c0_i32_1 = arith.constant 0 : i32
    return %c0_i32, %c0_i32_0 : i32, i32
  }
  func.func @transform_2(%arg0: i32) -> (i32, i32) {
    %c0_i32 = arith.constant 0 : i32
    %c0_i32_0 = arith.constant 0 : i32
    %c0_i32_1 = arith.constant 0 : i32
    return %c0_i32, %c0_i32_0 : i32, i32
  }
  func.func @transform_3(%arg0: i32) -> (i32, i32) {
    %c0_i32 = arith.constant 0 : i32
    %c0_i32_0 = arith.constant 0 : i32
    %c0_i32_1 = arith.constant 0 : i32
    return %c0_i32, %c0_i32_0 : i32, i32
  }
  func.func @transform_4(%arg0: i32) -> (i32, i32) {
    %c0_i32 = arith.constant 0 : i32
    %c0_i32_0 = arith.constant 0 : i32
    %c0_i32_1 = arith.constant 0 : i32
    return %c0_i32, %c0_i32_0 : i32, i32
  }
  func.func @transform_5(%arg0: i32) -> (i32, i32) {
    %c0_i32 = arith.constant 0 : i32
    %c0_i32_0 = arith.constant 0 : i32
    %c0_i32_1 = arith.constant 0 : i32
    return %c0_i32, %c0_i32_0 : i32, i32
  }
  func.func @transform_6(%arg0: i32) -> (i32, i32) {
    %c0_i32 = arith.constant 0 : i32
    %c0_i32_0 = arith.constant 0 : i32
    return %arg0, %c0_i32 : i32, i32
  }
}

</mosaic_0001>

<llo_original>
// kernel: mnist_net_forward.5
$region0: #{mnist_net_forward.5}
  #allocation0 [shape = 'u32[]', space=smem, size = 0x4, offset = 0x4, fixed_abs, tag = 'smem constant byte address 0x4 - core index']
  #allocation1 [shape = 'u32[144,128]{1,0:T(1,128)}', space=vmem, size = 0x12000, scoped, tag = 'internal scratch']
  %s0 = inlined_call_operand.vmem [shape: bf16[2,28,28,8], index: 0, kind: input, shape index: {}]
  %s1 = inlined_call_operand.vmem [shape: bf16[25,8,128], index: 1, kind: input, shape index: {}]
  %s2 = inlined_call_operand.vmem [shape: f32[3,128], index: 2, kind: input, shape index: {}]
  %s3 = inlined_call_operand.vmem [shape: bf16[2,24,24,128], index: 3, kind: output, shape index: {}]
  %s4 = sld [smem:[#allocation0]]
  $region52: #{mnist_net_forward.5} parent=0
    _
  %s6 = ssub.s32 1, %s4
  %s7 = scalar_select 0, %s6, %s4
  loop: start=0, step=1, limit=4
  $region2: #{mnist_net_forward.5} parent=0 // loop_pre_header
    _
  $region3: #{mnist_net_forward.5} parent=0 // loop_header
    %s9 = sphi 0, %s13
    %p10 = scmp.ge.s32.totalorder %s9, 4
    %s19 = sphi 0, %s21
    %s22 = sphi 0, %s19
    %s23 = sphi 0, %s22
    %s39 = sphi 0, %s23
    %s43 = sphi 0, %s43
    %s45 = sphi 0, %s43
    %s46 = sphi 0, %s45
    %s60 = sphi 0, %s46
    %s64 = sphi 0, %s64
    %s66 = sphi 0, %s64
    %s67 = sphi 0, %s66
    %s81 = sphi 0, %s67
    %s87 = sphi 0, %s89
    %s90 = sphi 0, %s87
    %s91 = sphi 0, %s90
    %s107 = sphi 0, %s91
  $region4: #{mnist_net_forward.5} parent=0 // loop_header_branch
    %12 = sbr.rel (%p10) target = $region8
  $region5: #{mnist_net_forward.5} parent=0 // loop_body
    %s14 = ssub.s32 %s9, 1
    %s15 = ssub.s32 %s9, 2
    %s16 = sadd.s32 %s9, 1
    %s17 = ssub.s32 %s9, %s16
    %p18 = scmp.eq.s32.totalorder %s17, 0
    %s20 = sadd.s32 %s19, 1
    %s21 = scalar_select %p18, %s19, %s20
    %p24 = pneg %p18
    %p25 = scmp.eq.s32.totalorder %s9, 1
    %p26 = por %p24, %p25
    %p27 = scmp.ne.s32.totalorder %s19, %s22
    %p28 = scmp.eq.s32.totalorder %s9, 0
    %p29 = por %p27, %p28
    %p30 = scmp.ne.s32.totalorder %s19, %s22
    %p31 = scmp.eq.s32.totalorder %s14, 1
    %p32 = por %p30, %p31
    %p33 = scmp.ne.s32.totalorder %s22, %s23
    %p34 = scmp.eq.s32.totalorder %s14, 0
    %p35 = por %p33, %p34
    %p36 = scmp.ne.s32.totalorder %s22, %s23
    %p37 = scmp.eq.s32.totalorder %s15, 1
    %p38 = por %p36, %p37
    %p40 = scmp.ne.s32.totalorder %s23, %s39
    %p41 = scmp.eq.s32.totalorder %s15, 0
    %p42 = por %p40, %p41
    %s44 = sadd.s32 %s43, 1
    %p47 = scmp.eq.s32.totalorder %s9, 1
    %p48 = scmp.ne.s32.totalorder %s43, %s45
    %p49 = scmp.eq.s32.totalorder %s9, 0
    %p50 = por %p48, %p49
    %p51 = scmp.ne.s32.totalorder %s43, %s45
    %p52 = scmp.eq.s32.totalorder %s14, 1
    %p53 = por %p51, %p52
    %p54 = scmp.ne.s32.totalorder %s45, %s46
    %p55 = scmp.eq.s32.totalorder %s14, 0
    %p56 = por %p54, %p55
    %p57 = scmp.ne.s32.totalorder %s45, %s46
    %p58 = scmp.eq.s32.totalorder %s15, 1
    %p59 = por %p57, %p58
    %p61 = scmp.ne.s32.totalorder %s46, %s60
    %p62 = scmp.eq.s32.totalorder %s15, 0
    %p63 = por %p61, %p62
    %s65 = sadd.s32 %s64, 1
    %p68 = scmp.eq.s32.totalorder %s9, 1
    %p69 = scmp.ne.s32.totalorder %s64, %s66
    %p70 = scmp.eq.s32.totalorder %s9, 0
    %p71 = por %p69, %p70
    %p72 = scmp.ne.s32.totalorder %s64, %s66
    %p73 = scmp.eq.s32.totalorder %s14, 1
    %p74 = por %p72, %p73
    %p75 = scmp.ne.s32.totalorder %s66, %s67
    %p76 = scmp.eq.s32.totalorder %s14, 0
    %p77 = por %p75, %p76
    %p78 = scmp.ne.s32.totalorder %s66, %s67
    %p79 = scmp.eq.s32.totalorder %s15, 1
    %p80 = por %p78, %p79
    %p82 = scmp.ne.s32.totalorder %s67, %s81
    %p83 = scmp.eq.s32.totalorder %s15, 0
    %p84 = por %p82, %p83
    %s85 = ssub.s32 %s9, %s16
    %p86 = scmp.eq.s32.totalorder %s85, 0
    %s88 = sadd.s32 %s87, 1
    %s89 = scalar_select %p86, %s87, %s88
    %p92 = pneg %p86
    %p93 = scmp.eq.s32.totalorder %s9, 1
    %p94 = por %p92, %p93
    %p95 = scmp.ne.s32.totalorder %s87, %s90
    %p96 = scmp.eq.s32.totalorder %s9, 0
    %p97 = por %p95, %p96
    %p98 = scmp.ne.s32.totalorder %s87, %s90
    %p99 = scmp.eq.s32.totalorder %s14, 1
    %p100 = por %p98, %p99
    %p101 = scmp.ne.s32.totalorder %s90, %s91
    %p102 = scmp.eq.s32.totalorder %s14, 0
    %p103 = por %p101, %p102
    %p104 = scmp.ne.s32.totalorder %s90, %s91
    %p105 = scmp.eq.s32.totalorder %s15, 1
    %p106 = por %p104, %p105
    %p108 = scmp.ne.s32.totalorder %s91, %s107
    %p109 = scmp.eq.s32.totalorder %s15, 0
    %p110 = por %p108, %p109
    %p111 = scmp.le.s32.totalorder 1, %s9
    %p112 = scmp.lt.s32.totalorder %s9, 3
    %p113 = pnand %p111, %p112
    %p114 = pneg %p113
    // Predicated region
    $region9: #{mnist_net_forward.5} parent=5 // pred_check
      _
    $region10: #{mnist_net_forward.5} parent=5 // pred_check_branch
      %116 = sbr.rel (%p113) target = $region12
    $region11: #{mnist_net_forward.5} parent=5 // pred_region
      %s117 = ssub.s32 %s9, 1
      // Predicated region
      $region13: #{mnist_net_forward.5} parent=11 // pred_check
        %p118 = pneg %p56
      $region14: #{mnist_net_forward.5} parent=11 // pred_check_branch
        %120 = sbr.rel (%p118) target = $region16
      $region15: #{mnist_net_forward.5} parent=11 // pred_region
        _
      $region16: #{mnist_net_forward.5} parent=11 // pred_fallthru
        _
      // Predicated region
      $region17: #{mnist_net_forward.5} parent=11 // pred_check
        %p121 = pneg %p77
      $region18: #{mnist_net_forward.5} parent=11 // pred_check_branch
        %123 = sbr.rel (%p121) target = $region20
      $region19: #{mnist_net_forward.5} parent=11 // pred_region
        _
      $region20: #{mnist_net_forward.5} parent=11 // pred_fallthru
        _
    $region12: #{mnist_net_forward.5} parent=5 // pred_fallthru
      _
    %p124 = scmp.lt.s32.totalorder %s9, 2
    // Predicated region
    $region21: #{mnist_net_forward.5} parent=5 // pred_check
      %p125 = pneg %p124
    $region22: #{mnist_net_forward.5} parent=5 // pred_check_branch
      %127 = sbr.rel (%p125) target = $region24
    $region23: #{mnist_net_forward.5} parent=5 // pred_region
      // Predicated region
      $region25: #{mnist_net_forward.5} parent=23 // pred_check
        %p128 = pneg %p29
      $region26: #{mnist_net_forward.5} parent=23 // pred_check_branch
        %130 = sbr.rel (%p128) target = $region28
      $region27: #{mnist_net_forward.5} parent=23 // pred_region
        %p131 = scmp.lt.s32.totalorder %s9, 1
        %s132 = scalar_select %p131, %s9, 1
        %s133 = smul.addr %s132, 112
        %s134 = smul.addr %s133, 4
        %s135 = scalar_lea.vmem %s0, %s134
      $region28: #{mnist_net_forward.5} parent=23 // pred_fallthru
        _
    $region24: #{mnist_net_forward.5} parent=5 // pred_fallthru
      _
    %p136 = scmp.le.s32.totalorder 1, %s9
    %p137 = scmp.lt.s32.totalorder %s9, 3
    %p138 = pnand %p136, %p137
    %p139 = pneg %p138
    // Predicated region
    $region29: #{mnist_net_forward.5} parent=5 // pred_check
      _
    $region30: #{mnist_net_forward.5} parent=5 // pred_check_branch
      %141 = sbr.rel (%p138) target = $region32
    $region31: #{mnist_net_forward.5} parent=5 // pred_region
      %s142 = ssub.s32 %s9, 1
      %p143 = scmp.lt.s32.totalorder %s14, 1
      %s144 = scalar_select %p143, %s14, 1
      %s145 = smul.addr %s144, 112
      %s146 = smul.addr %s145, 4
      %s147 = scalar_lea.vmem %s0, %s146
      %p148 = pneg %p35
      %p149 = pneg %p32
      %p150 = pneg %p56
      %p151 = pneg %p53
      %p152 = pneg %p77
      %p153 = pneg %p74
      %p154 = pneg %p103
      %p155 = pneg %p100
      %p156 = scmp.lt.s32.totalorder %s14, 1
      %s157 = scalar_select %p156, %s14, 1
      %s158 = smul.addr %s157, 72
      %s159 = smul.addr %s158, 4
      %s160 = scalar_lea.vmem %s3, %s159
      %p161 = scmp.lt.s32.totalorder %s14, 1
      %s162 = scalar_select %p161, %s14, 1
      %s163 = smul.addr %s162, 112
      %s164 = smul.addr %s163, 4
      %s165 = scalar_lea.vmem %s0, %s164
      %p166 = scmp.lt.s32.totalorder %s14, 1
      %s167 = scalar_select %p166, %s14, 1
      %s168 = smul.addr %s167, 72
      %s169 = smul.addr %s168, 4
      %s170 = scalar_lea.vmem %s3, %s169
      %v172 = vld [vmem:[%s2] sm:$0x1]
      %v173 = vld [vmem:[%s2 + $0x1] sm:$0x1]
      %v174 = vld [vmem:[%s2 + $0x2] sm:$0x1]
      loop: start=0, step=1, limit=24
      $region33: #{mnist_net_forward.5} parent=31 // loop_pre_header
        _
      $region34: #{mnist_net_forward.5} parent=31 // loop_header
        %s176 = sphi 0, %s180
        %p177 = scmp.ge.s32.totalorder %s176, 24
      $region35: #{mnist_net_forward.5} parent=31 // loop_header_branch
        %179 = sbr.rel (%p177) target = $region39
      $region36: #{mnist_net_forward.5} parent=31 // loop_body
        %s181 = smul.u32 %s176, 4
        %s182 = smul.addr %s181, 4
        %s183 = scalar_lea.vmem %s165, %s182
        %v184 = vld [vmem:[%s183] sm:$0xf]
        %v185 = vld [vmem:[%s183 + $0x4] sm:$0xf]
        %v186 = vld [vmem:[%s183 + $0x8] sm:$0xf]
        %v187 = vld [vmem:[%s1] sm:$0xf]
        %v188 = vld [vmem:[%s183 + $0xc] sm:$0x1]
        %s189 = scalar_lea.vmem %s1, 4
        %v190 = vld [vmem:[%s189] sm:$0xf]
        %v195 = vunpack.c.l.b16 %v184
        %v196 = vunpack.c.l.b16 %v185
        %v197 = vunpack.c.l.b16 %v186
        %v198 = vunpack.c.l.b16 %v188
        %v199 = vpack.c.b16 %v196, %v195
        %v200 = vpack.c.b16 %v198, %v197
        %vm201 = vsmask.f32 7424
        %v203 = vshrl.u32 %v199, 16
        %v205 = vshll.u32 %v199, 16
        %v207 = vrot.slane %v205, 1
        %v208 = vor.u32 %v203, %v207
        %v210 = vshll.u32 %v200, 16
        %v212 = vrot.slane %v210, 1
        %v213 = vsel %vm201, %v208, %v212
        %v214 = vshrl.u32 %v200, 16
        %v216 = vor.u32 %v214, %v212
        %vm217 = vcmask 64512
        %v219 = vsel %vm217, %v213, 0
        %v222 = vsel %vm217, %v216, 0
        %vm224 = vcmask 1043456
        %v226 = vsel %vm224, %v190, 0
        %228 = vmatprep.subr.bf16.mxu0 0
        %229 = vmatpush1.bf16.msra.mxu0 0
        %230 = vmatprep.subr.bf16.mxu0 0
        %231 = vmatpush1.bf16.msra.mxu0 0
        %232 = vmatprep.subr.bf16.mxu0 0
        %233 = vmatpush1.bf16.msra.mxu0 0
        %234 = vmatprep.subr.bf16.mxu0 0
        %235 = vmatpush1.bf16.msra.mxu0 0
        %236 = vmatprep.subr.bf16.mxu0 0
        %237 = vmatpush1.bf16.msra.mxu0 0
        %238 = vmatprep.subr.bf16.mxu0 0
        %239 = vmatpush1.bf16.msra.mxu0 0
        %240 = vmatprep.subr.bf16.mxu0 0
        %241 = vmatpush1.bf16.msra.mxu0 0
        %242 = vmatprep.subr.bf16.mxu0 0
        %243 = vmatpush1.bf16.msra.mxu0 %v226
        %244 = vmatprep.subr.bf16.mxu0 0
        %245 = vmatpush2.bf16.msra.mxu0 0
        %246 = vmatprep.subr.bf16.mxu0 0
        %247 = vmatpush2.bf16.msra.mxu0 0
        %248 = vmatprep.subr.bf16.mxu0 0
        %249 = vmatpush2.bf16.msra.mxu0 0
        %250 = vmatprep.subr.bf16.mxu0 0
        %251 = vmatpush2.bf16.msra.mxu0 0
        %252 = vmatprep.subr.bf16.mxu0 0
        %253 = vmatpush2.bf16.msra.mxu0 0
        %254 = vmatprep.subr.bf16.mxu0 0
        %255 = vmatpush2.bf16.msra.mxu0 0
        %256 = vmatprep.subr.bf16.mxu0 0
        %257 = vmatpush2.bf16.msra.mxu0 0
        %258 = vmatprep.subr.bf16.mxu0 0
        %259 = vmatpush2.bf16.msra.mxu0 0
        %260 = vmatprep.mubr.bf16.mxu0 0
        %261 = vmatmul.mubr.bf16.gmra.mxu0 %v219
        %v262 = vpop.f32.mrf.mxu0
        %v263 = vadd.f32 0.0, %v262
        %v264 = vpop.f32.mrf.mxu0
        %v265 = vpop.f32.mrf.mxu0
        %v266 = vadd.f32 0.0, %v265
        %v267 = vpop.f32.mrf.mxu0
        %268 = vmatprep.mubr.bf16.mxu0 0
        %269 = vmatmul.mubr.bf16.gmra.mxu0 %v222
        %v270 = vpop.f32.mrf.mxu0
        %v271 = vadd.f32 0.0, %v270
        %v272 = vpop.f32.mrf.mxu0
        %v273 = vpop.f32.mrf.mxu0
        %v274 = vpop.f32.mrf.mxu0
        %275 = vdwg.mxu0
        %v276 = vpack.c.b16 %v197, %v197
        %v277 = vsel %vm217, %v199, 0
        %v280 = vsel %vm217, %v276, 0
        %v283 = vsel %vm224, %v187, 0
        %285 = vmatprep.subr.bf16.mxu0 0
        %286 = vmatpush1.bf16.msra.mxu0 0
        %287 = vmatprep.subr.bf16.mxu0 0
        %288 = vmatpush1.bf16.msra.mxu0 0
        %289 = vmatprep.subr.bf16.mxu0 0
        %290 = vmatpush1.bf16.msra.mxu0 0
        %291 = vmatprep.subr.bf16.mxu0 0
        %292 = vmatpush1.bf16.msra.mxu0 0
        %293 = vmatprep.subr.bf16.mxu0 0
        %294 = vmatpush1.bf16.msra.mxu0 0
        %295 = vmatprep.subr.bf16.mxu0 0
        %296 = vmatpush1.bf16.msra.mxu0 0
        %297 = vmatprep.subr.bf16.mxu0 0
        %298 = vmatpush1.bf16.msra.mxu0 0
        %299 = vmatprep.subr.bf16.mxu0 0
        %300 = vmatpush1.bf16.msra.mxu0 %v283
        %301 = vmatprep.subr.bf16.mxu0 0
        %302 = vmatpush2.bf16.msra.mxu0 0
        %303 = vmatprep.subr.bf16.mxu0 0
        %304 = vmatpush2.bf16.msra.mxu0 0
        %305 = vmatprep.subr.bf16.mxu0 0
        %306 = vmatpush2.bf16.msra.mxu0 0
        %307 = vmatprep.subr.bf16.mxu0 0
        %308 = vmatpush2.bf16.msra.mxu0 0
        %309 = vmatprep.subr.bf16.mxu0 0
        %310 = vmatpush2.bf16.msra.mxu0 0
        %311 = vmatprep.subr.bf16.mxu0 0
        %312 = vmatpush2.bf16.msra.mxu0 0
        %313 = vmatprep.subr.bf16.mxu0 0
        %314 = vmatpush2.bf16.msra.mxu0 0
        %315 = vmatprep.subr.bf16.mxu0 0
        %316 = vmatpush2.bf16.msra.mxu0 0
        %317 = vmatprep.mubr.bf16.mxu0 0
        %318 = vmatmul.mubr.bf16.gmra.mxu0 %v277
        %v319 = vpop.f32.mrf.mxu0
        %v320 = vadd.f32 %v263, %v319
        %v321 = vpop.f32.mrf.mxu0
        %v322 = vpop.f32.mrf.mxu0
        %v323 = vadd.f32 %v266, %v322
        %v324 = vpop.f32.mrf.mxu0
        %325 = vmatprep.mubr.bf16.mxu0 0
        %326 = vmatmul.mubr.bf16.gmra.mxu0 %v280
        %v327 = vpop.f32.mrf.mxu0
        %v328 = vadd.f32 %v271, %v327
        %v329 = vpop.f32.mrf.mxu0
        %v330 = vpop.f32.mrf.mxu0
        %v331 = vpop.f32.mrf.mxu0
        %332 = vdwg.mxu0
        %v333 = vld [vmem:[%s183] sm:$0xe]
        %s334 = scalar_lea.vmem %s1, 8
        %v335 = vld [vmem:[%s334] sm:$0xf]
        %v337 = vunpack.c.l.b16 %v333
        %v338 = vpack.c.b16 %v196, %v337
        %vm339 = vcmask 1046528
        %v340 = vrot.slane %v338, 1
        %v341 = vrot.slane %v200, 1
        %v342 = vsel %vm339, %v340, %v341
        %v344 = vsel %vm217, %v342, 0
        %v347 = vsel %vm217, %v341, 0
        %v350 = vsel %vm224, %v335, 0
        %352 = vmatprep.subr.bf16.mxu0 0
        %353 = vmatpush1.bf16.msra.mxu0 0
        %354 = vmatprep.subr.bf16.mxu0 0
        %355 = vmatpush1.bf16.msra.mxu0 0
        %356 = vmatprep.subr.bf16.mxu0 0
        %357 = vmatpush1.bf16.msra.mxu0 0
        %358 = vmatprep.subr.bf16.mxu0 0
        %359 = vmatpush1.bf16.msra.mxu0 0
        %360 = vmatprep.subr.bf16.mxu0 0
        %361 = vmatpush1.bf16.msra.mxu0 0
        %362 = vmatprep.subr.bf16.mxu0 0
        %363 = vmatpush1.bf16.msra.mxu0 0
        %364 = vmatprep.subr.bf16.mxu0 0
        %365 = vmatpush1.bf16.msra.mxu0 0
        %366 = vmatprep.subr.bf16.mxu0 0
        %367 = vmatpush1.bf16.msra.mxu0 %v350
        %368 = vmatprep.subr.bf16.mxu0 0
        %369 = vmatpush2.bf16.msra.mxu0 0
        %370 = vmatprep.subr.bf16.mxu0 0
        %371 = vmatpush2.bf16.msra.mxu0 0
        %372 = vmatprep.subr.bf16.mxu0 0
        %373 = vmatpush2.bf16.msra.mxu0 0
        %374 = vmatprep.subr.bf16.mxu0 0
        %375 = vmatpush2.bf16.msra.mxu0 0
        %376 = vmatprep.subr.bf16.mxu0 0
        %377 = vmatpush2.bf16.msra.mxu0 0
        %378 = vmatprep.subr.bf16.mxu0 0
        %379 = vmatpush2.bf16.msra.mxu0 0
        %380 = vmatprep.subr.bf16.mxu0 0
        %381 = vmatpush2.bf16.msra.mxu0 0
        %382 = vmatprep.subr.bf16.mxu0 0
        %383 = vmatpush2.bf16.msra.mxu0 0
        %384 = vmatprep.mubr.bf16.mxu0 0
        %385 = vmatmul.mubr.bf16.gmra.mxu0 %v344
        %v386 = vpop.f32.mrf.mxu0
        %v387 = vadd.f32 0.0, %v386
        %v388 = vpop.f32.mrf.mxu0
        %v389 = vpop.f32.mrf.mxu0
        %v390 = vadd.f32 0.0, %v389
        %v391 = vpop.f32.mrf.mxu0
        %392 = vmatprep.mubr.bf16.mxu0 0
        %393 = vmatmul.mubr.bf16.gmra.mxu0 %v347
        %v394 = vpop.f32.mrf.mxu0
        %v395 = vadd.f32 0.0, %v394
        %v396 = vpop.f32.mrf.mxu0
        %v397 = vpop.f32.mrf.mxu0
        %v398 = vpop.f32.mrf.mxu0
        %399 = vdwg.mxu0
        %v400 = vadd.f32 %v320, %v387
        %v401 = vadd.f32 %v323, %v390
        %v402 = vadd.f32 %v328, %v395
        %v403 = vld [vmem:[%s183 + $0xc] sm:$0x3]
        %s404 = scalar_lea.vmem %s1, 12
        %v405 = vld [vmem:[%s404] sm:$0xf]
        %v407 = vunpack.c.l.b16 %v403
        %v408 = vpack.c.b16 %v407, %v197
        %vm409 = vsmask.f32 6400
        %v411 = vshrl.u32 %v338, 16
        %v413 = vrot.slane %v411, 1
        %v414 = vshll.u32 %v338, 16
        %v416 = vrot.slane %v414, 2
        %v417 = vor.u32 %v413, %v416
        %v419 = vshrl.u32 %v408, 16
        %v421 = vrot.slane %v419, 1
        %v422 = vshll.u32 %v408, 16
        %v424 = vrot.slane %v422, 2
        %v425 = vor.u32 %v421, %v424
        %v426 = vsel %vm409, %v417, %v425
        %v428 = vsel %vm217, %v426, 0
        %v431 = vsel %vm217, %v425, 0
        %v434 = vsel %vm224, %v405, 0
        %436 = vmatprep.subr.bf16.mxu0 0
        %437 = vmatpush1.bf16.msra.mxu0 0
        %438 = vmatprep.subr.bf16.mxu0 0
        %439 = vmatpush1.bf16.msra.mxu0 0
        %440 = vmatprep.subr.bf16.mxu0 0
        %441 = vmatpush1.bf16.msra.mxu0 0
        %442 = vmatprep.subr.bf16.mxu0 0
        %443 = vmatpush1.bf16.msra.mxu0 0
        %444 = vmatprep.subr.bf16.mxu0 0
        %445 = vmatpush1.bf16.msra.mxu0 0
        %446 = vmatprep.subr.bf16.mxu0 0
        %447 = vmatpush1.bf16.msra.mxu0 0
        %448 = vmatprep.subr.bf16.mxu0 0
        %449 = vmatpush1.bf16.msra.mxu0 0
        %450 = vmatprep.subr.bf16.mxu0 0
        %451 = vmatpush1.bf16.msra.mxu0 %v434
        %452 = vmatprep.subr.bf16.mxu0 0
        %453 = vmatpush2.bf16.msra.mxu0 0
        %454 = vmatprep.subr.bf16.mxu0 0
        %455 = vmatpush2.bf16.msra.mxu0 0
        %456 = vmatprep.subr.bf16.mxu0 0
        %457 = vmatpush2.bf16.msra.mxu0 0
        %458 = vmatprep.subr.bf16.mxu0 0
        %459 = vmatpush2.bf16.msra.mxu0 0
        %460 = vmatprep.subr.bf16.mxu0 0
        %461 = vmatpush2.bf16.msra.mxu0 0
        %462 = vmatprep.subr.bf16.mxu0 0
        %463 = vmatpush2.bf16.msra.mxu0 0
        %464 = vmatprep.subr.bf16.mxu0 0
        %465 = vmatpush2.bf16.msra.mxu0 0
        %466 = vmatprep.subr.bf16.mxu0 0
        %467 = vmatpush2.bf16.msra.mxu0 0
        %468 = vmatprep.mubr.bf16.mxu0 0
        %469 = vmatmul.mubr.bf16.gmra.mxu0 %v428
        %v470 = vpop.f32.mrf.mxu0
        %v471 = vadd.f32 0.0, %v470
        %v472 = vpop.f32.mrf.mxu0
        %v473 = vpop.f32.mrf.mxu0
        %v474 = vadd.f32 0.0, %v473
        %v475 = vpop.f32.mrf.mxu0
        %476 = vmatprep.mubr.bf16.mxu0 0
        %477 = vmatmul.mubr.bf16.gmra.mxu0 %v431
        %v478 = vpop.f32.mrf.mxu0
        %v479 = vadd.f32 0.0, %v478
        %v480 = vpop.f32.mrf.mxu0
        %v481 = vpop.f32.mrf.mxu0
        %v482 = vpop.f32.mrf.mxu0
        %483 = vdwg.mxu0
        %v484 = vadd.f32 %v400, %v471
        %v485 = vadd.f32 %v401, %v474
        %v486 = vadd.f32 %v402, %v479
        %v487 = vld [vmem:[%s183] sm:$0xc]
        %s488 = scalar_lea.vmem %s1, 16
        %v489 = vld [vmem:[%s488] sm:$0xf]
        %v491 = vunpack.c.l.b16 %v487
        %v492 = vpack.c.b16 %v196, %v491
        %vm493 = vcmask 1045504
        %v494 = vrot.slane %v492, 2
        %v495 = vrot.slane %v408, 2
        %v496 = vsel %vm493, %v494, %v495
        %v498 = vsel %vm217, %v496, 0
        %v501 = vsel %vm217, %v495, 0
        %v504 = vsel %vm224, %v489, 0
        %506 = vmatprep.subr.bf16.mxu0 0
        %507 = vmatpush1.bf16.msra.mxu0 0
        %508 = vmatprep.subr.bf16.mxu0 0
        %509 = vmatpush1.bf16.msra.mxu0 0
        %510 = vmatprep.subr.bf16.mxu0 0
        %511 = vmatpush1.bf16.msra.mxu0 0
        %512 = vmatprep.subr.bf16.mxu0 0
        %513 = vmatpush1.bf16.msra.mxu0 0
        %514 = vmatprep.subr.bf16.mxu0 0
        %515 = vmatpush1.bf16.msra.mxu0 0
        %516 = vmatprep.subr.bf16.mxu0 0
        %517 = vmatpush1.bf16.msra.mxu0 0
        %518 = vmatprep.subr.bf16.mxu0 0
        %519 = vmatpush1.bf16.msra.mxu0 0
        %520 = vmatprep.subr.bf16.mxu0 0
        %521 = vmatpush1.bf16.msra.mxu0 %v504
        %522 = vmatprep.subr.bf16.mxu0 0
        %523 = vmatpush2.bf16.msra.mxu0 0
        %524 = vmatprep.subr.bf16.mxu0 0
        %525 = vmatpush2.bf16.msra.mxu0 0
        %526 = vmatprep.subr.bf16.mxu0 0
        %527 = vmatpush2.bf16.msra.mxu0 0
        %528 = vmatprep.subr.bf16.mxu0 0
        %529 = vmatpush2.bf16.msra.mxu0 0
        %530 = vmatprep.subr.bf16.mxu0 0
        %531 = vmatpush2.bf16.msra.mxu0 0
        %532 = vmatprep.subr.bf16.mxu0 0
        %533 = vmatpush2.bf16.msra.mxu0 0
        %534 = vmatprep.subr.bf16.mxu0 0
        %535 = vmatpush2.bf16.msra.mxu0 0
        %536 = vmatprep.subr.bf16.mxu0 0
        %537 = vmatpush2.bf16.msra.mxu0 0
        %538 = vmatprep.mubr.bf16.mxu0 0
        %539 = vmatmul.mubr.bf16.gmra.mxu0 %v498
        %v540 = vpop.f32.mrf.mxu0
        %v541 = vadd.f32 0.0, %v540
        %v542 = vpop.f32.mrf.mxu0
        %v543 = vpop.f32.mrf.mxu0
        %v544 = vadd.f32 0.0, %v543
        %v545 = vpop.f32.mrf.mxu0
        %546 = vmatprep.mubr.bf16.mxu0 0
        %547 = vmatmul.mubr.bf16.gmra.mxu0 %v501
        %v548 = vpop.f32.mrf.mxu0
        %v549 = vadd.f32 0.0, %v548
        %v550 = vpop.f32.mrf.mxu0
        %v551 = vpop.f32.mrf.mxu0
        %v552 = vpop.f32.mrf.mxu0
        %553 = vdwg.mxu0
        %v554 = vadd.f32 %v484, %v541
        %v555 = vadd.f32 %v485, %v544
        %v556 = vadd.f32 %v486, %v549
        %s557 = sadd.s32 %s176, 1
        %s558 = smul.u32 %s557, 4
        %s559 = smul.addr %s558, 4
        %s560 = scalar_lea.vmem %s165, %s559
        %v561 = vld [vmem:[%s560] sm:$0xf]
        %v562 = vld [vmem:[%s560 + $0x4] sm:$0xf]
        %v563 = vld [vmem:[%s560 + $0x8] sm:$0xf]
        %s564 = scalar_lea.vmem %s1, 20
        %v565 = vld [vmem:[%s564] sm:$0xf]
        %v569 = vunpack.c.l.b16 %v561
        %v570 = vunpack.c.l.b16 %v562
        %v571 = vunpack.c.l.b16 %v563
        %v572 = vpack.c.b16 %v570, %v569
        %v573 = vpack.c.b16 %v571, %v571
        %v575 = vsel %vm217, %v572, 0
        %v578 = vsel %vm217, %v573, 0
        %v581 = vsel %vm224, %v565, 0
        %583 = vmatprep.subr.bf16.mxu0 0
        %584 = vmatpush1.bf16.msra.mxu0 0
        %585 = vmatprep.subr.bf16.mxu0 0
        %586 = vmatpush1.bf16.msra.mxu0 0
        %587 = vmatprep.subr.bf16.mxu0 0
        %588 = vmatpush1.bf16.msra.mxu0 0
        %589 = vmatprep.subr.bf16.mxu0 0
        %590 = vmatpush1.bf16.msra.mxu0 0
        %591 = vmatprep.subr.bf16.mxu0 0
        %592 = vmatpush1.bf16.msra.mxu0 0
        %593 = vmatprep.subr.bf16.mxu0 0
        %594 = vmatpush1.bf16.msra.mxu0 0
        %595 = vmatprep.subr.bf16.mxu0 0
        %596 = vmatpush1.bf16.msra.mxu0 0
        %597 = vmatprep.subr.bf16.mxu0 0
        %598 = vmatpush1.bf16.msra.mxu0 %v581
        %599 = vmatprep.subr.bf16.mxu0 0
        %600 = vmatpush2.bf16.msra.mxu0 0
        %601 = vmatprep.subr.bf16.mxu0 0
        %602 = vmatpush2.bf16.msra.mxu0 0
        %603 = vmatprep.subr.bf16.mxu0 0
        %604 = vmatpush2.bf16.msra.mxu0 0
        %605 = vmatprep.subr.bf16.mxu0 0
        %606 = vmatpush2.bf16.msra.mxu0 0
        %607 = vmatprep.subr.bf16.mxu0 0
        %608 = vmatpush2.bf16.msra.mxu0 0
        %609 = vmatprep.subr.bf16.mxu0 0
        %610 = vmatpush2.bf16.msra.mxu0 0
        %611 = vmatprep.subr.bf16.mxu0 0
        %612 = vmatpush2.bf16.msra.mxu0 0
        %613 = vmatprep.subr.bf16.mxu0 0
        %614 = vmatpush2.bf16.msra.mxu0 0
        %615 = vmatprep.mubr.bf16.mxu0 0
        %616 = vmatmul.mubr.bf16.gmra.mxu0 %v575
        %v617 = vpop.f32.mrf.mxu0
        %v618 = vadd.f32 0.0, %v617
        %v619 = vpop.f32.mrf.mxu0
        %v620 = vpop.f32.mrf.mxu0
        %v621 = vadd.f32 0.0, %v620
        %v622 = vpop.f32.mrf.mxu0
        %623 = vmatprep.mubr.bf16.mxu0 0
        %624 = vmatmul.mubr.bf16.gmra.mxu0 %v578
        %v625 = vpop.f32.mrf.mxu0
        %v626 = vadd.f32 0.0, %v625
        %v627 = vpop.f32.mrf.mxu0
        %v628 = vpop.f32.mrf.mxu0
        %v629 = vpop.f32.mrf.mxu0
        %630 = vdwg.mxu0
        %v631 = vadd.f32 %v554, %v618
        %v632 = vadd.f32 %v555, %v621
        %v633 = vadd.f32 %v556, %v626
        %v634 = vld [vmem:[%s560] sm:$0xf]
        %v635 = vld [vmem:[%s560 + $0x4] sm:$0xf]
        %v636 = vld [vmem:[%s560 + $0x8] sm:$0xf]
        %v637 = vld [vmem:[%s560 + $0xc] sm:$0x1]
        %s638 = scalar_lea.vmem %s1, 24
        %v639 = vld [vmem:[%s638] sm:$0xf]
        %v644 = vunpack.c.l.b16 %v634
        %v645 = vunpack.c.l.b16 %v635
        %v646 = vunpack.c.l.b16 %v636
        %v647 = vunpack.c.l.b16 %v637
        %v648 = vpack.c.b16 %v645, %v644
        %v649 = vpack.c.b16 %v647, %v646
        %v651 = vshrl.u32 %v648, 16
        %v653 = vshll.u32 %v648, 16
        %v655 = vrot.slane %v653, 1
        %v656 = vor.u32 %v651, %v655
        %v658 = vshll.u32 %v649, 16
        %v660 = vrot.slane %v658, 1
        %v661 = vsel %vm201, %v656, %v660
        %v662 = vshrl.u32 %v649, 16
        %v664 = vor.u32 %v662, %v660
        %v666 = vsel %vm217, %v661, 0
        %v669 = vsel %vm217, %v664, 0
        %v672 = vsel %vm224, %v639, 0
        %674 = vmatprep.subr.bf16.mxu0 0
        %675 = vmatpush1.bf16.msra.mxu0 0
        %676 = vmatprep.subr.bf16.mxu0 0
        %677 = vmatpush1.bf16.msra.mxu0 0
        %678 = vmatprep.subr.bf16.mxu0 0
        %679 = vmatpush1.bf16.msra.mxu0 0
        %680 = vmatprep.subr.bf16.mxu0 0
        %681 = vmatpush1.bf16.msra.mxu0 0
        %682 = vmatprep.subr.bf16.mxu0 0
        %683 = vmatpush1.bf16.msra.mxu0 0
        %684 = vmatprep.subr.bf16.mxu0 0
        %685 = vmatpush1.bf16.msra.mxu0 0
        %686 = vmatprep.subr.bf16.mxu0 0
        %687 = vmatpush1.bf16.msra.mxu0 0
        %688 = vmatprep.subr.bf16.mxu0 0
        %689 = vmatpush1.bf16.msra.mxu0 %v672
        %690 = vmatprep.subr.bf16.mxu0 0
        %691 = vmatpush2.bf16.msra.mxu0 0
        %692 = vmatprep.subr.bf16.mxu0 0
        %693 = vmatpush2.bf16.msra.mxu0 0
        %694 = vmatprep.subr.bf16.mxu0 0
        %695 = vmatpush2.bf16.msra.mxu0 0
        %696 = vmatprep.subr.bf16.mxu0 0
        %697 = vmatpush2.bf16.msra.mxu0 0
        %698 = vmatprep.subr.bf16.mxu0 0
        %699 = vmatpush2.bf16.msra.mxu0 0
        %700 = vmatprep.subr.bf16.mxu0 0
        %701 = vmatpush2.bf16.msra.mxu0 0
        %702 = vmatprep.subr.bf16.mxu0 0
        %703 = vmatpush2.bf16.msra.mxu0 0
        %704 = vmatprep.subr.bf16.mxu0 0
        %705 = vmatpush2.bf16.msra.mxu0 0
        %706 = vmatprep.mubr.bf16.mxu0 0
        %707 = vmatmul.mubr.bf16.gmra.mxu0 %v666
        %v708 = vpop.f32.mrf.mxu0
        %v709 = vadd.f32 0.0, %v708
        %v710 = vpop.f32.mrf.mxu0
        %v711 = vpop.f32.mrf.mxu0
        %v712 = vadd.f32 0.0, %v711
        %v713 = vpop.f32.mrf.mxu0
        %714 = vmatprep.mubr.bf16.mxu0 0
        %715 = vmatmul.mubr.bf16.gmra.mxu0 %v669
        %v716 = vpop.f32.mrf.mxu0
        %v717 = vadd.f32 0.0, %v716
        %v718 = vpop.f32.mrf.mxu0
        %v719 = vpop.f32.mrf.mxu0
        %v720 = vpop.f32.mrf.mxu0
        %721 = vdwg.mxu0
        %v722 = vadd.f32 %v631, %v709
        %v723 = vadd.f32 %v632, %v712
        %v724 = vadd.f32 %v633, %v717
        %v725 = vld [vmem:[%s560] sm:$0xe]
        %s726 = scalar_lea.vmem %s1, 28
        %v727 = vld [vmem:[%s726] sm:$0xf]
        %v729 = vunpack.c.l.b16 %v725
        %v730 = vpack.c.b16 %v645, %v729
        %v731 = vrot.slane %v730, 1
        %v732 = vrot.slane %v649, 1
        %v733 = vsel %vm339, %v731, %v732
        %v735 = vsel %vm217, %v733, 0
        %v738 = vsel %vm217, %v732, 0
        %v741 = vsel %vm224, %v727, 0
        %743 = vmatprep.subr.bf16.mxu0 0
        %744 = vmatpush1.bf16.msra.mxu0 0
        %745 = vmatprep.subr.bf16.mxu0 0
        %746 = vmatpush1.bf16.msra.mxu0 0
        %747 = vmatprep.subr.bf16.mxu0 0
        %748 = vmatpush1.bf16.msra.mxu0 0
        %749 = vmatprep.subr.bf16.mxu0 0
        %750 = vmatpush1.bf16.msra.mxu0 0
        %751 = vmatprep.subr.bf16.mxu0 0
        %752 = vmatpush1.bf16.msra.mxu0 0
        %753 = vmatprep.subr.bf16.mxu0 0
        %754 = vmatpush1.bf16.msra.mxu0 0
        %755 = vmatprep.subr.bf16.mxu0 0
        %756 = vmatpush1.bf16.msra.mxu0 0
        %757 = vmatprep.subr.bf16.mxu0 0
        %758 = vmatpush1.bf16.msra.mxu0 %v741
        %759 = vmatprep.subr.bf16.mxu0 0
        %760 = vmatpush2.bf16.msra.mxu0 0
        %761 = vmatprep.subr.bf16.mxu0 0
        %762 = vmatpush2.bf16.msra.mxu0 0
        %763 = vmatprep.subr.bf16.mxu0 0
        %764 = vmatpush2.bf16.msra.mxu0 0
        %765 = vmatprep.subr.bf16.mxu0 0
        %766 = vmatpush2.bf16.msra.mxu0 0
        %767 = vmatprep.subr.bf16.mxu0 0
        %768 = vmatpush2.bf16.msra.mxu0 0
        %769 = vmatprep.subr.bf16.mxu0 0
        %770 = vmatpush2.bf16.msra.mxu0 0
        %771 = vmatprep.subr.bf16.mxu0 0
        %772 = vmatpush2.bf16.msra.mxu0 0
        %773 = vmatprep.subr.bf16.mxu0 0
        %774 = vmatpush2.bf16.msra.mxu0 0
        %775 = vmatprep.mubr.bf16.mxu0 0
        %776 = vmatmul.mubr.bf16.gmra.mxu0 %v735
        %v777 = vpop.f32.mrf.mxu0
        %v778 = vadd.f32 0.0, %v777
        %v779 = vpop.f32.mrf.mxu0
        %v780 = vpop.f32.mrf.mxu0
        %v781 = vadd.f32 0.0, %v780
        %v782 = vpop.f32.mrf.mxu0
        %783 = vmatprep.mubr.bf16.mxu0 0
        %784 = vmatmul.mubr.bf16.gmra.mxu0 %v738
        %v785 = vpop.f32.mrf.mxu0
        %v786 = vadd.f32 0.0, %v785
        %v787 = vpop.f32.mrf.mxu0
        %v788 = vpop.f32.mrf.mxu0
        %v789 = vpop.f32.mrf.mxu0
        %790 = vdwg.mxu0
        %v791 = vadd.f32 %v722, %v778
        %v792 = vadd.f32 %v723, %v781
        %v793 = vadd.f32 %v724, %v786
        %v794 = vld [vmem:[%s560 + $0xc] sm:$0x3]
        %s795 = scalar_lea.vmem %s1, 32
        %v796 = vld [vmem:[%s795] sm:$0xf]
        %v798 = vunpack.c.l.b16 %v794
        %v799 = vpack.c.b16 %v798, %v646
        %v801 = vshrl.u32 %v730, 16
        %v803 = vrot.slane %v801, 1
        %v804 = vshll.u32 %v730, 16
        %v806 = vrot.slane %v804, 2
        %v807 = vor.u32 %v803, %v806
        %v809 = vshrl.u32 %v799, 16
        %v811 = vrot.slane %v809, 1
        %v812 = vshll.u32 %v799, 16
        %v814 = vrot.slane %v812, 2
        %v815 = vor.u32 %v811, %v814
        %v816 = vsel %vm409, %v807, %v815
        %v818 = vsel %vm217, %v816, 0
        %v821 = vsel %vm217, %v815, 0
        %v824 = vsel %vm224, %v796, 0
        %826 = vmatprep.subr.bf16.mxu0 0
        %827 = vmatpush1.bf16.msra.mxu0 0
        %828 = vmatprep.subr.bf16.mxu0 0
        %829 = vmatpush1.bf16.msra.mxu0 0
        %830 = vmatprep.subr.bf16.mxu0 0
        %831 = vmatpush1.bf16.msra.mxu0 0
        %832 = vmatprep.subr.bf16.mxu0 0
        %833 = vmatpush1.bf16.msra.mxu0 0
        %834 = vmatprep.subr.bf16.mxu0 0
        %835 = vmatpush1.bf16.msra.mxu0 0
        %836 = vmatprep.subr.bf16.mxu0 0
        %837 = vmatpush1.bf16.msra.mxu0 0
        %838 = vmatprep.subr.bf16.mxu0 0
        %839 = vmatpush1.bf16.msra.mxu0 0
        %840 = vmatprep.subr.bf16.mxu0 0
        %841 = vmatpush1.bf16.msra.mxu0 %v824
        %842 = vmatprep.subr.bf16.mxu0 0
        %843 = vmatpush2.bf16.msra.mxu0 0
        %844 = vmatprep.subr.bf16.mxu0 0
        %845 = vmatpush2.bf16.msra.mxu0 0
        %846 = vmatprep.subr.bf16.mxu0 0
        %847 = vmatpush2.bf16.msra.mxu0 0
        %848 = vmatprep.subr.bf16.mxu0 0
        %849 = vmatpush2.bf16.msra.mxu0 0
        %850 = vmatprep.subr.bf16.mxu0 0
        %851 = vmatpush2.bf16.msra.mxu0 0
        %852 = vmatprep.subr.bf16.mxu0 0
        %853 = vmatpush2.bf16.msra.mxu0 0
        %854 = vmatprep.subr.bf16.mxu0 0
        %855 = vmatpush2.bf16.msra.mxu0 0
        %856 = vmatprep.subr.bf16.mxu0 0
        %857 = vmatpush2.bf16.msra.mxu0 0
        %858 = vmatprep.mubr.bf16.mxu0 0
        %859 = vmatmul.mubr.bf16.gmra.mxu0 %v818
        %v860 = vpop.f32.mrf.mxu0
        %v861 = vadd.f32 0.0, %v860
        %v862 = vpop.f32.mrf.mxu0
        %v863 = vpop.f32.mrf.mxu0
        %v864 = vadd.f32 0.0, %v863
        %v865 = vpop.f32.mrf.mxu0
        %866 = vmatprep.mubr.bf16.mxu0 0
        %867 = vmatmul.mubr.bf16.gmra.mxu0 %v821
        %v868 = vpop.f32.mrf.mxu0
        %v869 = vadd.f32 0.0, %v868
        %v870 = vpop.f32.mrf.mxu0
        %v871 = vpop.f32.mrf.mxu0
        %v872 = vpop.f32.mrf.mxu0
        %873 = vdwg.mxu0
        %v874 = vadd.f32 %v791, %v861
        %v875 = vadd.f32 %v792, %v864
        %v876 = vadd.f32 %v793, %v869
        %v877 = vld [vmem:[%s560] sm:$0xc]
        %s878 = scalar_lea.vmem %s1, 36
        %v879 = vld [vmem:[%s878] sm:$0xf]
        %v881 = vunpack.c.l.b16 %v877
        %v882 = vpack.c.b16 %v645, %v881
        %v883 = vrot.slane %v882, 2
        %v884 = vrot.slane %v799, 2
        %v885 = vsel %vm493, %v883, %v884
        %v887 = vsel %vm217, %v885, 0
        %v890 = vsel %vm217, %v884, 0
        %v893 = vsel %vm224, %v879, 0
        %895 = vmatprep.subr.bf16.mxu0 0
        %896 = vmatpush1.bf16.msra.mxu0 0
        %897 = vmatprep.subr.bf16.mxu0 0
        %898 = vmatpush1.bf16.msra.mxu0 0
        %899 = vmatprep.subr.bf16.mxu0 0
        %900 = vmatpush1.bf16.msra.mxu0 0
        %901 = vmatprep.subr.bf16.mxu0 0
        %902 = vmatpush1.bf16.msra.mxu0 0
        %903 = vmatprep.subr.bf16.mxu0 0
        %904 = vmatpush1.bf16.msra.mxu0 0
        %905 = vmatprep.subr.bf16.mxu0 0
        %906 = vmatpush1.bf16.msra.mxu0 0
        %907 = vmatprep.subr.bf16.mxu0 0
        %908 = vmatpush1.bf16.msra.mxu0 0
        %909 = vmatprep.subr.bf16.mxu0 0
        %910 = vmatpush1.bf16.msra.mxu0 %v893
        %911 = vmatprep.subr.bf16.mxu0 0
        %912 = vmatpush2.bf16.msra.mxu0 0
        %913 = vmatprep.subr.bf16.mxu0 0
        %914 = vmatpush2.bf16.msra.mxu0 0
        %915 = vmatprep.subr.bf16.mxu0 0
        %916 = vmatpush2.bf16.msra.mxu0 0
        %917 = vmatprep.subr.bf16.mxu0 0
        %918 = vmatpush2.bf16.msra.mxu0 0
        %919 = vmatprep.subr.bf16.mxu0 0
        %920 = vmatpush2.bf16.msra.mxu0 0
        %921 = vmatprep.subr.bf16.mxu0 0
        %922 = vmatpush2.bf16.msra.mxu0 0
        %923 = vmatprep.subr.bf16.mxu0 0
        %924 = vmatpush2.bf16.msra.mxu0 0
        %925 = vmatprep.subr.bf16.mxu0 0
        %926 = vmatpush2.bf16.msra.mxu0 0
        %927 = vmatprep.mubr.bf16.mxu0 0
        %928 = vmatmul.mubr.bf16.gmra.mxu0 %v887
        %v929 = vpop.f32.mrf.mxu0
        %v930 = vadd.f32 0.0, %v929
        %v931 = vpop.f32.mrf.mxu0
        %v932 = vpop.f32.mrf.mxu0
        %v933 = vadd.f32 0.0, %v932
        %v934 = vpop.f32.mrf.mxu0
        %935 = vmatprep.mubr.bf16.mxu0 0
        %936 = vmatmul.mubr.bf16.gmra.mxu0 %v890
        %v937 = vpop.f32.mrf.mxu0
        %v938 = vadd.f32 0.0, %v937
        %v939 = vpop.f32.mrf.mxu0
        %v940 = vpop.f32.mrf.mxu0
        %v941 = vpop.f32.mrf.mxu0
        %942 = vdwg.mxu0
        %v943 = vadd.f32 %v874, %v930
        %v944 = vadd.f32 %v875, %v933
        %v945 = vadd.f32 %v876, %v938
        %s946 = sadd.s32 %s176, 2
        %s947 = smul.u32 %s946, 4
        %s948 = smul.addr %s947, 4
        %s949 = scalar_lea.vmem %s165, %s948
        %v950 = vld [vmem:[%s949] sm:$0xf]
        %v951 = vld [vmem:[%s949 + $0x4] sm:$0xf]
        %v952 = vld [vmem:[%s949 + $0x8] sm:$0xf]
        %s953 = scalar_lea.vmem %s1, 40
        %v954 = vld [vmem:[%s953] sm:$0xf]
        %v958 = vunpack.c.l.b16 %v950
        %v959 = vunpack.c.l.b16 %v951
        %v960 = vunpack.c.l.b16 %v952
        %v961 = vpack.c.b16 %v959, %v958
        %v962 = vpack.c.b16 %v960, %v960
        %v964 = vsel %vm217, %v961, 0
        %v967 = vsel %vm217, %v962, 0
        %v970 = vsel %vm224, %v954, 0
        %972 = vmatprep.subr.bf16.mxu0 0
        %973 = vmatpush1.bf16.msra.mxu0 0
        %974 = vmatprep.subr.bf16.mxu0 0
        %975 = vmatpush1.bf16.msra.mxu0 0
        %976 = vmatprep.subr.bf16.mxu0 0
        %977 = vmatpush1.bf16.msra.mxu0 0
        %978 = vmatprep.subr.bf16.mxu0 0
        %979 = vmatpush1.bf16.msra.mxu0 0
        %980 = vmatprep.subr.bf16.mxu0 0
        %981 = vmatpush1.bf16.msra.mxu0 0
        %982 = vmatprep.subr.bf16.mxu0 0
        %983 = vmatpush1.bf16.msra.mxu0 0
        %984 = vmatprep.subr.bf16.mxu0 0
        %985 = vmatpush1.bf16.msra.mxu0 0
        %986 = vmatprep.subr.bf16.mxu0 0
        %987 = vmatpush1.bf16.msra.mxu0 %v970
        %988 = vmatprep.subr.bf16.mxu0 0
        %989 = vmatpush2.bf16.msra.mxu0 0
        %990 = vmatprep.subr.bf16.mxu0 0
        %991 = vmatpush2.bf16.msra.mxu0 0
        %992 = vmatprep.subr.bf16.mxu0 0
        %993 = vmatpush2.bf16.msra.mxu0 0
        %994 = vmatprep.subr.bf16.mxu0 0
        %995 = vmatpush2.bf16.msra.mxu0 0
        %996 = vmatprep.subr.bf16.mxu0 0
        %997 = vmatpush2.bf16.msra.mxu0 0
        %998 = vmatprep.subr.bf16.mxu0 0
        %999 = vmatpush2.bf16.msra.mxu0 0
        %1000 = vmatprep.subr.bf16.mxu0 0
        %1001 = vmatpush2.bf16.msra.mxu0 0
        %1002 = vmatprep.subr.bf16.mxu0 0
        %1003 = vmatpush2.bf16.msra.mxu0 0
        %1004 = vmatprep.mubr.bf16.mxu0 0
        %1005 = vmatmul.mubr.bf16.gmra.mxu0 %v964
        %v1006 = vpop.f32.mrf.mxu0
        %v1007 = vadd.f32 0.0, %v1006
        %v1008 = vpop.f32.mrf.mxu0
        %v1009 = vpop.f32.mrf.mxu0
        %v1010 = vadd.f32 0.0, %v1009
        %v1011 = vpop.f32.mrf.mxu0
        %1012 = vmatprep.mubr.bf16.mxu0 0
        %1013 = vmatmul.mubr.bf16.gmra.mxu0 %v967
        %v1014 = vpop.f32.mrf.mxu0
        %v1015 = vadd.f32 0.0, %v1014
        %v1016 = vpop.f32.mrf.mxu0
        %v1017 = vpop.f32.mrf.mxu0
        %v1018 = vpop.f32.mrf.mxu0
        %1019 = vdwg.mxu0
        %v1020 = vadd.f32 %v943, %v1007
        %v1021 = vadd.f32 %v944, %v1010
        %v1022 = vadd.f32 %v945, %v1015
        %v1023 = vld [vmem:[%s949] sm:$0xf]
        %v1024 = vld [vmem:[%s949 + $0x4] sm:$0xf]
        %v1025 = vld [vmem:[%s949 + $0x8] sm:$0xf]
        %v1026 = vld [vmem:[%s949 + $0xc] sm:$0x1]
        %s1027 = scalar_lea.vmem %s1, 44
        %v1028 = vld [vmem:[%s1027] sm:$0xf]
        %v1033 = vunpack.c.l.b16 %v1023
        %v1034 = vunpack.c.l.b16 %v1024
        %v1035 = vunpack.c.l.b16 %v1025
        %v1036 = vunpack.c.l.b16 %v1026
        %v1037 = vpack.c.b16 %v1034, %v1033
        %v1038 = vpack.c.b16 %v1036, %v1035
        %v1040 = vshrl.u32 %v1037, 16
        %v1042 = vshll.u32 %v1037, 16
        %v1044 = vrot.slane %v1042, 1
        %v1045 = vor.u32 %v1040, %v1044
        %v1047 = vshll.u32 %v1038, 16
        %v1049 = vrot.slane %v1047, 1
        %v1050 = vsel %vm201, %v1045, %v1049
        %v1051 = vshrl.u32 %v1038, 16
        %v1053 = vor.u32 %v1051, %v1049
        %v1055 = vsel %vm217, %v1050, 0
        %v1058 = vsel %vm217, %v1053, 0
        %v1061 = vsel %vm224, %v1028, 0
        %1063 = vmatprep.subr.bf16.mxu0 0
        %1064 = vmatpush1.bf16.msra.mxu0 0
        %1065 = vmatprep.subr.bf16.mxu0 0
        %1066 = vmatpush1.bf16.msra.mxu0 0
        %1067 = vmatprep.subr.bf16.mxu0 0
        %1068 = vmatpush1.bf16.msra.mxu0 0
        %1069 = vmatprep.subr.bf16.mxu0 0
        %1070 = vmatpush1.bf16.msra.mxu0 0
        %1071 = vmatprep.subr.bf16.mxu0 0
        %1072 = vmatpush1.bf16.msra.mxu0 0
        %1073 = vmatprep.subr.bf16.mxu0 0
        %1074 = vmatpush1.bf16.msra.mxu0 0
        %1075 = vmatprep.subr.bf16.mxu0 0
        %1076 = vmatpush1.bf16.msra.mxu0 0
        %1077 = vmatprep.subr.bf16.mxu0 0
        %1078 = vmatpush1.bf16.msra.mxu0 %v1061
        %1079 = vmatprep.subr.bf16.mxu0 0
        %1080 = vmatpush2.bf16.msra.mxu0 0
        %1081 = vmatprep.subr.bf16.mxu0 0
        %1082 = vmatpush2.bf16.msra.mxu0 0
        %1083 = vmatprep.subr.bf16.mxu0 0
        %1084 = vmatpush2.bf16.msra.mxu0 0
        %1085 = vmatprep.subr.bf16.mxu0 0
        %1086 = vmatpush2.bf16.msra.mxu0 0
        %1087 = vmatprep.subr.bf16.mxu0 0
        %1088 = vmatpush2.bf16.msra.mxu0 0
        %1089 = vmatprep.subr.bf16.mxu0 0
        %1090 = vmatpush2.bf16.msra.mxu0 0
        %1091 = vmatprep.subr.bf16.mxu0 0
        %1092 = vmatpush2.bf16.msra.mxu0 0
        %1093 = vmatprep.subr.bf16.mxu0 0
        %1094 = vmatpush2.bf16.msra.mxu0 0
        %1095 = vmatprep.mubr.bf16.mxu0 0
        %1096 = vmatmul.mubr.bf16.gmra.mxu0 %v1055
        %v1097 = vpop.f32.mrf.mxu0
        %v1098 = vadd.f32 0.0, %v1097
        %v1099 = vpop.f32.mrf.mxu0
        %v1100 = vpop.f32.mrf.mxu0
        %v1101 = vadd.f32 0.0, %v1100
        %v1102 = vpop.f32.mrf.mxu0
        %1103 = vmatprep.mubr.bf16.mxu0 0
        %1104 = vmatmul.mubr.bf16.gmra.mxu0 %v1058
        %v1105 = vpop.f32.mrf.mxu0
        %v1106 = vadd.f32 0.0, %v1105
        %v1107 = vpop.f32.mrf.mxu0
        %v1108 = vpop.f32.mrf.mxu0
        %v1109 = vpop.f32.mrf.mxu0
        %1110 = vdwg.mxu0
        %v1111 = vadd.f32 %v1020, %v1098
        %v1112 = vadd.f32 %v1021, %v1101
        %v1113 = vadd.f32 %v1022, %v1106
        %v1114 = vld [vmem:[%s949] sm:$0xe]
        %s1115 = scalar_lea.vmem %s1, 48
        %v1116 = vld [vmem:[%s1115] sm:$0xf]
        %v1118 = vunpack.c.l.b16 %v1114
        %v1119 = vpack.c.b16 %v1034, %v1118
        %v1120 = vrot.slane %v1119, 1
        %v1121 = vrot.slane %v1038, 1
        %v1122 = vsel %vm339, %v1120, %v1121
        %v1124 = vsel %vm217, %v1122, 0
        %v1127 = vsel %vm217, %v1121, 0
        %v1130 = vsel %vm224, %v1116, 0
        %1132 = vmatprep.subr.bf16.mxu0 0
        %1133 = vmatpush1.bf16.msra.mxu0 0
        %1134 = vmatprep.subr.bf16.mxu0 0
        %1135 = vmatpush1.bf16.msra.mxu0 0
        %1136 = vmatprep.subr.bf16.mxu0 0
        %1137 = vmatpush1.bf16.msra.mxu0 0
        %1138 = vmatprep.subr.bf16.mxu0 0
        %1139 = vmatpush1.bf16.msra.mxu0 0
        %1140 = vmatprep.subr.bf16.mxu0 0
        %1141 = vmatpush1.bf16.msra.mxu0 0
        %1142 = vmatprep.subr.bf16.mxu0 0
        %1143 = vmatpush1.bf16.msra.mxu0 0
        %1144 = vmatprep.subr.bf16.mxu0 0
        %1145 = vmatpush1.bf16.msra.mxu0 0
        %1146 = vmatprep.subr.bf16.mxu0 0
        %1147 = vmatpush1.bf16.msra.mxu0 %v1130
        %1148 = vmatprep.subr.bf16.mxu0 0
        %1149 = vmatpush2.bf16.msra.mxu0 0
        %1150 = vmatprep.subr.bf16.mxu0 0
        %1151 = vmatpush2.bf16.msra.mxu0 0
        %1152 = vmatprep.subr.bf16.mxu0 0
        %1153 = vmatpush2.bf16.msra.mxu0 0
        %1154 = vmatprep.subr.bf16.mxu0 0
        %1155 = vmatpush2.bf16.msra.mxu0 0
        %1156 = vmatprep.subr.bf16.mxu0 0
        %1157 = vmatpush2.bf16.msra.mxu0 0
        %1158 = vmatprep.subr.bf16.mxu0 0
        %1159 = vmatpush2.bf16.msra.mxu0 0
        %1160 = vmatprep.subr.bf16.mxu0 0
        %1161 = vmatpush2.bf16.msra.mxu0 0
        %1162 = vmatprep.subr.bf16.mxu0 0
        %1163 = vmatpush2.bf16.msra.mxu0 0
        %1164 = vmatprep.mubr.bf16.mxu0 0
        %1165 = vmatmul.mubr.bf16.gmra.mxu0 %v1124
        %v1166 = vpop.f32.mrf.mxu0
        %v1167 = vadd.f32 0.0, %v1166
        %v1168 = vpop.f32.mrf.mxu0
        %v1169 = vpop.f32.mrf.mxu0
        %v1170 = vadd.f32 0.0, %v1169
        %v1171 = vpop.f32.mrf.mxu0
        %1172 = vmatprep.mubr.bf16.mxu0 0
        %1173 = vmatmul.mubr.bf16.gmra.mxu0 %v1127
        %v1174 = vpop.f32.mrf.mxu0
        %v1175 = vadd.f32 0.0, %v1174
        %v1176 = vpop.f32.mrf.mxu0
        %v1177 = vpop.f32.mrf.mxu0
        %v1178 = vpop.f32.mrf.mxu0
        %1179 = vdwg.mxu0
        %v1180 = vadd.f32 %v1111, %v1167
        %v1181 = vadd.f32 %v1112, %v1170
        %v1182 = vadd.f32 %v1113, %v1175
        %v1183 = vld [vmem:[%s949 + $0xc] sm:$0x3]
        %s1184 = scalar_lea.vmem %s1, 52
        %v1185 = vld [vmem:[%s1184] sm:$0xf]
        %v1187 = vunpack.c.l.b16 %v1183
        %v1188 = vpack.c.b16 %v1187, %v1035
        %v1190 = vshrl.u32 %v1119, 16
        %v1192 = vrot.slane %v1190, 1
        %v1193 = vshll.u32 %v1119, 16
        %v1195 = vrot.slane %v1193, 2
        %v1196 = vor.u32 %v1192, %v1195
        %v1198 = vshrl.u32 %v1188, 16
        %v1200 = vrot.slane %v1198, 1
        %v1201 = vshll.u32 %v1188, 16
        %v1203 = vrot.slane %v1201, 2
        %v1204 = vor.u32 %v1200, %v1203
        %v1205 = vsel %vm409, %v1196, %v1204
        %v1207 = vsel %vm217, %v1205, 0
        %v1210 = vsel %vm217, %v1204, 0
        %v1213 = vsel %vm224, %v1185, 0
        %1215 = vmatprep.subr.bf16.mxu0 0
        %1216 = vmatpush1.bf16.msra.mxu0 0
        %1217 = vmatprep.subr.bf16.mxu0 0
        %1218 = vmatpush1.bf16.msra.mxu0 0
        %1219 = vmatprep.subr.bf16.mxu0 0
        %1220 = vmatpush1.bf16.msra.mxu0 0
        %1221 = vmatprep.subr.bf16.mxu0 0
        %1222 = vmatpush1.bf16.msra.mxu0 0
        %1223 = vmatprep.subr.bf16.mxu0 0
        %1224 = vmatpush1.bf16.msra.mxu0 0
        %1225 = vmatprep.subr.bf16.mxu0 0
        %1226 = vmatpush1.bf16.msra.mxu0 0
        %1227 = vmatprep.subr.bf16.mxu0 0
        %1228 = vmatpush1.bf16.msra.mxu0 0
        %1229 = vmatprep.subr.bf16.mxu0 0
        %1230 = vmatpush1.bf16.msra.mxu0 %v1213
        %1231 = vmatprep.subr.bf16.mxu0 0
        %1232 = vmatpush2.bf16.msra.mxu0 0
        %1233 = vmatprep.subr.bf16.mxu0 0
        %1234 = vmatpush2.bf16.msra.mxu0 0
        %1235 = vmatprep.subr.bf16.mxu0 0
        %1236 = vmatpush2.bf16.msra.mxu0 0
        %1237 = vmatprep.subr.bf16.mxu0 0
        %1238 = vmatpush2.bf16.msra.mxu0 0
        %1239 = vmatprep.subr.bf16.mxu0 0
        %1240 = vmatpush2.bf16.msra.mxu0 0
        %1241 = vmatprep.subr.bf16.mxu0 0
        %1242 = vmatpush2.bf16.msra.mxu0 0
        %1243 = vmatprep.subr.bf16.mxu0 0
        %1244 = vmatpush2.bf16.msra.mxu0 0
        %1245 = vmatprep.subr.bf16.mxu0 0
        %1246 = vmatpush2.bf16.msra.mxu0 0
        %1247 = vmatprep.mubr.bf16.mxu0 0
        %1248 = vmatmul.mubr.bf16.gmra.mxu0 %v1207
        %v1249 = vpop.f32.mrf.mxu0
        %v1250 = vadd.f32 0.0, %v1249
        %v1251 = vpop.f32.mrf.mxu0
        %v1252 = vpop.f32.mrf.mxu0
        %v1253 = vadd.f32 0.0, %v1252
        %v1254 = vpop.f32.mrf.mxu0
        %1255 = vmatprep.mubr.bf16.mxu0 0
        %1256 = vmatmul.mubr.bf16.gmra.mxu0 %v1210
        %v1257 = vpop.f32.mrf.mxu0
        %v1258 = vadd.f32 0.0, %v1257
        %v1259 = vpop.f32.mrf.mxu0
        %v1260 = vpop.f32.mrf.mxu0
        %v1261 = vpop.f32.mrf.mxu0
        %1262 = vdwg.mxu0
        %v1263 = vadd.f32 %v1180, %v1250
        %v1264 = vadd.f32 %v1181, %v1253
        %v1265 = vadd.f32 %v1182, %v1258
        %v1266 = vld [vmem:[%s949] sm:$0xc]
        %s1267 = scalar_lea.vmem %s1, 56
        %v1268 = vld [vmem:[%s1267] sm:$0xf]
        %v1270 = vunpack.c.l.b16 %v1266
        %v1271 = vpack.c.b16 %v1034, %v1270
        %v1272 = vrot.slane %v1271, 2
        %v1273 = vrot.slane %v1188, 2
        %v1274 = vsel %vm493, %v1272, %v1273
        %v1276 = vsel %vm217, %v1274, 0
        %v1279 = vsel %vm217, %v1273, 0
        %v1282 = vsel %vm224, %v1268, 0
        %1284 = vmatprep.subr.bf16.mxu0 0
        %1285 = vmatpush1.bf16.msra.mxu0 0
        %1286 = vmatprep.subr.bf16.mxu0 0
        %1287 = vmatpush1.bf16.msra.mxu0 0
        %1288 = vmatprep.subr.bf16.mxu0 0
        %1289 = vmatpush1.bf16.msra.mxu0 0
        %1290 = vmatprep.subr.bf16.mxu0 0
        %1291 = vmatpush1.bf16.msra.mxu0 0
        %1292 = vmatprep.subr.bf16.mxu0 0
        %1293 = vmatpush1.bf16.msra.mxu0 0
        %1294 = vmatprep.subr.bf16.mxu0 0
        %1295 = vmatpush1.bf16.msra.mxu0 0
        %1296 = vmatprep.subr.bf16.mxu0 0
        %1297 = vmatpush1.bf16.msra.mxu0 0
        %1298 = vmatprep.subr.bf16.mxu0 0
        %1299 = vmatpush1.bf16.msra.mxu0 %v1282
        %1300 = vmatprep.subr.bf16.mxu0 0
        %1301 = vmatpush2.bf16.msra.mxu0 0
        %1302 = vmatprep.subr.bf16.mxu0 0
        %1303 = vmatpush2.bf16.msra.mxu0 0
        %1304 = vmatprep.subr.bf16.mxu0 0
        %1305 = vmatpush2.bf16.msra.mxu0 0
        %1306 = vmatprep.subr.bf16.mxu0 0
        %1307 = vmatpush2.bf16.msra.mxu0 0
        %1308 = vmatprep.subr.bf16.mxu0 0
        %1309 = vmatpush2.bf16.msra.mxu0 0
        %1310 = vmatprep.subr.bf16.mxu0 0
        %1311 = vmatpush2.bf16.msra.mxu0 0
        %1312 = vmatprep.subr.bf16.mxu0 0
        %1313 = vmatpush2.bf16.msra.mxu0 0
        %1314 = vmatprep.subr.bf16.mxu0 0
        %1315 = vmatpush2.bf16.msra.mxu0 0
        %1316 = vmatprep.mubr.bf16.mxu0 0
        %1317 = vmatmul.mubr.bf16.gmra.mxu0 %v1276
        %v1318 = vpop.f32.mrf.mxu0
        %v1319 = vadd.f32 0.0, %v1318
        %v1320 = vpop.f32.mrf.mxu0
        %v1321 = vpop.f32.mrf.mxu0
        %v1322 = vadd.f32 0.0, %v1321
        %v1323 = vpop.f32.mrf.mxu0
        %1324 = vmatprep.mubr.bf16.mxu0 0
        %1325 = vmatmul.mubr.bf16.gmra.mxu0 %v1279
        %v1326 = vpop.f32.mrf.mxu0
        %v1327 = vadd.f32 0.0, %v1326
        %v1328 = vpop.f32.mrf.mxu0
        %v1329 = vpop.f32.mrf.mxu0
        %v1330 = vpop.f32.mrf.mxu0
        %1331 = vdwg.mxu0
        %v1332 = vadd.f32 %v1263, %v1319
        %v1333 = vadd.f32 %v1264, %v1322
        %v1334 = vadd.f32 %v1265, %v1327
        %s1335 = sadd.s32 %s176, 3
        %s1336 = smul.u32 %s1335, 4
        %s1337 = smul.addr %s1336, 4
        %s1338 = scalar_lea.vmem %s165, %s1337
        %v1339 = vld [vmem:[%s1338] sm:$0xf]
        %v1340 = vld [vmem:[%s1338 + $0x4] sm:$0xf]
        %v1341 = vld [vmem:[%s1338 + $0x8] sm:$0xf]
        %s1342 = scalar_lea.vmem %s1, 60
        %v1343 = vld [vmem:[%s1342] sm:$0xf]
        %v1347 = vunpack.c.l.b16 %v1339
        %v1348 = vunpack.c.l.b16 %v1340
        %v1349 = vunpack.c.l.b16 %v1341
        %v1350 = vpack.c.b16 %v1348, %v1347
        %v1351 = vpack.c.b16 %v1349, %v1349
        %v1353 = vsel %vm217, %v1350, 0
        %v1356 = vsel %vm217, %v1351, 0
        %v1359 = vsel %vm224, %v1343, 0
        %1361 = vmatprep.subr.bf16.mxu0 0
        %1362 = vmatpush1.bf16.msra.mxu0 0
        %1363 = vmatprep.subr.bf16.mxu0 0
        %1364 = vmatpush1.bf16.msra.mxu0 0
        %1365 = vmatprep.subr.bf16.mxu0 0
        %1366 = vmatpush1.bf16.msra.mxu0 0
        %1367 = vmatprep.subr.bf16.mxu0 0
        %1368 = vmatpush1.bf16.msra.mxu0 0
        %1369 = vmatprep.subr.bf16.mxu0 0
        %1370 = vmatpush1.bf16.msra.mxu0 0
        %1371 = vmatprep.subr.bf16.mxu0 0
        %1372 = vmatpush1.bf16.msra.mxu0 0
        %1373 = vmatprep.subr.bf16.mxu0 0
        %1374 = vmatpush1.bf16.msra.mxu0 0
        %1375 = vmatprep.subr.bf16.mxu0 0
        %1376 = vmatpush1.bf16.msra.mxu0 %v1359
        %1377 = vmatprep.subr.bf16.mxu0 0
        %1378 = vmatpush2.bf16.msra.mxu0 0
        %1379 = vmatprep.subr.bf16.mxu0 0
        %1380 = vmatpush2.bf16.msra.mxu0 0
        %1381 = vmatprep.subr.bf16.mxu0 0
        %1382 = vmatpush2.bf16.msra.mxu0 0
        %1383 = vmatprep.subr.bf16.mxu0 0
        %1384 = vmatpush2.bf16.msra.mxu0 0
        %1385 = vmatprep.subr.bf16.mxu0 0
        %1386 = vmatpush2.bf16.msra.mxu0 0
        %1387 = vmatprep.subr.bf16.mxu0 0
        %1388 = vmatpush2.bf16.msra.mxu0 0
        %1389 = vmatprep.subr.bf16.mxu0 0
        %1390 = vmatpush2.bf16.msra.mxu0 0
        %1391 = vmatprep.subr.bf16.mxu0 0
        %1392 = vmatpush2.bf16.msra.mxu0 0
        %1393 = vmatprep.mubr.bf16.mxu0 0
        %1394 = vmatmul.mubr.bf16.gmra.mxu0 %v1353
        %v1395 = vpop.f32.mrf.mxu0
        %v1396 = vadd.f32 0.0, %v1395
        %v1397 = vpop.f32.mrf.mxu0
        %v1398 = vpop.f32.mrf.mxu0
        %v1399 = vadd.f32 0.0, %v1398
        %v1400 = vpop.f32.mrf.mxu0
        %1401 = vmatprep.mubr.bf16.mxu0 0
        %1402 = vmatmul.mubr.bf16.gmra.mxu0 %v1356
        %v1403 = vpop.f32.mrf.mxu0
        %v1404 = vadd.f32 0.0, %v1403
        %v1405 = vpop.f32.mrf.mxu0
        %v1406 = vpop.f32.mrf.mxu0
        %v1407 = vpop.f32.mrf.mxu0
        %1408 = vdwg.mxu0
        %v1409 = vadd.f32 %v1332, %v1396
        %v1410 = vadd.f32 %v1333, %v1399
        %v1411 = vadd.f32 %v1334, %v1404
        %v1412 = vld [vmem:[%s1338] sm:$0xf]
        %v1413 = vld [vmem:[%s1338 + $0x4] sm:$0xf]
        %v1414 = vld [vmem:[%s1338 + $0x8] sm:$0xf]
        %v1415 = vld [vmem:[%s1338 + $0xc] sm:$0x1]
        %s1416 = scalar_lea.vmem %s1, 64
        %v1417 = vld [vmem:[%s1416] sm:$0xf]
        %v1422 = vunpack.c.l.b16 %v1412
        %v1423 = vunpack.c.l.b16 %v1413
        %v1424 = vunpack.c.l.b16 %v1414
        %v1425 = vunpack.c.l.b16 %v1415
        %v1426 = vpack.c.b16 %v1423, %v1422
        %v1427 = vpack.c.b16 %v1425, %v1424
        %v1429 = vshrl.u32 %v1426, 16
        %v1431 = vshll.u32 %v1426, 16
        %v1433 = vrot.slane %v1431, 1
        %v1434 = vor.u32 %v1429, %v1433
        %v1436 = vshll.u32 %v1427, 16
        %v1438 = vrot.slane %v1436, 1
        %v1439 = vsel %vm201, %v1434, %v1438
        %v1440 = vshrl.u32 %v1427, 16
        %v1442 = vor.u32 %v1440, %v1438
        %v1444 = vsel %vm217, %v1439, 0
        %v1447 = vsel %vm217, %v1442, 0
        %v1450 = vsel %vm224, %v1417, 0
        %1452 = vmatprep.subr.bf16.mxu0 0
        %1453 = vmatpush1.bf16.msra.mxu0 0
        %1454 = vmatprep.subr.bf16.mxu0 0
        %1455 = vmatpush1.bf16.msra.mxu0 0
        %1456 = vmatprep.subr.bf16.mxu0 0
        %1457 = vmatpush1.bf16.msra.mxu0 0
        %1458 = vmatprep.subr.bf16.mxu0 0
        %1459 = vmatpush1.bf16.msra.mxu0 0
        %1460 = vmatprep.subr.bf16.mxu0 0
        %1461 = vmatpush1.bf16.msra.mxu0 0
        %1462 = vmatprep.subr.bf16.mxu0 0
        %1463 = vmatpush1.bf16.msra.mxu0 0
        %1464 = vmatprep.subr.bf16.mxu0 0
        %1465 = vmatpush1.bf16.msra.mxu0 0
        %1466 = vmatprep.subr.bf16.mxu0 0
        %1467 = vmatpush1.bf16.msra.mxu0 %v1450
        %1468 = vmatprep.subr.bf16.mxu0 0
        %1469 = vmatpush2.bf16.msra.mxu0 0
        %1470 = vmatprep.subr.bf16.mxu0 0
        %1471 = vmatpush2.bf16.msra.mxu0 0
        %1472 = vmatprep.subr.bf16.mxu0 0
        %1473 = vmatpush2.bf16.msra.mxu0 0
        %1474 = vmatprep.subr.bf16.mxu0 0
        %1475 = vmatpush2.bf16.msra.mxu0 0
        %1476 = vmatprep.subr.bf16.mxu0 0
        %1477 = vmatpush2.bf16.msra.mxu0 0
        %1478 = vmatprep.subr.bf16.mxu0 0
        %1479 = vmatpush2.bf16.msra.mxu0 0
        %1480 = vmatprep.subr.bf16.mxu0 0
        %1481 = vmatpush2.bf16.msra.mxu0 0
        %1482 = vmatprep.subr.bf16.mxu0 0
        %1483 = vmatpush2.bf16.msra.mxu0 0
        %1484 = vmatprep.mubr.bf16.mxu0 0
        %1485 = vmatmul.mubr.bf16.gmra.mxu0 %v1444
        %v1486 = vpop.f32.mrf.mxu0
        %v1487 = vadd.f32 0.0, %v1486
        %v1488 = vpop.f32.mrf.mxu0
        %v1489 = vpop.f32.mrf.mxu0
        %v1490 = vadd.f32 0.0, %v1489
        %v1491 = vpop.f32.mrf.mxu0
        %1492 = vmatprep.mubr.bf16.mxu0 0
        %1493 = vmatmul.mubr.bf16.gmra.mxu0 %v1447
        %v1494 = vpop.f32.mrf.mxu0
        %v1495 = vadd.f32 0.0, %v1494
        %v1496 = vpop.f32.mrf.mxu0
        %v1497 = vpop.f32.mrf.mxu0
        %v1498 = vpop.f32.mrf.mxu0
        %1499 = vdwg.mxu0
        %v1500 = vadd.f32 %v1409, %v1487
        %v1501 = vadd.f32 %v1410, %v1490
        %v1502 = vadd.f32 %v1411, %v1495
        %v1503 = vld [vmem:[%s1338] sm:$0xe]
        %s1504 = scalar_lea.vmem %s1, 68
        %v1505 = vld [vmem:[%s1504] sm:$0xf]
        %v1507 = vunpack.c.l.b16 %v1503
        %v1508 = vpack.c.b16 %v1423, %v1507
        %v1509 = vrot.slane %v1508, 1
        %v1510 = vrot.slane %v1427, 1
        %v1511 = vsel %vm339, %v1509, %v1510
        %v1513 = vsel %vm217, %v1511, 0
        %v1516 = vsel %vm217, %v1510, 0
        %v1519 = vsel %vm224, %v1505, 0
        %1521 = vmatprep.subr.bf16.mxu0 0
        %1522 = vmatpush1.bf16.msra.mxu0 0
        %1523 = vmatprep.subr.bf16.mxu0 0
        %1524 = vmatpush1.bf16.msra.mxu0 0
        %1525 = vmatprep.subr.bf16.mxu0 0
        %1526 = vmatpush1.bf16.msra.mxu0 0
        %1527 = vmatprep.subr.bf16.mxu0 0
        %1528 = vmatpush1.bf16.msra.mxu0 0
        %1529 = vmatprep.subr.bf16.mxu0 0
        %1530 = vmatpush1.bf16.msra.mxu0 0
        %1531 = vmatprep.subr.bf16.mxu0 0
        %1532 = vmatpush1.bf16.msra.mxu0 0
        %1533 = vmatprep.subr.bf16.mxu0 0
        %1534 = vmatpush1.bf16.msra.mxu0 0
        %1535 = vmatprep.subr.bf16.mxu0 0
        %1536 = vmatpush1.bf16.msra.mxu0 %v1519
        %1537 = vmatprep.subr.bf16.mxu0 0
        %1538 = vmatpush2.bf16.msra.mxu0 0
        %1539 = vmatprep.subr.bf16.mxu0 0
        %1540 = vmatpush2.bf16.msra.mxu0 0
        %1541 = vmatprep.subr.bf16.mxu0 0
        %1542 = vmatpush2.bf16.msra.mxu0 0
        %1543 = vmatprep.subr.bf16.mxu0 0
        %1544 = vmatpush2.bf16.msra.mxu0 0
        %1545 = vmatprep.subr.bf16.mxu0 0
        %1546 = vmatpush2.bf16.msra.mxu0 0
        %1547 = vmatprep.subr.bf16.mxu0 0
        %1548 = vmatpush2.bf16.msra.mxu0 0
        %1549 = vmatprep.subr.bf16.mxu0 0
        %1550 = vmatpush2.bf16.msra.mxu0 0
        %1551 = vmatprep.subr.bf16.mxu0 0
        %1552 = vmatpush2.bf16.msra.mxu0 0
        %1553 = vmatprep.mubr.bf16.mxu0 0
        %1554 = vmatmul.mubr.bf16.gmra.mxu0 %v1513
        %v1555 = vpop.f32.mrf.mxu0
        %v1556 = vadd.f32 0.0, %v1555
        %v1557 = vpop.f32.mrf.mxu0
        %v1558 = vpop.f32.mrf.mxu0
        %v1559 = vadd.f32 0.0, %v1558
        %v1560 = vpop.f32.mrf.mxu0
        %1561 = vmatprep.mubr.bf16.mxu0 0
        %1562 = vmatmul.mubr.bf16.gmra.mxu0 %v1516
        %v1563 = vpop.f32.mrf.mxu0
        %v1564 = vadd.f32 0.0, %v1563
        %v1565 = vpop.f32.mrf.mxu0
        %v1566 = vpop.f32.mrf.mxu0
        %v1567 = vpop.f32.mrf.mxu0
        %1568 = vdwg.mxu0
        %v1569 = vadd.f32 %v1500, %v1556
        %v1570 = vadd.f32 %v1501, %v1559
        %v1571 = vadd.f32 %v1502, %v1564
        %v1572 = vld [vmem:[%s1338 + $0xc] sm:$0x3]
        %s1573 = scalar_lea.vmem %s1, 72
        %v1574 = vld [vmem:[%s1573] sm:$0xf]
        %v1576 = vunpack.c.l.b16 %v1572
        %v1577 = vpack.c.b16 %v1576, %v1424
        %v1579 = vshrl.u32 %v1508, 16
        %v1581 = vrot.slane %v1579, 1
        %v1582 = vshll.u32 %v1508, 16
        %v1584 = vrot.slane %v1582, 2
        %v1585 = vor.u32 %v1581, %v1584
        %v1587 = vshrl.u32 %v1577, 16
        %v1589 = vrot.slane %v1587, 1
        %v1590 = vshll.u32 %v1577, 16
        %v1592 = vrot.slane %v1590, 2
        %v1593 = vor.u32 %v1589, %v1592
        %v1594 = vsel %vm409, %v1585, %v1593
        %v1596 = vsel %vm217, %v1594, 0
        %v1599 = vsel %vm217, %v1593, 0
        %v1602 = vsel %vm224, %v1574, 0
        %1604 = vmatprep.subr.bf16.mxu0 0
        %1605 = vmatpush1.bf16.msra.mxu0 0
        %1606 = vmatprep.subr.bf16.mxu0 0
        %1607 = vmatpush1.bf16.msra.mxu0 0
        %1608 = vmatprep.subr.bf16.mxu0 0
        %1609 = vmatpush1.bf16.msra.mxu0 0
        %1610 = vmatprep.subr.bf16.mxu0 0
        %1611 = vmatpush1.bf16.msra.mxu0 0
        %1612 = vmatprep.subr.bf16.mxu0 0
        %1613 = vmatpush1.bf16.msra.mxu0 0
        %1614 = vmatprep.subr.bf16.mxu0 0
        %1615 = vmatpush1.bf16.msra.mxu0 0
        %1616 = vmatprep.subr.bf16.mxu0 0
        %1617 = vmatpush1.bf16.msra.mxu0 0
        %1618 = vmatprep.subr.bf16.mxu0 0
        %1619 = vmatpush1.bf16.msra.mxu0 %v1602
        %1620 = vmatprep.subr.bf16.mxu0 0
        %1621 = vmatpush2.bf16.msra.mxu0 0
        %1622 = vmatprep.subr.bf16.mxu0 0
        %1623 = vmatpush2.bf16.msra.mxu0 0
        %1624 = vmatprep.subr.bf16.mxu0 0
        %1625 = vmatpush2.bf16.msra.mxu0 0
        %1626 = vmatprep.subr.bf16.mxu0 0
        %1627 = vmatpush2.bf16.msra.mxu0 0
        %1628 = vmatprep.subr.bf16.mxu0 0
        %1629 = vmatpush2.bf16.msra.mxu0 0
        %1630 = vmatprep.subr.bf16.mxu0 0
        %1631 = vmatpush2.bf16.msra.mxu0 0
        %1632 = vmatprep.subr.bf16.mxu0 0
        %1633 = vmatpush2.bf16.msra.mxu0 0
        %1634 = vmatprep.subr.bf16.mxu0 0
        %1635 = vmatpush2.bf16.msra.mxu0 0
        %1636 = vmatprep.mubr.bf16.mxu0 0
        %1637 = vmatmul.mubr.bf16.gmra.mxu0 %v1596
        %v1638 = vpop.f32.mrf.mxu0
        %v1639 = vadd.f32 0.0, %v1638
        %v1640 = vpop.f32.mrf.mxu0
        %v1641 = vpop.f32.mrf.mxu0
        %v1642 = vadd.f32 0.0, %v1641
        %v1643 = vpop.f32.mrf.mxu0
        %1644 = vmatprep.mubr.bf16.mxu0 0
        %1645 = vmatmul.mubr.bf16.gmra.mxu0 %v1599
        %v1646 = vpop.f32.mrf.mxu0
        %v1647 = vadd.f32 0.0, %v1646
        %v1648 = vpop.f32.mrf.mxu0
        %v1649 = vpop.f32.mrf.mxu0
        %v1650 = vpop.f32.mrf.mxu0
        %1651 = vdwg.mxu0
        %v1652 = vadd.f32 %v1569, %v1639
        %v1653 = vadd.f32 %v1570, %v1642
        %v1654 = vadd.f32 %v1571, %v1647
        %v1655 = vld [vmem:[%s1338] sm:$0xc]
        %s1656 = scalar_lea.vmem %s1, 76
        %v1657 = vld [vmem:[%s1656] sm:$0xf]
        %v1659 = vunpack.c.l.b16 %v1655
        %v1660 = vpack.c.b16 %v1423, %v1659
        %v1661 = vrot.slane %v1660, 2
        %v1662 = vrot.slane %v1577, 2
        %v1663 = vsel %vm493, %v1661, %v1662
        %v1665 = vsel %vm217, %v1663, 0
        %v1668 = vsel %vm217, %v1662, 0
        %v1671 = vsel %vm224, %v1657, 0
        %1673 = vmatprep.subr.bf16.mxu0 0
        %1674 = vmatpush1.bf16.msra.mxu0 0
        %1675 = vmatprep.subr.bf16.mxu0 0
        %1676 = vmatpush1.bf16.msra.mxu0 0
        %1677 = vmatprep.subr.bf16.mxu0 0
        %1678 = vmatpush1.bf16.msra.mxu0 0
        %1679 = vmatprep.subr.bf16.mxu0 0
        %1680 = vmatpush1.bf16.msra.mxu0 0
        %1681 = vmatprep.subr.bf16.mxu0 0
        %1682 = vmatpush1.bf16.msra.mxu0 0
        %1683 = vmatprep.subr.bf16.mxu0 0
        %1684 = vmatpush1.bf16.msra.mxu0 0
        %1685 = vmatprep.subr.bf16.mxu0 0
        %1686 = vmatpush1.bf16.msra.mxu0 0
        %1687 = vmatprep.subr.bf16.mxu0 0
        %1688 = vmatpush1.bf16.msra.mxu0 %v1671
        %1689 = vmatprep.subr.bf16.mxu0 0
        %1690 = vmatpush2.bf16.msra.mxu0 0
        %1691 = vmatprep.subr.bf16.mxu0 0
        %1692 = vmatpush2.bf16.msra.mxu0 0
        %1693 = vmatprep.subr.bf16.mxu0 0
        %1694 = vmatpush2.bf16.msra.mxu0 0
        %1695 = vmatprep.subr.bf16.mxu0 0
        %1696 = vmatpush2.bf16.msra.mxu0 0
        %1697 = vmatprep.subr.bf16.mxu0 0
        %1698 = vmatpush2.bf16.msra.mxu0 0
        %1699 = vmatprep.subr.bf16.mxu0 0
        %1700 = vmatpush2.bf16.msra.mxu0 0
        %1701 = vmatprep.subr.bf16.mxu0 0
        %1702 = vmatpush2.bf16.msra.mxu0 0
        %1703 = vmatprep.subr.bf16.mxu0 0
        %1704 = vmatpush2.bf16.msra.mxu0 0
        %1705 = vmatprep.mubr.bf16.mxu0 0
        %1706 = vmatmul.mubr.bf16.gmra.mxu0 %v1665
        %v1707 = vpop.f32.mrf.mxu0
        %v1708 = vadd.f32 0.0, %v1707
        %v1709 = vpop.f32.mrf.mxu0
        %v1710 = vpop.f32.mrf.mxu0
        %v1711 = vadd.f32 0.0, %v1710
        %v1712 = vpop.f32.mrf.mxu0
        %1713 = vmatprep.mubr.bf16.mxu0 0
        %1714 = vmatmul.mubr.bf16.gmra.mxu0 %v1668
        %v1715 = vpop.f32.mrf.mxu0
        %v1716 = vadd.f32 0.0, %v1715
        %v1717 = vpop.f32.mrf.mxu0
        %v1718 = vpop.f32.mrf.mxu0
        %v1719 = vpop.f32.mrf.mxu0
        %1720 = vdwg.mxu0
        %v1721 = vadd.f32 %v1652, %v1708
        %v1722 = vadd.f32 %v1653, %v1711
        %v1723 = vadd.f32 %v1654, %v1716
        %s1724 = sadd.s32 %s176, 4
        %s1725 = smul.u32 %s1724, 4
        %s1726 = smul.addr %s1725, 4
        %s1727 = scalar_lea.vmem %s165, %s1726
        %v1728 = vld [vmem:[%s1727] sm:$0xf]
        %v1729 = vld [vmem:[%s1727 + $0x4] sm:$0xf]
        %v1730 = vld [vmem:[%s1727 + $0x8] sm:$0xf]
        %s1731 = scalar_lea.vmem %s1, 80
        %v1732 = vld [vmem:[%s1731] sm:$0xf]
        %v1736 = vunpack.c.l.b16 %v1728
        %v1737 = vunpack.c.l.b16 %v1729
        %v1738 = vunpack.c.l.b16 %v1730
        %v1739 = vpack.c.b16 %v1737, %v1736
        %v1740 = vpack.c.b16 %v1738, %v1738
        %v1742 = vsel %vm217, %v1739, 0
        %v1745 = vsel %vm217, %v1740, 0
        %v1748 = vsel %vm224, %v1732, 0
        %1750 = vmatprep.subr.bf16.mxu0 0
        %1751 = vmatpush1.bf16.msra.mxu0 0
        %1752 = vmatprep.subr.bf16.mxu0 0
        %1753 = vmatpush1.bf16.msra.mxu0 0
        %1754 = vmatprep.subr.bf16.mxu0 0
        %1755 = vmatpush1.bf16.msra.mxu0 0
        %1756 = vmatprep.subr.bf16.mxu0 0
        %1757 = vmatpush1.bf16.msra.mxu0 0
        %1758 = vmatprep.subr.bf16.mxu0 0
        %1759 = vmatpush1.bf16.msra.mxu0 0
        %1760 = vmatprep.subr.bf16.mxu0 0
        %1761 = vmatpush1.bf16.msra.mxu0 0
        %1762 = vmatprep.subr.bf16.mxu0 0
        %1763 = vmatpush1.bf16.msra.mxu0 0
        %1764 = vmatprep.subr.bf16.mxu0 0
        %1765 = vmatpush1.bf16.msra.mxu0 %v1748
        %1766 = vmatprep.subr.bf16.mxu0 0
        %1767 = vmatpush2.bf16.msra.mxu0 0
        %1768 = vmatprep.subr.bf16.mxu0 0
        %1769 = vmatpush2.bf16.msra.mxu0 0
        %1770 = vmatprep.subr.bf16.mxu0 0
        %1771 = vmatpush2.bf16.msra.mxu0 0
        %1772 = vmatprep.subr.bf16.mxu0 0
        %1773 = vmatpush2.bf16.msra.mxu0 0
        %1774 = vmatprep.subr.bf16.mxu0 0
        %1775 = vmatpush2.bf16.msra.mxu0 0
        %1776 = vmatprep.subr.bf16.mxu0 0
        %1777 = vmatpush2.bf16.msra.mxu0 0
        %1778 = vmatprep.subr.bf16.mxu0 0
        %1779 = vmatpush2.bf16.msra.mxu0 0
        %1780 = vmatprep.subr.bf16.mxu0 0
        %1781 = vmatpush2.bf16.msra.mxu0 0
        %1782 = vmatprep.mubr.bf16.mxu0 0
        %1783 = vmatmul.mubr.bf16.gmra.mxu0 %v1742
        %v1784 = vpop.f32.mrf.mxu0
        %v1785 = vadd.f32 0.0, %v1784
        %v1786 = vpop.f32.mrf.mxu0
        %v1787 = vpop.f32.mrf.mxu0
        %v1788 = vadd.f32 0.0, %v1787
        %v1789 = vpop.f32.mrf.mxu0
        %1790 = vmatprep.mubr.bf16.mxu0 0
        %1791 = vmatmul.mubr.bf16.gmra.mxu0 %v1745
        %v1792 = vpop.f32.mrf.mxu0
        %v1793 = vadd.f32 0.0, %v1792
        %v1794 = vpop.f32.mrf.mxu0
        %v1795 = vpop.f32.mrf.mxu0
        %v1796 = vpop.f32.mrf.mxu0
        %1797 = vdwg.mxu0
        %v1798 = vadd.f32 %v1721, %v1785
        %v1799 = vadd.f32 %v1722, %v1788
        %v1800 = vadd.f32 %v1723, %v1793
        %v1801 = vld [vmem:[%s1727] sm:$0xf]
        %v1802 = vld [vmem:[%s1727 + $0x4] sm:$0xf]
        %v1803 = vld [vmem:[%s1727 + $0x8] sm:$0xf]
        %v1804 = vld [vmem:[%s1727 + $0xc] sm:$0x1]
        %s1805 = scalar_lea.vmem %s1, 84
        %v1806 = vld [vmem:[%s1805] sm:$0xf]
        %v1811 = vunpack.c.l.b16 %v1801
        %v1812 = vunpack.c.l.b16 %v1802
        %v1813 = vunpack.c.l.b16 %v1803
        %v1814 = vunpack.c.l.b16 %v1804
        %v1815 = vpack.c.b16 %v1812, %v1811
        %v1816 = vpack.c.b16 %v1814, %v1813
        %v1818 = vshrl.u32 %v1815, 16
        %v1820 = vshll.u32 %v1815, 16
        %v1822 = vrot.slane %v1820, 1
        %v1823 = vor.u32 %v1818, %v1822
        %v1825 = vshll.u32 %v1816, 16
        %v1827 = vrot.slane %v1825, 1
        %v1828 = vsel %vm201, %v1823, %v1827
        %v1829 = vshrl.u32 %v1816, 16
        %v1831 = vor.u32 %v1829, %v1827
        %v1833 = vsel %vm217, %v1828, 0
        %v1836 = vsel %vm217, %v1831, 0
        %v1839 = vsel %vm224, %v1806, 0
        %1841 = vmatprep.subr.bf16.mxu0 0
        %1842 = vmatpush1.bf16.msra.mxu0 0
        %1843 = vmatprep.subr.bf16.mxu0 0
        %1844 = vmatpush1.bf16.msra.mxu0 0
        %1845 = vmatprep.subr.bf16.mxu0 0
        %1846 = vmatpush1.bf16.msra.mxu0 0
        %1847 = vmatprep.subr.bf16.mxu0 0
        %1848 = vmatpush1.bf16.msra.mxu0 0
        %1849 = vmatprep.subr.bf16.mxu0 0
        %1850 = vmatpush1.bf16.msra.mxu0 0
        %1851 = vmatprep.subr.bf16.mxu0 0
        %1852 = vmatpush1.bf16.msra.mxu0 0
        %1853 = vmatprep.subr.bf16.mxu0 0
        %1854 = vmatpush1.bf16.msra.mxu0 0
        %1855 = vmatprep.subr.bf16.mxu0 0
        %1856 = vmatpush1.bf16.msra.mxu0 %v1839
        %1857 = vmatprep.subr.bf16.mxu0 0
        %1858 = vmatpush2.bf16.msra.mxu0 0
        %1859 = vmatprep.subr.bf16.mxu0 0
        %1860 = vmatpush2.bf16.msra.mxu0 0
        %1861 = vmatprep.subr.bf16.mxu0 0
        %1862 = vmatpush2.bf16.msra.mxu0 0
        %1863 = vmatprep.subr.bf16.mxu0 0
        %1864 = vmatpush2.bf16.msra.mxu0 0
        %1865 = vmatprep.subr.bf16.mxu0 0
        %1866 = vmatpush2.bf16.msra.mxu0 0
        %1867 = vmatprep.subr.bf16.mxu0 0
        %1868 = vmatpush2.bf16.msra.mxu0 0
        %1869 = vmatprep.subr.bf16.mxu0 0
        %1870 = vmatpush2.bf16.msra.mxu0 0
        %1871 = vmatprep.subr.bf16.mxu0 0
        %1872 = vmatpush2.bf16.msra.mxu0 0
        %1873 = vmatprep.mubr.bf16.mxu0 0
        %1874 = vmatmul.mubr.bf16.gmra.mxu0 %v1833
        %v1875 = vpop.f32.mrf.mxu0
        %v1876 = vadd.f32 0.0, %v1875
        %v1877 = vpop.f32.mrf.mxu0
        %v1878 = vpop.f32.mrf.mxu0
        %v1879 = vadd.f32 0.0, %v1878
        %v1880 = vpop.f32.mrf.mxu0
        %1881 = vmatprep.mubr.bf16.mxu0 0
        %1882 = vmatmul.mubr.bf16.gmra.mxu0 %v1836
        %v1883 = vpop.f32.mrf.mxu0
        %v1884 = vadd.f32 0.0, %v1883
        %v1885 = vpop.f32.mrf.mxu0
        %v1886 = vpop.f32.mrf.mxu0
        %v1887 = vpop.f32.mrf.mxu0
        %1888 = vdwg.mxu0
        %v1889 = vadd.f32 %v1798, %v1876
        %v1890 = vadd.f32 %v1799, %v1879
        %v1891 = vadd.f32 %v1800, %v1884
        %v1892 = vld [vmem:[%s1727] sm:$0xe]
        %s1893 = scalar_lea.vmem %s1, 88
        %v1894 = vld [vmem:[%s1893] sm:$0xf]
        %v1896 = vunpack.c.l.b16 %v1892
        %v1897 = vpack.c.b16 %v1812, %v1896
        %v1898 = vrot.slane %v1897, 1
        %v1899 = vrot.slane %v1816, 1
        %v1900 = vsel %vm339, %v1898, %v1899
        %v1902 = vsel %vm217, %v1900, 0
        %v1905 = vsel %vm217, %v1899, 0
        %v1908 = vsel %vm224, %v1894, 0
        %1910 = vmatprep.subr.bf16.mxu0 0
        %1911 = vmatpush1.bf16.msra.mxu0 0
        %1912 = vmatprep.subr.bf16.mxu0 0
        %1913 = vmatpush1.bf16.msra.mxu0 0
        %1914 = vmatprep.subr.bf16.mxu0 0
        %1915 = vmatpush1.bf16.msra.mxu0 0
        %1916 = vmatprep.subr.bf16.mxu0 0
        %1917 = vmatpush1.bf16.msra.mxu0 0
        %1918 = vmatprep.subr.bf16.mxu0 0
        %1919 = vmatpush1.bf16.msra.mxu0 0
        %1920 = vmatprep.subr.bf16.mxu0 0
        %1921 = vmatpush1.bf16.msra.mxu0 0
        %1922 = vmatprep.subr.bf16.mxu0 0
        %1923 = vmatpush1.bf16.msra.mxu0 0
        %1924 = vmatprep.subr.bf16.mxu0 0
        %1925 = vmatpush1.bf16.msra.mxu0 %v1908
        %1926 = vmatprep.subr.bf16.mxu0 0
        %1927 = vmatpush2.bf16.msra.mxu0 0
        %1928 = vmatprep.subr.bf16.mxu0 0
        %1929 = vmatpush2.bf16.msra.mxu0 0
        %1930 = vmatprep.subr.bf16.mxu0 0
        %1931 = vmatpush2.bf16.msra.mxu0 0
        %1932 = vmatprep.subr.bf16.mxu0 0
        %1933 = vmatpush2.bf16.msra.mxu0 0
        %1934 = vmatprep.subr.bf16.mxu0 0
        %1935 = vmatpush2.bf16.msra.mxu0 0
        %1936 = vmatprep.subr.bf16.mxu0 0
        %1937 = vmatpush2.bf16.msra.mxu0 0
        %1938 = vmatprep.subr.bf16.mxu0 0
        %1939 = vmatpush2.bf16.msra.mxu0 0
        %1940 = vmatprep.subr.bf16.mxu0 0
        %1941 = vmatpush2.bf16.msra.mxu0 0
        %1942 = vmatprep.mubr.bf16.mxu0 0
        %1943 = vmatmul.mubr.bf16.gmra.mxu0 %v1902
        %v1944 = vpop.f32.mrf.mxu0
        %v1945 = vadd.f32 0.0, %v1944
        %v1946 = vpop.f32.mrf.mxu0
        %v1947 = vpop.f32.mrf.mxu0
        %v1948 = vadd.f32 0.0, %v1947
        %v1949 = vpop.f32.mrf.mxu0
        %1950 = vmatprep.mubr.bf16.mxu0 0
        %1951 = vmatmul.mubr.bf16.gmra.mxu0 %v1905
        %v1952 = vpop.f32.mrf.mxu0
        %v1953 = vadd.f32 0.0, %v1952
        %v1954 = vpop.f32.mrf.mxu0
        %v1955 = vpop.f32.mrf.mxu0
        %v1956 = vpop.f32.mrf.mxu0
        %1957 = vdwg.mxu0
        %v1958 = vadd.f32 %v1889, %v1945
        %v1959 = vadd.f32 %v1890, %v1948
        %v1960 = vadd.f32 %v1891, %v1953
        %v1961 = vld [vmem:[%s1727 + $0xc] sm:$0x3]
        %s1962 = scalar_lea.vmem %s1, 92
        %v1963 = vld [vmem:[%s1962] sm:$0xf]
        %v1965 = vunpack.c.l.b16 %v1961
        %v1966 = vpack.c.b16 %v1965, %v1813
        %v1968 = vshrl.u32 %v1897, 16
        %v1970 = vrot.slane %v1968, 1
        %v1971 = vshll.u32 %v1897, 16
        %v1973 = vrot.slane %v1971, 2
        %v1974 = vor.u32 %v1970, %v1973
        %v1976 = vshrl.u32 %v1966, 16
        %v1978 = vrot.slane %v1976, 1
        %v1979 = vshll.u32 %v1966, 16
        %v1981 = vrot.slane %v1979, 2
        %v1982 = vor.u32 %v1978, %v1981
        %v1983 = vsel %vm409, %v1974, %v1982
        %v1985 = vsel %vm217, %v1983, 0
        %v1988 = vsel %vm217, %v1982, 0
        %v1991 = vsel %vm224, %v1963, 0
        %1993 = vmatprep.subr.bf16.mxu0 0
        %1994 = vmatpush1.bf16.msra.mxu0 0
        %1995 = vmatprep.subr.bf16.mxu0 0
        %1996 = vmatpush1.bf16.msra.mxu0 0
        %1997 = vmatprep.subr.bf16.mxu0 0
        %1998 = vmatpush1.bf16.msra.mxu0 0
        %1999 = vmatprep.subr.bf16.mxu0 0
        %2000 = vmatpush1.bf16.msra.mxu0 0
        %2001 = vmatprep.subr.bf16.mxu0 0
        %2002 = vmatpush1.bf16.msra.mxu0 0
        %2003 = vmatprep.subr.bf16.mxu0 0
        %2004 = vmatpush1.bf16.msra.mxu0 0
        %2005 = vmatprep.subr.bf16.mxu0 0
        %2006 = vmatpush1.bf16.msra.mxu0 0
        %2007 = vmatprep.subr.bf16.mxu0 0
        %2008 = vmatpush1.bf16.msra.mxu0 %v1991
        %2009 = vmatprep.subr.bf16.mxu0 0
        %2010 = vmatpush2.bf16.msra.mxu0 0
        %2011 = vmatprep.subr.bf16.mxu0 0
        %2012 = vmatpush2.bf16.msra.mxu0 0
        %2013 = vmatprep.subr.bf16.mxu0 0
        %2014 = vmatpush2.bf16.msra.mxu0 0
        %2015 = vmatprep.subr.bf16.mxu0 0
        %2016 = vmatpush2.bf16.msra.mxu0 0
        %2017 = vmatprep.subr.bf16.mxu0 0
        %2018 = vmatpush2.bf16.msra.mxu0 0
        %2019 = vmatprep.subr.bf16.mxu0 0
        %2020 = vmatpush2.bf16.msra.mxu0 0
        %2021 = vmatprep.subr.bf16.mxu0 0
        %2022 = vmatpush2.bf16.msra.mxu0 0
        %2023 = vmatprep.subr.bf16.mxu0 0
        %2024 = vmatpush2.bf16.msra.mxu0 0
        %2025 = vmatprep.mubr.bf16.mxu0 0
        %2026 = vmatmul.mubr.bf16.gmra.mxu0 %v1985
        %v2027 = vpop.f32.mrf.mxu0
        %v2028 = vadd.f32 0.0, %v2027
        %v2029 = vpop.f32.mrf.mxu0
        %v2030 = vpop.f32.mrf.mxu0
        %v2031 = vadd.f32 0.0, %v2030
        %v2032 = vpop.f32.mrf.mxu0
        %2033 = vmatprep.mubr.bf16.mxu0 0
        %2034 = vmatmul.mubr.bf16.gmra.mxu0 %v1988
        %v2035 = vpop.f32.mrf.mxu0
        %v2036 = vadd.f32 0.0, %v2035
        %v2037 = vpop.f32.mrf.mxu0
        %v2038 = vpop.f32.mrf.mxu0
        %v2039 = vpop.f32.mrf.mxu0
        %2040 = vdwg.mxu0
        %v2041 = vadd.f32 %v1958, %v2028
        %v2042 = vadd.f32 %v1959, %v2031
        %v2043 = vadd.f32 %v1960, %v2036
        %v2044 = vld [vmem:[%s1727] sm:$0xc]
        %s2045 = scalar_lea.vmem %s1, 96
        %v2046 = vld [vmem:[%s2045] sm:$0xf]
        %v2048 = vunpack.c.l.b16 %v2044
        %v2049 = vpack.c.b16 %v1812, %v2048
        %v2050 = vrot.slane %v2049, 2
        %v2051 = vrot.slane %v1966, 2
        %v2052 = vsel %vm493, %v2050, %v2051
        %v2054 = vsel %vm217, %v2052, 0
        %v2057 = vsel %vm217, %v2051, 0
        %v2060 = vsel %vm224, %v2046, 0
        %2062 = vmatprep.subr.bf16.mxu0 0
        %2063 = vmatpush1.bf16.msra.mxu0 0
        %2064 = vmatprep.subr.bf16.mxu0 0
        %2065 = vmatpush1.bf16.msra.mxu0 0
        %2066 = vmatprep.subr.bf16.mxu0 0
        %2067 = vmatpush1.bf16.msra.mxu0 0
        %2068 = vmatprep.subr.bf16.mxu0 0
        %2069 = vmatpush1.bf16.msra.mxu0 0
        %2070 = vmatprep.subr.bf16.mxu0 0
        %2071 = vmatpush1.bf16.msra.mxu0 0
        %2072 = vmatprep.subr.bf16.mxu0 0
        %2073 = vmatpush1.bf16.msra.mxu0 0
        %2074 = vmatprep.subr.bf16.mxu0 0
        %2075 = vmatpush1.bf16.msra.mxu0 0
        %2076 = vmatprep.subr.bf16.mxu0 0
        %2077 = vmatpush1.bf16.msra.mxu0 %v2060
        %2078 = vmatprep.subr.bf16.mxu0 0
        %2079 = vmatpush2.bf16.msra.mxu0 0
        %2080 = vmatprep.subr.bf16.mxu0 0
        %2081 = vmatpush2.bf16.msra.mxu0 0
        %2082 = vmatprep.subr.bf16.mxu0 0
        %2083 = vmatpush2.bf16.msra.mxu0 0
        %2084 = vmatprep.subr.bf16.mxu0 0
        %2085 = vmatpush2.bf16.msra.mxu0 0
        %2086 = vmatprep.subr.bf16.mxu0 0
        %2087 = vmatpush2.bf16.msra.mxu0 0
        %2088 = vmatprep.subr.bf16.mxu0 0
        %2089 = vmatpush2.bf16.msra.mxu0 0
        %2090 = vmatprep.subr.bf16.mxu0 0
        %2091 = vmatpush2.bf16.msra.mxu0 0
        %2092 = vmatprep.subr.bf16.mxu0 0
        %2093 = vmatpush2.bf16.msra.mxu0 0
        %2094 = vmatprep.mubr.bf16.mxu0 0
        %2095 = vmatmul.mubr.bf16.gmra.mxu0 %v2054
        %v2096 = vpop.f32.mrf.mxu0
        %v2097 = vadd.f32 0.0, %v2096
        %v2098 = vpop.f32.mrf.mxu0
        %v2099 = vpop.f32.mrf.mxu0
        %v2100 = vadd.f32 0.0, %v2099
        %v2101 = vpop.f32.mrf.mxu0
        %2102 = vmatprep.mubr.bf16.mxu0 0
        %2103 = vmatmul.mubr.bf16.gmra.mxu0 %v2057
        %v2104 = vpop.f32.mrf.mxu0
        %v2105 = vadd.f32 0.0, %v2104
        %v2106 = vpop.f32.mrf.mxu0
        %v2107 = vpop.f32.mrf.mxu0
        %v2108 = vpop.f32.mrf.mxu0
        %2109 = vdwg.mxu0
        %v2110 = vadd.f32 %v2041, %v2097
        %v2111 = vadd.f32 %v2042, %v2100
        %v2112 = vadd.f32 %v2043, %v2105
        %v2113 = vlaneseq
        %v2114 = vshrl.u32 %v2113, 7
        %v2115 = vsub.s32 0, %v2114
        %v2116 = vrot.slane %v172, %v2115
        %v2117 = vadd.f32 %v2110, %v2116
        %v2118 = vadd.f32 %v2111, %v2116
        %v2119 = vadd.f32 %v2112, %v2116
        %v2120 = vmax.f32 %v2117, 0.0
        %v2121 = vmax.f32 %v2118, 0.0
        %v2122 = vmax.f32 %v2119, 0.0
        %v2123 = vlaneseq
        %v2124 = vshrl.u32 %v2123, 7
        %v2125 = vsub.s32 0, %v2124
        %v2126 = vrot.slane %v173, %v2125
        %v2127 = vmul.f32 %v2120, %v2126
        %v2128 = vmul.f32 %v2121, %v2126
        %v2129 = vmul.f32 %v2122, %v2126
        %v2130 = vlaneseq
        %v2131 = vshrl.u32 %v2130, 7
        %v2132 = vsub.s32 0, %v2131
        %v2133 = vrot.slane %v174, %v2132
        %v2134 = vadd.f32 %v2127, %v2133
        %v2135 = vadd.f32 %v2128, %v2133
        %v2136 = vadd.f32 %v2129, %v2133
        %v2137 = vpack.c.bf16 %v2135, %v2134
        %v2138 = vpack.c.bf16 %v2136, %v2136
        %v2141 = vunpack.c.l.b16 %v2137
        %v2142 = vunpack.c.h.b16 %v2137
        %v2143 = vunpack.c.l.b16 %v2138
        %v2144 = vpack.c.b16 %v2141, %v2141
        %v2145 = vpack.c.b16 %v2142, %v2142
        %v2146 = vpack.c.b16 %v2143, %v2143
        %s2150 = smul.u32 %s176, 3
        %s2151 = smul.addr %s2150, 4
        %s2152 = scalar_lea.vmem %s170, %s2151
        %2153 = vst [vmem:[%s2152] sm:$0xf] %v2144
        %2154 = vst [vmem:[%s2152 + $0x4] sm:$0xf] %v2145
        %2155 = vst [vmem:[%s2152 + $0x8] sm:$0xf] %v2146
      $region37: #{mnist_net_forward.5} parent=31 // loop_footer
        %s180 = sadd.s32 1, %s176
      $region38: #{mnist_net_forward.5} parent=31 // loop_footer_branch
        %175 = sbr.rel target = $region34
      $region39: #{mnist_net_forward.5} parent=31 // loop_exit
        _
      %p2156 = scmp.lt.s32.totalorder %s14, 1
      %s2157 = scalar_select %p2156, %s14, 1
      %s2158 = smul.addr %s2157, 72
      %s2159 = smul.addr %s2158, 4
      %s2160 = scalar_lea.vmem %s3, %s2159
      // Predicated region
      $region40: #{mnist_net_forward.5} parent=31 // pred_check
        %p2161 = pneg %p100
      $region41: #{mnist_net_forward.5} parent=31 // pred_check_branch
        %2163 = sbr.rel (%p2161) target = $region43
      $region42: #{mnist_net_forward.5} parent=31 // pred_region
        _
      $region43: #{mnist_net_forward.5} parent=31 // pred_fallthru
        _
    $region32: #{mnist_net_forward.5} parent=5 // pred_fallthru
      _
    %p2164 = scmp.le.s32.totalorder 2, %s9
    // Predicated region
    $region44: #{mnist_net_forward.5} parent=5 // pred_check
      %p2165 = pneg %p2164
    $region45: #{mnist_net_forward.5} parent=5 // pred_check_branch
      %2167 = sbr.rel (%p2165) target = $region47
    $region46: #{mnist_net_forward.5} parent=5 // pred_region
      %s2168 = ssub.s32 %s9, 2
      // Predicated region
      $region48: #{mnist_net_forward.5} parent=46 // pred_check
        %p2169 = pneg %p106
      $region49: #{mnist_net_forward.5} parent=46 // pred_check_branch
        %2171 = sbr.rel (%p2169) target = $region51
      $region50: #{mnist_net_forward.5} parent=46 // pred_region
        %p2172 = scmp.lt.s32.totalorder %s15, 1
        %s2173 = scalar_select %p2172, %s15, 1
        %s2174 = smul.addr %s2173, 72
        %s2175 = smul.addr %s2174, 4
        %s2176 = scalar_lea.vmem %s3, %s2175
      $region51: #{mnist_net_forward.5} parent=46 // pred_fallthru
        _
    $region47: #{mnist_net_forward.5} parent=5 // pred_fallthru
      _
  $region6: #{mnist_net_forward.5} parent=0 // loop_footer
    %s13 = sadd.s32 1, %s9
  $region7: #{mnist_net_forward.5} parent=0 // loop_footer_branch
    %8 = sbr.rel target = $region3
  $region8: #{mnist_net_forward.5} parent=0 // loop_exit
    _

// kernel: mnist_net_forward.6
$region0: #{mnist_net_forward.6}
  #allocation0 [shape = 'u32[]', space=smem, size = 0x4, offset = 0x4, fixed_abs, tag = 'smem constant byte address 0x4 - core index']
  #allocation1 [shape = 'u32[144,128]{1,0:T(1,128)}', space=vmem, size = 0x12000, scoped, tag = 'internal scratch']
  %s0 = inlined_call_operand.vmem [shape: bf16[2,24,24,128], index: 0, kind: input, shape index: {}]
  %s1 = inlined_call_operand.vmem [shape: bf16[25,128,128], index: 1, kind: input, shape index: {}]
  %s2 = inlined_call_operand.vmem [shape: f32[3,128], index: 2, kind: input, shape index: {}]
  %s3 = inlined_call_operand.vmem [shape: bf16[2,20,20,128], index: 3, kind: output, shape index: {}]
  %s4 = sld [smem:[#allocation0]]
  $region52: #{mnist_net_forward.6} parent=0
    _
  %s6 = ssub.s32 1, %s4
  %s7 = scalar_select 0, %s6, %s4
  loop: start=0, step=1, limit=4
  $region2: #{mnist_net_forward.6} parent=0 // loop_pre_header
    _
  $region3: #{mnist_net_forward.6} parent=0 // loop_header
    %s9 = sphi 0, %s13
    %p10 = scmp.ge.s32.totalorder %s9, 4
    %s19 = sphi 0, %s21
    %s22 = sphi 0, %s19
    %s23 = sphi 0, %s22
    %s39 = sphi 0, %s23
    %s43 = sphi 0, %s43
    %s45 = sphi 0, %s43
    %s46 = sphi 0, %s45
    %s60 = sphi 0, %s46
    %s64 = sphi 0, %s64
    %s66 = sphi 0, %s64
    %s67 = sphi 0, %s66
    %s81 = sphi 0, %s67
    %s87 = sphi 0, %s89
    %s90 = sphi 0, %s87
    %s91 = sphi 0, %s90
    %s107 = sphi 0, %s91
  $region4: #{mnist_net_forward.6} parent=0 // loop_header_branch
    %12 = sbr.rel (%p10) target = $region8
  $region5: #{mnist_net_forward.6} parent=0 // loop_body
    %s14 = ssub.s32 %s9, 1
    %s15 = ssub.s32 %s9, 2
    %s16 = sadd.s32 %s9, 1
    %s17 = ssub.s32 %s9, %s16
    %p18 = scmp.eq.s32.totalorder %s17, 0
    %s20 = sadd.s32 %s19, 1
    %s21 = scalar_select %p18, %s19, %s20
    %p24 = pneg %p18
    %p25 = scmp.eq.s32.totalorder %s9, 1
    %p26 = por %p24, %p25
    %p27 = scmp.ne.s32.totalorder %s19, %s22
    %p28 = scmp.eq.s32.totalorder %s9, 0
    %p29 = por %p27, %p28
    %p30 = scmp.ne.s32.totalorder %s19, %s22
    %p31 = scmp.eq.s32.totalorder %s14, 1
    %p32 = por %p30, %p31
    %p33 = scmp.ne.s32.totalorder %s22, %s23
    %p34 = scmp.eq.s32.totalorder %s14, 0
    %p35 = por %p33, %p34
    %p36 = scmp.ne.s32.totalorder %s22, %s23
    %p37 = scmp.eq.s32.totalorder %s15, 1
    %p38 = por %p36, %p37
    %p40 = scmp.ne.s32.totalorder %s23, %s39
    %p41 = scmp.eq.s32.totalorder %s15, 0
    %p42 = por %p40, %p41
    %s44 = sadd.s32 %s43, 1
    %p47 = scmp.eq.s32.totalorder %s9, 1
    %p48 = scmp.ne.s32.totalorder %s43, %s45
    %p49 = scmp.eq.s32.totalorder %s9, 0
    %p50 = por %p48, %p49
    %p51 = scmp.ne.s32.totalorder %s43, %s45
    %p52 = scmp.eq.s32.totalorder %s14, 1
    %p53 = por %p51, %p52
    %p54 = scmp.ne.s32.totalorder %s45, %s46
    %p55 = scmp.eq.s32.totalorder %s14, 0
    %p56 = por %p54, %p55
    %p57 = scmp.ne.s32.totalorder %s45, %s46
    %p58 = scmp.eq.s32.totalorder %s15, 1
    %p59 = por %p57, %p58
    %p61 = scmp.ne.s32.totalorder %s46, %s60
    %p62 = scmp.eq.s32.totalorder %s15, 0
    %p63 = por %p61, %p62
    %s65 = sadd.s32 %s64, 1
    %p68 = scmp.eq.s32.totalorder %s9, 1
    %p69 = scmp.ne.s32.totalorder %s64, %s66
    %p70 = scmp.eq.s32.totalorder %s9, 0
    %p71 = por %p69, %p70
    %p72 = scmp.ne.s32.totalorder %s64, %s66
    %p73 = scmp.eq.s32.totalorder %s14, 1
    %p74 = por %p72, %p73
    %p75 = scmp.ne.s32.totalorder %s66, %s67
    %p76 = scmp.eq.s32.totalorder %s14, 0
    %p77 = por %p75, %p76
    %p78 = scmp.ne.s32.totalorder %s66, %s67
    %p79 = scmp.eq.s32.totalorder %s15, 1
    %p80 = por %p78, %p79
    %p82 = scmp.ne.s32.totalorder %s67, %s81
    %p83 = scmp.eq.s32.totalorder %s15, 0
    %p84 = por %p82, %p83
    %s85 = ssub.s32 %s9, %s16
    %p86 = scmp.eq.s32.totalorder %s85, 0
    %s88 = sadd.s32 %s87, 1
    %s89 = scalar_select %p86, %s87, %s88
    %p92 = pneg %p86
    %p93 = scmp.eq.s32.totalorder %s9, 1
    %p94 = por %p92, %p93
    %p95 = scmp.ne.s32.totalorder %s87, %s90
    %p96 = scmp.eq.s32.totalorder %s9, 0
    %p97 = por %p95, %p96
    %p98 = scmp.ne.s32.totalorder %s87, %s90
    %p99 = scmp.eq.s32.totalorder %s14, 1
    %p100 = por %p98, %p99
    %p101 = scmp.ne.s32.totalorder %s90, %s91
    %p102 = scmp.eq.s32.totalorder %s14, 0
    %p103 = por %p101, %p102
    %p104 = scmp.ne.s32.totalorder %s90, %s91
    %p105 = scmp.eq.s32.totalorder %s15, 1
    %p106 = por %p104, %p105
    %p108 = scmp.ne.s32.totalorder %s91, %s107
    %p109 = scmp.eq.s32.totalorder %s15, 0
    %p110 = por %p108, %p109
    %p111 = scmp.le.s32.totalorder 1, %s9
    %p112 = scmp.lt.s32.totalorder %s9, 3
    %p113 = pnand %p111, %p112
    %p114 = pneg %p113
    // Predicated region
    $region9: #{mnist_net_forward.6} parent=5 // pred_check
      _
    $region10: #{mnist_net_forward.6} parent=5 // pred_check_branch
      %116 = sbr.rel (%p113) target = $region12
    $region11: #{mnist_net_forward.6} parent=5 // pred_region
      %s117 = ssub.s32 %s9, 1
      // Predicated region
      $region13: #{mnist_net_forward.6} parent=11 // pred_check
        %p118 = pneg %p56
      $region14: #{mnist_net_forward.6} parent=11 // pred_check_branch
        %120 = sbr.rel (%p118) target = $region16
      $region15: #{mnist_net_forward.6} parent=11 // pred_region
        _
      $region16: #{mnist_net_forward.6} parent=11 // pred_fallthru
        _
      // Predicated region
      $region17: #{mnist_net_forward.6} parent=11 // pred_check
        %p121 = pneg %p77
      $region18: #{mnist_net_forward.6} parent=11 // pred_check_branch
        %123 = sbr.rel (%p121) target = $region20
      $region19: #{mnist_net_forward.6} parent=11 // pred_region
        _
      $region20: #{mnist_net_forward.6} parent=11 // pred_fallthru
        _
    $region12: #{mnist_net_forward.6} parent=5 // pred_fallthru
      _
    %p124 = scmp.lt.s32.totalorder %s9, 2
    // Predicated region
    $region21: #{mnist_net_forward.6} parent=5 // pred_check
      %p125 = pneg %p124
    $region22: #{mnist_net_forward.6} parent=5 // pred_check_branch
      %127 = sbr.rel (%p125) target = $region24
    $region23: #{mnist_net_forward.6} parent=5 // pred_region
      // Predicated region
      $region25: #{mnist_net_forward.6} parent=23 // pred_check
        %p128 = pneg %p29
      $region26: #{mnist_net_forward.6} parent=23 // pred_check_branch
        %130 = sbr.rel (%p128) target = $region28
      $region27: #{mnist_net_forward.6} parent=23 // pred_region
        %p131 = scmp.lt.s32.totalorder %s9, 1
        %s132 = scalar_select %p131, %s9, 1
        %s133 = smul.addr %s132, 72
        %s134 = smul.addr %s133, 4
        %s135 = scalar_lea.vmem %s0, %s134
      $region28: #{mnist_net_forward.6} parent=23 // pred_fallthru
        _
    $region24: #{mnist_net_forward.6} parent=5 // pred_fallthru
      _
    %p136 = scmp.le.s32.totalorder 1, %s9
    %p137 = scmp.lt.s32.totalorder %s9, 3
    %p138 = pnand %p136, %p137
    %p139 = pneg %p138
    // Predicated region
    $region29: #{mnist_net_forward.6} parent=5 // pred_check
      _
    $region30: #{mnist_net_forward.6} parent=5 // pred_check_branch
      %141 = sbr.rel (%p138) target = $region32
    $region31: #{mnist_net_forward.6} parent=5 // pred_region
      %s142 = ssub.s32 %s9, 1
      %p143 = scmp.lt.s32.totalorder %s14, 1
      %s144 = scalar_select %p143, %s14, 1
      %s145 = smul.addr %s144, 72
      %s146 = smul.addr %s145, 4
      %s147 = scalar_lea.vmem %s0, %s146
      %p148 = pneg %p35
      %p149 = pneg %p32
      %p150 = pneg %p56
      %p151 = pneg %p53
      %p152 = pneg %p77
      %p153 = pneg %p74
      %p154 = pneg %p103
      %p155 = pneg %p100
      %p156 = scmp.lt.s32.totalorder %s14, 1
      %s157 = scalar_select %p156, %s14, 1
      %s158 = smul.addr %s157, 60
      %s159 = smul.addr %s158, 4
      %s160 = scalar_lea.vmem %s3, %s159
      %p161 = scmp.lt.s32.totalorder %s14, 1
      %s162 = scalar_select %p161, %s14, 1
      %s163 = smul.addr %s162, 72
      %s164 = smul.addr %s163, 4
      %s165 = scalar_lea.vmem %s0, %s164
      %p166 = scmp.lt.s32.totalorder %s14, 1
      %s167 = scalar_select %p166, %s14, 1
      %s168 = smul.addr %s167, 60
      %s169 = smul.addr %s168, 4
      %s170 = scalar_lea.vmem %s3, %s169
      %v172 = vld [vmem:[%s2] sm:$0x1]
      %v173 = vld [vmem:[%s2 + $0x1] sm:$0x1]
      %v174 = vld [vmem:[%s2 + $0x2] sm:$0x1]
      loop: start=0, step=1, limit=20
      $region33: #{mnist_net_forward.6} parent=31 // loop_pre_header
        _
      $region34: #{mnist_net_forward.6} parent=31 // loop_header
        %s176 = sphi 0, %s180
        %p177 = scmp.ge.s32.totalorder %s176, 20
      $region35: #{mnist_net_forward.6} parent=31 // loop_header_branch
        %179 = sbr.rel (%p177) target = $region39
      $region36: #{mnist_net_forward.6} parent=31 // loop_body
        %s181 = smul.u32 %s176, 3
        %s182 = smul.addr %s181, 4
        %s183 = scalar_lea.vmem %s165, %s182
        %v184 = vld [vmem:[%s183] sm:$0xf]
        %v185 = vld [vmem:[%s183 + $0x4] sm:$0xf]
        %v186 = vld [vmem:[%s183 + $0x8] sm:$0x3]
        %v187 = vld [vmem:[%s1] sm:$0xf]
        %v188 = vld [vmem:[%s1 + $0x4] sm:$0xf]
        %v189 = vld [vmem:[%s1 + $0x8] sm:$0xf]
        %v190 = vld [vmem:[%s1 + $0xc] sm:$0xf]
        %v191 = vld [vmem:[%s1 + $0x10] sm:$0xf]
        %v192 = vld [vmem:[%s1 + $0x14] sm:$0xf]
        %v193 = vld [vmem:[%s1 + $0x18] sm:$0xf]
        %v194 = vld [vmem:[%s1 + $0x1c] sm:$0xf]
        %v195 = vld [vmem:[%s1 + $0x20] sm:$0xf]
        %v196 = vld [vmem:[%s1 + $0x24] sm:$0xf]
        %v197 = vld [vmem:[%s1 + $0x28] sm:$0xf]
        %v198 = vld [vmem:[%s1 + $0x2c] sm:$0xf]
        %v199 = vld [vmem:[%s1 + $0x30] sm:$0xf]
        %v200 = vld [vmem:[%s1 + $0x34] sm:$0xf]
        %v201 = vld [vmem:[%s1 + $0x38] sm:$0xf]
        %v202 = vld [vmem:[%s1 + $0x3c] sm:$0xf]
        %v203 = vld [vmem:[%s183 + $0x8] sm:$0x7]
        %s204 = scalar_lea.vmem %s1, 64
        %v205 = vld [vmem:[%s204] sm:$0xf]
        %v206 = vld [vmem:[%s204 + $0x4] sm:$0xf]
        %v207 = vld [vmem:[%s204 + $0x8] sm:$0xf]
        %v208 = vld [vmem:[%s204 + $0xc] sm:$0xf]
        %v209 = vld [vmem:[%s204 + $0x10] sm:$0xf]
        %v210 = vld [vmem:[%s204 + $0x14] sm:$0xf]
        %v211 = vld [vmem:[%s204 + $0x18] sm:$0xf]
        %v212 = vld [vmem:[%s204 + $0x1c] sm:$0xf]
        %v213 = vld [vmem:[%s204 + $0x20] sm:$0xf]
        %v214 = vld [vmem:[%s204 + $0x24] sm:$0xf]
        %v215 = vld [vmem:[%s204 + $0x28] sm:$0xf]
        %v216 = vld [vmem:[%s204 + $0x2c] sm:$0xf]
        %v217 = vld [vmem:[%s204 + $0x30] sm:$0xf]
        %v218 = vld [vmem:[%s204 + $0x34] sm:$0xf]
        %v219 = vld [vmem:[%s204 + $0x38] sm:$0xf]
        %v220 = vld [vmem:[%s204 + $0x3c] sm:$0xf]
        %v224 = vunpack.c.l.b16 %v184
        %v225 = vunpack.c.l.b16 %v185
        %v226 = vunpack.c.l.b16 %v203
        %v227 = vpack.c.b16 %v225, %v224
        %v228 = vpack.c.b16 %v226, %v226
        %vm229 = vsmask.f32 7424
        %v231 = vshrl.u32 %v227, 16
        %v233 = vshll.u32 %v227, 16
        %v235 = vrot.slane %v233, 1
        %v236 = vor.u32 %v231, %v235
        %v238 = vshll.u32 %v228, 16
        %v240 = vrot.slane %v238, 1
        %v241 = vsel %vm229, %v236, %v240
        %v242 = vshrl.u32 %v228, 16
        %v244 = vor.u32 %v242, %v240
        %v263 = vunpack.c.l.b16 %v205
        %v264 = vunpack.c.l.b16 %v206
        %v265 = vunpack.c.l.b16 %v207
        %v266 = vunpack.c.l.b16 %v208
        %v267 = vunpack.c.l.b16 %v209
        %v268 = vunpack.c.l.b16 %v210
        %v269 = vunpack.c.l.b16 %v211
        %v270 = vunpack.c.l.b16 %v212
        %v271 = vunpack.c.l.b16 %v213
        %v272 = vunpack.c.l.b16 %v214
        %v273 = vunpack.c.l.b16 %v215
        %v274 = vunpack.c.l.b16 %v216
        %v275 = vunpack.c.l.b16 %v217
        %v276 = vunpack.c.l.b16 %v218
        %v277 = vunpack.c.l.b16 %v219
        %v278 = vunpack.c.l.b16 %v220
        %v279 = vpack.c.b16 %v264, %v263
        %v280 = vpack.c.b16 %v266, %v265
        %v281 = vpack.c.b16 %v268, %v267
        %v282 = vpack.c.b16 %v270, %v269
        %v283 = vpack.c.b16 %v272, %v271
        %v284 = vpack.c.b16 %v274, %v273
        %v285 = vpack.c.b16 %v276, %v275
        %v286 = vpack.c.b16 %v278, %v277
        %295 = vmatprep.subr.bf16.mxu0 0
        %296 = vmatpush1.bf16.msra.mxu0 %v286
        %297 = vmatprep.subr.bf16.mxu0 0
        %298 = vmatpush1.bf16.msra.mxu0 %v285
        %299 = vmatprep.subr.bf16.mxu0 0
        %300 = vmatpush1.bf16.msra.mxu0 %v284
        %301 = vmatprep.subr.bf16.mxu0 0
        %302 = vmatpush1.bf16.msra.mxu0 %v283
        %303 = vmatprep.subr.bf16.mxu0 0
        %304 = vmatpush1.bf16.msra.mxu0 %v282
        %305 = vmatprep.subr.bf16.mxu0 0
        %306 = vmatpush1.bf16.msra.mxu0 %v281
        %307 = vmatprep.subr.bf16.mxu0 0
        %308 = vmatpush1.bf16.msra.mxu0 %v280
        %309 = vmatprep.subr.bf16.mxu0 0
        %310 = vmatpush1.bf16.msra.mxu0 %v279
        %311 = vmatprep.subr.bf16.mxu0 0
        %312 = vmatpush2.bf16.msra.mxu0 0
        %313 = vmatprep.subr.bf16.mxu0 0
        %314 = vmatpush2.bf16.msra.mxu0 0
        %315 = vmatprep.subr.bf16.mxu0 0
        %316 = vmatpush2.bf16.msra.mxu0 0
        %317 = vmatprep.subr.bf16.mxu0 0
        %318 = vmatpush2.bf16.msra.mxu0 0
        %319 = vmatprep.subr.bf16.mxu0 0
        %320 = vmatpush2.bf16.msra.mxu0 0
        %321 = vmatprep.subr.bf16.mxu0 0
        %322 = vmatpush2.bf16.msra.mxu0 0
        %323 = vmatprep.subr.bf16.mxu0 0
        %324 = vmatpush2.bf16.msra.mxu0 0
        %325 = vmatprep.subr.bf16.mxu0 0
        %326 = vmatpush2.bf16.msra.mxu0 0
        %327 = vmatprep.mubr.bf16.mxu0 0
        %328 = vmatmul.mubr.bf16.gmra.mxu0 %v241
        %v329 = vpop.f32.mrf.mxu0
        %v330 = vadd.f32 0.0, %v329
        %v331 = vpop.f32.mrf.mxu0
        %v332 = vpop.f32.mrf.mxu0
        %v333 = vadd.f32 0.0, %v332
        %v334 = vpop.f32.mrf.mxu0
        %335 = vmatprep.mubr.bf16.mxu0 0
        %336 = vmatmul.mubr.bf16.gmra.mxu0 %v244
        %v337 = vpop.f32.mrf.mxu0
        %v338 = vadd.f32 0.0, %v337
        %v339 = vpop.f32.mrf.mxu0
        %v340 = vpop.f32.mrf.mxu0
        %v341 = vpop.f32.mrf.mxu0
        %342 = vdwg.mxu0
        %v344 = vunpack.c.l.b16 %v186
        %v345 = vpack.c.b16 %v344, %v344
        %v364 = vunpack.c.l.b16 %v187
        %v365 = vunpack.c.l.b16 %v188
        %v366 = vunpack.c.l.b16 %v189
        %v367 = vunpack.c.l.b16 %v190
        %v368 = vunpack.c.l.b16 %v191
        %v369 = vunpack.c.l.b16 %v192
        %v370 = vunpack.c.l.b16 %v193
        %v371 = vunpack.c.l.b16 %v194
        %v372 = vunpack.c.l.b16 %v195
        %v373 = vunpack.c.l.b16 %v196
        %v374 = vunpack.c.l.b16 %v197
        %v375 = vunpack.c.l.b16 %v198
        %v376 = vunpack.c.l.b16 %v199
        %v377 = vunpack.c.l.b16 %v200
        %v378 = vunpack.c.l.b16 %v201
        %v379 = vunpack.c.l.b16 %v202
        %v380 = vpack.c.b16 %v365, %v364
        %v381 = vpack.c.b16 %v367, %v366
        %v382 = vpack.c.b16 %v369, %v368
        %v383 = vpack.c.b16 %v371, %v370
        %v384 = vpack.c.b16 %v373, %v372
        %v385 = vpack.c.b16 %v375, %v374
        %v386 = vpack.c.b16 %v377, %v376
        %v387 = vpack.c.b16 %v379, %v378
        %396 = vmatprep.subr.bf16.mxu0 0
        %397 = vmatpush1.bf16.msra.mxu0 %v387
        %398 = vmatprep.subr.bf16.mxu0 0
        %399 = vmatpush1.bf16.msra.mxu0 %v386
        %400 = vmatprep.subr.bf16.mxu0 0
        %401 = vmatpush1.bf16.msra.mxu0 %v385
        %402 = vmatprep.subr.bf16.mxu0 0
        %403 = vmatpush1.bf16.msra.mxu0 %v384
        %404 = vmatprep.subr.bf16.mxu0 0
        %405 = vmatpush1.bf16.msra.mxu0 %v383
        %406 = vmatprep.subr.bf16.mxu0 0
        %407 = vmatpush1.bf16.msra.mxu0 %v382
        %408 = vmatprep.subr.bf16.mxu0 0
        %409 = vmatpush1.bf16.msra.mxu0 %v381
        %410 = vmatprep.subr.bf16.mxu0 0
        %411 = vmatpush1.bf16.msra.mxu0 %v380
        %412 = vmatprep.subr.bf16.mxu0 0
        %413 = vmatpush2.bf16.msra.mxu0 0
        %414 = vmatprep.subr.bf16.mxu0 0
        %415 = vmatpush2.bf16.msra.mxu0 0
        %416 = vmatprep.subr.bf16.mxu0 0
        %417 = vmatpush2.bf16.msra.mxu0 0
        %418 = vmatprep.subr.bf16.mxu0 0
        %419 = vmatpush2.bf16.msra.mxu0 0
        %420 = vmatprep.subr.bf16.mxu0 0
        %421 = vmatpush2.bf16.msra.mxu0 0
        %422 = vmatprep.subr.bf16.mxu0 0
        %423 = vmatpush2.bf16.msra.mxu0 0
        %424 = vmatprep.subr.bf16.mxu0 0
        %425 = vmatpush2.bf16.msra.mxu0 0
        %426 = vmatprep.subr.bf16.mxu0 0
        %427 = vmatpush2.bf16.msra.mxu0 0
        %428 = vmatprep.mubr.bf16.mxu0 0
        %429 = vmatmul.mubr.bf16.gmra.mxu0 %v227
        %v430 = vpop.f32.mrf.mxu0
        %v431 = vadd.f32 %v330, %v430
        %v432 = vpop.f32.mrf.mxu0
        %v433 = vpop.f32.mrf.mxu0
        %v434 = vadd.f32 %v333, %v433
        %v435 = vpop.f32.mrf.mxu0
        %436 = vmatprep.mubr.bf16.mxu0 0
        %437 = vmatmul.mubr.bf16.gmra.mxu0 %v345
        %v438 = vpop.f32.mrf.mxu0
        %v439 = vadd.f32 %v338, %v438
        %v440 = vpop.f32.mrf.mxu0
        %v441 = vpop.f32.mrf.mxu0
        %v442 = vpop.f32.mrf.mxu0
        %443 = vdwg.mxu0
        %v444 = vld [vmem:[%s183] sm:$0xe]
        %s445 = scalar_lea.vmem %s1, 128
        %v446 = vld [vmem:[%s445] sm:$0xf]
        %v447 = vld [vmem:[%s445 + $0x4] sm:$0xf]
        %v448 = vld [vmem:[%s445 + $0x8] sm:$0xf]
        %v449 = vld [vmem:[%s445 + $0xc] sm:$0xf]
        %v450 = vld [vmem:[%s445 + $0x10] sm:$0xf]
        %v451 = vld [vmem:[%s445 + $0x14] sm:$0xf]
        %v452 = vld [vmem:[%s445 + $0x18] sm:$0xf]
        %v453 = vld [vmem:[%s445 + $0x1c] sm:$0xf]
        %v454 = vld [vmem:[%s445 + $0x20] sm:$0xf]
        %v455 = vld [vmem:[%s445 + $0x24] sm:$0xf]
        %v456 = vld [vmem:[%s445 + $0x28] sm:$0xf]
        %v457 = vld [vmem:[%s445 + $0x2c] sm:$0xf]
        %v458 = vld [vmem:[%s445 + $0x30] sm:$0xf]
        %v459 = vld [vmem:[%s445 + $0x34] sm:$0xf]
        %v460 = vld [vmem:[%s445 + $0x38] sm:$0xf]
        %v461 = vld [vmem:[%s445 + $0x3c] sm:$0xf]
        %v463 = vunpack.c.l.b16 %v444
        %v464 = vpack.c.b16 %v225, %v463
        %vm465 = vcmask 1046528
        %v466 = vrot.slane %v464, 1
        %v467 = vrot.slane %v228, 1
        %v468 = vsel %vm465, %v466, %v467
        %v487 = vunpack.c.l.b16 %v446
        %v488 = vunpack.c.l.b16 %v447
        %v489 = vunpack.c.l.b16 %v448
        %v490 = vunpack.c.l.b16 %v449
        %v491 = vunpack.c.l.b16 %v450
        %v492 = vunpack.c.l.b16 %v451
        %v493 = vunpack.c.l.b16 %v452
        %v494 = vunpack.c.l.b16 %v453
        %v495 = vunpack.c.l.b16 %v454
        %v496 = vunpack.c.l.b16 %v455
        %v497 = vunpack.c.l.b16 %v456
        %v498 = vunpack.c.l.b16 %v457
        %v499 = vunpack.c.l.b16 %v458
        %v500 = vunpack.c.l.b16 %v459
        %v501 = vunpack.c.l.b16 %v460
        %v502 = vunpack.c.l.b16 %v461
        %v503 = vpack.c.b16 %v488, %v487
        %v504 = vpack.c.b16 %v490, %v489
        %v505 = vpack.c.b16 %v492, %v491
        %v506 = vpack.c.b16 %v494, %v493
        %v507 = vpack.c.b16 %v496, %v495
        %v508 = vpack.c.b16 %v498, %v497
        %v509 = vpack.c.b16 %v500, %v499
        %v510 = vpack.c.b16 %v502, %v501
        %519 = vmatprep.subr.bf16.mxu0 0
        %520 = vmatpush1.bf16.msra.mxu0 %v510
        %521 = vmatprep.subr.bf16.mxu0 0
        %522 = vmatpush1.bf16.msra.mxu0 %v509
        %523 = vmatprep.subr.bf16.mxu0 0
        %524 = vmatpush1.bf16.msra.mxu0 %v508
        %525 = vmatprep.subr.bf16.mxu0 0
        %526 = vmatpush1.bf16.msra.mxu0 %v507
        %527 = vmatprep.subr.bf16.mxu0 0
        %528 = vmatpush1.bf16.msra.mxu0 %v506
        %529 = vmatprep.subr.bf16.mxu0 0
        %530 = vmatpush1.bf16.msra.mxu0 %v505
        %531 = vmatprep.subr.bf16.mxu0 0
        %532 = vmatpush1.bf16.msra.mxu0 %v504
        %533 = vmatprep.subr.bf16.mxu0 0
        %534 = vmatpush1.bf16.msra.mxu0 %v503
        %535 = vmatprep.subr.bf16.mxu0 0
        %536 = vmatpush2.bf16.msra.mxu0 0
        %537 = vmatprep.subr.bf16.mxu0 0
        %538 = vmatpush2.bf16.msra.mxu0 0
        %539 = vmatprep.subr.bf16.mxu0 0
        %540 = vmatpush2.bf16.msra.mxu0 0
        %541 = vmatprep.subr.bf16.mxu0 0
        %542 = vmatpush2.bf16.msra.mxu0 0
        %543 = vmatprep.subr.bf16.mxu0 0
        %544 = vmatpush2.bf16.msra.mxu0 0
        %545 = vmatprep.subr.bf16.mxu0 0
        %546 = vmatpush2.bf16.msra.mxu0 0
        %547 = vmatprep.subr.bf16.mxu0 0
        %548 = vmatpush2.bf16.msra.mxu0 0
        %549 = vmatprep.subr.bf16.mxu0 0
        %550 = vmatpush2.bf16.msra.mxu0 0
        %551 = vmatprep.mubr.bf16.mxu0 0
        %552 = vmatmul.mubr.bf16.gmra.mxu0 %v468
        %v553 = vpop.f32.mrf.mxu0
        %v554 = vadd.f32 0.0, %v553
        %v555 = vpop.f32.mrf.mxu0
        %v556 = vpop.f32.mrf.mxu0
        %v557 = vadd.f32 0.0, %v556
        %v558 = vpop.f32.mrf.mxu0
        %559 = vmatprep.mubr.bf16.mxu0 0
        %560 = vmatmul.mubr.bf16.gmra.mxu0 %v467
        %v561 = vpop.f32.mrf.mxu0
        %v562 = vadd.f32 0.0, %v561
        %v563 = vpop.f32.mrf.mxu0
        %v564 = vpop.f32.mrf.mxu0
        %v565 = vpop.f32.mrf.mxu0
        %566 = vdwg.mxu0
        %v567 = vadd.f32 %v431, %v554
        %v568 = vadd.f32 %v434, %v557
        %v569 = vadd.f32 %v439, %v562
        %v570 = vld [vmem:[%s183 + $0x8] sm:$0xf]
        %s571 = scalar_lea.vmem %s1, 192
        %v572 = vld [vmem:[%s571] sm:$0xf]
        %v573 = vld [vmem:[%s571 + $0x4] sm:$0xf]
        %v574 = vld [vmem:[%s571 + $0x8] sm:$0xf]
        %v575 = vld [vmem:[%s571 + $0xc] sm:$0xf]
        %v576 = vld [vmem:[%s571 + $0x10] sm:$0xf]
        %v577 = vld [vmem:[%s571 + $0x14] sm:$0xf]
        %v578 = vld [vmem:[%s571 + $0x18] sm:$0xf]
        %v579 = vld [vmem:[%s571 + $0x1c] sm:$0xf]
        %v580 = vld [vmem:[%s571 + $0x20] sm:$0xf]
        %v581 = vld [vmem:[%s571 + $0x24] sm:$0xf]
        %v582 = vld [vmem:[%s571 + $0x28] sm:$0xf]
        %v583 = vld [vmem:[%s571 + $0x2c] sm:$0xf]
        %v584 = vld [vmem:[%s571 + $0x30] sm:$0xf]
        %v585 = vld [vmem:[%s571 + $0x34] sm:$0xf]
        %v586 = vld [vmem:[%s571 + $0x38] sm:$0xf]
        %v587 = vld [vmem:[%s571 + $0x3c] sm:$0xf]
        %v589 = vunpack.c.l.b16 %v570
        %v590 = vpack.c.b16 %v589, %v589
        %vm591 = vsmask.f32 6400
        %v593 = vshrl.u32 %v464, 16
        %v595 = vrot.slane %v593, 1
        %v596 = vshll.u32 %v464, 16
        %v598 = vrot.slane %v596, 2
        %v599 = vor.u32 %v595, %v598
        %v601 = vshrl.u32 %v590, 16
        %v603 = vrot.slane %v601, 1
        %v604 = vshll.u32 %v590, 16
        %v606 = vrot.slane %v604, 2
        %v607 = vor.u32 %v603, %v606
        %v608 = vsel %vm591, %v599, %v607
        %v627 = vunpack.c.l.b16 %v572
        %v628 = vunpack.c.l.b16 %v573
        %v629 = vunpack.c.l.b16 %v574
        %v630 = vunpack.c.l.b16 %v575
        %v631 = vunpack.c.l.b16 %v576
        %v632 = vunpack.c.l.b16 %v577
        %v633 = vunpack.c.l.b16 %v578
        %v634 = vunpack.c.l.b16 %v579
        %v635 = vunpack.c.l.b16 %v580
        %v636 = vunpack.c.l.b16 %v581
        %v637 = vunpack.c.l.b16 %v582
        %v638 = vunpack.c.l.b16 %v583
        %v639 = vunpack.c.l.b16 %v584
        %v640 = vunpack.c.l.b16 %v585
        %v641 = vunpack.c.l.b16 %v586
        %v642 = vunpack.c.l.b16 %v587
        %v643 = vpack.c.b16 %v628, %v627
        %v644 = vpack.c.b16 %v630, %v629
        %v645 = vpack.c.b16 %v632, %v631
        %v646 = vpack.c.b16 %v634, %v633
        %v647 = vpack.c.b16 %v636, %v635
        %v648 = vpack.c.b16 %v638, %v637
        %v649 = vpack.c.b16 %v640, %v639
        %v650 = vpack.c.b16 %v642, %v641
        %659 = vmatprep.subr.bf16.mxu0 0
        %660 = vmatpush1.bf16.msra.mxu0 %v650
        %661 = vmatprep.subr.bf16.mxu0 0
        %662 = vmatpush1.bf16.msra.mxu0 %v649
        %663 = vmatprep.subr.bf16.mxu0 0
        %664 = vmatpush1.bf16.msra.mxu0 %v648
        %665 = vmatprep.subr.bf16.mxu0 0
        %666 = vmatpush1.bf16.msra.mxu0 %v647
        %667 = vmatprep.subr.bf16.mxu0 0
        %668 = vmatpush1.bf16.msra.mxu0 %v646
        %669 = vmatprep.subr.bf16.mxu0 0
        %670 = vmatpush1.bf16.msra.mxu0 %v645
        %671 = vmatprep.subr.bf16.mxu0 0
        %672 = vmatpush1.bf16.msra.mxu0 %v644
        %673 = vmatprep.subr.bf16.mxu0 0
        %674 = vmatpush1.bf16.msra.mxu0 %v643
        %675 = vmatprep.subr.bf16.mxu0 0
        %676 = vmatpush2.bf16.msra.mxu0 0
        %677 = vmatprep.subr.bf16.mxu0 0
        %678 = vmatpush2.bf16.msra.mxu0 0
        %679 = vmatprep.subr.bf16.mxu0 0
        %680 = vmatpush2.bf16.msra.mxu0 0
        %681 = vmatprep.subr.bf16.mxu0 0
        %682 = vmatpush2.bf16.msra.mxu0 0
        %683 = vmatprep.subr.bf16.mxu0 0
        %684 = vmatpush2.bf16.msra.mxu0 0
        %685 = vmatprep.subr.bf16.mxu0 0
        %686 = vmatpush2.bf16.msra.mxu0 0
        %687 = vmatprep.subr.bf16.mxu0 0
        %688 = vmatpush2.bf16.msra.mxu0 0
        %689 = vmatprep.subr.bf16.mxu0 0
        %690 = vmatpush2.bf16.msra.mxu0 0
        %691 = vmatprep.mubr.bf16.mxu0 0
        %692 = vmatmul.mubr.bf16.gmra.mxu0 %v608
        %v693 = vpop.f32.mrf.mxu0
        %v694 = vadd.f32 0.0, %v693
        %v695 = vpop.f32.mrf.mxu0
        %v696 = vpop.f32.mrf.mxu0
        %v697 = vadd.f32 0.0, %v696
        %v698 = vpop.f32.mrf.mxu0
        %699 = vmatprep.mubr.bf16.mxu0 0
        %700 = vmatmul.mubr.bf16.gmra.mxu0 %v607
        %v701 = vpop.f32.mrf.mxu0
        %v702 = vadd.f32 0.0, %v701
        %v703 = vpop.f32.mrf.mxu0
        %v704 = vpop.f32.mrf.mxu0
        %v705 = vpop.f32.mrf.mxu0
        %706 = vdwg.mxu0
        %v707 = vadd.f32 %v567, %v694
        %v708 = vadd.f32 %v568, %v697
        %v709 = vadd.f32 %v569, %v702
        %v710 = vld [vmem:[%s183] sm:$0xc]
        %s711 = scalar_lea.vmem %s1, 256
        %v712 = vld [vmem:[%s711] sm:$0xf]
        %v713 = vld [vmem:[%s711 + $0x4] sm:$0xf]
        %v714 = vld [vmem:[%s711 + $0x8] sm:$0xf]
        %v715 = vld [vmem:[%s711 + $0xc] sm:$0xf]
        %v716 = vld [vmem:[%s711 + $0x10] sm:$0xf]
        %v717 = vld [vmem:[%s711 + $0x14] sm:$0xf]
        %v718 = vld [vmem:[%s711 + $0x18] sm:$0xf]
        %v719 = vld [vmem:[%s711 + $0x1c] sm:$0xf]
        %v720 = vld [vmem:[%s711 + $0x20] sm:$0xf]
        %v721 = vld [vmem:[%s711 + $0x24] sm:$0xf]
        %v722 = vld [vmem:[%s711 + $0x28] sm:$0xf]
        %v723 = vld [vmem:[%s711 + $0x2c] sm:$0xf]
        %v724 = vld [vmem:[%s711 + $0x30] sm:$0xf]
        %v725 = vld [vmem:[%s711 + $0x34] sm:$0xf]
        %v726 = vld [vmem:[%s711 + $0x38] sm:$0xf]
        %v727 = vld [vmem:[%s711 + $0x3c] sm:$0xf]
        %v729 = vunpack.c.l.b16 %v710
        %v730 = vpack.c.b16 %v225, %v729
        %vm731 = vcmask 1045504
        %v732 = vrot.slane %v730, 2
        %v733 = vrot.slane %v590, 2
        %v734 = vsel %vm731, %v732, %v733
        %v753 = vunpack.c.l.b16 %v712
        %v754 = vunpack.c.l.b16 %v713
        %v755 = vunpack.c.l.b16 %v714
        %v756 = vunpack.c.l.b16 %v715
        %v757 = vunpack.c.l.b16 %v716
        %v758 = vunpack.c.l.b16 %v717
        %v759 = vunpack.c.l.b16 %v718
        %v760 = vunpack.c.l.b16 %v719
        %v761 = vunpack.c.l.b16 %v720
        %v762 = vunpack.c.l.b16 %v721
        %v763 = vunpack.c.l.b16 %v722
        %v764 = vunpack.c.l.b16 %v723
        %v765 = vunpack.c.l.b16 %v724
        %v766 = vunpack.c.l.b16 %v725
        %v767 = vunpack.c.l.b16 %v726
        %v768 = vunpack.c.l.b16 %v727
        %v769 = vpack.c.b16 %v754, %v753
        %v770 = vpack.c.b16 %v756, %v755
        %v771 = vpack.c.b16 %v758, %v757
        %v772 = vpack.c.b16 %v760, %v759
        %v773 = vpack.c.b16 %v762, %v761
        %v774 = vpack.c.b16 %v764, %v763
        %v775 = vpack.c.b16 %v766, %v765
        %v776 = vpack.c.b16 %v768, %v767
        %785 = vmatprep.subr.bf16.mxu0 0
        %786 = vmatpush1.bf16.msra.mxu0 %v776
        %787 = vmatprep.subr.bf16.mxu0 0
        %788 = vmatpush1.bf16.msra.mxu0 %v775
        %789 = vmatprep.subr.bf16.mxu0 0
        %790 = vmatpush1.bf16.msra.mxu0 %v774
        %791 = vmatprep.subr.bf16.mxu0 0
        %792 = vmatpush1.bf16.msra.mxu0 %v773
        %793 = vmatprep.subr.bf16.mxu0 0
        %794 = vmatpush1.bf16.msra.mxu0 %v772
        %795 = vmatprep.subr.bf16.mxu0 0
        %796 = vmatpush1.bf16.msra.mxu0 %v771
        %797 = vmatprep.subr.bf16.mxu0 0
        %798 = vmatpush1.bf16.msra.mxu0 %v770
        %799 = vmatprep.subr.bf16.mxu0 0
        %800 = vmatpush1.bf16.msra.mxu0 %v769
        %801 = vmatprep.subr.bf16.mxu0 0
        %802 = vmatpush2.bf16.msra.mxu0 0
        %803 = vmatprep.subr.bf16.mxu0 0
        %804 = vmatpush2.bf16.msra.mxu0 0
        %805 = vmatprep.subr.bf16.mxu0 0
        %806 = vmatpush2.bf16.msra.mxu0 0
        %807 = vmatprep.subr.bf16.mxu0 0
        %808 = vmatpush2.bf16.msra.mxu0 0
        %809 = vmatprep.subr.bf16.mxu0 0
        %810 = vmatpush2.bf16.msra.mxu0 0
        %811 = vmatprep.subr.bf16.mxu0 0
        %812 = vmatpush2.bf16.msra.mxu0 0
        %813 = vmatprep.subr.bf16.mxu0 0
        %814 = vmatpush2.bf16.msra.mxu0 0
        %815 = vmatprep.subr.bf16.mxu0 0
        %816 = vmatpush2.bf16.msra.mxu0 0
        %817 = vmatprep.mubr.bf16.mxu0 0
        %818 = vmatmul.mubr.bf16.gmra.mxu0 %v734
        %v819 = vpop.f32.mrf.mxu0
        %v820 = vadd.f32 0.0, %v819
        %v821 = vpop.f32.mrf.mxu0
        %v822 = vpop.f32.mrf.mxu0
        %v823 = vadd.f32 0.0, %v822
        %v824 = vpop.f32.mrf.mxu0
        %825 = vmatprep.mubr.bf16.mxu0 0
        %826 = vmatmul.mubr.bf16.gmra.mxu0 %v733
        %v827 = vpop.f32.mrf.mxu0
        %v828 = vadd.f32 0.0, %v827
        %v829 = vpop.f32.mrf.mxu0
        %v830 = vpop.f32.mrf.mxu0
        %v831 = vpop.f32.mrf.mxu0
        %832 = vdwg.mxu0
        %v833 = vadd.f32 %v707, %v820
        %v834 = vadd.f32 %v708, %v823
        %v835 = vadd.f32 %v709, %v828
        %s836 = sadd.s32 %s176, 1
        %s837 = smul.u32 %s836, 3
        %s838 = smul.addr %s837, 4
        %s839 = scalar_lea.vmem %s165, %s838
        %v840 = vld [vmem:[%s839] sm:$0xf]
        %v841 = vld [vmem:[%s839 + $0x4] sm:$0xf]
        %v842 = vld [vmem:[%s839 + $0x8] sm:$0x3]
        %s843 = scalar_lea.vmem %s1, 320
        %v844 = vld [vmem:[%s843] sm:$0xf]
        %v845 = vld [vmem:[%s843 + $0x4] sm:$0xf]
        %v846 = vld [vmem:[%s843 + $0x8] sm:$0xf]
        %v847 = vld [vmem:[%s843 + $0xc] sm:$0xf]
        %v848 = vld [vmem:[%s843 + $0x10] sm:$0xf]
        %v849 = vld [vmem:[%s843 + $0x14] sm:$0xf]
        %v850 = vld [vmem:[%s843 + $0x18] sm:$0xf]
        %v851 = vld [vmem:[%s843 + $0x1c] sm:$0xf]
        %v852 = vld [vmem:[%s843 + $0x20] sm:$0xf]
        %v853 = vld [vmem:[%s843 + $0x24] sm:$0xf]
        %v854 = vld [vmem:[%s843 + $0x28] sm:$0xf]
        %v855 = vld [vmem:[%s843 + $0x2c] sm:$0xf]
        %v856 = vld [vmem:[%s843 + $0x30] sm:$0xf]
        %v857 = vld [vmem:[%s843 + $0x34] sm:$0xf]
        %v858 = vld [vmem:[%s843 + $0x38] sm:$0xf]
        %v859 = vld [vmem:[%s843 + $0x3c] sm:$0xf]
        %v863 = vunpack.c.l.b16 %v840
        %v864 = vunpack.c.l.b16 %v841
        %v865 = vunpack.c.l.b16 %v842
        %v866 = vpack.c.b16 %v864, %v863
        %v867 = vpack.c.b16 %v865, %v865
        %v886 = vunpack.c.l.b16 %v844
        %v887 = vunpack.c.l.b16 %v845
        %v888 = vunpack.c.l.b16 %v846
        %v889 = vunpack.c.l.b16 %v847
        %v890 = vunpack.c.l.b16 %v848
        %v891 = vunpack.c.l.b16 %v849
        %v892 = vunpack.c.l.b16 %v850
        %v893 = vunpack.c.l.b16 %v851
        %v894 = vunpack.c.l.b16 %v852
        %v895 = vunpack.c.l.b16 %v853
        %v896 = vunpack.c.l.b16 %v854
        %v897 = vunpack.c.l.b16 %v855
        %v898 = vunpack.c.l.b16 %v856
        %v899 = vunpack.c.l.b16 %v857
        %v900 = vunpack.c.l.b16 %v858
        %v901 = vunpack.c.l.b16 %v859
        %v902 = vpack.c.b16 %v887, %v886
        %v903 = vpack.c.b16 %v889, %v888
        %v904 = vpack.c.b16 %v891, %v890
        %v905 = vpack.c.b16 %v893, %v892
        %v906 = vpack.c.b16 %v895, %v894
        %v907 = vpack.c.b16 %v897, %v896
        %v908 = vpack.c.b16 %v899, %v898
        %v909 = vpack.c.b16 %v901, %v900
        %918 = vmatprep.subr.bf16.mxu0 0
        %919 = vmatpush1.bf16.msra.mxu0 %v909
        %920 = vmatprep.subr.bf16.mxu0 0
        %921 = vmatpush1.bf16.msra.mxu0 %v908
        %922 = vmatprep.subr.bf16.mxu0 0
        %923 = vmatpush1.bf16.msra.mxu0 %v907
        %924 = vmatprep.subr.bf16.mxu0 0
        %925 = vmatpush1.bf16.msra.mxu0 %v906
        %926 = vmatprep.subr.bf16.mxu0 0
        %927 = vmatpush1.bf16.msra.mxu0 %v905
        %928 = vmatprep.subr.bf16.mxu0 0
        %929 = vmatpush1.bf16.msra.mxu0 %v904
        %930 = vmatprep.subr.bf16.mxu0 0
        %931 = vmatpush1.bf16.msra.mxu0 %v903
        %932 = vmatprep.subr.bf16.mxu0 0
        %933 = vmatpush1.bf16.msra.mxu0 %v902
        %934 = vmatprep.subr.bf16.mxu0 0
        %935 = vmatpush2.bf16.msra.mxu0 0
        %936 = vmatprep.subr.bf16.mxu0 0
        %937 = vmatpush2.bf16.msra.mxu0 0
        %938 = vmatprep.subr.bf16.mxu0 0
        %939 = vmatpush2.bf16.msra.mxu0 0
        %940 = vmatprep.subr.bf16.mxu0 0
        %941 = vmatpush2.bf16.msra.mxu0 0
        %942 = vmatprep.subr.bf16.mxu0 0
        %943 = vmatpush2.bf16.msra.mxu0 0
        %944 = vmatprep.subr.bf16.mxu0 0
        %945 = vmatpush2.bf16.msra.mxu0 0
        %946 = vmatprep.subr.bf16.mxu0 0
        %947 = vmatpush2.bf16.msra.mxu0 0
        %948 = vmatprep.subr.bf16.mxu0 0
        %949 = vmatpush2.bf16.msra.mxu0 0
        %950 = vmatprep.mubr.bf16.mxu0 0
        %951 = vmatmul.mubr.bf16.gmra.mxu0 %v866
        %v952 = vpop.f32.mrf.mxu0
        %v953 = vadd.f32 0.0, %v952
        %v954 = vpop.f32.mrf.mxu0
        %v955 = vpop.f32.mrf.mxu0
        %v956 = vadd.f32 0.0, %v955
        %v957 = vpop.f32.mrf.mxu0
        %958 = vmatprep.mubr.bf16.mxu0 0
        %959 = vmatmul.mubr.bf16.gmra.mxu0 %v867
        %v960 = vpop.f32.mrf.mxu0
        %v961 = vadd.f32 0.0, %v960
        %v962 = vpop.f32.mrf.mxu0
        %v963 = vpop.f32.mrf.mxu0
        %v964 = vpop.f32.mrf.mxu0
        %965 = vdwg.mxu0
        %v966 = vadd.f32 %v833, %v953
        %v967 = vadd.f32 %v834, %v956
        %v968 = vadd.f32 %v835, %v961
        %v969 = vld [vmem:[%s839 + $0x8] sm:$0x7]
        %s970 = scalar_lea.vmem %s1, 384
        %v971 = vld [vmem:[%s970] sm:$0xf]
        %v972 = vld [vmem:[%s970 + $0x4] sm:$0xf]
        %v973 = vld [vmem:[%s970 + $0x8] sm:$0xf]
        %v974 = vld [vmem:[%s970 + $0xc] sm:$0xf]
        %v975 = vld [vmem:[%s970 + $0x10] sm:$0xf]
        %v976 = vld [vmem:[%s970 + $0x14] sm:$0xf]
        %v977 = vld [vmem:[%s970 + $0x18] sm:$0xf]
        %v978 = vld [vmem:[%s970 + $0x1c] sm:$0xf]
        %v979 = vld [vmem:[%s970 + $0x20] sm:$0xf]
        %v980 = vld [vmem:[%s970 + $0x24] sm:$0xf]
        %v981 = vld [vmem:[%s970 + $0x28] sm:$0xf]
        %v982 = vld [vmem:[%s970 + $0x2c] sm:$0xf]
        %v983 = vld [vmem:[%s970 + $0x30] sm:$0xf]
        %v984 = vld [vmem:[%s970 + $0x34] sm:$0xf]
        %v985 = vld [vmem:[%s970 + $0x38] sm:$0xf]
        %v986 = vld [vmem:[%s970 + $0x3c] sm:$0xf]
        %v988 = vunpack.c.l.b16 %v969
        %v989 = vpack.c.b16 %v988, %v988
        %v991 = vshrl.u32 %v866, 16
        %v993 = vshll.u32 %v866, 16
        %v995 = vrot.slane %v993, 1
        %v996 = vor.u32 %v991, %v995
        %v998 = vshll.u32 %v989, 16
        %v1000 = vrot.slane %v998, 1
        %v1001 = vsel %vm229, %v996, %v1000
        %v1002 = vshrl.u32 %v989, 16
        %v1004 = vor.u32 %v1002, %v1000
        %v1023 = vunpack.c.l.b16 %v971
        %v1024 = vunpack.c.l.b16 %v972
        %v1025 = vunpack.c.l.b16 %v973
        %v1026 = vunpack.c.l.b16 %v974
        %v1027 = vunpack.c.l.b16 %v975
        %v1028 = vunpack.c.l.b16 %v976
        %v1029 = vunpack.c.l.b16 %v977
        %v1030 = vunpack.c.l.b16 %v978
        %v1031 = vunpack.c.l.b16 %v979
        %v1032 = vunpack.c.l.b16 %v980
        %v1033 = vunpack.c.l.b16 %v981
        %v1034 = vunpack.c.l.b16 %v982
        %v1035 = vunpack.c.l.b16 %v983
        %v1036 = vunpack.c.l.b16 %v984
        %v1037 = vunpack.c.l.b16 %v985
        %v1038 = vunpack.c.l.b16 %v986
        %v1039 = vpack.c.b16 %v1024, %v1023
        %v1040 = vpack.c.b16 %v1026, %v1025
        %v1041 = vpack.c.b16 %v1028, %v1027
        %v1042 = vpack.c.b16 %v1030, %v1029
        %v1043 = vpack.c.b16 %v1032, %v1031
        %v1044 = vpack.c.b16 %v1034, %v1033
        %v1045 = vpack.c.b16 %v1036, %v1035
        %v1046 = vpack.c.b16 %v1038, %v1037
        %1055 = vmatprep.subr.bf16.mxu0 0
        %1056 = vmatpush1.bf16.msra.mxu0 %v1046
        %1057 = vmatprep.subr.bf16.mxu0 0
        %1058 = vmatpush1.bf16.msra.mxu0 %v1045
        %1059 = vmatprep.subr.bf16.mxu0 0
        %1060 = vmatpush1.bf16.msra.mxu0 %v1044
        %1061 = vmatprep.subr.bf16.mxu0 0
        %1062 = vmatpush1.bf16.msra.mxu0 %v1043
        %1063 = vmatprep.subr.bf16.mxu0 0
        %1064 = vmatpush1.bf16.msra.mxu0 %v1042
        %1065 = vmatprep.subr.bf16.mxu0 0
        %1066 = vmatpush1.bf16.msra.mxu0 %v1041
        %1067 = vmatprep.subr.bf16.mxu0 0
        %1068 = vmatpush1.bf16.msra.mxu0 %v1040
        %1069 = vmatprep.subr.bf16.mxu0 0
        %1070 = vmatpush1.bf16.msra.mxu0 %v1039
        %1071 = vmatprep.subr.bf16.mxu0 0
        %1072 = vmatpush2.bf16.msra.mxu0 0
        %1073 = vmatprep.subr.bf16.mxu0 0
        %1074 = vmatpush2.bf16.msra.mxu0 0
        %1075 = vmatprep.subr.bf16.mxu0 0
        %1076 = vmatpush2.bf16.msra.mxu0 0
        %1077 = vmatprep.subr.bf16.mxu0 0
        %1078 = vmatpush2.bf16.msra.mxu0 0
        %1079 = vmatprep.subr.bf16.mxu0 0
        %1080 = vmatpush2.bf16.msra.mxu0 0
        %1081 = vmatprep.subr.bf16.mxu0 0
        %1082 = vmatpush2.bf16.msra.mxu0 0
        %1083 = vmatprep.subr.bf16.mxu0 0
        %1084 = vmatpush2.bf16.msra.mxu0 0
        %1085 = vmatprep.subr.bf16.mxu0 0
        %1086 = vmatpush2.bf16.msra.mxu0 0
        %1087 = vmatprep.mubr.bf16.mxu0 0
        %1088 = vmatmul.mubr.bf16.gmra.mxu0 %v1001
        %v1089 = vpop.f32.mrf.mxu0
        %v1090 = vadd.f32 0.0, %v1089
        %v1091 = vpop.f32.mrf.mxu0
        %v1092 = vpop.f32.mrf.mxu0
        %v1093 = vadd.f32 0.0, %v1092
        %v1094 = vpop.f32.mrf.mxu0
        %1095 = vmatprep.mubr.bf16.mxu0 0
        %1096 = vmatmul.mubr.bf16.gmra.mxu0 %v1004
        %v1097 = vpop.f32.mrf.mxu0
        %v1098 = vadd.f32 0.0, %v1097
        %v1099 = vpop.f32.mrf.mxu0
        %v1100 = vpop.f32.mrf.mxu0
        %v1101 = vpop.f32.mrf.mxu0
        %1102 = vdwg.mxu0
        %v1103 = vadd.f32 %v966, %v1090
        %v1104 = vadd.f32 %v967, %v1093
        %v1105 = vadd.f32 %v968, %v1098
        %v1106 = vld [vmem:[%s839] sm:$0xe]
        %s1107 = scalar_lea.vmem %s1, 448
        %v1108 = vld [vmem:[%s1107] sm:$0xf]
        %v1109 = vld [vmem:[%s1107 + $0x4] sm:$0xf]
        %v1110 = vld [vmem:[%s1107 + $0x8] sm:$0xf]
        %v1111 = vld [vmem:[%s1107 + $0xc] sm:$0xf]
        %v1112 = vld [vmem:[%s1107 + $0x10] sm:$0xf]
        %v1113 = vld [vmem:[%s1107 + $0x14] sm:$0xf]
        %v1114 = vld [vmem:[%s1107 + $0x18] sm:$0xf]
        %v1115 = vld [vmem:[%s1107 + $0x1c] sm:$0xf]
        %v1116 = vld [vmem:[%s1107 + $0x20] sm:$0xf]
        %v1117 = vld [vmem:[%s1107 + $0x24] sm:$0xf]
        %v1118 = vld [vmem:[%s1107 + $0x28] sm:$0xf]
        %v1119 = vld [vmem:[%s1107 + $0x2c] sm:$0xf]
        %v1120 = vld [vmem:[%s1107 + $0x30] sm:$0xf]
        %v1121 = vld [vmem:[%s1107 + $0x34] sm:$0xf]
        %v1122 = vld [vmem:[%s1107 + $0x38] sm:$0xf]
        %v1123 = vld [vmem:[%s1107 + $0x3c] sm:$0xf]
        %v1125 = vunpack.c.l.b16 %v1106
        %v1126 = vpack.c.b16 %v864, %v1125
        %v1127 = vrot.slane %v1126, 1
        %v1128 = vrot.slane %v989, 1
        %v1129 = vsel %vm465, %v1127, %v1128
        %v1148 = vunpack.c.l.b16 %v1108
        %v1149 = vunpack.c.l.b16 %v1109
        %v1150 = vunpack.c.l.b16 %v1110
        %v1151 = vunpack.c.l.b16 %v1111
        %v1152 = vunpack.c.l.b16 %v1112
        %v1153 = vunpack.c.l.b16 %v1113
        %v1154 = vunpack.c.l.b16 %v1114
        %v1155 = vunpack.c.l.b16 %v1115
        %v1156 = vunpack.c.l.b16 %v1116
        %v1157 = vunpack.c.l.b16 %v1117
        %v1158 = vunpack.c.l.b16 %v1118
        %v1159 = vunpack.c.l.b16 %v1119
        %v1160 = vunpack.c.l.b16 %v1120
        %v1161 = vunpack.c.l.b16 %v1121
        %v1162 = vunpack.c.l.b16 %v1122
        %v1163 = vunpack.c.l.b16 %v1123
        %v1164 = vpack.c.b16 %v1149, %v1148
        %v1165 = vpack.c.b16 %v1151, %v1150
        %v1166 = vpack.c.b16 %v1153, %v1152
        %v1167 = vpack.c.b16 %v1155, %v1154
        %v1168 = vpack.c.b16 %v1157, %v1156
        %v1169 = vpack.c.b16 %v1159, %v1158
        %v1170 = vpack.c.b16 %v1161, %v1160
        %v1171 = vpack.c.b16 %v1163, %v1162
        %1180 = vmatprep.subr.bf16.mxu0 0
        %1181 = vmatpush1.bf16.msra.mxu0 %v1171
        %1182 = vmatprep.subr.bf16.mxu0 0
        %1183 = vmatpush1.bf16.msra.mxu0 %v1170
        %1184 = vmatprep.subr.bf16.mxu0 0
        %1185 = vmatpush1.bf16.msra.mxu0 %v1169
        %1186 = vmatprep.subr.bf16.mxu0 0
        %1187 = vmatpush1.bf16.msra.mxu0 %v1168
        %1188 = vmatprep.subr.bf16.mxu0 0
        %1189 = vmatpush1.bf16.msra.mxu0 %v1167
        %1190 = vmatprep.subr.bf16.mxu0 0
        %1191 = vmatpush1.bf16.msra.mxu0 %v1166
        %1192 = vmatprep.subr.bf16.mxu0 0
        %1193 = vmatpush1.bf16.msra.mxu0 %v1165
        %1194 = vmatprep.subr.bf16.mxu0 0
        %1195 = vmatpush1.bf16.msra.mxu0 %v1164
        %1196 = vmatprep.subr.bf16.mxu0 0
        %1197 = vmatpush2.bf16.msra.mxu0 0
        %1198 = vmatprep.subr.bf16.mxu0 0
        %1199 = vmatpush2.bf16.msra.mxu0 0
        %1200 = vmatprep.subr.bf16.mxu0 0
        %1201 = vmatpush2.bf16.msra.mxu0 0
        %1202 = vmatprep.subr.bf16.mxu0 0
        %1203 = vmatpush2.bf16.msra.mxu0 0
        %1204 = vmatprep.subr.bf16.mxu0 0
        %1205 = vmatpush2.bf16.msra.mxu0 0
        %1206 = vmatprep.subr.bf16.mxu0 0
        %1207 = vmatpush2.bf16.msra.mxu0 0
        %1208 = vmatprep.subr.bf16.mxu0 0
        %1209 = vmatpush2.bf16.msra.mxu0 0
        %1210 = vmatprep.subr.bf16.mxu0 0
        %1211 = vmatpush2.bf16.msra.mxu0 0
        %1212 = vmatprep.mubr.bf16.mxu0 0
        %1213 = vmatmul.mubr.bf16.gmra.mxu0 %v1129
        %v1214 = vpop.f32.mrf.mxu0
        %v1215 = vadd.f32 0.0, %v1214
        %v1216 = vpop.f32.mrf.mxu0
        %v1217 = vpop.f32.mrf.mxu0
        %v1218 = vadd.f32 0.0, %v1217
        %v1219 = vpop.f32.mrf.mxu0
        %1220 = vmatprep.mubr.bf16.mxu0 0
        %1221 = vmatmul.mubr.bf16.gmra.mxu0 %v1128
        %v1222 = vpop.f32.mrf.mxu0
        %v1223 = vadd.f32 0.0, %v1222
        %v1224 = vpop.f32.mrf.mxu0
        %v1225 = vpop.f32.mrf.mxu0
        %v1226 = vpop.f32.mrf.mxu0
        %1227 = vdwg.mxu0
        %v1228 = vadd.f32 %v1103, %v1215
        %v1229 = vadd.f32 %v1104, %v1218
        %v1230 = vadd.f32 %v1105, %v1223
        %v1231 = vld [vmem:[%s839 + $0x8] sm:$0xf]
        %s1232 = scalar_lea.vmem %s1, 512
        %v1233 = vld [vmem:[%s1232] sm:$0xf]
        %v1234 = vld [vmem:[%s1232 + $0x4] sm:$0xf]
        %v1235 = vld [vmem:[%s1232 + $0x8] sm:$0xf]
        %v1236 = vld [vmem:[%s1232 + $0xc] sm:$0xf]
        %v1237 = vld [vmem:[%s1232 + $0x10] sm:$0xf]
        %v1238 = vld [vmem:[%s1232 + $0x14] sm:$0xf]
        %v1239 = vld [vmem:[%s1232 + $0x18] sm:$0xf]
        %v1240 = vld [vmem:[%s1232 + $0x1c] sm:$0xf]
        %v1241 = vld [vmem:[%s1232 + $0x20] sm:$0xf]
        %v1242 = vld [vmem:[%s1232 + $0x24] sm:$0xf]
        %v1243 = vld [vmem:[%s1232 + $0x28] sm:$0xf]
        %v1244 = vld [vmem:[%s1232 + $0x2c] sm:$0xf]
        %v1245 = vld [vmem:[%s1232 + $0x30] sm:$0xf]
        %v1246 = vld [vmem:[%s1232 + $0x34] sm:$0xf]
        %v1247 = vld [vmem:[%s1232 + $0x38] sm:$0xf]
        %v1248 = vld [vmem:[%s1232 + $0x3c] sm:$0xf]
        %v1250 = vunpack.c.l.b16 %v1231
        %v1251 = vpack.c.b16 %v1250, %v1250
        %v1253 = vshrl.u32 %v1126, 16
        %v1255 = vrot.slane %v1253, 1
        %v1256 = vshll.u32 %v1126, 16
        %v1258 = vrot.slane %v1256, 2
        %v1259 = vor.u32 %v1255, %v1258
        %v1261 = vshrl.u32 %v1251, 16
        %v1263 = vrot.slane %v1261, 1
        %v1264 = vshll.u32 %v1251, 16
        %v1266 = vrot.slane %v1264, 2
        %v1267 = vor.u32 %v1263, %v1266
        %v1268 = vsel %vm591, %v1259, %v1267
        %v1287 = vunpack.c.l.b16 %v1233
        %v1288 = vunpack.c.l.b16 %v1234
        %v1289 = vunpack.c.l.b16 %v1235
        %v1290 = vunpack.c.l.b16 %v1236
        %v1291 = vunpack.c.l.b16 %v1237
        %v1292 = vunpack.c.l.b16 %v1238
        %v1293 = vunpack.c.l.b16 %v1239
        %v1294 = vunpack.c.l.b16 %v1240
        %v1295 = vunpack.c.l.b16 %v1241
        %v1296 = vunpack.c.l.b16 %v1242
        %v1297 = vunpack.c.l.b16 %v1243
        %v1298 = vunpack.c.l.b16 %v1244
        %v1299 = vunpack.c.l.b16 %v1245
        %v1300 = vunpack.c.l.b16 %v1246
        %v1301 = vunpack.c.l.b16 %v1247
        %v1302 = vunpack.c.l.b16 %v1248
        %v1303 = vpack.c.b16 %v1288, %v1287
        %v1304 = vpack.c.b16 %v1290, %v1289
        %v1305 = vpack.c.b16 %v1292, %v1291
        %v1306 = vpack.c.b16 %v1294, %v1293
        %v1307 = vpack.c.b16 %v1296, %v1295
        %v1308 = vpack.c.b16 %v1298, %v1297
        %v1309 = vpack.c.b16 %v1300, %v1299
        %v1310 = vpack.c.b16 %v1302, %v1301
        %1319 = vmatprep.subr.bf16.mxu0 0
        %1320 = vmatpush1.bf16.msra.mxu0 %v1310
        %1321 = vmatprep.subr.bf16.mxu0 0
        %1322 = vmatpush1.bf16.msra.mxu0 %v1309
        %1323 = vmatprep.subr.bf16.mxu0 0
        %1324 = vmatpush1.bf16.msra.mxu0 %v1308
        %1325 = vmatprep.subr.bf16.mxu0 0
        %1326 = vmatpush1.bf16.msra.mxu0 %v1307
        %1327 = vmatprep.subr.bf16.mxu0 0
        %1328 = vmatpush1.bf16.msra.mxu0 %v1306
        %1329 = vmatprep.subr.bf16.mxu0 0
        %1330 = vmatpush1.bf16.msra.mxu0 %v1305
        %1331 = vmatprep.subr.bf16.mxu0 0
        %1332 = vmatpush1.bf16.msra.mxu0 %v1304
        %1333 = vmatprep.subr.bf16.mxu0 0
        %1334 = vmatpush1.bf16.msra.mxu0 %v1303
        %1335 = vmatprep.subr.bf16.mxu0 0
        %1336 = vmatpush2.bf16.msra.mxu0 0
        %1337 = vmatprep.subr.bf16.mxu0 0
        %1338 = vmatpush2.bf16.msra.mxu0 0
        %1339 = vmatprep.subr.bf16.mxu0 0
        %1340 = vmatpush2.bf16.msra.mxu0 0
        %1341 = vmatprep.subr.bf16.mxu0 0
        %1342 = vmatpush2.bf16.msra.mxu0 0
        %1343 = vmatprep.subr.bf16.mxu0 0
        %1344 = vmatpush2.bf16.msra.mxu0 0
        %1345 = vmatprep.subr.bf16.mxu0 0
        %1346 = vmatpush2.bf16.msra.mxu0 0
        %1347 = vmatprep.subr.bf16.mxu0 0
        %1348 = vmatpush2.bf16.msra.mxu0 0
        %1349 = vmatprep.subr.bf16.mxu0 0
        %1350 = vmatpush2.bf16.msra.mxu0 0
        %1351 = vmatprep.mubr.bf16.mxu0 0
        %1352 = vmatmul.mubr.bf16.gmra.mxu0 %v1268
        %v1353 = vpop.f32.mrf.mxu0
        %v1354 = vadd.f32 0.0, %v1353
        %v1355 = vpop.f32.mrf.mxu0
        %v1356 = vpop.f32.mrf.mxu0
        %v1357 = vadd.f32 0.0, %v1356
        %v1358 = vpop.f32.mrf.mxu0
        %1359 = vmatprep.mubr.bf16.mxu0 0
        %1360 = vmatmul.mubr.bf16.gmra.mxu0 %v1267
        %v1361 = vpop.f32.mrf.mxu0
        %v1362 = vadd.f32 0.0, %v1361
        %v1363 = vpop.f32.mrf.mxu0
        %v1364 = vpop.f32.mrf.mxu0
        %v1365 = vpop.f32.mrf.mxu0
        %1366 = vdwg.mxu0
        %v1367 = vadd.f32 %v1228, %v1354
        %v1368 = vadd.f32 %v1229, %v1357
        %v1369 = vadd.f32 %v1230, %v1362
        %v1370 = vld [vmem:[%s839] sm:$0xc]
        %s1371 = scalar_lea.vmem %s1, 576
        %v1372 = vld [vmem:[%s1371] sm:$0xf]
        %v1373 = vld [vmem:[%s1371 + $0x4] sm:$0xf]
        %v1374 = vld [vmem:[%s1371 + $0x8] sm:$0xf]
        %v1375 = vld [vmem:[%s1371 + $0xc] sm:$0xf]
        %v1376 = vld [vmem:[%s1371 + $0x10] sm:$0xf]
        %v1377 = vld [vmem:[%s1371 + $0x14] sm:$0xf]
        %v1378 = vld [vmem:[%s1371 + $0x18] sm:$0xf]
        %v1379 = vld [vmem:[%s1371 + $0x1c] sm:$0xf]
        %v1380 = vld [vmem:[%s1371 + $0x20] sm:$0xf]
        %v1381 = vld [vmem:[%s1371 + $0x24] sm:$0xf]
        %v1382 = vld [vmem:[%s1371 + $0x28] sm:$0xf]
        %v1383 = vld [vmem:[%s1371 + $0x2c] sm:$0xf]
        %v1384 = vld [vmem:[%s1371 + $0x30] sm:$0xf]
        %v1385 = vld [vmem:[%s1371 + $0x34] sm:$0xf]
        %v1386 = vld [vmem:[%s1371 + $0x38] sm:$0xf]
        %v1387 = vld [vmem:[%s1371 + $0x3c] sm:$0xf]
        %v1389 = vunpack.c.l.b16 %v1370
        %v1390 = vpack.c.b16 %v864, %v1389
        %v1391 = vrot.slane %v1390, 2
        %v1392 = vrot.slane %v1251, 2
        %v1393 = vsel %vm731, %v1391, %v1392
        %v1412 = vunpack.c.l.b16 %v1372
        %v1413 = vunpack.c.l.b16 %v1373
        %v1414 = vunpack.c.l.b16 %v1374
        %v1415 = vunpack.c.l.b16 %v1375
        %v1416 = vunpack.c.l.b16 %v1376
        %v1417 = vunpack.c.l.b16 %v1377
        %v1418 = vunpack.c.l.b16 %v1378
        %v1419 = vunpack.c.l.b16 %v1379
        %v1420 = vunpack.c.l.b16 %v1380
        %v1421 = vunpack.c.l.b16 %v1381
        %v1422 = vunpack.c.l.b16 %v1382
        %v1423 = vunpack.c.l.b16 %v1383
        %v1424 = vunpack.c.l.b16 %v1384
        %v1425 = vunpack.c.l.b16 %v1385
        %v1426 = vunpack.c.l.b16 %v1386
        %v1427 = vunpack.c.l.b16 %v1387
        %v1428 = vpack.c.b16 %v1413, %v1412
        %v1429 = vpack.c.b16 %v1415, %v1414
        %v1430 = vpack.c.b16 %v1417, %v1416
        %v1431 = vpack.c.b16 %v1419, %v1418
        %v1432 = vpack.c.b16 %v1421, %v1420
        %v1433 = vpack.c.b16 %v1423, %v1422
        %v1434 = vpack.c.b16 %v1425, %v1424
        %v1435 = vpack.c.b16 %v1427, %v1426
        %1444 = vmatprep.subr.bf16.mxu0 0
        %1445 = vmatpush1.bf16.msra.mxu0 %v1435
        %1446 = vmatprep.subr.bf16.mxu0 0
        %1447 = vmatpush1.bf16.msra.mxu0 %v1434
        %1448 = vmatprep.subr.bf16.mxu0 0
        %1449 = vmatpush1.bf16.msra.mxu0 %v1433
        %1450 = vmatprep.subr.bf16.mxu0 0
        %1451 = vmatpush1.bf16.msra.mxu0 %v1432
        %1452 = vmatprep.subr.bf16.mxu0 0
        %1453 = vmatpush1.bf16.msra.mxu0 %v1431
        %1454 = vmatprep.subr.bf16.mxu0 0
        %1455 = vmatpush1.bf16.msra.mxu0 %v1430
        %1456 = vmatprep.subr.bf16.mxu0 0
        %1457 = vmatpush1.bf16.msra.mxu0 %v1429
        %1458 = vmatprep.subr.bf16.mxu0 0
        %1459 = vmatpush1.bf16.msra.mxu0 %v1428
        %1460 = vmatprep.subr.bf16.mxu0 0
        %1461 = vmatpush2.bf16.msra.mxu0 0
        %1462 = vmatprep.subr.bf16.mxu0 0
        %1463 = vmatpush2.bf16.msra.mxu0 0
        %1464 = vmatprep.subr.bf16.mxu0 0
        %1465 = vmatpush2.bf16.msra.mxu0 0
        %1466 = vmatprep.subr.bf16.mxu0 0
        %1467 = vmatpush2.bf16.msra.mxu0 0
        %1468 = vmatprep.subr.bf16.mxu0 0
        %1469 = vmatpush2.bf16.msra.mxu0 0
        %1470 = vmatprep.subr.bf16.mxu0 0
        %1471 = vmatpush2.bf16.msra.mxu0 0
        %1472 = vmatprep.subr.bf16.mxu0 0
        %1473 = vmatpush2.bf16.msra.mxu0 0
        %1474 = vmatprep.subr.bf16.mxu0 0
        %1475 = vmatpush2.bf16.msra.mxu0 0
        %1476 = vmatprep.mubr.bf16.mxu0 0
        %1477 = vmatmul.mubr.bf16.gmra.mxu0 %v1393
        %v1478 = vpop.f32.mrf.mxu0
        %v1479 = vadd.f32 0.0, %v1478
        %v1480 = vpop.f32.mrf.mxu0
        %v1481 = vpop.f32.mrf.mxu0
        %v1482 = vadd.f32 0.0, %v1481
        %v1483 = vpop.f32.mrf.mxu0
        %1484 = vmatprep.mubr.bf16.mxu0 0
        %1485 = vmatmul.mubr.bf16.gmra.mxu0 %v1392
        %v1486 = vpop.f32.mrf.mxu0
        %v1487 = vadd.f32 0.0, %v1486
        %v1488 = vpop.f32.mrf.mxu0
        %v1489 = vpop.f32.mrf.mxu0
        %v1490 = vpop.f32.mrf.mxu0
        %1491 = vdwg.mxu0
        %v1492 = vadd.f32 %v1367, %v1479
        %v1493 = vadd.f32 %v1368, %v1482
        %v1494 = vadd.f32 %v1369, %v1487
        %s1495 = sadd.s32 %s176, 2
        %s1496 = smul.u32 %s1495, 3
        %s1497 = smul.addr %s1496, 4
        %s1498 = scalar_lea.vmem %s165, %s1497
        %v1499 = vld [vmem:[%s1498] sm:$0xf]
        %v1500 = vld [vmem:[%s1498 + $0x4] sm:$0xf]
        %v1501 = vld [vmem:[%s1498 + $0x8] sm:$0x3]
        %s1502 = scalar_lea.vmem %s1, 640
        %v1503 = vld [vmem:[%s1502] sm:$0xf]
        %v1504 = vld [vmem:[%s1502 + $0x4] sm:$0xf]
        %v1505 = vld [vmem:[%s1502 + $0x8] sm:$0xf]
        %v1506 = vld [vmem:[%s1502 + $0xc] sm:$0xf]
        %v1507 = vld [vmem:[%s1502 + $0x10] sm:$0xf]
        %v1508 = vld [vmem:[%s1502 + $0x14] sm:$0xf]
        %v1509 = vld [vmem:[%s1502 + $0x18] sm:$0xf]
        %v1510 = vld [vmem:[%s1502 + $0x1c] sm:$0xf]
        %v1511 = vld [vmem:[%s1502 + $0x20] sm:$0xf]
        %v1512 = vld [vmem:[%s1502 + $0x24] sm:$0xf]
        %v1513 = vld [vmem:[%s1502 + $0x28] sm:$0xf]
        %v1514 = vld [vmem:[%s1502 + $0x2c] sm:$0xf]
        %v1515 = vld [vmem:[%s1502 + $0x30] sm:$0xf]
        %v1516 = vld [vmem:[%s1502 + $0x34] sm:$0xf]
        %v1517 = vld [vmem:[%s1502 + $0x38] sm:$0xf]
        %v1518 = vld [vmem:[%s1502 + $0x3c] sm:$0xf]
        %v1522 = vunpack.c.l.b16 %v1499
        %v1523 = vunpack.c.l.b16 %v1500
        %v1524 = vunpack.c.l.b16 %v1501
        %v1525 = vpack.c.b16 %v1523, %v1522
        %v1526 = vpack.c.b16 %v1524, %v1524
        %v1545 = vunpack.c.l.b16 %v1503
        %v1546 = vunpack.c.l.b16 %v1504
        %v1547 = vunpack.c.l.b16 %v1505
        %v1548 = vunpack.c.l.b16 %v1506
        %v1549 = vunpack.c.l.b16 %v1507
        %v1550 = vunpack.c.l.b16 %v1508
        %v1551 = vunpack.c.l.b16 %v1509
        %v1552 = vunpack.c.l.b16 %v1510
        %v1553 = vunpack.c.l.b16 %v1511
        %v1554 = vunpack.c.l.b16 %v1512
        %v1555 = vunpack.c.l.b16 %v1513
        %v1556 = vunpack.c.l.b16 %v1514
        %v1557 = vunpack.c.l.b16 %v1515
        %v1558 = vunpack.c.l.b16 %v1516
        %v1559 = vunpack.c.l.b16 %v1517
        %v1560 = vunpack.c.l.b16 %v1518
        %v1561 = vpack.c.b16 %v1546, %v1545
        %v1562 = vpack.c.b16 %v1548, %v1547
        %v1563 = vpack.c.b16 %v1550, %v1549
        %v1564 = vpack.c.b16 %v1552, %v1551
        %v1565 = vpack.c.b16 %v1554, %v1553
        %v1566 = vpack.c.b16 %v1556, %v1555
        %v1567 = vpack.c.b16 %v1558, %v1557
        %v1568 = vpack.c.b16 %v1560, %v1559
        %1577 = vmatprep.subr.bf16.mxu0 0
        %1578 = vmatpush1.bf16.msra.mxu0 %v1568
        %1579 = vmatprep.subr.bf16.mxu0 0
        %1580 = vmatpush1.bf16.msra.mxu0 %v1567
        %1581 = vmatprep.subr.bf16.mxu0 0
        %1582 = vmatpush1.bf16.msra.mxu0 %v1566
        %1583 = vmatprep.subr.bf16.mxu0 0
        %1584 = vmatpush1.bf16.msra.mxu0 %v1565
        %1585 = vmatprep.subr.bf16.mxu0 0
        %1586 = vmatpush1.bf16.msra.mxu0 %v1564
        %1587 = vmatprep.subr.bf16.mxu0 0
        %1588 = vmatpush1.bf16.msra.mxu0 %v1563
        %1589 = vmatprep.subr.bf16.mxu0 0
        %1590 = vmatpush1.bf16.msra.mxu0 %v1562
        %1591 = vmatprep.subr.bf16.mxu0 0
        %1592 = vmatpush1.bf16.msra.mxu0 %v1561
        %1593 = vmatprep.subr.bf16.mxu0 0
        %1594 = vmatpush2.bf16.msra.mxu0 0
        %1595 = vmatprep.subr.bf16.mxu0 0
        %1596 = vmatpush2.bf16.msra.mxu0 0
        %1597 = vmatprep.subr.bf16.mxu0 0
        %1598 = vmatpush2.bf16.msra.mxu0 0
        %1599 = vmatprep.subr.bf16.mxu0 0
        %1600 = vmatpush2.bf16.msra.mxu0 0
        %1601 = vmatprep.subr.bf16.mxu0 0
        %1602 = vmatpush2.bf16.msra.mxu0 0
        %1603 = vmatprep.subr.bf16.mxu0 0
        %1604 = vmatpush2.bf16.msra.mxu0 0
        %1605 = vmatprep.subr.bf16.mxu0 0
        %1606 = vmatpush2.bf16.msra.mxu0 0
        %1607 = vmatprep.subr.bf16.mxu0 0
        %1608 = vmatpush2.bf16.msra.mxu0 0
        %1609 = vmatprep.mubr.bf16.mxu0 0
        %1610 = vmatmul.mubr.bf16.gmra.mxu0 %v1525
        %v1611 = vpop.f32.mrf.mxu0
        %v1612 = vadd.f32 0.0, %v1611
        %v1613 = vpop.f32.mrf.mxu0
        %v1614 = vpop.f32.mrf.mxu0
        %v1615 = vadd.f32 0.0, %v1614
        %v1616 = vpop.f32.mrf.mxu0
        %1617 = vmatprep.mubr.bf16.mxu0 0
        %1618 = vmatmul.mubr.bf16.gmra.mxu0 %v1526
        %v1619 = vpop.f32.mrf.mxu0
        %v1620 = vadd.f32 0.0, %v1619
        %v1621 = vpop.f32.mrf.mxu0
        %v1622 = vpop.f32.mrf.mxu0
        %v1623 = vpop.f32.mrf.mxu0
        %1624 = vdwg.mxu0
        %v1625 = vadd.f32 %v1492, %v1612
        %v1626 = vadd.f32 %v1493, %v1615
        %v1627 = vadd.f32 %v1494, %v1620
        %v1628 = vld [vmem:[%s1498 + $0x8] sm:$0x7]
        %s1629 = scalar_lea.vmem %s1, 704
        %v1630 = vld [vmem:[%s1629] sm:$0xf]
        %v1631 = vld [vmem:[%s1629 + $0x4] sm:$0xf]
        %v1632 = vld [vmem:[%s1629 + $0x8] sm:$0xf]
        %v1633 = vld [vmem:[%s1629 + $0xc] sm:$0xf]
        %v1634 = vld [vmem:[%s1629 + $0x10] sm:$0xf]
        %v1635 = vld [vmem:[%s1629 + $0x14] sm:$0xf]
        %v1636 = vld [vmem:[%s1629 + $0x18] sm:$0xf]
        %v1637 = vld [vmem:[%s1629 + $0x1c] sm:$0xf]
        %v1638 = vld [vmem:[%s1629 + $0x20] sm:$0xf]
        %v1639 = vld [vmem:[%s1629 + $0x24] sm:$0xf]
        %v1640 = vld [vmem:[%s1629 + $0x28] sm:$0xf]
        %v1641 = vld [vmem:[%s1629 + $0x2c] sm:$0xf]
        %v1642 = vld [vmem:[%s1629 + $0x30] sm:$0xf]
        %v1643 = vld [vmem:[%s1629 + $0x34] sm:$0xf]
        %v1644 = vld [vmem:[%s1629 + $0x38] sm:$0xf]
        %v1645 = vld [vmem:[%s1629 + $0x3c] sm:$0xf]
        %v1647 = vunpack.c.l.b16 %v1628
        %v1648 = vpack.c.b16 %v1647, %v1647
        %v1650 = vshrl.u32 %v1525, 16
        %v1652 = vshll.u32 %v1525, 16
        %v1654 = vrot.slane %v1652, 1
        %v1655 = vor.u32 %v1650, %v1654
        %v1657 = vshll.u32 %v1648, 16
        %v1659 = vrot.slane %v1657, 1
        %v1660 = vsel %vm229, %v1655, %v1659
        %v1661 = vshrl.u32 %v1648, 16
        %v1663 = vor.u32 %v1661, %v1659
        %v1682 = vunpack.c.l.b16 %v1630
        %v1683 = vunpack.c.l.b16 %v1631
        %v1684 = vunpack.c.l.b16 %v1632
        %v1685 = vunpack.c.l.b16 %v1633
        %v1686 = vunpack.c.l.b16 %v1634
        %v1687 = vunpack.c.l.b16 %v1635
        %v1688 = vunpack.c.l.b16 %v1636
        %v1689 = vunpack.c.l.b16 %v1637
        %v1690 = vunpack.c.l.b16 %v1638
        %v1691 = vunpack.c.l.b16 %v1639
        %v1692 = vunpack.c.l.b16 %v1640
        %v1693 = vunpack.c.l.b16 %v1641
        %v1694 = vunpack.c.l.b16 %v1642
        %v1695 = vunpack.c.l.b16 %v1643
        %v1696 = vunpack.c.l.b16 %v1644
        %v1697 = vunpack.c.l.b16 %v1645
        %v1698 = vpack.c.b16 %v1683, %v1682
        %v1699 = vpack.c.b16 %v1685, %v1684
        %v1700 = vpack.c.b16 %v1687, %v1686
        %v1701 = vpack.c.b16 %v1689, %v1688
        %v1702 = vpack.c.b16 %v1691, %v1690
        %v1703 = vpack.c.b16 %v1693, %v1692
        %v1704 = vpack.c.b16 %v1695, %v1694
        %v1705 = vpack.c.b16 %v1697, %v1696
        %1714 = vmatprep.subr.bf16.mxu0 0
        %1715 = vmatpush1.bf16.msra.mxu0 %v1705
        %1716 = vmatprep.subr.bf16.mxu0 0
        %1717 = vmatpush1.bf16.msra.mxu0 %v1704
        %1718 = vmatprep.subr.bf16.mxu0 0
        %1719 = vmatpush1.bf16.msra.mxu0 %v1703
        %1720 = vmatprep.subr.bf16.mxu0 0
        %1721 = vmatpush1.bf16.msra.mxu0 %v1702
        %1722 = vmatprep.subr.bf16.mxu0 0
        %1723 = vmatpush1.bf16.msra.mxu0 %v1701
        %1724 = vmatprep.subr.bf16.mxu0 0
        %1725 = vmatpush1.bf16.msra.mxu0 %v1700
        %1726 = vmatprep.subr.bf16.mxu0 0
        %1727 = vmatpush1.bf16.msra.mxu0 %v1699
        %1728 = vmatprep.subr.bf16.mxu0 0
        %1729 = vmatpush1.bf16.msra.mxu0 %v1698
        %1730 = vmatprep.subr.bf16.mxu0 0
        %1731 = vmatpush2.bf16.msra.mxu0 0
        %1732 = vmatprep.subr.bf16.mxu0 0
        %1733 = vmatpush2.bf16.msra.mxu0 0
        %1734 = vmatprep.subr.bf16.mxu0 0
        %1735 = vmatpush2.bf16.msra.mxu0 0
        %1736 = vmatprep.subr.bf16.mxu0 0
        %1737 = vmatpush2.bf16.msra.mxu0 0
        %1738 = vmatprep.subr.bf16.mxu0 0
        %1739 = vmatpush2.bf16.msra.mxu0 0
        %1740 = vmatprep.subr.bf16.mxu0 0
        %1741 = vmatpush2.bf16.msra.mxu0 0
        %1742 = vmatprep.subr.bf16.mxu0 0
        %1743 = vmatpush2.bf16.msra.mxu0 0
        %1744 = vmatprep.subr.bf16.mxu0 0
        %1745 = vmatpush2.bf16.msra.mxu0 0
        %1746 = vmatprep.mubr.bf16.mxu0 0
        %1747 = vmatmul.mubr.bf16.gmra.mxu0 %v1660
        %v1748 = vpop.f32.mrf.mxu0
        %v1749 = vadd.f32 0.0, %v1748
        %v1750 = vpop.f32.mrf.mxu0
        %v1751 = vpop.f32.mrf.mxu0
        %v1752 = vadd.f32 0.0, %v1751
        %v1753 = vpop.f32.mrf.mxu0
        %1754 = vmatprep.mubr.bf16.mxu0 0
        %1755 = vmatmul.mubr.bf16.gmra.mxu0 %v1663
        %v1756 = vpop.f32.mrf.mxu0
        %v1757 = vadd.f32 0.0, %v1756
        %v1758 = vpop.f32.mrf.mxu0
        %v1759 = vpop.f32.mrf.mxu0
        %v1760 = vpop.f32.mrf.mxu0
        %1761 = vdwg.mxu0
        %v1762 = vadd.f32 %v1625, %v1749
        %v1763 = vadd.f32 %v1626, %v1752
        %v1764 = vadd.f32 %v1627, %v1757
        %v1765 = vld [vmem:[%s1498] sm:$0xe]
        %s1766 = scalar_lea.vmem %s1, 768
        %v1767 = vld [vmem:[%s1766] sm:$0xf]
        %v1768 = vld [vmem:[%s1766 + $0x4] sm:$0xf]
        %v1769 = vld [vmem:[%s1766 + $0x8] sm:$0xf]
        %v1770 = vld [vmem:[%s1766 + $0xc] sm:$0xf]
        %v1771 = vld [vmem:[%s1766 + $0x10] sm:$0xf]
        %v1772 = vld [vmem:[%s1766 + $0x14] sm:$0xf]
        %v1773 = vld [vmem:[%s1766 + $0x18] sm:$0xf]
        %v1774 = vld [vmem:[%s1766 + $0x1c] sm:$0xf]
        %v1775 = vld [vmem:[%s1766 + $0x20] sm:$0xf]
        %v1776 = vld [vmem:[%s1766 + $0x24] sm:$0xf]
        %v1777 = vld [vmem:[%s1766 + $0x28] sm:$0xf]
        %v1778 = vld [vmem:[%s1766 + $0x2c] sm:$0xf]
        %v1779 = vld [vmem:[%s1766 + $0x30] sm:$0xf]
        %v1780 = vld [vmem:[%s1766 + $0x34] sm:$0xf]
        %v1781 = vld [vmem:[%s1766 + $0x38] sm:$0xf]
        %v1782 = vld [vmem:[%s1766 + $0x3c] sm:$0xf]
        %v1784 = vunpack.c.l.b16 %v1765
        %v1785 = vpack.c.b16 %v1523, %v1784
        %v1786 = vrot.slane %v1785, 1
        %v1787 = vrot.slane %v1648, 1
        %v1788 = vsel %vm465, %v1786, %v1787
        %v1807 = vunpack.c.l.b16 %v1767
        %v1808 = vunpack.c.l.b16 %v1768
        %v1809 = vunpack.c.l.b16 %v1769
        %v1810 = vunpack.c.l.b16 %v1770
        %v1811 = vunpack.c.l.b16 %v1771
        %v1812 = vunpack.c.l.b16 %v1772
        %v1813 = vunpack.c.l.b16 %v1773
        %v1814 = vunpack.c.l.b16 %v1774
        %v1815 = vunpack.c.l.b16 %v1775
        %v1816 = vunpack.c.l.b16 %v1776
        %v1817 = vunpack.c.l.b16 %v1777
        %v1818 = vunpack.c.l.b16 %v1778
        %v1819 = vunpack.c.l.b16 %v1779
        %v1820 = vunpack.c.l.b16 %v1780
        %v1821 = vunpack.c.l.b16 %v1781
        %v1822 = vunpack.c.l.b16 %v1782
        %v1823 = vpack.c.b16 %v1808, %v1807
        %v1824 = vpack.c.b16 %v1810, %v1809
        %v1825 = vpack.c.b16 %v1812, %v1811
        %v1826 = vpack.c.b16 %v1814, %v1813
        %v1827 = vpack.c.b16 %v1816, %v1815
        %v1828 = vpack.c.b16 %v1818, %v1817
        %v1829 = vpack.c.b16 %v1820, %v1819
        %v1830 = vpack.c.b16 %v1822, %v1821
        %1839 = vmatprep.subr.bf16.mxu0 0
        %1840 = vmatpush1.bf16.msra.mxu0 %v1830
        %1841 = vmatprep.subr.bf16.mxu0 0
        %1842 = vmatpush1.bf16.msra.mxu0 %v1829
        %1843 = vmatprep.subr.bf16.mxu0 0
        %1844 = vmatpush1.bf16.msra.mxu0 %v1828
        %1845 = vmatprep.subr.bf16.mxu0 0
        %1846 = vmatpush1.bf16.msra.mxu0 %v1827
        %1847 = vmatprep.subr.bf16.mxu0 0
        %1848 = vmatpush1.bf16.msra.mxu0 %v1826
        %1849 = vmatprep.subr.bf16.mxu0 0
        %1850 = vmatpush1.bf16.msra.mxu0 %v1825
        %1851 = vmatprep.subr.bf16.mxu0 0
        %1852 = vmatpush1.bf16.msra.mxu0 %v1824
        %1853 = vmatprep.subr.bf16.mxu0 0
        %1854 = vmatpush1.bf16.msra.mxu0 %v1823
        %1855 = vmatprep.subr.bf16.mxu0 0
        %1856 = vmatpush2.bf16.msra.mxu0 0
        %1857 = vmatprep.subr.bf16.mxu0 0
        %1858 = vmatpush2.bf16.msra.mxu0 0
        %1859 = vmatprep.subr.bf16.mxu0 0
        %1860 = vmatpush2.bf16.msra.mxu0 0
        %1861 = vmatprep.subr.bf16.mxu0 0
        %1862 = vmatpush2.bf16.msra.mxu0 0
        %1863 = vmatprep.subr.bf16.mxu0 0
        %1864 = vmatpush2.bf16.msra.mxu0 0
        %1865 = vmatprep.subr.bf16.mxu0 0
        %1866 = vmatpush2.bf16.msra.mxu0 0
        %1867 = vmatprep.subr.bf16.mxu0 0
        %1868 = vmatpush2.bf16.msra.mxu0 0
        %1869 = vmatprep.subr.bf16.mxu0 0
        %1870 = vmatpush2.bf16.msra.mxu0 0
        %1871 = vmatprep.mubr.bf16.mxu0 0
        %1872 = vmatmul.mubr.bf16.gmra.mxu0 %v1788
        %v1873 = vpop.f32.mrf.mxu0
        %v1874 = vadd.f32 0.0, %v1873
        %v1875 = vpop.f32.mrf.mxu0
        %v1876 = vpop.f32.mrf.mxu0
        %v1877 = vadd.f32 0.0, %v1876
        %v1878 = vpop.f32.mrf.mxu0
        %1879 = vmatprep.mubr.bf16.mxu0 0
        %1880 = vmatmul.mubr.bf16.gmra.mxu0 %v1787
        %v1881 = vpop.f32.mrf.mxu0
        %v1882 = vadd.f32 0.0, %v1881
        %v1883 = vpop.f32.mrf.mxu0
        %v1884 = vpop.f32.mrf.mxu0
        %v1885 = vpop.f32.mrf.mxu0
        %1886 = vdwg.mxu0
        %v1887 = vadd.f32 %v1762, %v1874
        %v1888 = vadd.f32 %v1763, %v1877
        %v1889 = vadd.f32 %v1764, %v1882
        %v1890 = vld [vmem:[%s1498 + $0x8] sm:$0xf]
        %s1891 = scalar_lea.vmem %s1, 832
        %v1892 = vld [vmem:[%s1891] sm:$0xf]
        %v1893 = vld [vmem:[%s1891 + $0x4] sm:$0xf]
        %v1894 = vld [vmem:[%s1891 + $0x8] sm:$0xf]
        %v1895 = vld [vmem:[%s1891 + $0xc] sm:$0xf]
        %v1896 = vld [vmem:[%s1891 + $0x10] sm:$0xf]
        %v1897 = vld [vmem:[%s1891 + $0x14] sm:$0xf]
        %v1898 = vld [vmem:[%s1891 + $0x18] sm:$0xf]
        %v1899 = vld [vmem:[%s1891 + $0x1c] sm:$0xf]
        %v1900 = vld [vmem:[%s1891 + $0x20] sm:$0xf]
        %v1901 = vld [vmem:[%s1891 + $0x24] sm:$0xf]
        %v1902 = vld [vmem:[%s1891 + $0x28] sm:$0xf]
        %v1903 = vld [vmem:[%s1891 + $0x2c] sm:$0xf]
        %v1904 = vld [vmem:[%s1891 + $0x30] sm:$0xf]
        %v1905 = vld [vmem:[%s1891 + $0x34] sm:$0xf]
        %v1906 = vld [vmem:[%s1891 + $0x38] sm:$0xf]
        %v1907 = vld [vmem:[%s1891 + $0x3c] sm:$0xf]
        %v1909 = vunpack.c.l.b16 %v1890
        %v1910 = vpack.c.b16 %v1909, %v1909
        %v1912 = vshrl.u32 %v1785, 16
        %v1914 = vrot.slane %v1912, 1
        %v1915 = vshll.u32 %v1785, 16
        %v1917 = vrot.slane %v1915, 2
        %v1918 = vor.u32 %v1914, %v1917
        %v1920 = vshrl.u32 %v1910, 16
        %v1922 = vrot.slane %v1920, 1
        %v1923 = vshll.u32 %v1910, 16
        %v1925 = vrot.slane %v1923, 2
        %v1926 = vor.u32 %v1922, %v1925
        %v1927 = vsel %vm591, %v1918, %v1926
        %v1946 = vunpack.c.l.b16 %v1892
        %v1947 = vunpack.c.l.b16 %v1893
        %v1948 = vunpack.c.l.b16 %v1894
        %v1949 = vunpack.c.l.b16 %v1895
        %v1950 = vunpack.c.l.b16 %v1896
        %v1951 = vunpack.c.l.b16 %v1897
        %v1952 = vunpack.c.l.b16 %v1898
        %v1953 = vunpack.c.l.b16 %v1899
        %v1954 = vunpack.c.l.b16 %v1900
        %v1955 = vunpack.c.l.b16 %v1901
        %v1956 = vunpack.c.l.b16 %v1902
        %v1957 = vunpack.c.l.b16 %v1903
        %v1958 = vunpack.c.l.b16 %v1904
        %v1959 = vunpack.c.l.b16 %v1905
        %v1960 = vunpack.c.l.b16 %v1906
        %v1961 = vunpack.c.l.b16 %v1907
        %v1962 = vpack.c.b16 %v1947, %v1946
        %v1963 = vpack.c.b16 %v1949, %v1948
        %v1964 = vpack.c.b16 %v1951, %v1950
        %v1965 = vpack.c.b16 %v1953, %v1952
        %v1966 = vpack.c.b16 %v1955, %v1954
        %v1967 = vpack.c.b16 %v1957, %v1956
        %v1968 = vpack.c.b16 %v1959, %v1958
        %v1969 = vpack.c.b16 %v1961, %v1960
        %1978 = vmatprep.subr.bf16.mxu0 0
        %1979 = vmatpush1.bf16.msra.mxu0 %v1969
        %1980 = vmatprep.subr.bf16.mxu0 0
        %1981 = vmatpush1.bf16.msra.mxu0 %v1968
        %1982 = vmatprep.subr.bf16.mxu0 0
        %1983 = vmatpush1.bf16.msra.mxu0 %v1967
        %1984 = vmatprep.subr.bf16.mxu0 0
        %1985 = vmatpush1.bf16.msra.mxu0 %v1966
        %1986 = vmatprep.subr.bf16.mxu0 0
        %1987 = vmatpush1.bf16.msra.mxu0 %v1965
        %1988 = vmatprep.subr.bf16.mxu0 0
        %1989 = vmatpush1.bf16.msra.mxu0 %v1964
        %1990 = vmatprep.subr.bf16.mxu0 0
        %1991 = vmatpush1.bf16.msra.mxu0 %v1963
        %1992 = vmatprep.subr.bf16.mxu0 0
        %1993 = vmatpush1.bf16.msra.mxu0 %v1962
        %1994 = vmatprep.subr.bf16.mxu0 0
        %1995 = vmatpush2.bf16.msra.mxu0 0
        %1996 = vmatprep.subr.bf16.mxu0 0
        %1997 = vmatpush2.bf16.msra.mxu0 0
        %1998 = vmatprep.subr.bf16.mxu0 0
        %1999 = vmatpush2.bf16.msra.mxu0 0
        %2000 = vmatprep.subr.bf16.mxu0 0
        %2001 = vmatpush2.bf16.msra.mxu0 0
        %2002 = vmatprep.subr.bf16.mxu0 0
        %2003 = vmatpush2.bf16.msra.mxu0 0
        %2004 = vmatprep.subr.bf16.mxu0 0
        %2005 = vmatpush2.bf16.msra.mxu0 0
        %2006 = vmatprep.subr.bf16.mxu0 0
        %2007 = vmatpush2.bf16.msra.mxu0 0
        %2008 = vmatprep.subr.bf16.mxu0 0
        %2009 = vmatpush2.bf16.msra.mxu0 0
        %2010 = vmatprep.mubr.bf16.mxu0 0
        %2011 = vmatmul.mubr.bf16.gmra.mxu0 %v1927
        %v2012 = vpop.f32.mrf.mxu0
        %v2013 = vadd.f32 0.0, %v2012
        %v2014 = vpop.f32.mrf.mxu0
        %v2015 = vpop.f32.mrf.mxu0
        %v2016 = vadd.f32 0.0, %v2015
        %v2017 = vpop.f32.mrf.mxu0
        %2018 = vmatprep.mubr.bf16.mxu0 0
        %2019 = vmatmul.mubr.bf16.gmra.mxu0 %v1926
        %v2020 = vpop.f32.mrf.mxu0
        %v2021 = vadd.f32 0.0, %v2020
        %v2022 = vpop.f32.mrf.mxu0
        %v2023 = vpop.f32.mrf.mxu0
        %v2024 = vpop.f32.mrf.mxu0
        %2025 = vdwg.mxu0
        %v2026 = vadd.f32 %v1887, %v2013
        %v2027 = vadd.f32 %v1888, %v2016
        %v2028 = vadd.f32 %v1889, %v2021
        %v2029 = vld [vmem:[%s1498] sm:$0xc]
        %s2030 = scalar_lea.vmem %s1, 896
        %v2031 = vld [vmem:[%s2030] sm:$0xf]
        %v2032 = vld [vmem:[%s2030 + $0x4] sm:$0xf]
        %v2033 = vld [vmem:[%s2030 + $0x8] sm:$0xf]
        %v2034 = vld [vmem:[%s2030 + $0xc] sm:$0xf]
        %v2035 = vld [vmem:[%s2030 + $0x10] sm:$0xf]
        %v2036 = vld [vmem:[%s2030 + $0x14] sm:$0xf]
        %v2037 = vld [vmem:[%s2030 + $0x18] sm:$0xf]
        %v2038 = vld [vmem:[%s2030 + $0x1c] sm:$0xf]
        %v2039 = vld [vmem:[%s2030 + $0x20] sm:$0xf]
        %v2040 = vld [vmem:[%s2030 + $0x24] sm:$0xf]
        %v2041 = vld [vmem:[%s2030 + $0x28] sm:$0xf]
        %v2042 = vld [vmem:[%s2030 + $0x2c] sm:$0xf]
        %v2043 = vld [vmem:[%s2030 + $0x30] sm:$0xf]
        %v2044 = vld [vmem:[%s2030 + $0x34] sm:$0xf]
        %v2045 = vld [vmem:[%s2030 + $0x38] sm:$0xf]
        %v2046 = vld [vmem:[%s2030 + $0x3c] sm:$0xf]
        %v2048 = vunpack.c.l.b16 %v2029
        %v2049 = vpack.c.b16 %v1523, %v2048
        %v2050 = vrot.slane %v2049, 2
        %v2051 = vrot.slane %v1910, 2
        %v2052 = vsel %vm731, %v2050, %v2051
        %v2071 = vunpack.c.l.b16 %v2031
        %v2072 = vunpack.c.l.b16 %v2032
        %v2073 = vunpack.c.l.b16 %v2033
        %v2074 = vunpack.c.l.b16 %v2034
        %v2075 = vunpack.c.l.b16 %v2035
        %v2076 = vunpack.c.l.b16 %v2036
        %v2077 = vunpack.c.l.b16 %v2037
        %v2078 = vunpack.c.l.b16 %v2038
        %v2079 = vunpack.c.l.b16 %v2039
        %v2080 = vunpack.c.l.b16 %v2040
        %v2081 = vunpack.c.l.b16 %v2041
        %v2082 = vunpack.c.l.b16 %v2042
        %v2083 = vunpack.c.l.b16 %v2043
        %v2084 = vunpack.c.l.b16 %v2044
        %v2085 = vunpack.c.l.b16 %v2045
        %v2086 = vunpack.c.l.b16 %v2046
        %v2087 = vpack.c.b16 %v2072, %v2071
        %v2088 = vpack.c.b16 %v2074, %v2073
        %v2089 = vpack.c.b16 %v2076, %v2075
        %v2090 = vpack.c.b16 %v2078, %v2077
        %v2091 = vpack.c.b16 %v2080, %v2079
        %v2092 = vpack.c.b16 %v2082, %v2081
        %v2093 = vpack.c.b16 %v2084, %v2083
        %v2094 = vpack.c.b16 %v2086, %v2085
        %2103 = vmatprep.subr.bf16.mxu0 0
        %2104 = vmatpush1.bf16.msra.mxu0 %v2094
        %2105 = vmatprep.subr.bf16.mxu0 0
        %2106 = vmatpush1.bf16.msra.mxu0 %v2093
        %2107 = vmatprep.subr.bf16.mxu0 0
        %2108 = vmatpush1.bf16.msra.mxu0 %v2092
        %2109 = vmatprep.subr.bf16.mxu0 0
        %2110 = vmatpush1.bf16.msra.mxu0 %v2091
        %2111 = vmatprep.subr.bf16.mxu0 0
        %2112 = vmatpush1.bf16.msra.mxu0 %v2090
        %2113 = vmatprep.subr.bf16.mxu0 0
        %2114 = vmatpush1.bf16.msra.mxu0 %v2089
        %2115 = vmatprep.subr.bf16.mxu0 0
        %2116 = vmatpush1.bf16.msra.mxu0 %v2088
        %2117 = vmatprep.subr.bf16.mxu0 0
        %2118 = vmatpush1.bf16.msra.mxu0 %v2087
        %2119 = vmatprep.subr.bf16.mxu0 0
        %2120 = vmatpush2.bf16.msra.mxu0 0
        %2121 = vmatprep.subr.bf16.mxu0 0
        %2122 = vmatpush2.bf16.msra.mxu0 0
        %2123 = vmatprep.subr.bf16.mxu0 0
        %2124 = vmatpush2.bf16.msra.mxu0 0
        %2125 = vmatprep.subr.bf16.mxu0 0
        %2126 = vmatpush2.bf16.msra.mxu0 0
        %2127 = vmatprep.subr.bf16.mxu0 0
        %2128 = vmatpush2.bf16.msra.mxu0 0
        %2129 = vmatprep.subr.bf16.mxu0 0
        %2130 = vmatpush2.bf16.msra.mxu0 0
        %2131 = vmatprep.subr.bf16.mxu0 0
        %2132 = vmatpush2.bf16.msra.mxu0 0
        %2133 = vmatprep.subr.bf16.mxu0 0
        %2134 = vmatpush2.bf16.msra.mxu0 0
        %2135 = vmatprep.mubr.bf16.mxu0 0
        %2136 = vmatmul.mubr.bf16.gmra.mxu0 %v2052
        %v2137 = vpop.f32.mrf.mxu0
        %v2138 = vadd.f32 0.0, %v2137
        %v2139 = vpop.f32.mrf.mxu0
        %v2140 = vpop.f32.mrf.mxu0
        %v2141 = vadd.f32 0.0, %v2140
        %v2142 = vpop.f32.mrf.mxu0
        %2143 = vmatprep.mubr.bf16.mxu0 0
        %2144 = vmatmul.mubr.bf16.gmra.mxu0 %v2051
        %v2145 = vpop.f32.mrf.mxu0
        %v2146 = vadd.f32 0.0, %v2145
        %v2147 = vpop.f32.mrf.mxu0
        %v2148 = vpop.f32.mrf.mxu0
        %v2149 = vpop.f32.mrf.mxu0
        %2150 = vdwg.mxu0
        %v2151 = vadd.f32 %v2026, %v2138
        %v2152 = vadd.f32 %v2027, %v2141
        %v2153 = vadd.f32 %v2028, %v2146
        %s2154 = sadd.s32 %s176, 3
        %s2155 = smul.u32 %s2154, 3
        %s2156 = smul.addr %s2155, 4
        %s2157 = scalar_lea.vmem %s165, %s2156
        %v2158 = vld [vmem:[%s2157] sm:$0xf]
        %v2159 = vld [vmem:[%s2157 + $0x4] sm:$0xf]
        %v2160 = vld [vmem:[%s2157 + $0x8] sm:$0x3]
        %s2161 = scalar_lea.vmem %s1, 960
        %v2162 = vld [vmem:[%s2161] sm:$0xf]
        %v2163 = vld [vmem:[%s2161 + $0x4] sm:$0xf]
        %v2164 = vld [vmem:[%s2161 + $0x8] sm:$0xf]
        %v2165 = vld [vmem:[%s2161 + $0xc] sm:$0xf]
        %v2166 = vld [vmem:[%s2161 + $0x10] sm:$0xf]
        %v2167 = vld [vmem:[%s2161 + $0x14] sm:$0xf]
        %v2168 = vld [vmem:[%s2161 + $0x18] sm:$0xf]
        %v2169 = vld [vmem:[%s2161 + $0x1c] sm:$0xf]
        %v2170 = vld [vmem:[%s2161 + $0x20] sm:$0xf]
        %v2171 = vld [vmem:[%s2161 + $0x24] sm:$0xf]
        %v2172 = vld [vmem:[%s2161 + $0x28] sm:$0xf]
        %v2173 = vld [vmem:[%s2161 + $0x2c] sm:$0xf]
        %v2174 = vld [vmem:[%s2161 + $0x30] sm:$0xf]
        %v2175 = vld [vmem:[%s2161 + $0x34] sm:$0xf]
        %v2176 = vld [vmem:[%s2161 + $0x38] sm:$0xf]
        %v2177 = vld [vmem:[%s2161 + $0x3c] sm:$0xf]
        %v2181 = vunpack.c.l.b16 %v2158
        %v2182 = vunpack.c.l.b16 %v2159
        %v2183 = vunpack.c.l.b16 %v2160
        %v2184 = vpack.c.b16 %v2182, %v2181
        %v2185 = vpack.c.b16 %v2183, %v2183
        %v2204 = vunpack.c.l.b16 %v2162
        %v2205 = vunpack.c.l.b16 %v2163
        %v2206 = vunpack.c.l.b16 %v2164
        %v2207 = vunpack.c.l.b16 %v2165
        %v2208 = vunpack.c.l.b16 %v2166
        %v2209 = vunpack.c.l.b16 %v2167
        %v2210 = vunpack.c.l.b16 %v2168
        %v2211 = vunpack.c.l.b16 %v2169
        %v2212 = vunpack.c.l.b16 %v2170
        %v2213 = vunpack.c.l.b16 %v2171
        %v2214 = vunpack.c.l.b16 %v2172
        %v2215 = vunpack.c.l.b16 %v2173
        %v2216 = vunpack.c.l.b16 %v2174
        %v2217 = vunpack.c.l.b16 %v2175
        %v2218 = vunpack.c.l.b16 %v2176
        %v2219 = vunpack.c.l.b16 %v2177
        %v2220 = vpack.c.b16 %v2205, %v2204
        %v2221 = vpack.c.b16 %v2207, %v2206
        %v2222 = vpack.c.b16 %v2209, %v2208
        %v2223 = vpack.c.b16 %v2211, %v2210
        %v2224 = vpack.c.b16 %v2213, %v2212
        %v2225 = vpack.c.b16 %v2215, %v2214
        %v2226 = vpack.c.b16 %v2217, %v2216
        %v2227 = vpack.c.b16 %v2219, %v2218
        %2236 = vmatprep.subr.bf16.mxu0 0
        %2237 = vmatpush1.bf16.msra.mxu0 %v2227
        %2238 = vmatprep.subr.bf16.mxu0 0
        %2239 = vmatpush1.bf16.msra.mxu0 %v2226
        %2240 = vmatprep.subr.bf16.mxu0 0
        %2241 = vmatpush1.bf16.msra.mxu0 %v2225
        %2242 = vmatprep.subr.bf16.mxu0 0
        %2243 = vmatpush1.bf16.msra.mxu0 %v2224
        %2244 = vmatprep.subr.bf16.mxu0 0
        %2245 = vmatpush1.bf16.msra.mxu0 %v2223
        %2246 = vmatprep.subr.bf16.mxu0 0
        %2247 = vmatpush1.bf16.msra.mxu0 %v2222
        %2248 = vmatprep.subr.bf16.mxu0 0
        %2249 = vmatpush1.bf16.msra.mxu0 %v2221
        %2250 = vmatprep.subr.bf16.mxu0 0
        %2251 = vmatpush1.bf16.msra.mxu0 %v2220
        %2252 = vmatprep.subr.bf16.mxu0 0
        %2253 = vmatpush2.bf16.msra.mxu0 0
        %2254 = vmatprep.subr.bf16.mxu0 0
        %2255 = vmatpush2.bf16.msra.mxu0 0
        %2256 = vmatprep.subr.bf16.mxu0 0
        %2257 = vmatpush2.bf16.msra.mxu0 0
        %2258 = vmatprep.subr.bf16.mxu0 0
        %2259 = vmatpush2.bf16.msra.mxu0 0
        %2260 = vmatprep.subr.bf16.mxu0 0
        %2261 = vmatpush2.bf16.msra.mxu0 0
        %2262 = vmatprep.subr.bf16.mxu0 0
        %2263 = vmatpush2.bf16.msra.mxu0 0
        %2264 = vmatprep.subr.bf16.mxu0 0
        %2265 = vmatpush2.bf16.msra.mxu0 0
        %2266 = vmatprep.subr.bf16.mxu0 0
        %2267 = vmatpush2.bf16.msra.mxu0 0
        %2268 = vmatprep.mubr.bf16.mxu0 0
        %2269 = vmatmul.mubr.bf16.gmra.mxu0 %v2184
        %v2270 = vpop.f32.mrf.mxu0
        %v2271 = vadd.f32 0.0, %v2270
        %v2272 = vpop.f32.mrf.mxu0
        %v2273 = vpop.f32.mrf.mxu0
        %v2274 = vadd.f32 0.0, %v2273
        %v2275 = vpop.f32.mrf.mxu0
        %2276 = vmatprep.mubr.bf16.mxu0 0
        %2277 = vmatmul.mubr.bf16.gmra.mxu0 %v2185
        %v2278 = vpop.f32.mrf.mxu0
        %v2279 = vadd.f32 0.0, %v2278
        %v2280 = vpop.f32.mrf.mxu0
        %v2281 = vpop.f32.mrf.mxu0
        %v2282 = vpop.f32.mrf.mxu0
        %2283 = vdwg.mxu0
        %v2284 = vadd.f32 %v2151, %v2271
        %v2285 = vadd.f32 %v2152, %v2274
        %v2286 = vadd.f32 %v2153, %v2279
        %v2287 = vld [vmem:[%s2157 + $0x8] sm:$0x7]
        %s2288 = scalar_lea.vmem %s1, 1024
        %v2289 = vld [vmem:[%s2288] sm:$0xf]
        %v2290 = vld [vmem:[%s2288 + $0x4] sm:$0xf]
        %v2291 = vld [vmem:[%s2288 + $0x8] sm:$0xf]
        %v2292 = vld [vmem:[%s2288 + $0xc] sm:$0xf]
        %v2293 = vld [vmem:[%s2288 + $0x10] sm:$0xf]
        %v2294 = vld [vmem:[%s2288 + $0x14] sm:$0xf]
        %v2295 = vld [vmem:[%s2288 + $0x18] sm:$0xf]
        %v2296 = vld [vmem:[%s2288 + $0x1c] sm:$0xf]
        %v2297 = vld [vmem:[%s2288 + $0x20] sm:$0xf]
        %v2298 = vld [vmem:[%s2288 + $0x24] sm:$0xf]
        %v2299 = vld [vmem:[%s2288 + $0x28] sm:$0xf]
        %v2300 = vld [vmem:[%s2288 + $0x2c] sm:$0xf]
        %v2301 = vld [vmem:[%s2288 + $0x30] sm:$0xf]
        %v2302 = vld [vmem:[%s2288 + $0x34] sm:$0xf]
        %v2303 = vld [vmem:[%s2288 + $0x38] sm:$0xf]
        %v2304 = vld [vmem:[%s2288 + $0x3c] sm:$0xf]
        %v2306 = vunpack.c.l.b16 %v2287
        %v2307 = vpack.c.b16 %v2306, %v2306
        %v2309 = vshrl.u32 %v2184, 16
        %v2311 = vshll.u32 %v2184, 16
        %v2313 = vrot.slane %v2311, 1
        %v2314 = vor.u32 %v2309, %v2313
        %v2316 = vshll.u32 %v2307, 16
        %v2318 = vrot.slane %v2316, 1
        %v2319 = vsel %vm229, %v2314, %v2318
        %v2320 = vshrl.u32 %v2307, 16
        %v2322 = vor.u32 %v2320, %v2318
        %v2341 = vunpack.c.l.b16 %v2289
        %v2342 = vunpack.c.l.b16 %v2290
        %v2343 = vunpack.c.l.b16 %v2291
        %v2344 = vunpack.c.l.b16 %v2292
        %v2345 = vunpack.c.l.b16 %v2293
        %v2346 = vunpack.c.l.b16 %v2294
        %v2347 = vunpack.c.l.b16 %v2295
        %v2348 = vunpack.c.l.b16 %v2296
        %v2349 = vunpack.c.l.b16 %v2297
        %v2350 = vunpack.c.l.b16 %v2298
        %v2351 = vunpack.c.l.b16 %v2299
        %v2352 = vunpack.c.l.b16 %v2300
        %v2353 = vunpack.c.l.b16 %v2301
        %v2354 = vunpack.c.l.b16 %v2302
        %v2355 = vunpack.c.l.b16 %v2303
        %v2356 = vunpack.c.l.b16 %v2304
        %v2357 = vpack.c.b16 %v2342, %v2341
        %v2358 = vpack.c.b16 %v2344, %v2343
        %v2359 = vpack.c.b16 %v2346, %v2345
        %v2360 = vpack.c.b16 %v2348, %v2347
        %v2361 = vpack.c.b16 %v2350, %v2349
        %v2362 = vpack.c.b16 %v2352, %v2351
        %v2363 = vpack.c.b16 %v2354, %v2353
        %v2364 = vpack.c.b16 %v2356, %v2355
        %2373 = vmatprep.subr.bf16.mxu0 0
        %2374 = vmatpush1.bf16.msra.mxu0 %v2364
        %2375 = vmatprep.subr.bf16.mxu0 0
        %2376 = vmatpush1.bf16.msra.mxu0 %v2363
        %2377 = vmatprep.subr.bf16.mxu0 0
        %2378 = vmatpush1.bf16.msra.mxu0 %v2362
        %2379 = vmatprep.subr.bf16.mxu0 0
        %2380 = vmatpush1.bf16.msra.mxu0 %v2361
        %2381 = vmatprep.subr.bf16.mxu0 0
        %2382 = vmatpush1.bf16.msra.mxu0 %v2360
        %2383 = vmatprep.subr.bf16.mxu0 0
        %2384 = vmatpush1.bf16.msra.mxu0 %v2359
        %2385 = vmatprep.subr.bf16.mxu0 0
        %2386 = vmatpush1.bf16.msra.mxu0 %v2358
        %2387 = vmatprep.subr.bf16.mxu0 0
        %2388 = vmatpush1.bf16.msra.mxu0 %v2357
        %2389 = vmatprep.subr.bf16.mxu0 0
        %2390 = vmatpush2.bf16.msra.mxu0 0
        %2391 = vmatprep.subr.bf16.mxu0 0
        %2392 = vmatpush2.bf16.msra.mxu0 0
        %2393 = vmatprep.subr.bf16.mxu0 0
        %2394 = vmatpush2.bf16.msra.mxu0 0
        %2395 = vmatprep.subr.bf16.mxu0 0
        %2396 = vmatpush2.bf16.msra.mxu0 0
        %2397 = vmatprep.subr.bf16.mxu0 0
        %2398 = vmatpush2.bf16.msra.mxu0 0
        %2399 = vmatprep.subr.bf16.mxu0 0
        %2400 = vmatpush2.bf16.msra.mxu0 0
        %2401 = vmatprep.subr.bf16.mxu0 0
        %2402 = vmatpush2.bf16.msra.mxu0 0
        %2403 = vmatprep.subr.bf16.mxu0 0
        %2404 = vmatpush2.bf16.msra.mxu0 0
        %2405 = vmatprep.mubr.bf16.mxu0 0
        %2406 = vmatmul.mubr.bf16.gmra.mxu0 %v2319
        %v2407 = vpop.f32.mrf.mxu0
        %v2408 = vadd.f32 0.0, %v2407
        %v2409 = vpop.f32.mrf.mxu0
        %v2410 = vpop.f32.mrf.mxu0
        %v2411 = vadd.f32 0.0, %v2410
        %v2412 = vpop.f32.mrf.mxu0
        %2413 = vmatprep.mubr.bf16.mxu0 0
        %2414 = vmatmul.mubr.bf16.gmra.mxu0 %v2322
        %v2415 = vpop.f32.mrf.mxu0
        %v2416 = vadd.f32 0.0, %v2415
        %v2417 = vpop.f32.mrf.mxu0
        %v2418 = vpop.f32.mrf.mxu0
        %v2419 = vpop.f32.mrf.mxu0
        %2420 = vdwg.mxu0
        %v2421 = vadd.f32 %v2284, %v2408
        %v2422 = vadd.f32 %v2285, %v2411
        %v2423 = vadd.f32 %v2286, %v2416
        %v2424 = vld [vmem:[%s2157] sm:$0xe]
        %s2425 = scalar_lea.vmem %s1, 1088
        %v2426 = vld [vmem:[%s2425] sm:$0xf]
        %v2427 = vld [vmem:[%s2425 + $0x4] sm:$0xf]
        %v2428 = vld [vmem:[%s2425 + $0x8] sm:$0xf]
        %v2429 = vld [vmem:[%s2425 + $0xc] sm:$0xf]
        %v2430 = vld [vmem:[%s2425 + $0x10] sm:$0xf]
        %v2431 = vld [vmem:[%s2425 + $0x14] sm:$0xf]
        %v2432 = vld [vmem:[%s2425 + $0x18] sm:$0xf]
        %v2433 = vld [vmem:[%s2425 + $0x1c] sm:$0xf]
        %v2434 = vld [vmem:[%s2425 + $0x20] sm:$0xf]
        %v2435 = vld [vmem:[%s2425 + $0x24] sm:$0xf]
        %v2436 = vld [vmem:[%s2425 + $0x28] sm:$0xf]
        %v2437 = vld [vmem:[%s2425 + $0x2c] sm:$0xf]
        %v2438 = vld [vmem:[%s2425 + $0x30] sm:$0xf]
        %v2439 = vld [vmem:[%s2425 + $0x34] sm:$0xf]
        %v2440 = vld [vmem:[%s2425 + $0x38] sm:$0xf]
        %v2441 = vld [vmem:[%s2425 + $0x3c] sm:$0xf]
        %v2443 = vunpack.c.l.b16 %v2424
        %v2444 = vpack.c.b16 %v2182, %v2443
        %v2445 = vrot.slane %v2444, 1
        %v2446 = vrot.slane %v2307, 1
        %v2447 = vsel %vm465, %v2445, %v2446
        %v2466 = vunpack.c.l.b16 %v2426
        %v2467 = vunpack.c.l.b16 %v2427
        %v2468 = vunpack.c.l.b16 %v2428
        %v2469 = vunpack.c.l.b16 %v2429
        %v2470 = vunpack.c.l.b16 %v2430
        %v2471 = vunpack.c.l.b16 %v2431
        %v2472 = vunpack.c.l.b16 %v2432
        %v2473 = vunpack.c.l.b16 %v2433
        %v2474 = vunpack.c.l.b16 %v2434
        %v2475 = vunpack.c.l.b16 %v2435
        %v2476 = vunpack.c.l.b16 %v2436
        %v2477 = vunpack.c.l.b16 %v2437
        %v2478 = vunpack.c.l.b16 %v2438
        %v2479 = vunpack.c.l.b16 %v2439
        %v2480 = vunpack.c.l.b16 %v2440
        %v2481 = vunpack.c.l.b16 %v2441
        %v2482 = vpack.c.b16 %v2467, %v2466
        %v2483 = vpack.c.b16 %v2469, %v2468
        %v2484 = vpack.c.b16 %v2471, %v2470
        %v2485 = vpack.c.b16 %v2473, %v2472
        %v2486 = vpack.c.b16 %v2475, %v2474
        %v2487 = vpack.c.b16 %v2477, %v2476
        %v2488 = vpack.c.b16 %v2479, %v2478
        %v2489 = vpack.c.b16 %v2481, %v2480
        %2498 = vmatprep.subr.bf16.mxu0 0
        %2499 = vmatpush1.bf16.msra.mxu0 %v2489
        %2500 = vmatprep.subr.bf16.mxu0 0
        %2501 = vmatpush1.bf16.msra.mxu0 %v2488
        %2502 = vmatprep.subr.bf16.mxu0 0
        %2503 = vmatpush1.bf16.msra.mxu0 %v2487
        %2504 = vmatprep.subr.bf16.mxu0 0
        %2505 = vmatpush1.bf16.msra.mxu0 %v2486
        %2506 = vmatprep.subr.bf16.mxu0 0
        %2507 = vmatpush1.bf16.msra.mxu0 %v2485
        %2508 = vmatprep.subr.bf16.mxu0 0
        %2509 = vmatpush1.bf16.msra.mxu0 %v2484
        %2510 = vmatprep.subr.bf16.mxu0 0
        %2511 = vmatpush1.bf16.msra.mxu0 %v2483
        %2512 = vmatprep.subr.bf16.mxu0 0
        %2513 = vmatpush1.bf16.msra.mxu0 %v2482
        %2514 = vmatprep.subr.bf16.mxu0 0
        %2515 = vmatpush2.bf16.msra.mxu0 0
        %2516 = vmatprep.subr.bf16.mxu0 0
        %2517 = vmatpush2.bf16.msra.mxu0 0
        %2518 = vmatprep.subr.bf16.mxu0 0
        %2519 = vmatpush2.bf16.msra.mxu0 0
        %2520 = vmatprep.subr.bf16.mxu0 0
        %2521 = vmatpush2.bf16.msra.mxu0 0
        %2522 = vmatprep.subr.bf16.mxu0 0
        %2523 = vmatpush2.bf16.msra.mxu0 0
        %2524 = vmatprep.subr.bf16.mxu0 0
        %2525 = vmatpush2.bf16.msra.mxu0 0
        %2526 = vmatprep.subr.bf16.mxu0 0
        %2527 = vmatpush2.bf16.msra.mxu0 0
        %2528 = vmatprep.subr.bf16.mxu0 0
        %2529 = vmatpush2.bf16.msra.mxu0 0
        %2530 = vmatprep.mubr.bf16.mxu0 0
        %2531 = vmatmul.mubr.bf16.gmra.mxu0 %v2447
        %v2532 = vpop.f32.mrf.mxu0
        %v2533 = vadd.f32 0.0, %v2532
        %v2534 = vpop.f32.mrf.mxu0
        %v2535 = vpop.f32.mrf.mxu0
        %v2536 = vadd.f32 0.0, %v2535
        %v2537 = vpop.f32.mrf.mxu0
        %2538 = vmatprep.mubr.bf16.mxu0 0
        %2539 = vmatmul.mubr.bf16.gmra.mxu0 %v2446
        %v2540 = vpop.f32.mrf.mxu0
        %v2541 = vadd.f32 0.0, %v2540
        %v2542 = vpop.f32.mrf.mxu0
        %v2543 = vpop.f32.mrf.mxu0
        %v2544 = vpop.f32.mrf.mxu0
        %2545 = vdwg.mxu0
        %v2546 = vadd.f32 %v2421, %v2533
        %v2547 = vadd.f32 %v2422, %v2536
        %v2548 = vadd.f32 %v2423, %v2541
        %v2549 = vld [vmem:[%s2157 + $0x8] sm:$0xf]
        %s2550 = scalar_lea.vmem %s1, 1152
        %v2551 = vld [vmem:[%s2550] sm:$0xf]
        %v2552 = vld [vmem:[%s2550 + $0x4] sm:$0xf]
        %v2553 = vld [vmem:[%s2550 + $0x8] sm:$0xf]
        %v2554 = vld [vmem:[%s2550 + $0xc] sm:$0xf]
        %v2555 = vld [vmem:[%s2550 + $0x10] sm:$0xf]
        %v2556 = vld [vmem:[%s2550 + $0x14] sm:$0xf]
        %v2557 = vld [vmem:[%s2550 + $0x18] sm:$0xf]
        %v2558 = vld [vmem:[%s2550 + $0x1c] sm:$0xf]
        %v2559 = vld [vmem:[%s2550 + $0x20] sm:$0xf]
        %v2560 = vld [vmem:[%s2550 + $0x24] sm:$0xf]
        %v2561 = vld [vmem:[%s2550 + $0x28] sm:$0xf]
        %v2562 = vld [vmem:[%s2550 + $0x2c] sm:$0xf]
        %v2563 = vld [vmem:[%s2550 + $0x30] sm:$0xf]
        %v2564 = vld [vmem:[%s2550 + $0x34] sm:$0xf]
        %v2565 = vld [vmem:[%s2550 + $0x38] sm:$0xf]
        %v2566 = vld [vmem:[%s2550 + $0x3c] sm:$0xf]
        %v2568 = vunpack.c.l.b16 %v2549
        %v2569 = vpack.c.b16 %v2568, %v2568
        %v2571 = vshrl.u32 %v2444, 16
        %v2573 = vrot.slane %v2571, 1
        %v2574 = vshll.u32 %v2444, 16
        %v2576 = vrot.slane %v2574, 2
        %v2577 = vor.u32 %v2573, %v2576
        %v2579 = vshrl.u32 %v2569, 16
        %v2581 = vrot.slane %v2579, 1
        %v2582 = vshll.u32 %v2569, 16
        %v2584 = vrot.slane %v2582, 2
        %v2585 = vor.u32 %v2581, %v2584
        %v2586 = vsel %vm591, %v2577, %v2585
        %v2605 = vunpack.c.l.b16 %v2551
        %v2606 = vunpack.c.l.b16 %v2552
        %v2607 = vunpack.c.l.b16 %v2553
        %v2608 = vunpack.c.l.b16 %v2554
        %v2609 = vunpack.c.l.b16 %v2555
        %v2610 = vunpack.c.l.b16 %v2556
        %v2611 = vunpack.c.l.b16 %v2557
        %v2612 = vunpack.c.l.b16 %v2558
        %v2613 = vunpack.c.l.b16 %v2559
        %v2614 = vunpack.c.l.b16 %v2560
        %v2615 = vunpack.c.l.b16 %v2561
        %v2616 = vunpack.c.l.b16 %v2562
        %v2617 = vunpack.c.l.b16 %v2563
        %v2618 = vunpack.c.l.b16 %v2564
        %v2619 = vunpack.c.l.b16 %v2565
        %v2620 = vunpack.c.l.b16 %v2566
        %v2621 = vpack.c.b16 %v2606, %v2605
        %v2622 = vpack.c.b16 %v2608, %v2607
        %v2623 = vpack.c.b16 %v2610, %v2609
        %v2624 = vpack.c.b16 %v2612, %v2611
        %v2625 = vpack.c.b16 %v2614, %v2613
        %v2626 = vpack.c.b16 %v2616, %v2615
        %v2627 = vpack.c.b16 %v2618, %v2617
        %v2628 = vpack.c.b16 %v2620, %v2619
        %2637 = vmatprep.subr.bf16.mxu0 0
        %2638 = vmatpush1.bf16.msra.mxu0 %v2628
        %2639 = vmatprep.subr.bf16.mxu0 0
        %2640 = vmatpush1.bf16.msra.mxu0 %v2627
        %2641 = vmatprep.subr.bf16.mxu0 0
        %2642 = vmatpush1.bf16.msra.mxu0 %v2626
        %2643 = vmatprep.subr.bf16.mxu0 0
        %2644 = vmatpush1.bf16.msra.mxu0 %v2625
        %2645 = vmatprep.subr.bf16.mxu0 0
        %2646 = vmatpush1.bf16.msra.mxu0 %v2624
        %2647 = vmatprep.subr.bf16.mxu0 0
        %2648 = vmatpush1.bf16.msra.mxu0 %v2623
        %2649 = vmatprep.subr.bf16.mxu0 0
        %2650 = vmatpush1.bf16.msra.mxu0 %v2622
        %2651 = vmatprep.subr.bf16.mxu0 0
        %2652 = vmatpush1.bf16.msra.mxu0 %v2621
        %2653 = vmatprep.subr.bf16.mxu0 0
        %2654 = vmatpush2.bf16.msra.mxu0 0
        %2655 = vmatprep.subr.bf16.mxu0 0
        %2656 = vmatpush2.bf16.msra.mxu0 0
        %2657 = vmatprep.subr.bf16.mxu0 0
        %2658 = vmatpush2.bf16.msra.mxu0 0
        %2659 = vmatprep.subr.bf16.mxu0 0
        %2660 = vmatpush2.bf16.msra.mxu0 0
        %2661 = vmatprep.subr.bf16.mxu0 0
        %2662 = vmatpush2.bf16.msra.mxu0 0
        %2663 = vmatprep.subr.bf16.mxu0 0
        %2664 = vmatpush2.bf16.msra.mxu0 0
        %2665 = vmatprep.subr.bf16.mxu0 0
        %2666 = vmatpush2.bf16.msra.mxu0 0
        %2667 = vmatprep.subr.bf16.mxu0 0
        %2668 = vmatpush2.bf16.msra.mxu0 0
        %2669 = vmatprep.mubr.bf16.mxu0 0
        %2670 = vmatmul.mubr.bf16.gmra.mxu0 %v2586
        %v2671 = vpop.f32.mrf.mxu0
        %v2672 = vadd.f32 0.0, %v2671
        %v2673 = vpop.f32.mrf.mxu0
        %v2674 = vpop.f32.mrf.mxu0
        %v2675 = vadd.f32 0.0, %v2674
        %v2676 = vpop.f32.mrf.mxu0
        %2677 = vmatprep.mubr.bf16.mxu0 0
        %2678 = vmatmul.mubr.bf16.gmra.mxu0 %v2585
        %v2679 = vpop.f32.mrf.mxu0
        %v2680 = vadd.f32 0.0, %v2679
        %v2681 = vpop.f32.mrf.mxu0
        %v2682 = vpop.f32.mrf.mxu0
        %v2683 = vpop.f32.mrf.mxu0
        %2684 = vdwg.mxu0
        %v2685 = vadd.f32 %v2546, %v2672
        %v2686 = vadd.f32 %v2547, %v2675
        %v2687 = vadd.f32 %v2548, %v2680
        %v2688 = vld [vmem:[%s2157] sm:$0xc]
        %s2689 = scalar_lea.vmem %s1, 1216
        %v2690 = vld [vmem:[%s2689] sm:$0xf]
        %v2691 = vld [vmem:[%s2689 + $0x4] sm:$0xf]
        %v2692 = vld [vmem:[%s2689 + $0x8] sm:$0xf]
        %v2693 = vld [vmem:[%s2689 + $0xc] sm:$0xf]
        %v2694 = vld [vmem:[%s2689 + $0x10] sm:$0xf]
        %v2695 = vld [vmem:[%s2689 + $0x14] sm:$0xf]
        %v2696 = vld [vmem:[%s2689 + $0x18] sm:$0xf]
        %v2697 = vld [vmem:[%s2689 + $0x1c] sm:$0xf]
        %v2698 = vld [vmem:[%s2689 + $0x20] sm:$0xf]
        %v2699 = vld [vmem:[%s2689 + $0x24] sm:$0xf]
        %v2700 = vld [vmem:[%s2689 + $0x28] sm:$0xf]
        %v2701 = vld [vmem:[%s2689 + $0x2c] sm:$0xf]
        %v2702 = vld [vmem:[%s2689 + $0x30] sm:$0xf]
        %v2703 = vld [vmem:[%s2689 + $0x34] sm:$0xf]
        %v2704 = vld [vmem:[%s2689 + $0x38] sm:$0xf]
        %v2705 = vld [vmem:[%s2689 + $0x3c] sm:$0xf]
        %v2707 = vunpack.c.l.b16 %v2688
        %v2708 = vpack.c.b16 %v2182, %v2707
        %v2709 = vrot.slane %v2708, 2
        %v2710 = vrot.slane %v2569, 2
        %v2711 = vsel %vm731, %v2709, %v2710
        %v2730 = vunpack.c.l.b16 %v2690
        %v2731 = vunpack.c.l.b16 %v2691
        %v2732 = vunpack.c.l.b16 %v2692
        %v2733 = vunpack.c.l.b16 %v2693
        %v2734 = vunpack.c.l.b16 %v2694
        %v2735 = vunpack.c.l.b16 %v2695
        %v2736 = vunpack.c.l.b16 %v2696
        %v2737 = vunpack.c.l.b16 %v2697
        %v2738 = vunpack.c.l.b16 %v2698
        %v2739 = vunpack.c.l.b16 %v2699
        %v2740 = vunpack.c.l.b16 %v2700
        %v2741 = vunpack.c.l.b16 %v2701
        %v2742 = vunpack.c.l.b16 %v2702
        %v2743 = vunpack.c.l.b16 %v2703
        %v2744 = vunpack.c.l.b16 %v2704
        %v2745 = vunpack.c.l.b16 %v2705
        %v2746 = vpack.c.b16 %v2731, %v2730
        %v2747 = vpack.c.b16 %v2733, %v2732
        %v2748 = vpack.c.b16 %v2735, %v2734
        %v2749 = vpack.c.b16 %v2737, %v2736
        %v2750 = vpack.c.b16 %v2739, %v2738
        %v2751 = vpack.c.b16 %v2741, %v2740
        %v2752 = vpack.c.b16 %v2743, %v2742
        %v2753 = vpack.c.b16 %v2745, %v2744
        %2762 = vmatprep.subr.bf16.mxu0 0
        %2763 = vmatpush1.bf16.msra.mxu0 %v2753
        %2764 = vmatprep.subr.bf16.mxu0 0
        %2765 = vmatpush1.bf16.msra.mxu0 %v2752
        %2766 = vmatprep.subr.bf16.mxu0 0
        %2767 = vmatpush1.bf16.msra.mxu0 %v2751
        %2768 = vmatprep.subr.bf16.mxu0 0
        %2769 = vmatpush1.bf16.msra.mxu0 %v2750
        %2770 = vmatprep.subr.bf16.mxu0 0
        %2771 = vmatpush1.bf16.msra.mxu0 %v2749
        %2772 = vmatprep.subr.bf16.mxu0 0
        %2773 = vmatpush1.bf16.msra.mxu0 %v2748
        %2774 = vmatprep.subr.bf16.mxu0 0
        %2775 = vmatpush1.bf16.msra.mxu0 %v2747
        %2776 = vmatprep.subr.bf16.mxu0 0
        %2777 = vmatpush1.bf16.msra.mxu0 %v2746
        %2778 = vmatprep.subr.bf16.mxu0 0
        %2779 = vmatpush2.bf16.msra.mxu0 0
        %2780 = vmatprep.subr.bf16.mxu0 0
        %2781 = vmatpush2.bf16.msra.mxu0 0
        %2782 = vmatprep.subr.bf16.mxu0 0
        %2783 = vmatpush2.bf16.msra.mxu0 0
        %2784 = vmatprep.subr.bf16.mxu0 0
        %2785 = vmatpush2.bf16.msra.mxu0 0
        %2786 = vmatprep.subr.bf16.mxu0 0
        %2787 = vmatpush2.bf16.msra.mxu0 0
        %2788 = vmatprep.subr.bf16.mxu0 0
        %2789 = vmatpush2.bf16.msra.mxu0 0
        %2790 = vmatprep.subr.bf16.mxu0 0
        %2791 = vmatpush2.bf16.msra.mxu0 0
        %2792 = vmatprep.subr.bf16.mxu0 0
        %2793 = vmatpush2.bf16.msra.mxu0 0
        %2794 = vmatprep.mubr.bf16.mxu0 0
        %2795 = vmatmul.mubr.bf16.gmra.mxu0 %v2711
        %v2796 = vpop.f32.mrf.mxu0
        %v2797 = vadd.f32 0.0, %v2796
        %v2798 = vpop.f32.mrf.mxu0
        %v2799 = vpop.f32.mrf.mxu0
        %v2800 = vadd.f32 0.0, %v2799
        %v2801 = vpop.f32.mrf.mxu0
        %2802 = vmatprep.mubr.bf16.mxu0 0
        %2803 = vmatmul.mubr.bf16.gmra.mxu0 %v2710
        %v2804 = vpop.f32.mrf.mxu0
        %v2805 = vadd.f32 0.0, %v2804
        %v2806 = vpop.f32.mrf.mxu0
        %v2807 = vpop.f32.mrf.mxu0
        %v2808 = vpop.f32.mrf.mxu0
        %2809 = vdwg.mxu0
        %v2810 = vadd.f32 %v2685, %v2797
        %v2811 = vadd.f32 %v2686, %v2800
        %v2812 = vadd.f32 %v2687, %v2805
        %s2813 = sadd.s32 %s176, 4
        %s2814 = smul.u32 %s2813, 3
        %s2815 = smul.addr %s2814, 4
        %s2816 = scalar_lea.vmem %s165, %s2815
        %v2817 = vld [vmem:[%s2816] sm:$0xf]
        %v2818 = vld [vmem:[%s2816 + $0x4] sm:$0xf]
        %v2819 = vld [vmem:[%s2816 + $0x8] sm:$0x3]
        %s2820 = scalar_lea.vmem %s1, 1280
        %v2821 = vld [vmem:[%s2820] sm:$0xf]
        %v2822 = vld [vmem:[%s2820 + $0x4] sm:$0xf]
        %v2823 = vld [vmem:[%s2820 + $0x8] sm:$0xf]
        %v2824 = vld [vmem:[%s2820 + $0xc] sm:$0xf]
        %v2825 = vld [vmem:[%s2820 + $0x10] sm:$0xf]
        %v2826 = vld [vmem:[%s2820 + $0x14] sm:$0xf]
        %v2827 = vld [vmem:[%s2820 + $0x18] sm:$0xf]
        %v2828 = vld [vmem:[%s2820 + $0x1c] sm:$0xf]
        %v2829 = vld [vmem:[%s2820 + $0x20] sm:$0xf]
        %v2830 = vld [vmem:[%s2820 + $0x24] sm:$0xf]
        %v2831 = vld [vmem:[%s2820 + $0x28] sm:$0xf]
        %v2832 = vld [vmem:[%s2820 + $0x2c] sm:$0xf]
        %v2833 = vld [vmem:[%s2820 + $0x30] sm:$0xf]
        %v2834 = vld [vmem:[%s2820 + $0x34] sm:$0xf]
        %v2835 = vld [vmem:[%s2820 + $0x38] sm:$0xf]
        %v2836 = vld [vmem:[%s2820 + $0x3c] sm:$0xf]
        %v2840 = vunpack.c.l.b16 %v2817
        %v2841 = vunpack.c.l.b16 %v2818
        %v2842 = vunpack.c.l.b16 %v2819
        %v2843 = vpack.c.b16 %v2841, %v2840
        %v2844 = vpack.c.b16 %v2842, %v2842
        %v2863 = vunpack.c.l.b16 %v2821
        %v2864 = vunpack.c.l.b16 %v2822
        %v2865 = vunpack.c.l.b16 %v2823
        %v2866 = vunpack.c.l.b16 %v2824
        %v2867 = vunpack.c.l.b16 %v2825
        %v2868 = vunpack.c.l.b16 %v2826
        %v2869 = vunpack.c.l.b16 %v2827
        %v2870 = vunpack.c.l.b16 %v2828
        %v2871 = vunpack.c.l.b16 %v2829
        %v2872 = vunpack.c.l.b16 %v2830
        %v2873 = vunpack.c.l.b16 %v2831
        %v2874 = vunpack.c.l.b16 %v2832
        %v2875 = vunpack.c.l.b16 %v2833
        %v2876 = vunpack.c.l.b16 %v2834
        %v2877 = vunpack.c.l.b16 %v2835
        %v2878 = vunpack.c.l.b16 %v2836
        %v2879 = vpack.c.b16 %v2864, %v2863
        %v2880 = vpack.c.b16 %v2866, %v2865
        %v2881 = vpack.c.b16 %v2868, %v2867
        %v2882 = vpack.c.b16 %v2870, %v2869
        %v2883 = vpack.c.b16 %v2872, %v2871
        %v2884 = vpack.c.b16 %v2874, %v2873
        %v2885 = vpack.c.b16 %v2876, %v2875
        %v2886 = vpack.c.b16 %v2878, %v2877
        %2895 = vmatprep.subr.bf16.mxu0 0
        %2896 = vmatpush1.bf16.msra.mxu0 %v2886
        %2897 = vmatprep.subr.bf16.mxu0 0
        %2898 = vmatpush1.bf16.msra.mxu0 %v2885
        %2899 = vmatprep.subr.bf16.mxu0 0
        %2900 = vmatpush1.bf16.msra.mxu0 %v2884
        %2901 = vmatprep.subr.bf16.mxu0 0
        %2902 = vmatpush1.bf16.msra.mxu0 %v2883
        %2903 = vmatprep.subr.bf16.mxu0 0
        %2904 = vmatpush1.bf16.msra.mxu0 %v2882
        %2905 = vmatprep.subr.bf16.mxu0 0
        %2906 = vmatpush1.bf16.msra.mxu0 %v2881
        %2907 = vmatprep.subr.bf16.mxu0 0
        %2908 = vmatpush1.bf16.msra.mxu0 %v2880
        %2909 = vmatprep.subr.bf16.mxu0 0
        %2910 = vmatpush1.bf16.msra.mxu0 %v2879
        %2911 = vmatprep.subr.bf16.mxu0 0
        %2912 = vmatpush2.bf16.msra.mxu0 0
        %2913 = vmatprep.subr.bf16.mxu0 0
        %2914 = vmatpush2.bf16.msra.mxu0 0
        %2915 = vmatprep.subr.bf16.mxu0 0
        %2916 = vmatpush2.bf16.msra.mxu0 0
        %2917 = vmatprep.subr.bf16.mxu0 0
        %2918 = vmatpush2.bf16.msra.mxu0 0
        %2919 = vmatprep.subr.bf16.mxu0 0
        %2920 = vmatpush2.bf16.msra.mxu0 0
        %2921 = vmatprep.subr.bf16.mxu0 0
        %2922 = vmatpush2.bf16.msra.mxu0 0
        %2923 = vmatprep.subr.bf16.mxu0 0
        %2924 = vmatpush2.bf16.msra.mxu0 0
        %2925 = vmatprep.subr.bf16.mxu0 0
        %2926 = vmatpush2.bf16.msra.mxu0 0
        %2927 = vmatprep.mubr.bf16.mxu0 0
        %2928 = vmatmul.mubr.bf16.gmra.mxu0 %v2843
        %v2929 = vpop.f32.mrf.mxu0
        %v2930 = vadd.f32 0.0, %v2929
        %v2931 = vpop.f32.mrf.mxu0
        %v2932 = vpop.f32.mrf.mxu0
        %v2933 = vadd.f32 0.0, %v2932
        %v2934 = vpop.f32.mrf.mxu0
        %2935 = vmatprep.mubr.bf16.mxu0 0
        %2936 = vmatmul.mubr.bf16.gmra.mxu0 %v2844
        %v2937 = vpop.f32.mrf.mxu0
        %v2938 = vadd.f32 0.0, %v2937
        %v2939 = vpop.f32.mrf.mxu0
        %v2940 = vpop.f32.mrf.mxu0
        %v2941 = vpop.f32.mrf.mxu0
        %2942 = vdwg.mxu0
        %v2943 = vadd.f32 %v2810, %v2930
        %v2944 = vadd.f32 %v2811, %v2933
        %v2945 = vadd.f32 %v2812, %v2938
        %v2946 = vld [vmem:[%s2816 + $0x8] sm:$0x7]
        %s2947 = scalar_lea.vmem %s1, 1344
        %v2948 = vld [vmem:[%s2947] sm:$0xf]
        %v2949 = vld [vmem:[%s2947 + $0x4] sm:$0xf]
        %v2950 = vld [vmem:[%s2947 + $0x8] sm:$0xf]
        %v2951 = vld [vmem:[%s2947 + $0xc] sm:$0xf]
        %v2952 = vld [vmem:[%s2947 + $0x10] sm:$0xf]
        %v2953 = vld [vmem:[%s2947 + $0x14] sm:$0xf]
        %v2954 = vld [vmem:[%s2947 + $0x18] sm:$0xf]
        %v2955 = vld [vmem:[%s2947 + $0x1c] sm:$0xf]
        %v2956 = vld [vmem:[%s2947 + $0x20] sm:$0xf]
        %v2957 = vld [vmem:[%s2947 + $0x24] sm:$0xf]
        %v2958 = vld [vmem:[%s2947 + $0x28] sm:$0xf]
        %v2959 = vld [vmem:[%s2947 + $0x2c] sm:$0xf]
        %v2960 = vld [vmem:[%s2947 + $0x30] sm:$0xf]
        %v2961 = vld [vmem:[%s2947 + $0x34] sm:$0xf]
        %v2962 = vld [vmem:[%s2947 + $0x38] sm:$0xf]
        %v2963 = vld [vmem:[%s2947 + $0x3c] sm:$0xf]
        %v2965 = vunpack.c.l.b16 %v2946
        %v2966 = vpack.c.b16 %v2965, %v2965
        %v2968 = vshrl.u32 %v2843, 16
        %v2970 = vshll.u32 %v2843, 16
        %v2972 = vrot.slane %v2970, 1
        %v2973 = vor.u32 %v2968, %v2972
        %v2975 = vshll.u32 %v2966, 16
        %v2977 = vrot.slane %v2975, 1
        %v2978 = vsel %vm229, %v2973, %v2977
        %v2979 = vshrl.u32 %v2966, 16
        %v2981 = vor.u32 %v2979, %v2977
        %v3000 = vunpack.c.l.b16 %v2948
        %v3001 = vunpack.c.l.b16 %v2949
        %v3002 = vunpack.c.l.b16 %v2950
        %v3003 = vunpack.c.l.b16 %v2951
        %v3004 = vunpack.c.l.b16 %v2952
        %v3005 = vunpack.c.l.b16 %v2953
        %v3006 = vunpack.c.l.b16 %v2954
        %v3007 = vunpack.c.l.b16 %v2955
        %v3008 = vunpack.c.l.b16 %v2956
        %v3009 = vunpack.c.l.b16 %v2957
        %v3010 = vunpack.c.l.b16 %v2958
        %v3011 = vunpack.c.l.b16 %v2959
        %v3012 = vunpack.c.l.b16 %v2960
        %v3013 = vunpack.c.l.b16 %v2961
        %v3014 = vunpack.c.l.b16 %v2962
        %v3015 = vunpack.c.l.b16 %v2963
        %v3016 = vpack.c.b16 %v3001, %v3000
        %v3017 = vpack.c.b16 %v3003, %v3002
        %v3018 = vpack.c.b16 %v3005, %v3004
        %v3019 = vpack.c.b16 %v3007, %v3006
        %v3020 = vpack.c.b16 %v3009, %v3008
        %v3021 = vpack.c.b16 %v3011, %v3010
        %v3022 = vpack.c.b16 %v3013, %v3012
        %v3023 = vpack.c.b16 %v3015, %v3014
        %3032 = vmatprep.subr.bf16.mxu0 0
        %3033 = vmatpush1.bf16.msra.mxu0 %v3023
        %3034 = vmatprep.subr.bf16.mxu0 0
        %3035 = vmatpush1.bf16.msra.mxu0 %v3022
        %3036 = vmatprep.subr.bf16.mxu0 0
        %3037 = vmatpush1.bf16.msra.mxu0 %v3021
        %3038 = vmatprep.subr.bf16.mxu0 0
        %3039 = vmatpush1.bf16.msra.mxu0 %v3020
        %3040 = vmatprep.subr.bf16.mxu0 0
        %3041 = vmatpush1.bf16.msra.mxu0 %v3019
        %3042 = vmatprep.subr.bf16.mxu0 0
        %3043 = vmatpush1.bf16.msra.mxu0 %v3018
        %3044 = vmatprep.subr.bf16.mxu0 0
        %3045 = vmatpush1.bf16.msra.mxu0 %v3017
        %3046 = vmatprep.subr.bf16.mxu0 0
        %3047 = vmatpush1.bf16.msra.mxu0 %v3016
        %3048 = vmatprep.subr.bf16.mxu0 0
        %3049 = vmatpush2.bf16.msra.mxu0 0
        %3050 = vmatprep.subr.bf16.mxu0 0
        %3051 = vmatpush2.bf16.msra.mxu0 0
        %3052 = vmatprep.subr.bf16.mxu0 0
        %3053 = vmatpush2.bf16.msra.mxu0 0
        %3054 = vmatprep.subr.bf16.mxu0 0
        %3055 = vmatpush2.bf16.msra.mxu0 0
        %3056 = vmatprep.subr.bf16.mxu0 0
        %3057 = vmatpush2.bf16.msra.mxu0 0
        %3058 = vmatprep.subr.bf16.mxu0 0
        %3059 = vmatpush2.bf16.msra.mxu0 0
        %3060 = vmatprep.subr.bf16.mxu0 0
        %3061 = vmatpush2.bf16.msra.mxu0 0
        %3062 = vmatprep.subr.bf16.mxu0 0
        %3063 = vmatpush2.bf16.msra.mxu0 0
        %3064 = vmatprep.mubr.bf16.mxu0 0
        %3065 = vmatmul.mubr.bf16.gmra.mxu0 %v2978
        %v3066 = vpop.f32.mrf.mxu0
        %v3067 = vadd.f32 0.0, %v3066
        %v3068 = vpop.f32.mrf.mxu0
        %v3069 = vpop.f32.mrf.mxu0
        %v3070 = vadd.f32 0.0, %v3069
        %v3071 = vpop.f32.mrf.mxu0
        %3072 = vmatprep.mubr.bf16.mxu0 0
        %3073 = vmatmul.mubr.bf16.gmra.mxu0 %v2981
        %v3074 = vpop.f32.mrf.mxu0
        %v3075 = vadd.f32 0.0, %v3074
        %v3076 = vpop.f32.mrf.mxu0
        %v3077 = vpop.f32.mrf.mxu0
        %v3078 = vpop.f32.mrf.mxu0
        %3079 = vdwg.mxu0
        %v3080 = vadd.f32 %v2943, %v3067
        %v3081 = vadd.f32 %v2944, %v3070
        %v3082 = vadd.f32 %v2945, %v3075
        %v3083 = vld [vmem:[%s2816] sm:$0xe]
        %s3084 = scalar_lea.vmem %s1, 1408
        %v3085 = vld [vmem:[%s3084] sm:$0xf]
        %v3086 = vld [vmem:[%s3084 + $0x4] sm:$0xf]
        %v3087 = vld [vmem:[%s3084 + $0x8] sm:$0xf]
        %v3088 = vld [vmem:[%s3084 + $0xc] sm:$0xf]
        %v3089 = vld [vmem:[%s3084 + $0x10] sm:$0xf]
        %v3090 = vld [vmem:[%s3084 + $0x14] sm:$0xf]
        %v3091 = vld [vmem:[%s3084 + $0x18] sm:$0xf]
        %v3092 = vld [vmem:[%s3084 + $0x1c] sm:$0xf]
        %v3093 = vld [vmem:[%s3084 + $0x20] sm:$0xf]
        %v3094 = vld [vmem:[%s3084 + $0x24] sm:$0xf]
        %v3095 = vld [vmem:[%s3084 + $0x28] sm:$0xf]
        %v3096 = vld [vmem:[%s3084 + $0x2c] sm:$0xf]
        %v3097 = vld [vmem:[%s3084 + $0x30] sm:$0xf]
        %v3098 = vld [vmem:[%s3084 + $0x34] sm:$0xf]
        %v3099 = vld [vmem:[%s3084 + $0x38] sm:$0xf]
        %v3100 = vld [vmem:[%s3084 + $0x3c] sm:$0xf]
        %v3102 = vunpack.c.l.b16 %v3083
        %v3103 = vpack.c.b16 %v2841, %v3102
        %v3104 = vrot.slane %v3103, 1
        %v3105 = vrot.slane %v2966, 1
        %v3106 = vsel %vm465, %v3104, %v3105
        %v3125 = vunpack.c.l.b16 %v3085
        %v3126 = vunpack.c.l.b16 %v3086
        %v3127 = vunpack.c.l.b16 %v3087
        %v3128 = vunpack.c.l.b16 %v3088
        %v3129 = vunpack.c.l.b16 %v3089
        %v3130 = vunpack.c.l.b16 %v3090
        %v3131 = vunpack.c.l.b16 %v3091
        %v3132 = vunpack.c.l.b16 %v3092
        %v3133 = vunpack.c.l.b16 %v3093
        %v3134 = vunpack.c.l.b16 %v3094
        %v3135 = vunpack.c.l.b16 %v3095
        %v3136 = vunpack.c.l.b16 %v3096
        %v3137 = vunpack.c.l.b16 %v3097
        %v3138 = vunpack.c.l.b16 %v3098
        %v3139 = vunpack.c.l.b16 %v3099
        %v3140 = vunpack.c.l.b16 %v3100
        %v3141 = vpack.c.b16 %v3126, %v3125
        %v3142 = vpack.c.b16 %v3128, %v3127
        %v3143 = vpack.c.b16 %v3130, %v3129
        %v3144 = vpack.c.b16 %v3132, %v3131
        %v3145 = vpack.c.b16 %v3134, %v3133
        %v3146 = vpack.c.b16 %v3136, %v3135
        %v3147 = vpack.c.b16 %v3138, %v3137
        %v3148 = vpack.c.b16 %v3140, %v3139
        %3157 = vmatprep.subr.bf16.mxu0 0
        %3158 = vmatpush1.bf16.msra.mxu0 %v3148
        %3159 = vmatprep.subr.bf16.mxu0 0
        %3160 = vmatpush1.bf16.msra.mxu0 %v3147
        %3161 = vmatprep.subr.bf16.mxu0 0
        %3162 = vmatpush1.bf16.msra.mxu0 %v3146
        %3163 = vmatprep.subr.bf16.mxu0 0
        %3164 = vmatpush1.bf16.msra.mxu0 %v3145
        %3165 = vmatprep.subr.bf16.mxu0 0
        %3166 = vmatpush1.bf16.msra.mxu0 %v3144
        %3167 = vmatprep.subr.bf16.mxu0 0
        %3168 = vmatpush1.bf16.msra.mxu0 %v3143
        %3169 = vmatprep.subr.bf16.mxu0 0
        %3170 = vmatpush1.bf16.msra.mxu0 %v3142
        %3171 = vmatprep.subr.bf16.mxu0 0
        %3172 = vmatpush1.bf16.msra.mxu0 %v3141
        %3173 = vmatprep.subr.bf16.mxu0 0
        %3174 = vmatpush2.bf16.msra.mxu0 0
        %3175 = vmatprep.subr.bf16.mxu0 0
        %3176 = vmatpush2.bf16.msra.mxu0 0
        %3177 = vmatprep.subr.bf16.mxu0 0
        %3178 = vmatpush2.bf16.msra.mxu0 0
        %3179 = vmatprep.subr.bf16.mxu0 0
        %3180 = vmatpush2.bf16.msra.mxu0 0
        %3181 = vmatprep.subr.bf16.mxu0 0
        %3182 = vmatpush2.bf16.msra.mxu0 0
        %3183 = vmatprep.subr.bf16.mxu0 0
        %3184 = vmatpush2.bf16.msra.mxu0 0
        %3185 = vmatprep.subr.bf16.mxu0 0
        %3186 = vmatpush2.bf16.msra.mxu0 0
        %3187 = vmatprep.subr.bf16.mxu0 0
        %3188 = vmatpush2.bf16.msra.mxu0 0
        %3189 = vmatprep.mubr.bf16.mxu0 0
        %3190 = vmatmul.mubr.bf16.gmra.mxu0 %v3106
        %v3191 = vpop.f32.mrf.mxu0
        %v3192 = vadd.f32 0.0, %v3191
        %v3193 = vpop.f32.mrf.mxu0
        %v3194 = vpop.f32.mrf.mxu0
        %v3195 = vadd.f32 0.0, %v3194
        %v3196 = vpop.f32.mrf.mxu0
        %3197 = vmatprep.mubr.bf16.mxu0 0
        %3198 = vmatmul.mubr.bf16.gmra.mxu0 %v3105
        %v3199 = vpop.f32.mrf.mxu0
        %v3200 = vadd.f32 0.0, %v3199
        %v3201 = vpop.f32.mrf.mxu0
        %v3202 = vpop.f32.mrf.mxu0
        %v3203 = vpop.f32.mrf.mxu0
        %3204 = vdwg.mxu0
        %v3205 = vadd.f32 %v3080, %v3192
        %v3206 = vadd.f32 %v3081, %v3195
        %v3207 = vadd.f32 %v3082, %v3200
        %v3208 = vld [vmem:[%s2816 + $0x8] sm:$0xf]
        %s3209 = scalar_lea.vmem %s1, 1472
        %v3210 = vld [vmem:[%s3209] sm:$0xf]
        %v3211 = vld [vmem:[%s3209 + $0x4] sm:$0xf]
        %v3212 = vld [vmem:[%s3209 + $0x8] sm:$0xf]
        %v3213 = vld [vmem:[%s3209 + $0xc] sm:$0xf]
        %v3214 = vld [vmem:[%s3209 + $0x10] sm:$0xf]
        %v3215 = vld [vmem:[%s3209 + $0x14] sm:$0xf]
        %v3216 = vld [vmem:[%s3209 + $0x18] sm:$0xf]
        %v3217 = vld [vmem:[%s3209 + $0x1c] sm:$0xf]
        %v3218 = vld [vmem:[%s3209 + $0x20] sm:$0xf]
        %v3219 = vld [vmem:[%s3209 + $0x24] sm:$0xf]
        %v3220 = vld [vmem:[%s3209 + $0x28] sm:$0xf]
        %v3221 = vld [vmem:[%s3209 + $0x2c] sm:$0xf]
        %v3222 = vld [vmem:[%s3209 + $0x30] sm:$0xf]
        %v3223 = vld [vmem:[%s3209 + $0x34] sm:$0xf]
        %v3224 = vld [vmem:[%s3209 + $0x38] sm:$0xf]
        %v3225 = vld [vmem:[%s3209 + $0x3c] sm:$0xf]
        %v3227 = vunpack.c.l.b16 %v3208
        %v3228 = vpack.c.b16 %v3227, %v3227
        %v3230 = vshrl.u32 %v3103, 16
        %v3232 = vrot.slane %v3230, 1
        %v3233 = vshll.u32 %v3103, 16
        %v3235 = vrot.slane %v3233, 2
        %v3236 = vor.u32 %v3232, %v3235
        %v3238 = vshrl.u32 %v3228, 16
        %v3240 = vrot.slane %v3238, 1
        %v3241 = vshll.u32 %v3228, 16
        %v3243 = vrot.slane %v3241, 2
        %v3244 = vor.u32 %v3240, %v3243
        %v3245 = vsel %vm591, %v3236, %v3244
        %v3264 = vunpack.c.l.b16 %v3210
        %v3265 = vunpack.c.l.b16 %v3211
        %v3266 = vunpack.c.l.b16 %v3212
        %v3267 = vunpack.c.l.b16 %v3213
        %v3268 = vunpack.c.l.b16 %v3214
        %v3269 = vunpack.c.l.b16 %v3215
        %v3270 = vunpack.c.l.b16 %v3216
        %v3271 = vunpack.c.l.b16 %v3217
        %v3272 = vunpack.c.l.b16 %v3218
        %v3273 = vunpack.c.l.b16 %v3219
        %v3274 = vunpack.c.l.b16 %v3220
        %v3275 = vunpack.c.l.b16 %v3221
        %v3276 = vunpack.c.l.b16 %v3222
        %v3277 = vunpack.c.l.b16 %v3223
        %v3278 = vunpack.c.l.b16 %v3224
        %v3279 = vunpack.c.l.b16 %v3225
        %v3280 = vpack.c.b16 %v3265, %v3264
        %v3281 = vpack.c.b16 %v3267, %v3266
        %v3282 = vpack.c.b16 %v3269, %v3268
        %v3283 = vpack.c.b16 %v3271, %v3270
        %v3284 = vpack.c.b16 %v3273, %v3272
        %v3285 = vpack.c.b16 %v3275, %v3274
        %v3286 = vpack.c.b16 %v3277, %v3276
        %v3287 = vpack.c.b16 %v3279, %v3278
        %3296 = vmatprep.subr.bf16.mxu0 0
        %3297 = vmatpush1.bf16.msra.mxu0 %v3287
        %3298 = vmatprep.subr.bf16.mxu0 0
        %3299 = vmatpush1.bf16.msra.mxu0 %v3286
        %3300 = vmatprep.subr.bf16.mxu0 0
        %3301 = vmatpush1.bf16.msra.mxu0 %v3285
        %3302 = vmatprep.subr.bf16.mxu0 0
        %3303 = vmatpush1.bf16.msra.mxu0 %v3284
        %3304 = vmatprep.subr.bf16.mxu0 0
        %3305 = vmatpush1.bf16.msra.mxu0 %v3283
        %3306 = vmatprep.subr.bf16.mxu0 0
        %3307 = vmatpush1.bf16.msra.mxu0 %v3282
        %3308 = vmatprep.subr.bf16.mxu0 0
        %3309 = vmatpush1.bf16.msra.mxu0 %v3281
        %3310 = vmatprep.subr.bf16.mxu0 0
        %3311 = vmatpush1.bf16.msra.mxu0 %v3280
        %3312 = vmatprep.subr.bf16.mxu0 0
        %3313 = vmatpush2.bf16.msra.mxu0 0
        %3314 = vmatprep.subr.bf16.mxu0 0
        %3315 = vmatpush2.bf16.msra.mxu0 0
        %3316 = vmatprep.subr.bf16.mxu0 0
        %3317 = vmatpush2.bf16.msra.mxu0 0
        %3318 = vmatprep.subr.bf16.mxu0 0
        %3319 = vmatpush2.bf16.msra.mxu0 0
        %3320 = vmatprep.subr.bf16.mxu0 0
        %3321 = vmatpush2.bf16.msra.mxu0 0
        %3322 = vmatprep.subr.bf16.mxu0 0
        %3323 = vmatpush2.bf16.msra.mxu0 0
        %3324 = vmatprep.subr.bf16.mxu0 0
        %3325 = vmatpush2.bf16.msra.mxu0 0
        %3326 = vmatprep.subr.bf16.mxu0 0
        %3327 = vmatpush2.bf16.msra.mxu0 0
        %3328 = vmatprep.mubr.bf16.mxu0 0
        %3329 = vmatmul.mubr.bf16.gmra.mxu0 %v3245
        %v3330 = vpop.f32.mrf.mxu0
        %v3331 = vadd.f32 0.0, %v3330
        %v3332 = vpop.f32.mrf.mxu0
        %v3333 = vpop.f32.mrf.mxu0
        %v3334 = vadd.f32 0.0, %v3333
        %v3335 = vpop.f32.mrf.mxu0
        %3336 = vmatprep.mubr.bf16.mxu0 0
        %3337 = vmatmul.mubr.bf16.gmra.mxu0 %v3244
        %v3338 = vpop.f32.mrf.mxu0
        %v3339 = vadd.f32 0.0, %v3338
        %v3340 = vpop.f32.mrf.mxu0
        %v3341 = vpop.f32.mrf.mxu0
        %v3342 = vpop.f32.mrf.mxu0
        %3343 = vdwg.mxu0
        %v3344 = vadd.f32 %v3205, %v3331
        %v3345 = vadd.f32 %v3206, %v3334
        %v3346 = vadd.f32 %v3207, %v3339
        %v3347 = vld [vmem:[%s2816] sm:$0xc]
        %s3348 = scalar_lea.vmem %s1, 1536
        %v3349 = vld [vmem:[%s3348] sm:$0xf]
        %v3350 = vld [vmem:[%s3348 + $0x4] sm:$0xf]
        %v3351 = vld [vmem:[%s3348 + $0x8] sm:$0xf]
        %v3352 = vld [vmem:[%s3348 + $0xc] sm:$0xf]
        %v3353 = vld [vmem:[%s3348 + $0x10] sm:$0xf]
        %v3354 = vld [vmem:[%s3348 + $0x14] sm:$0xf]
        %v3355 = vld [vmem:[%s3348 + $0x18] sm:$0xf]
        %v3356 = vld [vmem:[%s3348 + $0x1c] sm:$0xf]
        %v3357 = vld [vmem:[%s3348 + $0x20] sm:$0xf]
        %v3358 = vld [vmem:[%s3348 + $0x24] sm:$0xf]
        %v3359 = vld [vmem:[%s3348 + $0x28] sm:$0xf]
        %v3360 = vld [vmem:[%s3348 + $0x2c] sm:$0xf]
        %v3361 = vld [vmem:[%s3348 + $0x30] sm:$0xf]
        %v3362 = vld [vmem:[%s3348 + $0x34] sm:$0xf]
        %v3363 = vld [vmem:[%s3348 + $0x38] sm:$0xf]
        %v3364 = vld [vmem:[%s3348 + $0x3c] sm:$0xf]
        %v3366 = vunpack.c.l.b16 %v3347
        %v3367 = vpack.c.b16 %v2841, %v3366
        %v3368 = vrot.slane %v3367, 2
        %v3369 = vrot.slane %v3228, 2
        %v3370 = vsel %vm731, %v3368, %v3369
        %v3389 = vunpack.c.l.b16 %v3349
        %v3390 = vunpack.c.l.b16 %v3350
        %v3391 = vunpack.c.l.b16 %v3351
        %v3392 = vunpack.c.l.b16 %v3352
        %v3393 = vunpack.c.l.b16 %v3353
        %v3394 = vunpack.c.l.b16 %v3354
        %v3395 = vunpack.c.l.b16 %v3355
        %v3396 = vunpack.c.l.b16 %v3356
        %v3397 = vunpack.c.l.b16 %v3357
        %v3398 = vunpack.c.l.b16 %v3358
        %v3399 = vunpack.c.l.b16 %v3359
        %v3400 = vunpack.c.l.b16 %v3360
        %v3401 = vunpack.c.l.b16 %v3361
        %v3402 = vunpack.c.l.b16 %v3362
        %v3403 = vunpack.c.l.b16 %v3363
        %v3404 = vunpack.c.l.b16 %v3364
        %v3405 = vpack.c.b16 %v3390, %v3389
        %v3406 = vpack.c.b16 %v3392, %v3391
        %v3407 = vpack.c.b16 %v3394, %v3393
        %v3408 = vpack.c.b16 %v3396, %v3395
        %v3409 = vpack.c.b16 %v3398, %v3397
        %v3410 = vpack.c.b16 %v3400, %v3399
        %v3411 = vpack.c.b16 %v3402, %v3401
        %v3412 = vpack.c.b16 %v3404, %v3403
        %3421 = vmatprep.subr.bf16.mxu0 0
        %3422 = vmatpush1.bf16.msra.mxu0 %v3412
        %3423 = vmatprep.subr.bf16.mxu0 0
        %3424 = vmatpush1.bf16.msra.mxu0 %v3411
        %3425 = vmatprep.subr.bf16.mxu0 0
        %3426 = vmatpush1.bf16.msra.mxu0 %v3410
        %3427 = vmatprep.subr.bf16.mxu0 0
        %3428 = vmatpush1.bf16.msra.mxu0 %v3409
        %3429 = vmatprep.subr.bf16.mxu0 0
        %3430 = vmatpush1.bf16.msra.mxu0 %v3408
        %3431 = vmatprep.subr.bf16.mxu0 0
        %3432 = vmatpush1.bf16.msra.mxu0 %v3407
        %3433 = vmatprep.subr.bf16.mxu0 0
        %3434 = vmatpush1.bf16.msra.mxu0 %v3406
        %3435 = vmatprep.subr.bf16.mxu0 0
        %3436 = vmatpush1.bf16.msra.mxu0 %v3405
        %3437 = vmatprep.subr.bf16.mxu0 0
        %3438 = vmatpush2.bf16.msra.mxu0 0
        %3439 = vmatprep.subr.bf16.mxu0 0
        %3440 = vmatpush2.bf16.msra.mxu0 0
        %3441 = vmatprep.subr.bf16.mxu0 0
        %3442 = vmatpush2.bf16.msra.mxu0 0
        %3443 = vmatprep.subr.bf16.mxu0 0
        %3444 = vmatpush2.bf16.msra.mxu0 0
        %3445 = vmatprep.subr.bf16.mxu0 0
        %3446 = vmatpush2.bf16.msra.mxu0 0
        %3447 = vmatprep.subr.bf16.mxu0 0
        %3448 = vmatpush2.bf16.msra.mxu0 0
        %3449 = vmatprep.subr.bf16.mxu0 0
        %3450 = vmatpush2.bf16.msra.mxu0 0
        %3451 = vmatprep.subr.bf16.mxu0 0
        %3452 = vmatpush2.bf16.msra.mxu0 0
        %3453 = vmatprep.mubr.bf16.mxu0 0
        %3454 = vmatmul.mubr.bf16.gmra.mxu0 %v3370
        %v3455 = vpop.f32.mrf.mxu0
        %v3456 = vadd.f32 0.0, %v3455
        %v3457 = vpop.f32.mrf.mxu0
        %v3458 = vpop.f32.mrf.mxu0
        %v3459 = vadd.f32 0.0, %v3458
        %v3460 = vpop.f32.mrf.mxu0
        %3461 = vmatprep.mubr.bf16.mxu0 0
        %3462 = vmatmul.mubr.bf16.gmra.mxu0 %v3369
        %v3463 = vpop.f32.mrf.mxu0
        %v3464 = vadd.f32 0.0, %v3463
        %v3465 = vpop.f32.mrf.mxu0
        %v3466 = vpop.f32.mrf.mxu0
        %v3467 = vpop.f32.mrf.mxu0
        %3468 = vdwg.mxu0
        %v3469 = vadd.f32 %v3344, %v3456
        %v3470 = vadd.f32 %v3345, %v3459
        %v3471 = vadd.f32 %v3346, %v3464
        %v3472 = vlaneseq
        %v3473 = vshrl.u32 %v3472, 7
        %v3474 = vsub.s32 0, %v3473
        %v3475 = vrot.slane %v172, %v3474
        %v3476 = vadd.f32 %v3469, %v3475
        %v3477 = vadd.f32 %v3470, %v3475
        %v3478 = vadd.f32 %v3471, %v3475
        %v3479 = vmax.f32 %v3476, 0.0
        %v3480 = vmax.f32 %v3477, 0.0
        %v3481 = vmax.f32 %v3478, 0.0
        %v3482 = vlaneseq
        %v3483 = vshrl.u32 %v3482, 7
        %v3484 = vsub.s32 0, %v3483
        %v3485 = vrot.slane %v173, %v3484
        %v3486 = vmul.f32 %v3479, %v3485
        %v3487 = vmul.f32 %v3480, %v3485
        %v3488 = vmul.f32 %v3481, %v3485
        %v3489 = vlaneseq
        %v3490 = vshrl.u32 %v3489, 7
        %v3491 = vsub.s32 0, %v3490
        %v3492 = vrot.slane %v174, %v3491
        %v3493 = vadd.f32 %v3486, %v3492
        %v3494 = vadd.f32 %v3487, %v3492
        %v3495 = vadd.f32 %v3488, %v3492
        %v3496 = vpack.c.bf16 %v3494, %v3493
        %v3497 = vpack.c.bf16 %v3495, %v3495
        %v3500 = vunpack.c.l.b16 %v3496
        %v3501 = vunpack.c.h.b16 %v3496
        %v3502 = vunpack.c.l.b16 %v3497
        %v3503 = vpack.c.b16 %v3500, %v3500
        %v3504 = vpack.c.b16 %v3501, %v3501
        %v3505 = vpack.c.b16 %v3502, %v3502
        %s3509 = smul.addr %s181, 4
        %s3510 = scalar_lea.vmem %s170, %s3509
        %3511 = vst [vmem:[%s3510] sm:$0xf] %v3503
        %3512 = vst [vmem:[%s3510 + $0x4] sm:$0xf] %v3504
        %3513 = vst [vmem:[%s3510 + $0x8] sm:$0x3] %v3505
      $region37: #{mnist_net_forward.6} parent=31 // loop_footer
        %s180 = sadd.s32 1, %s176
      $region38: #{mnist_net_forward.6} parent=31 // loop_footer_branch
        %175 = sbr.rel target = $region34
      $region39: #{mnist_net_forward.6} parent=31 // loop_exit
        _
      %p3514 = scmp.lt.s32.totalorder %s14, 1
      %s3515 = scalar_select %p3514, %s14, 1
      %s3516 = smul.addr %s3515, 60
      %s3517 = smul.addr %s3516, 4
      %s3518 = scalar_lea.vmem %s3, %s3517
      // Predicated region
      $region40: #{mnist_net_forward.6} parent=31 // pred_check
        %p3519 = pneg %p100
      $region41: #{mnist_net_forward.6} parent=31 // pred_check_branch
        %3521 = sbr.rel (%p3519) target = $region43
      $region42: #{mnist_net_forward.6} parent=31 // pred_region
        _
      $region43: #{mnist_net_forward.6} parent=31 // pred_fallthru
        _
    $region32: #{mnist_net_forward.6} parent=5 // pred_fallthru
      _
    %p3522 = scmp.le.s32.totalorder 2, %s9
    // Predicated region
    $region44: #{mnist_net_forward.6} parent=5 // pred_check
      %p3523 = pneg %p3522
    $region45: #{mnist_net_forward.6} parent=5 // pred_check_branch
      %3525 = sbr.rel (%p3523) target = $region47
    $region46: #{mnist_net_forward.6} parent=5 // pred_region
      %s3526 = ssub.s32 %s9, 2
      // Predicated region
      $region48: #{mnist_net_forward.6} parent=46 // pred_check
        %p3527 = pneg %p106
      $region49: #{mnist_net_forward.6} parent=46 // pred_check_branch
        %3529 = sbr.rel (%p3527) target = $region51
      $region50: #{mnist_net_forward.6} parent=46 // pred_region
        %p3530 = scmp.lt.s32.totalorder %s15, 1
        %s3531 = scalar_select %p3530, %s15, 1
        %s3532 = smul.addr %s3531, 60
        %s3533 = smul.addr %s3532, 4
        %s3534 = scalar_lea.vmem %s3, %s3533
      $region51: #{mnist_net_forward.6} parent=46 // pred_fallthru
        _
    $region47: #{mnist_net_forward.6} parent=5 // pred_fallthru
      _
  $region6: #{mnist_net_forward.6} parent=0 // loop_footer
    %s13 = sadd.s32 1, %s9
  $region7: #{mnist_net_forward.6} parent=0 // loop_footer_branch
    %8 = sbr.rel target = $region3
  $region8: #{mnist_net_forward.6} parent=0 // loop_exit
    _

// kernel: mnist_net_forward.7
$region0: #{mnist_net_forward.7}
  #allocation0 [shape = 'u32[]', space=smem, size = 0x4, offset = 0x4, fixed_abs, tag = 'smem constant byte address 0x4 - core index']
  #allocation1 [shape = 'u32[144,128]{1,0:T(1,128)}', space=vmem, size = 0x12000, scoped, tag = 'internal scratch']
  %s0 = inlined_call_operand.vmem [shape: bf16[2,10,10,128], index: 0, kind: input, shape index: {}]
  %s1 = inlined_call_operand.vmem [shape: bf16[9,128,128], index: 1, kind: input, shape index: {}]
  %s2 = inlined_call_operand.vmem [shape: f32[3,128], index: 2, kind: input, shape index: {}]
  %s3 = inlined_call_operand.vmem [shape: bf16[2,8,8,128], index: 3, kind: output, shape index: {}]
  %s4 = sld [smem:[#allocation0]]
  $region52: #{mnist_net_forward.7} parent=0
    _
  %s6 = ssub.s32 1, %s4
  %s7 = scalar_select 0, %s6, %s4
  loop: start=0, step=1, limit=4
  $region2: #{mnist_net_forward.7} parent=0 // loop_pre_header
    _
  $region3: #{mnist_net_forward.7} parent=0 // loop_header
    %s9 = sphi 0, %s13
    %p10 = scmp.ge.s32.totalorder %s9, 4
    %s19 = sphi 0, %s21
    %s22 = sphi 0, %s19
    %s23 = sphi 0, %s22
    %s39 = sphi 0, %s23
    %s43 = sphi 0, %s43
    %s45 = sphi 0, %s43
    %s46 = sphi 0, %s45
    %s60 = sphi 0, %s46
    %s64 = sphi 0, %s64
    %s66 = sphi 0, %s64
    %s67 = sphi 0, %s66
    %s81 = sphi 0, %s67
    %s87 = sphi 0, %s89
    %s90 = sphi 0, %s87
    %s91 = sphi 0, %s90
    %s107 = sphi 0, %s91
  $region4: #{mnist_net_forward.7} parent=0 // loop_header_branch
    %12 = sbr.rel (%p10) target = $region8
  $region5: #{mnist_net_forward.7} parent=0 // loop_body
    %s14 = ssub.s32 %s9, 1
    %s15 = ssub.s32 %s9, 2
    %s16 = sadd.s32 %s9, 1
    %s17 = ssub.s32 %s9, %s16
    %p18 = scmp.eq.s32.totalorder %s17, 0
    %s20 = sadd.s32 %s19, 1
    %s21 = scalar_select %p18, %s19, %s20
    %p24 = pneg %p18
    %p25 = scmp.eq.s32.totalorder %s9, 1
    %p26 = por %p24, %p25
    %p27 = scmp.ne.s32.totalorder %s19, %s22
    %p28 = scmp.eq.s32.totalorder %s9, 0
    %p29 = por %p27, %p28
    %p30 = scmp.ne.s32.totalorder %s19, %s22
    %p31 = scmp.eq.s32.totalorder %s14, 1
    %p32 = por %p30, %p31
    %p33 = scmp.ne.s32.totalorder %s22, %s23
    %p34 = scmp.eq.s32.totalorder %s14, 0
    %p35 = por %p33, %p34
    %p36 = scmp.ne.s32.totalorder %s22, %s23
    %p37 = scmp.eq.s32.totalorder %s15, 1
    %p38 = por %p36, %p37
    %p40 = scmp.ne.s32.totalorder %s23, %s39
    %p41 = scmp.eq.s32.totalorder %s15, 0
    %p42 = por %p40, %p41
    %s44 = sadd.s32 %s43, 1
    %p47 = scmp.eq.s32.totalorder %s9, 1
    %p48 = scmp.ne.s32.totalorder %s43, %s45
    %p49 = scmp.eq.s32.totalorder %s9, 0
    %p50 = por %p48, %p49
    %p51 = scmp.ne.s32.totalorder %s43, %s45
    %p52 = scmp.eq.s32.totalorder %s14, 1
    %p53 = por %p51, %p52
    %p54 = scmp.ne.s32.totalorder %s45, %s46
    %p55 = scmp.eq.s32.totalorder %s14, 0
    %p56 = por %p54, %p55
    %p57 = scmp.ne.s32.totalorder %s45, %s46
    %p58 = scmp.eq.s32.totalorder %s15, 1
    %p59 = por %p57, %p58
    %p61 = scmp.ne.s32.totalorder %s46, %s60
    %p62 = scmp.eq.s32.totalorder %s15, 0
    %p63 = por %p61, %p62
    %s65 = sadd.s32 %s64, 1
    %p68 = scmp.eq.s32.totalorder %s9, 1
    %p69 = scmp.ne.s32.totalorder %s64, %s66
    %p70 = scmp.eq.s32.totalorder %s9, 0
    %p71 = por %p69, %p70
    %p72 = scmp.ne.s32.totalorder %s64, %s66
    %p73 = scmp.eq.s32.totalorder %s14, 1
    %p74 = por %p72, %p73
    %p75 = scmp.ne.s32.totalorder %s66, %s67
    %p76 = scmp.eq.s32.totalorder %s14, 0
    %p77 = por %p75, %p76
    %p78 = scmp.ne.s32.totalorder %s66, %s67
    %p79 = scmp.eq.s32.totalorder %s15, 1
    %p80 = por %p78, %p79
    %p82 = scmp.ne.s32.totalorder %s67, %s81
    %p83 = scmp.eq.s32.totalorder %s15, 0
    %p84 = por %p82, %p83
    %s85 = ssub.s32 %s9, %s16
    %p86 = scmp.eq.s32.totalorder %s85, 0
    %s88 = sadd.s32 %s87, 1
    %s89 = scalar_select %p86, %s87, %s88
    %p92 = pneg %p86
    %p93 = scmp.eq.s32.totalorder %s9, 1
    %p94 = por %p92, %p93
    %p95 = scmp.ne.s32.totalorder %s87, %s90
    %p96 = scmp.eq.s32.totalorder %s9, 0
    %p97 = por %p95, %p96
    %p98 = scmp.ne.s32.totalorder %s87, %s90
    %p99 = scmp.eq.s32.totalorder %s14, 1
    %p100 = por %p98, %p99
    %p101 = scmp.ne.s32.totalorder %s90, %s91
    %p102 = scmp.eq.s32.totalorder %s14, 0
    %p103 = por %p101, %p102
    %p104 = scmp.ne.s32.totalorder %s90, %s91
    %p105 = scmp.eq.s32.totalorder %s15, 1
    %p106 = por %p104, %p105
    %p108 = scmp.ne.s32.totalorder %s91, %s107
    %p109 = scmp.eq.s32.totalorder %s15, 0
    %p110 = por %p108, %p109
    %p111 = scmp.le.s32.totalorder 1, %s9
    %p112 = scmp.lt.s32.totalorder %s9, 3
    %p113 = pnand %p111, %p112
    %p114 = pneg %p113
    // Predicated region
    $region9: #{mnist_net_forward.7} parent=5 // pred_check
      _
    $region10: #{mnist_net_forward.7} parent=5 // pred_check_branch
      %116 = sbr.rel (%p113) target = $region12
    $region11: #{mnist_net_forward.7} parent=5 // pred_region
      %s117 = ssub.s32 %s9, 1
      // Predicated region
      $region13: #{mnist_net_forward.7} parent=11 // pred_check
        %p118 = pneg %p56
      $region14: #{mnist_net_forward.7} parent=11 // pred_check_branch
        %120 = sbr.rel (%p118) target = $region16
      $region15: #{mnist_net_forward.7} parent=11 // pred_region
        _
      $region16: #{mnist_net_forward.7} parent=11 // pred_fallthru
        _
      // Predicated region
      $region17: #{mnist_net_forward.7} parent=11 // pred_check
        %p121 = pneg %p77
      $region18: #{mnist_net_forward.7} parent=11 // pred_check_branch
        %123 = sbr.rel (%p121) target = $region20
      $region19: #{mnist_net_forward.7} parent=11 // pred_region
        _
      $region20: #{mnist_net_forward.7} parent=11 // pred_fallthru
        _
    $region12: #{mnist_net_forward.7} parent=5 // pred_fallthru
      _
    %p124 = scmp.lt.s32.totalorder %s9, 2
    // Predicated region
    $region21: #{mnist_net_forward.7} parent=5 // pred_check
      %p125 = pneg %p124
    $region22: #{mnist_net_forward.7} parent=5 // pred_check_branch
      %127 = sbr.rel (%p125) target = $region24
    $region23: #{mnist_net_forward.7} parent=5 // pred_region
      // Predicated region
      $region25: #{mnist_net_forward.7} parent=23 // pred_check
        %p128 = pneg %p29
      $region26: #{mnist_net_forward.7} parent=23 // pred_check_branch
        %130 = sbr.rel (%p128) target = $region28
      $region27: #{mnist_net_forward.7} parent=23 // pred_region
        %p131 = scmp.lt.s32.totalorder %s9, 1
        %s132 = scalar_select %p131, %s9, 1
        %s133 = smul.addr %s132, 20
        %s134 = smul.addr %s133, 4
        %s135 = scalar_lea.vmem %s0, %s134
      $region28: #{mnist_net_forward.7} parent=23 // pred_fallthru
        _
    $region24: #{mnist_net_forward.7} parent=5 // pred_fallthru
      _
    %p136 = scmp.le.s32.totalorder 1, %s9
    %p137 = scmp.lt.s32.totalorder %s9, 3
    %p138 = pnand %p136, %p137
    %p139 = pneg %p138
    // Predicated region
    $region29: #{mnist_net_forward.7} parent=5 // pred_check
      _
    $region30: #{mnist_net_forward.7} parent=5 // pred_check_branch
      %141 = sbr.rel (%p138) target = $region32
    $region31: #{mnist_net_forward.7} parent=5 // pred_region
      %s142 = ssub.s32 %s9, 1
      %p143 = scmp.lt.s32.totalorder %s14, 1
      %s144 = scalar_select %p143, %s14, 1
      %s145 = smul.addr %s144, 20
      %s146 = smul.addr %s145, 4
      %s147 = scalar_lea.vmem %s0, %s146
      %p148 = pneg %p35
      %p149 = pneg %p32
      %p150 = pneg %p56
      %p151 = pneg %p53
      %p152 = pneg %p77
      %p153 = pneg %p74
      %p154 = pneg %p103
      %p155 = pneg %p100
      %p156 = scmp.lt.s32.totalorder %s14, 1
      %s157 = scalar_select %p156, %s14, 1
      %s158 = smul.addr %s157, 8
      %s159 = smul.addr %s158, 4
      %s160 = scalar_lea.vmem %s3, %s159
      %p161 = scmp.lt.s32.totalorder %s14, 1
      %s162 = scalar_select %p161, %s14, 1
      %s163 = smul.addr %s162, 20
      %s164 = smul.addr %s163, 4
      %s165 = scalar_lea.vmem %s0, %s164
      %p166 = scmp.lt.s32.totalorder %s14, 1
      %s167 = scalar_select %p166, %s14, 1
      %s168 = smul.addr %s167, 8
      %s169 = smul.addr %s168, 4
      %s170 = scalar_lea.vmem %s3, %s169
      %v172 = vld [vmem:[%s2] sm:$0x1]
      %v173 = vld [vmem:[%s2 + $0x1] sm:$0x1]
      %v174 = vld [vmem:[%s2 + $0x2] sm:$0x1]
      loop: start=0, step=1, limit=8
      $region33: #{mnist_net_forward.7} parent=31 // loop_pre_header
        _
      $region34: #{mnist_net_forward.7} parent=31 // loop_header
        %s176 = sphi 0, %s180
        %p177 = scmp.ge.s32.totalorder %s176, 8
      $region35: #{mnist_net_forward.7} parent=31 // loop_header_branch
        %179 = sbr.rel (%p177) target = $region39
      $region36: #{mnist_net_forward.7} parent=31 // loop_body
        %s181 = smul.u32 %s176, 2
        %s182 = smul.addr %s181, 4
        %s183 = scalar_lea.vmem %s165, %s182
        %v184 = vld [vmem:[%s183] sm:$0xf]
        %v185 = vld [vmem:[%s1] sm:$0xf]
        %v186 = vld [vmem:[%s1 + $0x4] sm:$0xf]
        %v187 = vld [vmem:[%s1 + $0x8] sm:$0xf]
        %v188 = vld [vmem:[%s1 + $0xc] sm:$0xf]
        %v189 = vld [vmem:[%s1 + $0x10] sm:$0xf]
        %v190 = vld [vmem:[%s1 + $0x14] sm:$0xf]
        %v191 = vld [vmem:[%s1 + $0x18] sm:$0xf]
        %v192 = vld [vmem:[%s1 + $0x1c] sm:$0xf]
        %v193 = vld [vmem:[%s1 + $0x20] sm:$0xf]
        %v194 = vld [vmem:[%s1 + $0x24] sm:$0xf]
        %v195 = vld [vmem:[%s1 + $0x28] sm:$0xf]
        %v196 = vld [vmem:[%s1 + $0x2c] sm:$0xf]
        %v197 = vld [vmem:[%s1 + $0x30] sm:$0xf]
        %v198 = vld [vmem:[%s1 + $0x34] sm:$0xf]
        %v199 = vld [vmem:[%s1 + $0x38] sm:$0xf]
        %v200 = vld [vmem:[%s1 + $0x3c] sm:$0xf]
        %v201 = vld [vmem:[%s183 + $0x4] sm:$0x1]
        %s202 = scalar_lea.vmem %s1, 64
        %v203 = vld [vmem:[%s202] sm:$0xf]
        %v204 = vld [vmem:[%s202 + $0x4] sm:$0xf]
        %v205 = vld [vmem:[%s202 + $0x8] sm:$0xf]
        %v206 = vld [vmem:[%s202 + $0xc] sm:$0xf]
        %v207 = vld [vmem:[%s202 + $0x10] sm:$0xf]
        %v208 = vld [vmem:[%s202 + $0x14] sm:$0xf]
        %v209 = vld [vmem:[%s202 + $0x18] sm:$0xf]
        %v210 = vld [vmem:[%s202 + $0x1c] sm:$0xf]
        %v211 = vld [vmem:[%s202 + $0x20] sm:$0xf]
        %v212 = vld [vmem:[%s202 + $0x24] sm:$0xf]
        %v213 = vld [vmem:[%s202 + $0x28] sm:$0xf]
        %v214 = vld [vmem:[%s202 + $0x2c] sm:$0xf]
        %v215 = vld [vmem:[%s202 + $0x30] sm:$0xf]
        %v216 = vld [vmem:[%s202 + $0x34] sm:$0xf]
        %v217 = vld [vmem:[%s202 + $0x38] sm:$0xf]
        %v218 = vld [vmem:[%s202 + $0x3c] sm:$0xf]
        %v221 = vunpack.c.l.b16 %v184
        %v222 = vunpack.c.l.b16 %v201
        %v223 = vpack.c.b16 %v222, %v221
        %v225 = vshrl.u32 %v223, 16
        %v227 = vshll.u32 %v223, 16
        %v229 = vrot.slane %v227, 1
        %v230 = vor.u32 %v225, %v229
        %v248 = vunpack.c.l.b16 %v203
        %v249 = vunpack.c.l.b16 %v204
        %v250 = vunpack.c.l.b16 %v205
        %v251 = vunpack.c.l.b16 %v206
        %v252 = vunpack.c.l.b16 %v207
        %v253 = vunpack.c.l.b16 %v208
        %v254 = vunpack.c.l.b16 %v209
        %v255 = vunpack.c.l.b16 %v210
        %v256 = vunpack.c.l.b16 %v211
        %v257 = vunpack.c.l.b16 %v212
        %v258 = vunpack.c.l.b16 %v213
        %v259 = vunpack.c.l.b16 %v214
        %v260 = vunpack.c.l.b16 %v215
        %v261 = vunpack.c.l.b16 %v216
        %v262 = vunpack.c.l.b16 %v217
        %v263 = vunpack.c.l.b16 %v218
        %v264 = vpack.c.b16 %v249, %v248
        %v265 = vpack.c.b16 %v251, %v250
        %v266 = vpack.c.b16 %v253, %v252
        %v267 = vpack.c.b16 %v255, %v254
        %v268 = vpack.c.b16 %v257, %v256
        %v269 = vpack.c.b16 %v259, %v258
        %v270 = vpack.c.b16 %v261, %v260
        %v271 = vpack.c.b16 %v263, %v262
        %280 = vmatprep.subr.bf16.mxu0 0
        %281 = vmatpush1.bf16.msra.mxu0 %v271
        %282 = vmatprep.subr.bf16.mxu0 0
        %283 = vmatpush1.bf16.msra.mxu0 %v270
        %284 = vmatprep.subr.bf16.mxu0 0
        %285 = vmatpush1.bf16.msra.mxu0 %v269
        %286 = vmatprep.subr.bf16.mxu0 0
        %287 = vmatpush1.bf16.msra.mxu0 %v268
        %288 = vmatprep.subr.bf16.mxu0 0
        %289 = vmatpush1.bf16.msra.mxu0 %v267
        %290 = vmatprep.subr.bf16.mxu0 0
        %291 = vmatpush1.bf16.msra.mxu0 %v266
        %292 = vmatprep.subr.bf16.mxu0 0
        %293 = vmatpush1.bf16.msra.mxu0 %v265
        %294 = vmatprep.subr.bf16.mxu0 0
        %295 = vmatpush1.bf16.msra.mxu0 %v264
        %296 = vmatprep.subr.bf16.mxu0 0
        %297 = vmatpush2.bf16.msra.mxu0 0
        %298 = vmatprep.subr.bf16.mxu0 0
        %299 = vmatpush2.bf16.msra.mxu0 0
        %300 = vmatprep.subr.bf16.mxu0 0
        %301 = vmatpush2.bf16.msra.mxu0 0
        %302 = vmatprep.subr.bf16.mxu0 0
        %303 = vmatpush2.bf16.msra.mxu0 0
        %304 = vmatprep.subr.bf16.mxu0 0
        %305 = vmatpush2.bf16.msra.mxu0 0
        %306 = vmatprep.subr.bf16.mxu0 0
        %307 = vmatpush2.bf16.msra.mxu0 0
        %308 = vmatprep.subr.bf16.mxu0 0
        %309 = vmatpush2.bf16.msra.mxu0 0
        %310 = vmatprep.subr.bf16.mxu0 0
        %311 = vmatpush2.bf16.msra.mxu0 0
        %312 = vmatprep.mubr.bf16.mxu0 0
        %313 = vmatmul.mubr.bf16.gmra.mxu0 %v230
        %v314 = vpop.f32.mrf.mxu0
        %v315 = vadd.f32 0.0, %v314
        %v316 = vpop.f32.mrf.mxu0
        %v317 = vpop.f32.mrf.mxu0
        %v318 = vpop.f32.mrf.mxu0
        %319 = vdwg.mxu0
        %v336 = vunpack.c.l.b16 %v185
        %v337 = vunpack.c.l.b16 %v186
        %v338 = vunpack.c.l.b16 %v187
        %v339 = vunpack.c.l.b16 %v188
        %v340 = vunpack.c.l.b16 %v189
        %v341 = vunpack.c.l.b16 %v190
        %v342 = vunpack.c.l.b16 %v191
        %v343 = vunpack.c.l.b16 %v192
        %v344 = vunpack.c.l.b16 %v193
        %v345 = vunpack.c.l.b16 %v194
        %v346 = vunpack.c.l.b16 %v195
        %v347 = vunpack.c.l.b16 %v196
        %v348 = vunpack.c.l.b16 %v197
        %v349 = vunpack.c.l.b16 %v198
        %v350 = vunpack.c.l.b16 %v199
        %v351 = vunpack.c.l.b16 %v200
        %v352 = vpack.c.b16 %v337, %v336
        %v353 = vpack.c.b16 %v339, %v338
        %v354 = vpack.c.b16 %v341, %v340
        %v355 = vpack.c.b16 %v343, %v342
        %v356 = vpack.c.b16 %v345, %v344
        %v357 = vpack.c.b16 %v347, %v346
        %v358 = vpack.c.b16 %v349, %v348
        %v359 = vpack.c.b16 %v351, %v350
        %368 = vmatprep.subr.bf16.mxu0 0
        %369 = vmatpush1.bf16.msra.mxu0 %v359
        %370 = vmatprep.subr.bf16.mxu0 0
        %371 = vmatpush1.bf16.msra.mxu0 %v358
        %372 = vmatprep.subr.bf16.mxu0 0
        %373 = vmatpush1.bf16.msra.mxu0 %v357
        %374 = vmatprep.subr.bf16.mxu0 0
        %375 = vmatpush1.bf16.msra.mxu0 %v356
        %376 = vmatprep.subr.bf16.mxu0 0
        %377 = vmatpush1.bf16.msra.mxu0 %v355
        %378 = vmatprep.subr.bf16.mxu0 0
        %379 = vmatpush1.bf16.msra.mxu0 %v354
        %380 = vmatprep.subr.bf16.mxu0 0
        %381 = vmatpush1.bf16.msra.mxu0 %v353
        %382 = vmatprep.subr.bf16.mxu0 0
        %383 = vmatpush1.bf16.msra.mxu0 %v352
        %384 = vmatprep.subr.bf16.mxu0 0
        %385 = vmatpush2.bf16.msra.mxu0 0
        %386 = vmatprep.subr.bf16.mxu0 0
        %387 = vmatpush2.bf16.msra.mxu0 0
        %388 = vmatprep.subr.bf16.mxu0 0
        %389 = vmatpush2.bf16.msra.mxu0 0
        %390 = vmatprep.subr.bf16.mxu0 0
        %391 = vmatpush2.bf16.msra.mxu0 0
        %392 = vmatprep.subr.bf16.mxu0 0
        %393 = vmatpush2.bf16.msra.mxu0 0
        %394 = vmatprep.subr.bf16.mxu0 0
        %395 = vmatpush2.bf16.msra.mxu0 0
        %396 = vmatprep.subr.bf16.mxu0 0
        %397 = vmatpush2.bf16.msra.mxu0 0
        %398 = vmatprep.subr.bf16.mxu0 0
        %399 = vmatpush2.bf16.msra.mxu0 0
        %400 = vmatprep.mubr.bf16.mxu0 0
        %401 = vmatmul.mubr.bf16.gmra.mxu0 %v184
        %v402 = vpop.f32.mrf.mxu0
        %v403 = vadd.f32 %v315, %v402
        %v404 = vpop.f32.mrf.mxu0
        %v405 = vpop.f32.mrf.mxu0
        %v406 = vpop.f32.mrf.mxu0
        %407 = vdwg.mxu0
        %v408 = vld [vmem:[%s183] sm:$0xe]
        %s409 = scalar_lea.vmem %s1, 128
        %v410 = vld [vmem:[%s409] sm:$0xf]
        %v411 = vld [vmem:[%s409 + $0x4] sm:$0xf]
        %v412 = vld [vmem:[%s409 + $0x8] sm:$0xf]
        %v413 = vld [vmem:[%s409 + $0xc] sm:$0xf]
        %v414 = vld [vmem:[%s409 + $0x10] sm:$0xf]
        %v415 = vld [vmem:[%s409 + $0x14] sm:$0xf]
        %v416 = vld [vmem:[%s409 + $0x18] sm:$0xf]
        %v417 = vld [vmem:[%s409 + $0x1c] sm:$0xf]
        %v418 = vld [vmem:[%s409 + $0x20] sm:$0xf]
        %v419 = vld [vmem:[%s409 + $0x24] sm:$0xf]
        %v420 = vld [vmem:[%s409 + $0x28] sm:$0xf]
        %v421 = vld [vmem:[%s409 + $0x2c] sm:$0xf]
        %v422 = vld [vmem:[%s409 + $0x30] sm:$0xf]
        %v423 = vld [vmem:[%s409 + $0x34] sm:$0xf]
        %v424 = vld [vmem:[%s409 + $0x38] sm:$0xf]
        %v425 = vld [vmem:[%s409 + $0x3c] sm:$0xf]
        %v427 = vunpack.c.l.b16 %v408
        %v428 = vpack.c.b16 %v222, %v427
        %v429 = vrot.slane %v428, 1
        %v447 = vunpack.c.l.b16 %v410
        %v448 = vunpack.c.l.b16 %v411
        %v449 = vunpack.c.l.b16 %v412
        %v450 = vunpack.c.l.b16 %v413
        %v451 = vunpack.c.l.b16 %v414
        %v452 = vunpack.c.l.b16 %v415
        %v453 = vunpack.c.l.b16 %v416
        %v454 = vunpack.c.l.b16 %v417
        %v455 = vunpack.c.l.b16 %v418
        %v456 = vunpack.c.l.b16 %v419
        %v457 = vunpack.c.l.b16 %v420
        %v458 = vunpack.c.l.b16 %v421
        %v459 = vunpack.c.l.b16 %v422
        %v460 = vunpack.c.l.b16 %v423
        %v461 = vunpack.c.l.b16 %v424
        %v462 = vunpack.c.l.b16 %v425
        %v463 = vpack.c.b16 %v448, %v447
        %v464 = vpack.c.b16 %v450, %v449
        %v465 = vpack.c.b16 %v452, %v451
        %v466 = vpack.c.b16 %v454, %v453
        %v467 = vpack.c.b16 %v456, %v455
        %v468 = vpack.c.b16 %v458, %v457
        %v469 = vpack.c.b16 %v460, %v459
        %v470 = vpack.c.b16 %v462, %v461
        %479 = vmatprep.subr.bf16.mxu0 0
        %480 = vmatpush1.bf16.msra.mxu0 %v470
        %481 = vmatprep.subr.bf16.mxu0 0
        %482 = vmatpush1.bf16.msra.mxu0 %v469
        %483 = vmatprep.subr.bf16.mxu0 0
        %484 = vmatpush1.bf16.msra.mxu0 %v468
        %485 = vmatprep.subr.bf16.mxu0 0
        %486 = vmatpush1.bf16.msra.mxu0 %v467
        %487 = vmatprep.subr.bf16.mxu0 0
        %488 = vmatpush1.bf16.msra.mxu0 %v466
        %489 = vmatprep.subr.bf16.mxu0 0
        %490 = vmatpush1.bf16.msra.mxu0 %v465
        %491 = vmatprep.subr.bf16.mxu0 0
        %492 = vmatpush1.bf16.msra.mxu0 %v464
        %493 = vmatprep.subr.bf16.mxu0 0
        %494 = vmatpush1.bf16.msra.mxu0 %v463
        %495 = vmatprep.subr.bf16.mxu0 0
        %496 = vmatpush2.bf16.msra.mxu0 0
        %497 = vmatprep.subr.bf16.mxu0 0
        %498 = vmatpush2.bf16.msra.mxu0 0
        %499 = vmatprep.subr.bf16.mxu0 0
        %500 = vmatpush2.bf16.msra.mxu0 0
        %501 = vmatprep.subr.bf16.mxu0 0
        %502 = vmatpush2.bf16.msra.mxu0 0
        %503 = vmatprep.subr.bf16.mxu0 0
        %504 = vmatpush2.bf16.msra.mxu0 0
        %505 = vmatprep.subr.bf16.mxu0 0
        %506 = vmatpush2.bf16.msra.mxu0 0
        %507 = vmatprep.subr.bf16.mxu0 0
        %508 = vmatpush2.bf16.msra.mxu0 0
        %509 = vmatprep.subr.bf16.mxu0 0
        %510 = vmatpush2.bf16.msra.mxu0 0
        %511 = vmatprep.mubr.bf16.mxu0 0
        %512 = vmatmul.mubr.bf16.gmra.mxu0 %v429
        %v513 = vpop.f32.mrf.mxu0
        %v514 = vadd.f32 0.0, %v513
        %v515 = vpop.f32.mrf.mxu0
        %v516 = vpop.f32.mrf.mxu0
        %v517 = vpop.f32.mrf.mxu0
        %518 = vdwg.mxu0
        %v519 = vadd.f32 %v403, %v514
        %s520 = sadd.s32 %s176, 1
        %s521 = smul.u32 %s520, 2
        %s522 = smul.addr %s521, 4
        %s523 = scalar_lea.vmem %s165, %s522
        %v524 = vld [vmem:[%s523] sm:$0xf]
        %s525 = scalar_lea.vmem %s1, 192
        %v526 = vld [vmem:[%s525] sm:$0xf]
        %v527 = vld [vmem:[%s525 + $0x4] sm:$0xf]
        %v528 = vld [vmem:[%s525 + $0x8] sm:$0xf]
        %v529 = vld [vmem:[%s525 + $0xc] sm:$0xf]
        %v530 = vld [vmem:[%s525 + $0x10] sm:$0xf]
        %v531 = vld [vmem:[%s525 + $0x14] sm:$0xf]
        %v532 = vld [vmem:[%s525 + $0x18] sm:$0xf]
        %v533 = vld [vmem:[%s525 + $0x1c] sm:$0xf]
        %v534 = vld [vmem:[%s525 + $0x20] sm:$0xf]
        %v535 = vld [vmem:[%s525 + $0x24] sm:$0xf]
        %v536 = vld [vmem:[%s525 + $0x28] sm:$0xf]
        %v537 = vld [vmem:[%s525 + $0x2c] sm:$0xf]
        %v538 = vld [vmem:[%s525 + $0x30] sm:$0xf]
        %v539 = vld [vmem:[%s525 + $0x34] sm:$0xf]
        %v540 = vld [vmem:[%s525 + $0x38] sm:$0xf]
        %v541 = vld [vmem:[%s525 + $0x3c] sm:$0xf]
        %v558 = vunpack.c.l.b16 %v526
        %v559 = vunpack.c.l.b16 %v527
        %v560 = vunpack.c.l.b16 %v528
        %v561 = vunpack.c.l.b16 %v529
        %v562 = vunpack.c.l.b16 %v530
        %v563 = vunpack.c.l.b16 %v531
        %v564 = vunpack.c.l.b16 %v532
        %v565 = vunpack.c.l.b16 %v533
        %v566 = vunpack.c.l.b16 %v534
        %v567 = vunpack.c.l.b16 %v535
        %v568 = vunpack.c.l.b16 %v536
        %v569 = vunpack.c.l.b16 %v537
        %v570 = vunpack.c.l.b16 %v538
        %v571 = vunpack.c.l.b16 %v539
        %v572 = vunpack.c.l.b16 %v540
        %v573 = vunpack.c.l.b16 %v541
        %v574 = vpack.c.b16 %v559, %v558
        %v575 = vpack.c.b16 %v561, %v560
        %v576 = vpack.c.b16 %v563, %v562
        %v577 = vpack.c.b16 %v565, %v564
        %v578 = vpack.c.b16 %v567, %v566
        %v579 = vpack.c.b16 %v569, %v568
        %v580 = vpack.c.b16 %v571, %v570
        %v581 = vpack.c.b16 %v573, %v572
        %590 = vmatprep.subr.bf16.mxu0 0
        %591 = vmatpush1.bf16.msra.mxu0 %v581
        %592 = vmatprep.subr.bf16.mxu0 0
        %593 = vmatpush1.bf16.msra.mxu0 %v580
        %594 = vmatprep.subr.bf16.mxu0 0
        %595 = vmatpush1.bf16.msra.mxu0 %v579
        %596 = vmatprep.subr.bf16.mxu0 0
        %597 = vmatpush1.bf16.msra.mxu0 %v578
        %598 = vmatprep.subr.bf16.mxu0 0
        %599 = vmatpush1.bf16.msra.mxu0 %v577
        %600 = vmatprep.subr.bf16.mxu0 0
        %601 = vmatpush1.bf16.msra.mxu0 %v576
        %602 = vmatprep.subr.bf16.mxu0 0
        %603 = vmatpush1.bf16.msra.mxu0 %v575
        %604 = vmatprep.subr.bf16.mxu0 0
        %605 = vmatpush1.bf16.msra.mxu0 %v574
        %606 = vmatprep.subr.bf16.mxu0 0
        %607 = vmatpush2.bf16.msra.mxu0 0
        %608 = vmatprep.subr.bf16.mxu0 0
        %609 = vmatpush2.bf16.msra.mxu0 0
        %610 = vmatprep.subr.bf16.mxu0 0
        %611 = vmatpush2.bf16.msra.mxu0 0
        %612 = vmatprep.subr.bf16.mxu0 0
        %613 = vmatpush2.bf16.msra.mxu0 0
        %614 = vmatprep.subr.bf16.mxu0 0
        %615 = vmatpush2.bf16.msra.mxu0 0
        %616 = vmatprep.subr.bf16.mxu0 0
        %617 = vmatpush2.bf16.msra.mxu0 0
        %618 = vmatprep.subr.bf16.mxu0 0
        %619 = vmatpush2.bf16.msra.mxu0 0
        %620 = vmatprep.subr.bf16.mxu0 0
        %621 = vmatpush2.bf16.msra.mxu0 0
        %622 = vmatprep.mubr.bf16.mxu0 0
        %623 = vmatmul.mubr.bf16.gmra.mxu0 %v524
        %v624 = vpop.f32.mrf.mxu0
        %v625 = vadd.f32 0.0, %v624
        %v626 = vpop.f32.mrf.mxu0
        %v627 = vpop.f32.mrf.mxu0
        %v628 = vpop.f32.mrf.mxu0
        %629 = vdwg.mxu0
        %v630 = vadd.f32 %v519, %v625
        %v631 = vld [vmem:[%s523] sm:$0xf]
        %v632 = vld [vmem:[%s523 + $0x4] sm:$0x1]
        %s633 = scalar_lea.vmem %s1, 256
        %v634 = vld [vmem:[%s633] sm:$0xf]
        %v635 = vld [vmem:[%s633 + $0x4] sm:$0xf]
        %v636 = vld [vmem:[%s633 + $0x8] sm:$0xf]
        %v637 = vld [vmem:[%s633 + $0xc] sm:$0xf]
        %v638 = vld [vmem:[%s633 + $0x10] sm:$0xf]
        %v639 = vld [vmem:[%s633 + $0x14] sm:$0xf]
        %v640 = vld [vmem:[%s633 + $0x18] sm:$0xf]
        %v641 = vld [vmem:[%s633 + $0x1c] sm:$0xf]
        %v642 = vld [vmem:[%s633 + $0x20] sm:$0xf]
        %v643 = vld [vmem:[%s633 + $0x24] sm:$0xf]
        %v644 = vld [vmem:[%s633 + $0x28] sm:$0xf]
        %v645 = vld [vmem:[%s633 + $0x2c] sm:$0xf]
        %v646 = vld [vmem:[%s633 + $0x30] sm:$0xf]
        %v647 = vld [vmem:[%s633 + $0x34] sm:$0xf]
        %v648 = vld [vmem:[%s633 + $0x38] sm:$0xf]
        %v649 = vld [vmem:[%s633 + $0x3c] sm:$0xf]
        %v652 = vunpack.c.l.b16 %v631
        %v653 = vunpack.c.l.b16 %v632
        %v654 = vpack.c.b16 %v653, %v652
        %v656 = vshrl.u32 %v654, 16
        %v658 = vshll.u32 %v654, 16
        %v660 = vrot.slane %v658, 1
        %v661 = vor.u32 %v656, %v660
        %v679 = vunpack.c.l.b16 %v634
        %v680 = vunpack.c.l.b16 %v635
        %v681 = vunpack.c.l.b16 %v636
        %v682 = vunpack.c.l.b16 %v637
        %v683 = vunpack.c.l.b16 %v638
        %v684 = vunpack.c.l.b16 %v639
        %v685 = vunpack.c.l.b16 %v640
        %v686 = vunpack.c.l.b16 %v641
        %v687 = vunpack.c.l.b16 %v642
        %v688 = vunpack.c.l.b16 %v643
        %v689 = vunpack.c.l.b16 %v644
        %v690 = vunpack.c.l.b16 %v645
        %v691 = vunpack.c.l.b16 %v646
        %v692 = vunpack.c.l.b16 %v647
        %v693 = vunpack.c.l.b16 %v648
        %v694 = vunpack.c.l.b16 %v649
        %v695 = vpack.c.b16 %v680, %v679
        %v696 = vpack.c.b16 %v682, %v681
        %v697 = vpack.c.b16 %v684, %v683
        %v698 = vpack.c.b16 %v686, %v685
        %v699 = vpack.c.b16 %v688, %v687
        %v700 = vpack.c.b16 %v690, %v689
        %v701 = vpack.c.b16 %v692, %v691
        %v702 = vpack.c.b16 %v694, %v693
        %711 = vmatprep.subr.bf16.mxu0 0
        %712 = vmatpush1.bf16.msra.mxu0 %v702
        %713 = vmatprep.subr.bf16.mxu0 0
        %714 = vmatpush1.bf16.msra.mxu0 %v701
        %715 = vmatprep.subr.bf16.mxu0 0
        %716 = vmatpush1.bf16.msra.mxu0 %v700
        %717 = vmatprep.subr.bf16.mxu0 0
        %718 = vmatpush1.bf16.msra.mxu0 %v699
        %719 = vmatprep.subr.bf16.mxu0 0
        %720 = vmatpush1.bf16.msra.mxu0 %v698
        %721 = vmatprep.subr.bf16.mxu0 0
        %722 = vmatpush1.bf16.msra.mxu0 %v697
        %723 = vmatprep.subr.bf16.mxu0 0
        %724 = vmatpush1.bf16.msra.mxu0 %v696
        %725 = vmatprep.subr.bf16.mxu0 0
        %726 = vmatpush1.bf16.msra.mxu0 %v695
        %727 = vmatprep.subr.bf16.mxu0 0
        %728 = vmatpush2.bf16.msra.mxu0 0
        %729 = vmatprep.subr.bf16.mxu0 0
        %730 = vmatpush2.bf16.msra.mxu0 0
        %731 = vmatprep.subr.bf16.mxu0 0
        %732 = vmatpush2.bf16.msra.mxu0 0
        %733 = vmatprep.subr.bf16.mxu0 0
        %734 = vmatpush2.bf16.msra.mxu0 0
        %735 = vmatprep.subr.bf16.mxu0 0
        %736 = vmatpush2.bf16.msra.mxu0 0
        %737 = vmatprep.subr.bf16.mxu0 0
        %738 = vmatpush2.bf16.msra.mxu0 0
        %739 = vmatprep.subr.bf16.mxu0 0
        %740 = vmatpush2.bf16.msra.mxu0 0
        %741 = vmatprep.subr.bf16.mxu0 0
        %742 = vmatpush2.bf16.msra.mxu0 0
        %743 = vmatprep.mubr.bf16.mxu0 0
        %744 = vmatmul.mubr.bf16.gmra.mxu0 %v661
        %v745 = vpop.f32.mrf.mxu0
        %v746 = vadd.f32 0.0, %v745
        %v747 = vpop.f32.mrf.mxu0
        %v748 = vpop.f32.mrf.mxu0
        %v749 = vpop.f32.mrf.mxu0
        %750 = vdwg.mxu0
        %v751 = vadd.f32 %v630, %v746
        %v752 = vld [vmem:[%s523] sm:$0xe]
        %s753 = scalar_lea.vmem %s1, 320
        %v754 = vld [vmem:[%s753] sm:$0xf]
        %v755 = vld [vmem:[%s753 + $0x4] sm:$0xf]
        %v756 = vld [vmem:[%s753 + $0x8] sm:$0xf]
        %v757 = vld [vmem:[%s753 + $0xc] sm:$0xf]
        %v758 = vld [vmem:[%s753 + $0x10] sm:$0xf]
        %v759 = vld [vmem:[%s753 + $0x14] sm:$0xf]
        %v760 = vld [vmem:[%s753 + $0x18] sm:$0xf]
        %v761 = vld [vmem:[%s753 + $0x1c] sm:$0xf]
        %v762 = vld [vmem:[%s753 + $0x20] sm:$0xf]
        %v763 = vld [vmem:[%s753 + $0x24] sm:$0xf]
        %v764 = vld [vmem:[%s753 + $0x28] sm:$0xf]
        %v765 = vld [vmem:[%s753 + $0x2c] sm:$0xf]
        %v766 = vld [vmem:[%s753 + $0x30] sm:$0xf]
        %v767 = vld [vmem:[%s753 + $0x34] sm:$0xf]
        %v768 = vld [vmem:[%s753 + $0x38] sm:$0xf]
        %v769 = vld [vmem:[%s753 + $0x3c] sm:$0xf]
        %v771 = vunpack.c.l.b16 %v752
        %v772 = vpack.c.b16 %v653, %v771
        %v773 = vrot.slane %v772, 1
        %v791 = vunpack.c.l.b16 %v754
        %v792 = vunpack.c.l.b16 %v755
        %v793 = vunpack.c.l.b16 %v756
        %v794 = vunpack.c.l.b16 %v757
        %v795 = vunpack.c.l.b16 %v758
        %v796 = vunpack.c.l.b16 %v759
        %v797 = vunpack.c.l.b16 %v760
        %v798 = vunpack.c.l.b16 %v761
        %v799 = vunpack.c.l.b16 %v762
        %v800 = vunpack.c.l.b16 %v763
        %v801 = vunpack.c.l.b16 %v764
        %v802 = vunpack.c.l.b16 %v765
        %v803 = vunpack.c.l.b16 %v766
        %v804 = vunpack.c.l.b16 %v767
        %v805 = vunpack.c.l.b16 %v768
        %v806 = vunpack.c.l.b16 %v769
        %v807 = vpack.c.b16 %v792, %v791
        %v808 = vpack.c.b16 %v794, %v793
        %v809 = vpack.c.b16 %v796, %v795
        %v810 = vpack.c.b16 %v798, %v797
        %v811 = vpack.c.b16 %v800, %v799
        %v812 = vpack.c.b16 %v802, %v801
        %v813 = vpack.c.b16 %v804, %v803
        %v814 = vpack.c.b16 %v806, %v805
        %823 = vmatprep.subr.bf16.mxu0 0
        %824 = vmatpush1.bf16.msra.mxu0 %v814
        %825 = vmatprep.subr.bf16.mxu0 0
        %826 = vmatpush1.bf16.msra.mxu0 %v813
        %827 = vmatprep.subr.bf16.mxu0 0
        %828 = vmatpush1.bf16.msra.mxu0 %v812
        %829 = vmatprep.subr.bf16.mxu0 0
        %830 = vmatpush1.bf16.msra.mxu0 %v811
        %831 = vmatprep.subr.bf16.mxu0 0
        %832 = vmatpush1.bf16.msra.mxu0 %v810
        %833 = vmatprep.subr.bf16.mxu0 0
        %834 = vmatpush1.bf16.msra.mxu0 %v809
        %835 = vmatprep.subr.bf16.mxu0 0
        %836 = vmatpush1.bf16.msra.mxu0 %v808
        %837 = vmatprep.subr.bf16.mxu0 0
        %838 = vmatpush1.bf16.msra.mxu0 %v807
        %839 = vmatprep.subr.bf16.mxu0 0
        %840 = vmatpush2.bf16.msra.mxu0 0
        %841 = vmatprep.subr.bf16.mxu0 0
        %842 = vmatpush2.bf16.msra.mxu0 0
        %843 = vmatprep.subr.bf16.mxu0 0
        %844 = vmatpush2.bf16.msra.mxu0 0
        %845 = vmatprep.subr.bf16.mxu0 0
        %846 = vmatpush2.bf16.msra.mxu0 0
        %847 = vmatprep.subr.bf16.mxu0 0
        %848 = vmatpush2.bf16.msra.mxu0 0
        %849 = vmatprep.subr.bf16.mxu0 0
        %850 = vmatpush2.bf16.msra.mxu0 0
        %851 = vmatprep.subr.bf16.mxu0 0
        %852 = vmatpush2.bf16.msra.mxu0 0
        %853 = vmatprep.subr.bf16.mxu0 0
        %854 = vmatpush2.bf16.msra.mxu0 0
        %855 = vmatprep.mubr.bf16.mxu0 0
        %856 = vmatmul.mubr.bf16.gmra.mxu0 %v773
        %v857 = vpop.f32.mrf.mxu0
        %v858 = vadd.f32 0.0, %v857
        %v859 = vpop.f32.mrf.mxu0
        %v860 = vpop.f32.mrf.mxu0
        %v861 = vpop.f32.mrf.mxu0
        %862 = vdwg.mxu0
        %v863 = vadd.f32 %v751, %v858
        %s864 = sadd.s32 %s176, 2
        %s865 = smul.u32 %s864, 2
        %s866 = smul.addr %s865, 4
        %s867 = scalar_lea.vmem %s165, %s866
        %v868 = vld [vmem:[%s867] sm:$0xf]
        %s869 = scalar_lea.vmem %s1, 384
        %v870 = vld [vmem:[%s869] sm:$0xf]
        %v871 = vld [vmem:[%s869 + $0x4] sm:$0xf]
        %v872 = vld [vmem:[%s869 + $0x8] sm:$0xf]
        %v873 = vld [vmem:[%s869 + $0xc] sm:$0xf]
        %v874 = vld [vmem:[%s869 + $0x10] sm:$0xf]
        %v875 = vld [vmem:[%s869 + $0x14] sm:$0xf]
        %v876 = vld [vmem:[%s869 + $0x18] sm:$0xf]
        %v877 = vld [vmem:[%s869 + $0x1c] sm:$0xf]
        %v878 = vld [vmem:[%s869 + $0x20] sm:$0xf]
        %v879 = vld [vmem:[%s869 + $0x24] sm:$0xf]
        %v880 = vld [vmem:[%s869 + $0x28] sm:$0xf]
        %v881 = vld [vmem:[%s869 + $0x2c] sm:$0xf]
        %v882 = vld [vmem:[%s869 + $0x30] sm:$0xf]
        %v883 = vld [vmem:[%s869 + $0x34] sm:$0xf]
        %v884 = vld [vmem:[%s869 + $0x38] sm:$0xf]
        %v885 = vld [vmem:[%s869 + $0x3c] sm:$0xf]
        %v902 = vunpack.c.l.b16 %v870
        %v903 = vunpack.c.l.b16 %v871
        %v904 = vunpack.c.l.b16 %v872
        %v905 = vunpack.c.l.b16 %v873
        %v906 = vunpack.c.l.b16 %v874
        %v907 = vunpack.c.l.b16 %v875
        %v908 = vunpack.c.l.b16 %v876
        %v909 = vunpack.c.l.b16 %v877
        %v910 = vunpack.c.l.b16 %v878
        %v911 = vunpack.c.l.b16 %v879
        %v912 = vunpack.c.l.b16 %v880
        %v913 = vunpack.c.l.b16 %v881
        %v914 = vunpack.c.l.b16 %v882
        %v915 = vunpack.c.l.b16 %v883
        %v916 = vunpack.c.l.b16 %v884
        %v917 = vunpack.c.l.b16 %v885
        %v918 = vpack.c.b16 %v903, %v902
        %v919 = vpack.c.b16 %v905, %v904
        %v920 = vpack.c.b16 %v907, %v906
        %v921 = vpack.c.b16 %v909, %v908
        %v922 = vpack.c.b16 %v911, %v910
        %v923 = vpack.c.b16 %v913, %v912
        %v924 = vpack.c.b16 %v915, %v914
        %v925 = vpack.c.b16 %v917, %v916
        %934 = vmatprep.subr.bf16.mxu0 0
        %935 = vmatpush1.bf16.msra.mxu0 %v925
        %936 = vmatprep.subr.bf16.mxu0 0
        %937 = vmatpush1.bf16.msra.mxu0 %v924
        %938 = vmatprep.subr.bf16.mxu0 0
        %939 = vmatpush1.bf16.msra.mxu0 %v923
        %940 = vmatprep.subr.bf16.mxu0 0
        %941 = vmatpush1.bf16.msra.mxu0 %v922
        %942 = vmatprep.subr.bf16.mxu0 0
        %943 = vmatpush1.bf16.msra.mxu0 %v921
        %944 = vmatprep.subr.bf16.mxu0 0
        %945 = vmatpush1.bf16.msra.mxu0 %v920
        %946 = vmatprep.subr.bf16.mxu0 0
        %947 = vmatpush1.bf16.msra.mxu0 %v919
        %948 = vmatprep.subr.bf16.mxu0 0
        %949 = vmatpush1.bf16.msra.mxu0 %v918
        %950 = vmatprep.subr.bf16.mxu0 0
        %951 = vmatpush2.bf16.msra.mxu0 0
        %952 = vmatprep.subr.bf16.mxu0 0
        %953 = vmatpush2.bf16.msra.mxu0 0
        %954 = vmatprep.subr.bf16.mxu0 0
        %955 = vmatpush2.bf16.msra.mxu0 0
        %956 = vmatprep.subr.bf16.mxu0 0
        %957 = vmatpush2.bf16.msra.mxu0 0
        %958 = vmatprep.subr.bf16.mxu0 0
        %959 = vmatpush2.bf16.msra.mxu0 0
        %960 = vmatprep.subr.bf16.mxu0 0
        %961 = vmatpush2.bf16.msra.mxu0 0
        %962 = vmatprep.subr.bf16.mxu0 0
        %963 = vmatpush2.bf16.msra.mxu0 0
        %964 = vmatprep.subr.bf16.mxu0 0
        %965 = vmatpush2.bf16.msra.mxu0 0
        %966 = vmatprep.mubr.bf16.mxu0 0
        %967 = vmatmul.mubr.bf16.gmra.mxu0 %v868
        %v968 = vpop.f32.mrf.mxu0
        %v969 = vadd.f32 0.0, %v968
        %v970 = vpop.f32.mrf.mxu0
        %v971 = vpop.f32.mrf.mxu0
        %v972 = vpop.f32.mrf.mxu0
        %973 = vdwg.mxu0
        %v974 = vadd.f32 %v863, %v969
        %v975 = vld [vmem:[%s867] sm:$0xf]
        %v976 = vld [vmem:[%s867 + $0x4] sm:$0x1]
        %s977 = scalar_lea.vmem %s1, 448
        %v978 = vld [vmem:[%s977] sm:$0xf]
        %v979 = vld [vmem:[%s977 + $0x4] sm:$0xf]
        %v980 = vld [vmem:[%s977 + $0x8] sm:$0xf]
        %v981 = vld [vmem:[%s977 + $0xc] sm:$0xf]
        %v982 = vld [vmem:[%s977 + $0x10] sm:$0xf]
        %v983 = vld [vmem:[%s977 + $0x14] sm:$0xf]
        %v984 = vld [vmem:[%s977 + $0x18] sm:$0xf]
        %v985 = vld [vmem:[%s977 + $0x1c] sm:$0xf]
        %v986 = vld [vmem:[%s977 + $0x20] sm:$0xf]
        %v987 = vld [vmem:[%s977 + $0x24] sm:$0xf]
        %v988 = vld [vmem:[%s977 + $0x28] sm:$0xf]
        %v989 = vld [vmem:[%s977 + $0x2c] sm:$0xf]
        %v990 = vld [vmem:[%s977 + $0x30] sm:$0xf]
        %v991 = vld [vmem:[%s977 + $0x34] sm:$0xf]
        %v992 = vld [vmem:[%s977 + $0x38] sm:$0xf]
        %v993 = vld [vmem:[%s977 + $0x3c] sm:$0xf]
        %v996 = vunpack.c.l.b16 %v975
        %v997 = vunpack.c.l.b16 %v976
        %v998 = vpack.c.b16 %v997, %v996
        %v1000 = vshrl.u32 %v998, 16
        %v1002 = vshll.u32 %v998, 16
        %v1004 = vrot.slane %v1002, 1
        %v1005 = vor.u32 %v1000, %v1004
        %v1023 = vunpack.c.l.b16 %v978
        %v1024 = vunpack.c.l.b16 %v979
        %v1025 = vunpack.c.l.b16 %v980
        %v1026 = vunpack.c.l.b16 %v981
        %v1027 = vunpack.c.l.b16 %v982
        %v1028 = vunpack.c.l.b16 %v983
        %v1029 = vunpack.c.l.b16 %v984
        %v1030 = vunpack.c.l.b16 %v985
        %v1031 = vunpack.c.l.b16 %v986
        %v1032 = vunpack.c.l.b16 %v987
        %v1033 = vunpack.c.l.b16 %v988
        %v1034 = vunpack.c.l.b16 %v989
        %v1035 = vunpack.c.l.b16 %v990
        %v1036 = vunpack.c.l.b16 %v991
        %v1037 = vunpack.c.l.b16 %v992
        %v1038 = vunpack.c.l.b16 %v993
        %v1039 = vpack.c.b16 %v1024, %v1023
        %v1040 = vpack.c.b16 %v1026, %v1025
        %v1041 = vpack.c.b16 %v1028, %v1027
        %v1042 = vpack.c.b16 %v1030, %v1029
        %v1043 = vpack.c.b16 %v1032, %v1031
        %v1044 = vpack.c.b16 %v1034, %v1033
        %v1045 = vpack.c.b16 %v1036, %v1035
        %v1046 = vpack.c.b16 %v1038, %v1037
        %1055 = vmatprep.subr.bf16.mxu0 0
        %1056 = vmatpush1.bf16.msra.mxu0 %v1046
        %1057 = vmatprep.subr.bf16.mxu0 0
        %1058 = vmatpush1.bf16.msra.mxu0 %v1045
        %1059 = vmatprep.subr.bf16.mxu0 0
        %1060 = vmatpush1.bf16.msra.mxu0 %v1044
        %1061 = vmatprep.subr.bf16.mxu0 0
        %1062 = vmatpush1.bf16.msra.mxu0 %v1043
        %1063 = vmatprep.subr.bf16.mxu0 0
        %1064 = vmatpush1.bf16.msra.mxu0 %v1042
        %1065 = vmatprep.subr.bf16.mxu0 0
        %1066 = vmatpush1.bf16.msra.mxu0 %v1041
        %1067 = vmatprep.subr.bf16.mxu0 0
        %1068 = vmatpush1.bf16.msra.mxu0 %v1040
        %1069 = vmatprep.subr.bf16.mxu0 0
        %1070 = vmatpush1.bf16.msra.mxu0 %v1039
        %1071 = vmatprep.subr.bf16.mxu0 0
        %1072 = vmatpush2.bf16.msra.mxu0 0
        %1073 = vmatprep.subr.bf16.mxu0 0
        %1074 = vmatpush2.bf16.msra.mxu0 0
        %1075 = vmatprep.subr.bf16.mxu0 0
        %1076 = vmatpush2.bf16.msra.mxu0 0
        %1077 = vmatprep.subr.bf16.mxu0 0
        %1078 = vmatpush2.bf16.msra.mxu0 0
        %1079 = vmatprep.subr.bf16.mxu0 0
        %1080 = vmatpush2.bf16.msra.mxu0 0
        %1081 = vmatprep.subr.bf16.mxu0 0
        %1082 = vmatpush2.bf16.msra.mxu0 0
        %1083 = vmatprep.subr.bf16.mxu0 0
        %1084 = vmatpush2.bf16.msra.mxu0 0
        %1085 = vmatprep.subr.bf16.mxu0 0
        %1086 = vmatpush2.bf16.msra.mxu0 0
        %1087 = vmatprep.mubr.bf16.mxu0 0
        %1088 = vmatmul.mubr.bf16.gmra.mxu0 %v1005
        %v1089 = vpop.f32.mrf.mxu0
        %v1090 = vadd.f32 0.0, %v1089
        %v1091 = vpop.f32.mrf.mxu0
        %v1092 = vpop.f32.mrf.mxu0
        %v1093 = vpop.f32.mrf.mxu0
        %1094 = vdwg.mxu0
        %v1095 = vadd.f32 %v974, %v1090
        %v1096 = vld [vmem:[%s867] sm:$0xe]
        %s1097 = scalar_lea.vmem %s1, 512
        %v1098 = vld [vmem:[%s1097] sm:$0xf]
        %v1099 = vld [vmem:[%s1097 + $0x4] sm:$0xf]
        %v1100 = vld [vmem:[%s1097 + $0x8] sm:$0xf]
        %v1101 = vld [vmem:[%s1097 + $0xc] sm:$0xf]
        %v1102 = vld [vmem:[%s1097 + $0x10] sm:$0xf]
        %v1103 = vld [vmem:[%s1097 + $0x14] sm:$0xf]
        %v1104 = vld [vmem:[%s1097 + $0x18] sm:$0xf]
        %v1105 = vld [vmem:[%s1097 + $0x1c] sm:$0xf]
        %v1106 = vld [vmem:[%s1097 + $0x20] sm:$0xf]
        %v1107 = vld [vmem:[%s1097 + $0x24] sm:$0xf]
        %v1108 = vld [vmem:[%s1097 + $0x28] sm:$0xf]
        %v1109 = vld [vmem:[%s1097 + $0x2c] sm:$0xf]
        %v1110 = vld [vmem:[%s1097 + $0x30] sm:$0xf]
        %v1111 = vld [vmem:[%s1097 + $0x34] sm:$0xf]
        %v1112 = vld [vmem:[%s1097 + $0x38] sm:$0xf]
        %v1113 = vld [vmem:[%s1097 + $0x3c] sm:$0xf]
        %v1115 = vunpack.c.l.b16 %v1096
        %v1116 = vpack.c.b16 %v997, %v1115
        %v1117 = vrot.slane %v1116, 1
        %v1135 = vunpack.c.l.b16 %v1098
        %v1136 = vunpack.c.l.b16 %v1099
        %v1137 = vunpack.c.l.b16 %v1100
        %v1138 = vunpack.c.l.b16 %v1101
        %v1139 = vunpack.c.l.b16 %v1102
        %v1140 = vunpack.c.l.b16 %v1103
        %v1141 = vunpack.c.l.b16 %v1104
        %v1142 = vunpack.c.l.b16 %v1105
        %v1143 = vunpack.c.l.b16 %v1106
        %v1144 = vunpack.c.l.b16 %v1107
        %v1145 = vunpack.c.l.b16 %v1108
        %v1146 = vunpack.c.l.b16 %v1109
        %v1147 = vunpack.c.l.b16 %v1110
        %v1148 = vunpack.c.l.b16 %v1111
        %v1149 = vunpack.c.l.b16 %v1112
        %v1150 = vunpack.c.l.b16 %v1113
        %v1151 = vpack.c.b16 %v1136, %v1135
        %v1152 = vpack.c.b16 %v1138, %v1137
        %v1153 = vpack.c.b16 %v1140, %v1139
        %v1154 = vpack.c.b16 %v1142, %v1141
        %v1155 = vpack.c.b16 %v1144, %v1143
        %v1156 = vpack.c.b16 %v1146, %v1145
        %v1157 = vpack.c.b16 %v1148, %v1147
        %v1158 = vpack.c.b16 %v1150, %v1149
        %1167 = vmatprep.subr.bf16.mxu0 0
        %1168 = vmatpush1.bf16.msra.mxu0 %v1158
        %1169 = vmatprep.subr.bf16.mxu0 0
        %1170 = vmatpush1.bf16.msra.mxu0 %v1157
        %1171 = vmatprep.subr.bf16.mxu0 0
        %1172 = vmatpush1.bf16.msra.mxu0 %v1156
        %1173 = vmatprep.subr.bf16.mxu0 0
        %1174 = vmatpush1.bf16.msra.mxu0 %v1155
        %1175 = vmatprep.subr.bf16.mxu0 0
        %1176 = vmatpush1.bf16.msra.mxu0 %v1154
        %1177 = vmatprep.subr.bf16.mxu0 0
        %1178 = vmatpush1.bf16.msra.mxu0 %v1153
        %1179 = vmatprep.subr.bf16.mxu0 0
        %1180 = vmatpush1.bf16.msra.mxu0 %v1152
        %1181 = vmatprep.subr.bf16.mxu0 0
        %1182 = vmatpush1.bf16.msra.mxu0 %v1151
        %1183 = vmatprep.subr.bf16.mxu0 0
        %1184 = vmatpush2.bf16.msra.mxu0 0
        %1185 = vmatprep.subr.bf16.mxu0 0
        %1186 = vmatpush2.bf16.msra.mxu0 0
        %1187 = vmatprep.subr.bf16.mxu0 0
        %1188 = vmatpush2.bf16.msra.mxu0 0
        %1189 = vmatprep.subr.bf16.mxu0 0
        %1190 = vmatpush2.bf16.msra.mxu0 0
        %1191 = vmatprep.subr.bf16.mxu0 0
        %1192 = vmatpush2.bf16.msra.mxu0 0
        %1193 = vmatprep.subr.bf16.mxu0 0
        %1194 = vmatpush2.bf16.msra.mxu0 0
        %1195 = vmatprep.subr.bf16.mxu0 0
        %1196 = vmatpush2.bf16.msra.mxu0 0
        %1197 = vmatprep.subr.bf16.mxu0 0
        %1198 = vmatpush2.bf16.msra.mxu0 0
        %1199 = vmatprep.mubr.bf16.mxu0 0
        %1200 = vmatmul.mubr.bf16.gmra.mxu0 %v1117
        %v1201 = vpop.f32.mrf.mxu0
        %v1202 = vadd.f32 0.0, %v1201
        %v1203 = vpop.f32.mrf.mxu0
        %v1204 = vpop.f32.mrf.mxu0
        %v1205 = vpop.f32.mrf.mxu0
        %1206 = vdwg.mxu0
        %v1207 = vadd.f32 %v1095, %v1202
        %v1208 = vlaneseq
        %v1209 = vshrl.u32 %v1208, 7
        %v1210 = vsub.s32 0, %v1209
        %v1211 = vrot.slane %v172, %v1210
        %v1212 = vadd.f32 %v1207, %v1211
        %v1213 = vmax.f32 %v1212, 0.0
        %v1214 = vlaneseq
        %v1215 = vshrl.u32 %v1214, 7
        %v1216 = vsub.s32 0, %v1215
        %v1217 = vrot.slane %v173, %v1216
        %v1218 = vmul.f32 %v1213, %v1217
        %v1219 = vlaneseq
        %v1220 = vshrl.u32 %v1219, 7
        %v1221 = vsub.s32 0, %v1220
        %v1222 = vrot.slane %v174, %v1221
        %v1223 = vadd.f32 %v1218, %v1222
        %v1224 = vpack.c.bf16 %v1223, %v1223
        %s1225 = smul.addr %s176, 4
        %s1226 = scalar_lea.vmem %s170, %s1225
        %1227 = vst [vmem:[%s1226] sm:$0xf] %v1224
      $region37: #{mnist_net_forward.7} parent=31 // loop_footer
        %s180 = sadd.s32 1, %s176
      $region38: #{mnist_net_forward.7} parent=31 // loop_footer_branch
        %175 = sbr.rel target = $region34
      $region39: #{mnist_net_forward.7} parent=31 // loop_exit
        _
      %p1228 = scmp.lt.s32.totalorder %s14, 1
      %s1229 = scalar_select %p1228, %s14, 1
      %s1230 = smul.addr %s1229, 8
      %s1231 = smul.addr %s1230, 4
      %s1232 = scalar_lea.vmem %s3, %s1231
      // Predicated region
      $region40: #{mnist_net_forward.7} parent=31 // pred_check
        %p1233 = pneg %p100
      $region41: #{mnist_net_forward.7} parent=31 // pred_check_branch
        %1235 = sbr.rel (%p1233) target = $region43
      $region42: #{mnist_net_forward.7} parent=31 // pred_region
        _
      $region43: #{mnist_net_forward.7} parent=31 // pred_fallthru
        _
    $region32: #{mnist_net_forward.7} parent=5 // pred_fallthru
      _
    %p1236 = scmp.le.s32.totalorder 2, %s9
    // Predicated region
    $region44: #{mnist_net_forward.7} parent=5 // pred_check
      %p1237 = pneg %p1236
    $region45: #{mnist_net_forward.7} parent=5 // pred_check_branch
      %1239 = sbr.rel (%p1237) target = $region47
    $region46: #{mnist_net_forward.7} parent=5 // pred_region
      %s1240 = ssub.s32 %s9, 2
      // Predicated region
      $region48: #{mnist_net_forward.7} parent=46 // pred_check
        %p1241 = pneg %p106
      $region49: #{mnist_net_forward.7} parent=46 // pred_check_branch
        %1243 = sbr.rel (%p1241) target = $region51
      $region50: #{mnist_net_forward.7} parent=46 // pred_region
        %p1244 = scmp.lt.s32.totalorder %s15, 1
        %s1245 = scalar_select %p1244, %s15, 1
        %s1246 = smul.addr %s1245, 8
        %s1247 = smul.addr %s1246, 4
        %s1248 = scalar_lea.vmem %s3, %s1247
      $region51: #{mnist_net_forward.7} parent=46 // pred_fallthru
        _
    $region47: #{mnist_net_forward.7} parent=5 // pred_fallthru
      _
  $region6: #{mnist_net_forward.7} parent=0 // loop_footer
    %s13 = sadd.s32 1, %s9
  $region7: #{mnist_net_forward.7} parent=0 // loop_footer_branch
    %8 = sbr.rel target = $region3
  $region8: #{mnist_net_forward.7} parent=0 // loop_exit
    _

// kernel: mnist_net_forward.8
$region0: #{mnist_net_forward.8}
  #allocation0 [shape = 'u32[]', space=smem, size = 0x4, offset = 0x4, fixed_abs, tag = 'smem constant byte address 0x4 - core index']
  #allocation1 [shape = 'u32[144,128]{1,0:T(1,128)}', space=vmem, size = 0x12000, scoped, tag = 'internal scratch']
  %s0 = inlined_call_operand.vmem [shape: bf16[2,8,8,128], index: 0, kind: input, shape index: {}]
  %s1 = inlined_call_operand.vmem [shape: bf16[9,128,128], index: 1, kind: input, shape index: {}]
  %s2 = inlined_call_operand.vmem [shape: f32[3,128], index: 2, kind: input, shape index: {}]
  %s3 = inlined_call_operand.vmem [shape: bf16[2,6,6,128], index: 3, kind: output, shape index: {}]
  %s4 = sld [smem:[#allocation0]]
  $region52: #{mnist_net_forward.8} parent=0
    _
  %s6 = ssub.s32 1, %s4
  %s7 = scalar_select 0, %s6, %s4
  loop: start=0, step=1, limit=4
  $region2: #{mnist_net_forward.8} parent=0 // loop_pre_header
    _
  $region3: #{mnist_net_forward.8} parent=0 // loop_header
    %s9 = sphi 0, %s13
    %p10 = scmp.ge.s32.totalorder %s9, 4
    %s19 = sphi 0, %s21
    %s22 = sphi 0, %s19
    %s23 = sphi 0, %s22
    %s39 = sphi 0, %s23
    %s43 = sphi 0, %s43
    %s45 = sphi 0, %s43
    %s46 = sphi 0, %s45
    %s60 = sphi 0, %s46
    %s64 = sphi 0, %s64
    %s66 = sphi 0, %s64
    %s67 = sphi 0, %s66
    %s81 = sphi 0, %s67
    %s87 = sphi 0, %s89
    %s90 = sphi 0, %s87
    %s91 = sphi 0, %s90
    %s107 = sphi 0, %s91
  $region4: #{mnist_net_forward.8} parent=0 // loop_header_branch
    %12 = sbr.rel (%p10) target = $region8
  $region5: #{mnist_net_forward.8} parent=0 // loop_body
    %s14 = ssub.s32 %s9, 1
    %s15 = ssub.s32 %s9, 2
    %s16 = sadd.s32 %s9, 1
    %s17 = ssub.s32 %s9, %s16
    %p18 = scmp.eq.s32.totalorder %s17, 0
    %s20 = sadd.s32 %s19, 1
    %s21 = scalar_select %p18, %s19, %s20
    %p24 = pneg %p18
    %p25 = scmp.eq.s32.totalorder %s9, 1
    %p26 = por %p24, %p25
    %p27 = scmp.ne.s32.totalorder %s19, %s22
    %p28 = scmp.eq.s32.totalorder %s9, 0
    %p29 = por %p27, %p28
    %p30 = scmp.ne.s32.totalorder %s19, %s22
    %p31 = scmp.eq.s32.totalorder %s14, 1
    %p32 = por %p30, %p31
    %p33 = scmp.ne.s32.totalorder %s22, %s23
    %p34 = scmp.eq.s32.totalorder %s14, 0
    %p35 = por %p33, %p34
    %p36 = scmp.ne.s32.totalorder %s22, %s23
    %p37 = scmp.eq.s32.totalorder %s15, 1
    %p38 = por %p36, %p37
    %p40 = scmp.ne.s32.totalorder %s23, %s39
    %p41 = scmp.eq.s32.totalorder %s15, 0
    %p42 = por %p40, %p41
    %s44 = sadd.s32 %s43, 1
    %p47 = scmp.eq.s32.totalorder %s9, 1
    %p48 = scmp.ne.s32.totalorder %s43, %s45
    %p49 = scmp.eq.s32.totalorder %s9, 0
    %p50 = por %p48, %p49
    %p51 = scmp.ne.s32.totalorder %s43, %s45
    %p52 = scmp.eq.s32.totalorder %s14, 1
    %p53 = por %p51, %p52
    %p54 = scmp.ne.s32.totalorder %s45, %s46
    %p55 = scmp.eq.s32.totalorder %s14, 0
    %p56 = por %p54, %p55
    %p57 = scmp.ne.s32.totalorder %s45, %s46
    %p58 = scmp.eq.s32.totalorder %s15, 1
    %p59 = por %p57, %p58
    %p61 = scmp.ne.s32.totalorder %s46, %s60
    %p62 = scmp.eq.s32.totalorder %s15, 0
    %p63 = por %p61, %p62
    %s65 = sadd.s32 %s64, 1
    %p68 = scmp.eq.s32.totalorder %s9, 1
    %p69 = scmp.ne.s32.totalorder %s64, %s66
    %p70 = scmp.eq.s32.totalorder %s9, 0
    %p71 = por %p69, %p70
    %p72 = scmp.ne.s32.totalorder %s64, %s66
    %p73 = scmp.eq.s32.totalorder %s14, 1
    %p74 = por %p72, %p73
    %p75 = scmp.ne.s32.totalorder %s66, %s67
    %p76 = scmp.eq.s32.totalorder %s14, 0
    %p77 = por %p75, %p76
    %p78 = scmp.ne.s32.totalorder %s66, %s67
    %p79 = scmp.eq.s32.totalorder %s15, 1
    %p80 = por %p78, %p79
    %p82 = scmp.ne.s32.totalorder %s67, %s81
    %p83 = scmp.eq.s32.totalorder %s15, 0
    %p84 = por %p82, %p83
    %s85 = ssub.s32 %s9, %s16
    %p86 = scmp.eq.s32.totalorder %s85, 0
    %s88 = sadd.s32 %s87, 1
    %s89 = scalar_select %p86, %s87, %s88
    %p92 = pneg %p86
    %p93 = scmp.eq.s32.totalorder %s9, 1
    %p94 = por %p92, %p93
    %p95 = scmp.ne.s32.totalorder %s87, %s90
    %p96 = scmp.eq.s32.totalorder %s9, 0
    %p97 = por %p95, %p96
    %p98 = scmp.ne.s32.totalorder %s87, %s90
    %p99 = scmp.eq.s32.totalorder %s14, 1
    %p100 = por %p98, %p99
    %p101 = scmp.ne.s32.totalorder %s90, %s91
    %p102 = scmp.eq.s32.totalorder %s14, 0
    %p103 = por %p101, %p102
    %p104 = scmp.ne.s32.totalorder %s90, %s91
    %p105 = scmp.eq.s32.totalorder %s15, 1
    %p106 = por %p104, %p105
    %p108 = scmp.ne.s32.totalorder %s91, %s107
    %p109 = scmp.eq.s32.totalorder %s15, 0
    %p110 = por %p108, %p109
    %p111 = scmp.le.s32.totalorder 1, %s9
    %p112 = scmp.lt.s32.totalorder %s9, 3
    %p113 = pnand %p111, %p112
    %p114 = pneg %p113
    // Predicated region
    $region9: #{mnist_net_forward.8} parent=5 // pred_check
      _
    $region10: #{mnist_net_forward.8} parent=5 // pred_check_branch
      %116 = sbr.rel (%p113) target = $region12
    $region11: #{mnist_net_forward.8} parent=5 // pred_region
      %s117 = ssub.s32 %s9, 1
      // Predicated region
      $region13: #{mnist_net_forward.8} parent=11 // pred_check
        %p118 = pneg %p56
      $region14: #{mnist_net_forward.8} parent=11 // pred_check_branch
        %120 = sbr.rel (%p118) target = $region16
      $region15: #{mnist_net_forward.8} parent=11 // pred_region
        _
      $region16: #{mnist_net_forward.8} parent=11 // pred_fallthru
        _
      // Predicated region
      $region17: #{mnist_net_forward.8} parent=11 // pred_check
        %p121 = pneg %p77
      $region18: #{mnist_net_forward.8} parent=11 // pred_check_branch
        %123 = sbr.rel (%p121) target = $region20
      $region19: #{mnist_net_forward.8} parent=11 // pred_region
        _
      $region20: #{mnist_net_forward.8} parent=11 // pred_fallthru
        _
    $region12: #{mnist_net_forward.8} parent=5 // pred_fallthru
      _
    %p124 = scmp.lt.s32.totalorder %s9, 2
    // Predicated region
    $region21: #{mnist_net_forward.8} parent=5 // pred_check
      %p125 = pneg %p124
    $region22: #{mnist_net_forward.8} parent=5 // pred_check_branch
      %127 = sbr.rel (%p125) target = $region24
    $region23: #{mnist_net_forward.8} parent=5 // pred_region
      // Predicated region
      $region25: #{mnist_net_forward.8} parent=23 // pred_check
        %p128 = pneg %p29
      $region26: #{mnist_net_forward.8} parent=23 // pred_check_branch
        %130 = sbr.rel (%p128) target = $region28
      $region27: #{mnist_net_forward.8} parent=23 // pred_region
        %p131 = scmp.lt.s32.totalorder %s9, 1
        %s132 = scalar_select %p131, %s9, 1
        %s133 = smul.addr %s132, 8
        %s134 = smul.addr %s133, 4
        %s135 = scalar_lea.vmem %s0, %s134
      $region28: #{mnist_net_forward.8} parent=23 // pred_fallthru
        _
    $region24: #{mnist_net_forward.8} parent=5 // pred_fallthru
      _
    %p136 = scmp.le.s32.totalorder 1, %s9
    %p137 = scmp.lt.s32.totalorder %s9, 3
    %p138 = pnand %p136, %p137
    %p139 = pneg %p138
    // Predicated region
    $region29: #{mnist_net_forward.8} parent=5 // pred_check
      _
    $region30: #{mnist_net_forward.8} parent=5 // pred_check_branch
      %141 = sbr.rel (%p138) target = $region32
    $region31: #{mnist_net_forward.8} parent=5 // pred_region
      %s142 = ssub.s32 %s9, 1
      %p143 = scmp.lt.s32.totalorder %s14, 1
      %s144 = scalar_select %p143, %s14, 1
      %s145 = smul.addr %s144, 8
      %s146 = smul.addr %s145, 4
      %s147 = scalar_lea.vmem %s0, %s146
      %p148 = pneg %p35
      %p149 = pneg %p32
      %p150 = pneg %p56
      %p151 = pneg %p53
      %p152 = pneg %p77
      %p153 = pneg %p74
      %p154 = pneg %p103
      %p155 = pneg %p100
      %p156 = scmp.lt.s32.totalorder %s14, 1
      %s157 = scalar_select %p156, %s14, 1
      %s158 = smul.addr %s157, 6
      %s159 = smul.addr %s158, 4
      %s160 = scalar_lea.vmem %s3, %s159
      %p161 = scmp.lt.s32.totalorder %s14, 1
      %s162 = scalar_select %p161, %s14, 1
      %s163 = smul.addr %s162, 8
      %s164 = smul.addr %s163, 4
      %s165 = scalar_lea.vmem %s0, %s164
      %p166 = scmp.lt.s32.totalorder %s14, 1
      %s167 = scalar_select %p166, %s14, 1
      %s168 = smul.addr %s167, 6
      %s169 = smul.addr %s168, 4
      %s170 = scalar_lea.vmem %s3, %s169
      %v172 = vld [vmem:[%s2] sm:$0x1]
      %v173 = vld [vmem:[%s2 + $0x1] sm:$0x1]
      %v174 = vld [vmem:[%s2 + $0x2] sm:$0x1]
      loop: start=0, step=1, limit=6
      $region33: #{mnist_net_forward.8} parent=31 // loop_pre_header
        _
      $region34: #{mnist_net_forward.8} parent=31 // loop_header
        %s176 = sphi 0, %s180
        %p177 = scmp.ge.s32.totalorder %s176, 6
      $region35: #{mnist_net_forward.8} parent=31 // loop_header_branch
        %179 = sbr.rel (%p177) target = $region39
      $region36: #{mnist_net_forward.8} parent=31 // loop_body
        %s181 = smul.addr %s176, 4
        %s182 = scalar_lea.vmem %s165, %s181
        %v183 = vld [vmem:[%s182] sm:$0x7]
        %v184 = vld [vmem:[%s1] sm:$0xf]
        %v185 = vld [vmem:[%s1 + $0x4] sm:$0xf]
        %v186 = vld [vmem:[%s1 + $0x8] sm:$0xf]
        %v187 = vld [vmem:[%s1 + $0xc] sm:$0xf]
        %v188 = vld [vmem:[%s1 + $0x10] sm:$0xf]
        %v189 = vld [vmem:[%s1 + $0x14] sm:$0xf]
        %v190 = vld [vmem:[%s1 + $0x18] sm:$0xf]
        %v191 = vld [vmem:[%s1 + $0x1c] sm:$0xf]
        %v192 = vld [vmem:[%s1 + $0x20] sm:$0xf]
        %v193 = vld [vmem:[%s1 + $0x24] sm:$0xf]
        %v194 = vld [vmem:[%s1 + $0x28] sm:$0xf]
        %v195 = vld [vmem:[%s1 + $0x2c] sm:$0xf]
        %v196 = vld [vmem:[%s1 + $0x30] sm:$0xf]
        %v197 = vld [vmem:[%s1 + $0x34] sm:$0xf]
        %v198 = vld [vmem:[%s1 + $0x38] sm:$0xf]
        %v199 = vld [vmem:[%s1 + $0x3c] sm:$0xf]
        %v200 = vld [vmem:[%s182] sm:$0xf]
        %s201 = scalar_lea.vmem %s1, 64
        %v202 = vld [vmem:[%s201] sm:$0xf]
        %v203 = vld [vmem:[%s201 + $0x4] sm:$0xf]
        %v204 = vld [vmem:[%s201 + $0x8] sm:$0xf]
        %v205 = vld [vmem:[%s201 + $0xc] sm:$0xf]
        %v206 = vld [vmem:[%s201 + $0x10] sm:$0xf]
        %v207 = vld [vmem:[%s201 + $0x14] sm:$0xf]
        %v208 = vld [vmem:[%s201 + $0x18] sm:$0xf]
        %v209 = vld [vmem:[%s201 + $0x1c] sm:$0xf]
        %v210 = vld [vmem:[%s201 + $0x20] sm:$0xf]
        %v211 = vld [vmem:[%s201 + $0x24] sm:$0xf]
        %v212 = vld [vmem:[%s201 + $0x28] sm:$0xf]
        %v213 = vld [vmem:[%s201 + $0x2c] sm:$0xf]
        %v214 = vld [vmem:[%s201 + $0x30] sm:$0xf]
        %v215 = vld [vmem:[%s201 + $0x34] sm:$0xf]
        %v216 = vld [vmem:[%s201 + $0x38] sm:$0xf]
        %v217 = vld [vmem:[%s201 + $0x3c] sm:$0xf]
        %v219 = vunpack.c.l.b16 %v200
        %v220 = vpack.c.b16 %v219, %v219
        %v222 = vshrl.u32 %v220, 16
        %v224 = vshll.u32 %v220, 16
        %v226 = vrot.slane %v224, 1
        %v227 = vor.u32 %v222, %v226
        %v245 = vunpack.c.l.b16 %v202
        %v246 = vunpack.c.l.b16 %v203
        %v247 = vunpack.c.l.b16 %v204
        %v248 = vunpack.c.l.b16 %v205
        %v249 = vunpack.c.l.b16 %v206
        %v250 = vunpack.c.l.b16 %v207
        %v251 = vunpack.c.l.b16 %v208
        %v252 = vunpack.c.l.b16 %v209
        %v253 = vunpack.c.l.b16 %v210
        %v254 = vunpack.c.l.b16 %v211
        %v255 = vunpack.c.l.b16 %v212
        %v256 = vunpack.c.l.b16 %v213
        %v257 = vunpack.c.l.b16 %v214
        %v258 = vunpack.c.l.b16 %v215
        %v259 = vunpack.c.l.b16 %v216
        %v260 = vunpack.c.l.b16 %v217
        %v261 = vpack.c.b16 %v246, %v245
        %v262 = vpack.c.b16 %v248, %v247
        %v263 = vpack.c.b16 %v250, %v249
        %v264 = vpack.c.b16 %v252, %v251
        %v265 = vpack.c.b16 %v254, %v253
        %v266 = vpack.c.b16 %v256, %v255
        %v267 = vpack.c.b16 %v258, %v257
        %v268 = vpack.c.b16 %v260, %v259
        %277 = vmatprep.subr.bf16.mxu0 0
        %278 = vmatpush1.bf16.msra.mxu0 %v268
        %279 = vmatprep.subr.bf16.mxu0 0
        %280 = vmatpush1.bf16.msra.mxu0 %v267
        %281 = vmatprep.subr.bf16.mxu0 0
        %282 = vmatpush1.bf16.msra.mxu0 %v266
        %283 = vmatprep.subr.bf16.mxu0 0
        %284 = vmatpush1.bf16.msra.mxu0 %v265
        %285 = vmatprep.subr.bf16.mxu0 0
        %286 = vmatpush1.bf16.msra.mxu0 %v264
        %287 = vmatprep.subr.bf16.mxu0 0
        %288 = vmatpush1.bf16.msra.mxu0 %v263
        %289 = vmatprep.subr.bf16.mxu0 0
        %290 = vmatpush1.bf16.msra.mxu0 %v262
        %291 = vmatprep.subr.bf16.mxu0 0
        %292 = vmatpush1.bf16.msra.mxu0 %v261
        %293 = vmatprep.subr.bf16.mxu0 0
        %294 = vmatpush2.bf16.msra.mxu0 0
        %295 = vmatprep.subr.bf16.mxu0 0
        %296 = vmatpush2.bf16.msra.mxu0 0
        %297 = vmatprep.subr.bf16.mxu0 0
        %298 = vmatpush2.bf16.msra.mxu0 0
        %299 = vmatprep.subr.bf16.mxu0 0
        %300 = vmatpush2.bf16.msra.mxu0 0
        %301 = vmatprep.subr.bf16.mxu0 0
        %302 = vmatpush2.bf16.msra.mxu0 0
        %303 = vmatprep.subr.bf16.mxu0 0
        %304 = vmatpush2.bf16.msra.mxu0 0
        %305 = vmatprep.subr.bf16.mxu0 0
        %306 = vmatpush2.bf16.msra.mxu0 0
        %307 = vmatprep.subr.bf16.mxu0 0
        %308 = vmatpush2.bf16.msra.mxu0 0
        %309 = vmatprep.mubr.bf16.mxu0 0
        %310 = vmatmul.mubr.bf16.gmra.mxu0 %v227
        %v311 = vpop.f32.mrf.mxu0
        %v312 = vadd.f32 0.0, %v311
        %v313 = vpop.f32.mrf.mxu0
        %v314 = vpop.f32.mrf.mxu0
        %v315 = vpop.f32.mrf.mxu0
        %316 = vdwg.mxu0
        %v333 = vunpack.c.l.b16 %v184
        %v334 = vunpack.c.l.b16 %v185
        %v335 = vunpack.c.l.b16 %v186
        %v336 = vunpack.c.l.b16 %v187
        %v337 = vunpack.c.l.b16 %v188
        %v338 = vunpack.c.l.b16 %v189
        %v339 = vunpack.c.l.b16 %v190
        %v340 = vunpack.c.l.b16 %v191
        %v341 = vunpack.c.l.b16 %v192
        %v342 = vunpack.c.l.b16 %v193
        %v343 = vunpack.c.l.b16 %v194
        %v344 = vunpack.c.l.b16 %v195
        %v345 = vunpack.c.l.b16 %v196
        %v346 = vunpack.c.l.b16 %v197
        %v347 = vunpack.c.l.b16 %v198
        %v348 = vunpack.c.l.b16 %v199
        %v349 = vpack.c.b16 %v334, %v333
        %v350 = vpack.c.b16 %v336, %v335
        %v351 = vpack.c.b16 %v338, %v337
        %v352 = vpack.c.b16 %v340, %v339
        %v353 = vpack.c.b16 %v342, %v341
        %v354 = vpack.c.b16 %v344, %v343
        %v355 = vpack.c.b16 %v346, %v345
        %v356 = vpack.c.b16 %v348, %v347
        %365 = vmatprep.subr.bf16.mxu0 0
        %366 = vmatpush1.bf16.msra.mxu0 %v356
        %367 = vmatprep.subr.bf16.mxu0 0
        %368 = vmatpush1.bf16.msra.mxu0 %v355
        %369 = vmatprep.subr.bf16.mxu0 0
        %370 = vmatpush1.bf16.msra.mxu0 %v354
        %371 = vmatprep.subr.bf16.mxu0 0
        %372 = vmatpush1.bf16.msra.mxu0 %v353
        %373 = vmatprep.subr.bf16.mxu0 0
        %374 = vmatpush1.bf16.msra.mxu0 %v352
        %375 = vmatprep.subr.bf16.mxu0 0
        %376 = vmatpush1.bf16.msra.mxu0 %v351
        %377 = vmatprep.subr.bf16.mxu0 0
        %378 = vmatpush1.bf16.msra.mxu0 %v350
        %379 = vmatprep.subr.bf16.mxu0 0
        %380 = vmatpush1.bf16.msra.mxu0 %v349
        %381 = vmatprep.subr.bf16.mxu0 0
        %382 = vmatpush2.bf16.msra.mxu0 0
        %383 = vmatprep.subr.bf16.mxu0 0
        %384 = vmatpush2.bf16.msra.mxu0 0
        %385 = vmatprep.subr.bf16.mxu0 0
        %386 = vmatpush2.bf16.msra.mxu0 0
        %387 = vmatprep.subr.bf16.mxu0 0
        %388 = vmatpush2.bf16.msra.mxu0 0
        %389 = vmatprep.subr.bf16.mxu0 0
        %390 = vmatpush2.bf16.msra.mxu0 0
        %391 = vmatprep.subr.bf16.mxu0 0
        %392 = vmatpush2.bf16.msra.mxu0 0
        %393 = vmatprep.subr.bf16.mxu0 0
        %394 = vmatpush2.bf16.msra.mxu0 0
        %395 = vmatprep.subr.bf16.mxu0 0
        %396 = vmatpush2.bf16.msra.mxu0 0
        %397 = vmatprep.mubr.bf16.mxu0 0
        %398 = vmatmul.mubr.bf16.gmra.mxu0 %v183
        %v399 = vpop.f32.mrf.mxu0
        %v400 = vadd.f32 %v312, %v399
        %v401 = vpop.f32.mrf.mxu0
        %v402 = vpop.f32.mrf.mxu0
        %v403 = vpop.f32.mrf.mxu0
        %404 = vdwg.mxu0
        %v405 = vld [vmem:[%s182] sm:$0xe]
        %s406 = scalar_lea.vmem %s1, 128
        %v407 = vld [vmem:[%s406] sm:$0xf]
        %v408 = vld [vmem:[%s406 + $0x4] sm:$0xf]
        %v409 = vld [vmem:[%s406 + $0x8] sm:$0xf]
        %v410 = vld [vmem:[%s406 + $0xc] sm:$0xf]
        %v411 = vld [vmem:[%s406 + $0x10] sm:$0xf]
        %v412 = vld [vmem:[%s406 + $0x14] sm:$0xf]
        %v413 = vld [vmem:[%s406 + $0x18] sm:$0xf]
        %v414 = vld [vmem:[%s406 + $0x1c] sm:$0xf]
        %v415 = vld [vmem:[%s406 + $0x20] sm:$0xf]
        %v416 = vld [vmem:[%s406 + $0x24] sm:$0xf]
        %v417 = vld [vmem:[%s406 + $0x28] sm:$0xf]
        %v418 = vld [vmem:[%s406 + $0x2c] sm:$0xf]
        %v419 = vld [vmem:[%s406 + $0x30] sm:$0xf]
        %v420 = vld [vmem:[%s406 + $0x34] sm:$0xf]
        %v421 = vld [vmem:[%s406 + $0x38] sm:$0xf]
        %v422 = vld [vmem:[%s406 + $0x3c] sm:$0xf]
        %v424 = vunpack.c.l.b16 %v405
        %v425 = vpack.c.b16 %v424, %v424
        %v426 = vrot.slane %v425, 1
        %v444 = vunpack.c.l.b16 %v407
        %v445 = vunpack.c.l.b16 %v408
        %v446 = vunpack.c.l.b16 %v409
        %v447 = vunpack.c.l.b16 %v410
        %v448 = vunpack.c.l.b16 %v411
        %v449 = vunpack.c.l.b16 %v412
        %v450 = vunpack.c.l.b16 %v413
        %v451 = vunpack.c.l.b16 %v414
        %v452 = vunpack.c.l.b16 %v415
        %v453 = vunpack.c.l.b16 %v416
        %v454 = vunpack.c.l.b16 %v417
        %v455 = vunpack.c.l.b16 %v418
        %v456 = vunpack.c.l.b16 %v419
        %v457 = vunpack.c.l.b16 %v420
        %v458 = vunpack.c.l.b16 %v421
        %v459 = vunpack.c.l.b16 %v422
        %v460 = vpack.c.b16 %v445, %v444
        %v461 = vpack.c.b16 %v447, %v446
        %v462 = vpack.c.b16 %v449, %v448
        %v463 = vpack.c.b16 %v451, %v450
        %v464 = vpack.c.b16 %v453, %v452
        %v465 = vpack.c.b16 %v455, %v454
        %v466 = vpack.c.b16 %v457, %v456
        %v467 = vpack.c.b16 %v459, %v458
        %476 = vmatprep.subr.bf16.mxu0 0
        %477 = vmatpush1.bf16.msra.mxu0 %v467
        %478 = vmatprep.subr.bf16.mxu0 0
        %479 = vmatpush1.bf16.msra.mxu0 %v466
        %480 = vmatprep.subr.bf16.mxu0 0
        %481 = vmatpush1.bf16.msra.mxu0 %v465
        %482 = vmatprep.subr.bf16.mxu0 0
        %483 = vmatpush1.bf16.msra.mxu0 %v464
        %484 = vmatprep.subr.bf16.mxu0 0
        %485 = vmatpush1.bf16.msra.mxu0 %v463
        %486 = vmatprep.subr.bf16.mxu0 0
        %487 = vmatpush1.bf16.msra.mxu0 %v462
        %488 = vmatprep.subr.bf16.mxu0 0
        %489 = vmatpush1.bf16.msra.mxu0 %v461
        %490 = vmatprep.subr.bf16.mxu0 0
        %491 = vmatpush1.bf16.msra.mxu0 %v460
        %492 = vmatprep.subr.bf16.mxu0 0
        %493 = vmatpush2.bf16.msra.mxu0 0
        %494 = vmatprep.subr.bf16.mxu0 0
        %495 = vmatpush2.bf16.msra.mxu0 0
        %496 = vmatprep.subr.bf16.mxu0 0
        %497 = vmatpush2.bf16.msra.mxu0 0
        %498 = vmatprep.subr.bf16.mxu0 0
        %499 = vmatpush2.bf16.msra.mxu0 0
        %500 = vmatprep.subr.bf16.mxu0 0
        %501 = vmatpush2.bf16.msra.mxu0 0
        %502 = vmatprep.subr.bf16.mxu0 0
        %503 = vmatpush2.bf16.msra.mxu0 0
        %504 = vmatprep.subr.bf16.mxu0 0
        %505 = vmatpush2.bf16.msra.mxu0 0
        %506 = vmatprep.subr.bf16.mxu0 0
        %507 = vmatpush2.bf16.msra.mxu0 0
        %508 = vmatprep.mubr.bf16.mxu0 0
        %509 = vmatmul.mubr.bf16.gmra.mxu0 %v426
        %v510 = vpop.f32.mrf.mxu0
        %v511 = vadd.f32 0.0, %v510
        %v512 = vpop.f32.mrf.mxu0
        %v513 = vpop.f32.mrf.mxu0
        %v514 = vpop.f32.mrf.mxu0
        %515 = vdwg.mxu0
        %v516 = vadd.f32 %v400, %v511
        %s517 = sadd.s32 %s176, 1
        %s518 = smul.addr %s517, 4
        %s519 = scalar_lea.vmem %s165, %s518
        %v520 = vld [vmem:[%s519] sm:$0x7]
        %s521 = scalar_lea.vmem %s1, 192
        %v522 = vld [vmem:[%s521] sm:$0xf]
        %v523 = vld [vmem:[%s521 + $0x4] sm:$0xf]
        %v524 = vld [vmem:[%s521 + $0x8] sm:$0xf]
        %v525 = vld [vmem:[%s521 + $0xc] sm:$0xf]
        %v526 = vld [vmem:[%s521 + $0x10] sm:$0xf]
        %v527 = vld [vmem:[%s521 + $0x14] sm:$0xf]
        %v528 = vld [vmem:[%s521 + $0x18] sm:$0xf]
        %v529 = vld [vmem:[%s521 + $0x1c] sm:$0xf]
        %v530 = vld [vmem:[%s521 + $0x20] sm:$0xf]
        %v531 = vld [vmem:[%s521 + $0x24] sm:$0xf]
        %v532 = vld [vmem:[%s521 + $0x28] sm:$0xf]
        %v533 = vld [vmem:[%s521 + $0x2c] sm:$0xf]
        %v534 = vld [vmem:[%s521 + $0x30] sm:$0xf]
        %v535 = vld [vmem:[%s521 + $0x34] sm:$0xf]
        %v536 = vld [vmem:[%s521 + $0x38] sm:$0xf]
        %v537 = vld [vmem:[%s521 + $0x3c] sm:$0xf]
        %v554 = vunpack.c.l.b16 %v522
        %v555 = vunpack.c.l.b16 %v523
        %v556 = vunpack.c.l.b16 %v524
        %v557 = vunpack.c.l.b16 %v525
        %v558 = vunpack.c.l.b16 %v526
        %v559 = vunpack.c.l.b16 %v527
        %v560 = vunpack.c.l.b16 %v528
        %v561 = vunpack.c.l.b16 %v529
        %v562 = vunpack.c.l.b16 %v530
        %v563 = vunpack.c.l.b16 %v531
        %v564 = vunpack.c.l.b16 %v532
        %v565 = vunpack.c.l.b16 %v533
        %v566 = vunpack.c.l.b16 %v534
        %v567 = vunpack.c.l.b16 %v535
        %v568 = vunpack.c.l.b16 %v536
        %v569 = vunpack.c.l.b16 %v537
        %v570 = vpack.c.b16 %v555, %v554
        %v571 = vpack.c.b16 %v557, %v556
        %v572 = vpack.c.b16 %v559, %v558
        %v573 = vpack.c.b16 %v561, %v560
        %v574 = vpack.c.b16 %v563, %v562
        %v575 = vpack.c.b16 %v565, %v564
        %v576 = vpack.c.b16 %v567, %v566
        %v577 = vpack.c.b16 %v569, %v568
        %586 = vmatprep.subr.bf16.mxu0 0
        %587 = vmatpush1.bf16.msra.mxu0 %v577
        %588 = vmatprep.subr.bf16.mxu0 0
        %589 = vmatpush1.bf16.msra.mxu0 %v576
        %590 = vmatprep.subr.bf16.mxu0 0
        %591 = vmatpush1.bf16.msra.mxu0 %v575
        %592 = vmatprep.subr.bf16.mxu0 0
        %593 = vmatpush1.bf16.msra.mxu0 %v574
        %594 = vmatprep.subr.bf16.mxu0 0
        %595 = vmatpush1.bf16.msra.mxu0 %v573
        %596 = vmatprep.subr.bf16.mxu0 0
        %597 = vmatpush1.bf16.msra.mxu0 %v572
        %598 = vmatprep.subr.bf16.mxu0 0
        %599 = vmatpush1.bf16.msra.mxu0 %v571
        %600 = vmatprep.subr.bf16.mxu0 0
        %601 = vmatpush1.bf16.msra.mxu0 %v570
        %602 = vmatprep.subr.bf16.mxu0 0
        %603 = vmatpush2.bf16.msra.mxu0 0
        %604 = vmatprep.subr.bf16.mxu0 0
        %605 = vmatpush2.bf16.msra.mxu0 0
        %606 = vmatprep.subr.bf16.mxu0 0
        %607 = vmatpush2.bf16.msra.mxu0 0
        %608 = vmatprep.subr.bf16.mxu0 0
        %609 = vmatpush2.bf16.msra.mxu0 0
        %610 = vmatprep.subr.bf16.mxu0 0
        %611 = vmatpush2.bf16.msra.mxu0 0
        %612 = vmatprep.subr.bf16.mxu0 0
        %613 = vmatpush2.bf16.msra.mxu0 0
        %614 = vmatprep.subr.bf16.mxu0 0
        %615 = vmatpush2.bf16.msra.mxu0 0
        %616 = vmatprep.subr.bf16.mxu0 0
        %617 = vmatpush2.bf16.msra.mxu0 0
        %618 = vmatprep.mubr.bf16.mxu0 0
        %619 = vmatmul.mubr.bf16.gmra.mxu0 %v520
        %v620 = vpop.f32.mrf.mxu0
        %v621 = vadd.f32 0.0, %v620
        %v622 = vpop.f32.mrf.mxu0
        %v623 = vpop.f32.mrf.mxu0
        %v624 = vpop.f32.mrf.mxu0
        %625 = vdwg.mxu0
        %v626 = vadd.f32 %v516, %v621
        %v627 = vld [vmem:[%s519] sm:$0xf]
        %s628 = scalar_lea.vmem %s1, 256
        %v629 = vld [vmem:[%s628] sm:$0xf]
        %v630 = vld [vmem:[%s628 + $0x4] sm:$0xf]
        %v631 = vld [vmem:[%s628 + $0x8] sm:$0xf]
        %v632 = vld [vmem:[%s628 + $0xc] sm:$0xf]
        %v633 = vld [vmem:[%s628 + $0x10] sm:$0xf]
        %v634 = vld [vmem:[%s628 + $0x14] sm:$0xf]
        %v635 = vld [vmem:[%s628 + $0x18] sm:$0xf]
        %v636 = vld [vmem:[%s628 + $0x1c] sm:$0xf]
        %v637 = vld [vmem:[%s628 + $0x20] sm:$0xf]
        %v638 = vld [vmem:[%s628 + $0x24] sm:$0xf]
        %v639 = vld [vmem:[%s628 + $0x28] sm:$0xf]
        %v640 = vld [vmem:[%s628 + $0x2c] sm:$0xf]
        %v641 = vld [vmem:[%s628 + $0x30] sm:$0xf]
        %v642 = vld [vmem:[%s628 + $0x34] sm:$0xf]
        %v643 = vld [vmem:[%s628 + $0x38] sm:$0xf]
        %v644 = vld [vmem:[%s628 + $0x3c] sm:$0xf]
        %v646 = vunpack.c.l.b16 %v627
        %v647 = vpack.c.b16 %v646, %v646
        %v649 = vshrl.u32 %v647, 16
        %v651 = vshll.u32 %v647, 16
        %v653 = vrot.slane %v651, 1
        %v654 = vor.u32 %v649, %v653
        %v672 = vunpack.c.l.b16 %v629
        %v673 = vunpack.c.l.b16 %v630
        %v674 = vunpack.c.l.b16 %v631
        %v675 = vunpack.c.l.b16 %v632
        %v676 = vunpack.c.l.b16 %v633
        %v677 = vunpack.c.l.b16 %v634
        %v678 = vunpack.c.l.b16 %v635
        %v679 = vunpack.c.l.b16 %v636
        %v680 = vunpack.c.l.b16 %v637
        %v681 = vunpack.c.l.b16 %v638
        %v682 = vunpack.c.l.b16 %v639
        %v683 = vunpack.c.l.b16 %v640
        %v684 = vunpack.c.l.b16 %v641
        %v685 = vunpack.c.l.b16 %v642
        %v686 = vunpack.c.l.b16 %v643
        %v687 = vunpack.c.l.b16 %v644
        %v688 = vpack.c.b16 %v673, %v672
        %v689 = vpack.c.b16 %v675, %v674
        %v690 = vpack.c.b16 %v677, %v676
        %v691 = vpack.c.b16 %v679, %v678
        %v692 = vpack.c.b16 %v681, %v680
        %v693 = vpack.c.b16 %v683, %v682
        %v694 = vpack.c.b16 %v685, %v684
        %v695 = vpack.c.b16 %v687, %v686
        %704 = vmatprep.subr.bf16.mxu0 0
        %705 = vmatpush1.bf16.msra.mxu0 %v695
        %706 = vmatprep.subr.bf16.mxu0 0
        %707 = vmatpush1.bf16.msra.mxu0 %v694
        %708 = vmatprep.subr.bf16.mxu0 0
        %709 = vmatpush1.bf16.msra.mxu0 %v693
        %710 = vmatprep.subr.bf16.mxu0 0
        %711 = vmatpush1.bf16.msra.mxu0 %v692
        %712 = vmatprep.subr.bf16.mxu0 0
        %713 = vmatpush1.bf16.msra.mxu0 %v691
        %714 = vmatprep.subr.bf16.mxu0 0
        %715 = vmatpush1.bf16.msra.mxu0 %v690
        %716 = vmatprep.subr.bf16.mxu0 0
        %717 = vmatpush1.bf16.msra.mxu0 %v689
        %718 = vmatprep.subr.bf16.mxu0 0
        %719 = vmatpush1.bf16.msra.mxu0 %v688
        %720 = vmatprep.subr.bf16.mxu0 0
        %721 = vmatpush2.bf16.msra.mxu0 0
        %722 = vmatprep.subr.bf16.mxu0 0
        %723 = vmatpush2.bf16.msra.mxu0 0
        %724 = vmatprep.subr.bf16.mxu0 0
        %725 = vmatpush2.bf16.msra.mxu0 0
        %726 = vmatprep.subr.bf16.mxu0 0
        %727 = vmatpush2.bf16.msra.mxu0 0
        %728 = vmatprep.subr.bf16.mxu0 0
        %729 = vmatpush2.bf16.msra.mxu0 0
        %730 = vmatprep.subr.bf16.mxu0 0
        %731 = vmatpush2.bf16.msra.mxu0 0
        %732 = vmatprep.subr.bf16.mxu0 0
        %733 = vmatpush2.bf16.msra.mxu0 0
        %734 = vmatprep.subr.bf16.mxu0 0
        %735 = vmatpush2.bf16.msra.mxu0 0
        %736 = vmatprep.mubr.bf16.mxu0 0
        %737 = vmatmul.mubr.bf16.gmra.mxu0 %v654
        %v738 = vpop.f32.mrf.mxu0
        %v739 = vadd.f32 0.0, %v738
        %v740 = vpop.f32.mrf.mxu0
        %v741 = vpop.f32.mrf.mxu0
        %v742 = vpop.f32.mrf.mxu0
        %743 = vdwg.mxu0
        %v744 = vadd.f32 %v626, %v739
        %v745 = vld [vmem:[%s519] sm:$0xe]
        %s746 = scalar_lea.vmem %s1, 320
        %v747 = vld [vmem:[%s746] sm:$0xf]
        %v748 = vld [vmem:[%s746 + $0x4] sm:$0xf]
        %v749 = vld [vmem:[%s746 + $0x8] sm:$0xf]
        %v750 = vld [vmem:[%s746 + $0xc] sm:$0xf]
        %v751 = vld [vmem:[%s746 + $0x10] sm:$0xf]
        %v752 = vld [vmem:[%s746 + $0x14] sm:$0xf]
        %v753 = vld [vmem:[%s746 + $0x18] sm:$0xf]
        %v754 = vld [vmem:[%s746 + $0x1c] sm:$0xf]
        %v755 = vld [vmem:[%s746 + $0x20] sm:$0xf]
        %v756 = vld [vmem:[%s746 + $0x24] sm:$0xf]
        %v757 = vld [vmem:[%s746 + $0x28] sm:$0xf]
        %v758 = vld [vmem:[%s746 + $0x2c] sm:$0xf]
        %v759 = vld [vmem:[%s746 + $0x30] sm:$0xf]
        %v760 = vld [vmem:[%s746 + $0x34] sm:$0xf]
        %v761 = vld [vmem:[%s746 + $0x38] sm:$0xf]
        %v762 = vld [vmem:[%s746 + $0x3c] sm:$0xf]
        %v764 = vunpack.c.l.b16 %v745
        %v765 = vpack.c.b16 %v764, %v764
        %v766 = vrot.slane %v765, 1
        %v784 = vunpack.c.l.b16 %v747
        %v785 = vunpack.c.l.b16 %v748
        %v786 = vunpack.c.l.b16 %v749
        %v787 = vunpack.c.l.b16 %v750
        %v788 = vunpack.c.l.b16 %v751
        %v789 = vunpack.c.l.b16 %v752
        %v790 = vunpack.c.l.b16 %v753
        %v791 = vunpack.c.l.b16 %v754
        %v792 = vunpack.c.l.b16 %v755
        %v793 = vunpack.c.l.b16 %v756
        %v794 = vunpack.c.l.b16 %v757
        %v795 = vunpack.c.l.b16 %v758
        %v796 = vunpack.c.l.b16 %v759
        %v797 = vunpack.c.l.b16 %v760
        %v798 = vunpack.c.l.b16 %v761
        %v799 = vunpack.c.l.b16 %v762
        %v800 = vpack.c.b16 %v785, %v784
        %v801 = vpack.c.b16 %v787, %v786
        %v802 = vpack.c.b16 %v789, %v788
        %v803 = vpack.c.b16 %v791, %v790
        %v804 = vpack.c.b16 %v793, %v792
        %v805 = vpack.c.b16 %v795, %v794
        %v806 = vpack.c.b16 %v797, %v796
        %v807 = vpack.c.b16 %v799, %v798
        %816 = vmatprep.subr.bf16.mxu0 0
        %817 = vmatpush1.bf16.msra.mxu0 %v807
        %818 = vmatprep.subr.bf16.mxu0 0
        %819 = vmatpush1.bf16.msra.mxu0 %v806
        %820 = vmatprep.subr.bf16.mxu0 0
        %821 = vmatpush1.bf16.msra.mxu0 %v805
        %822 = vmatprep.subr.bf16.mxu0 0
        %823 = vmatpush1.bf16.msra.mxu0 %v804
        %824 = vmatprep.subr.bf16.mxu0 0
        %825 = vmatpush1.bf16.msra.mxu0 %v803
        %826 = vmatprep.subr.bf16.mxu0 0
        %827 = vmatpush1.bf16.msra.mxu0 %v802
        %828 = vmatprep.subr.bf16.mxu0 0
        %829 = vmatpush1.bf16.msra.mxu0 %v801
        %830 = vmatprep.subr.bf16.mxu0 0
        %831 = vmatpush1.bf16.msra.mxu0 %v800
        %832 = vmatprep.subr.bf16.mxu0 0
        %833 = vmatpush2.bf16.msra.mxu0 0
        %834 = vmatprep.subr.bf16.mxu0 0
        %835 = vmatpush2.bf16.msra.mxu0 0
        %836 = vmatprep.subr.bf16.mxu0 0
        %837 = vmatpush2.bf16.msra.mxu0 0
        %838 = vmatprep.subr.bf16.mxu0 0
        %839 = vmatpush2.bf16.msra.mxu0 0
        %840 = vmatprep.subr.bf16.mxu0 0
        %841 = vmatpush2.bf16.msra.mxu0 0
        %842 = vmatprep.subr.bf16.mxu0 0
        %843 = vmatpush2.bf16.msra.mxu0 0
        %844 = vmatprep.subr.bf16.mxu0 0
        %845 = vmatpush2.bf16.msra.mxu0 0
        %846 = vmatprep.subr.bf16.mxu0 0
        %847 = vmatpush2.bf16.msra.mxu0 0
        %848 = vmatprep.mubr.bf16.mxu0 0
        %849 = vmatmul.mubr.bf16.gmra.mxu0 %v766
        %v850 = vpop.f32.mrf.mxu0
        %v851 = vadd.f32 0.0, %v850
        %v852 = vpop.f32.mrf.mxu0
        %v853 = vpop.f32.mrf.mxu0
        %v854 = vpop.f32.mrf.mxu0
        %855 = vdwg.mxu0
        %v856 = vadd.f32 %v744, %v851
        %s857 = sadd.s32 %s176, 2
        %s858 = smul.addr %s857, 4
        %s859 = scalar_lea.vmem %s165, %s858
        %v860 = vld [vmem:[%s859] sm:$0x7]
        %s861 = scalar_lea.vmem %s1, 384
        %v862 = vld [vmem:[%s861] sm:$0xf]
        %v863 = vld [vmem:[%s861 + $0x4] sm:$0xf]
        %v864 = vld [vmem:[%s861 + $0x8] sm:$0xf]
        %v865 = vld [vmem:[%s861 + $0xc] sm:$0xf]
        %v866 = vld [vmem:[%s861 + $0x10] sm:$0xf]
        %v867 = vld [vmem:[%s861 + $0x14] sm:$0xf]
        %v868 = vld [vmem:[%s861 + $0x18] sm:$0xf]
        %v869 = vld [vmem:[%s861 + $0x1c] sm:$0xf]
        %v870 = vld [vmem:[%s861 + $0x20] sm:$0xf]
        %v871 = vld [vmem:[%s861 + $0x24] sm:$0xf]
        %v872 = vld [vmem:[%s861 + $0x28] sm:$0xf]
        %v873 = vld [vmem:[%s861 + $0x2c] sm:$0xf]
        %v874 = vld [vmem:[%s861 + $0x30] sm:$0xf]
        %v875 = vld [vmem:[%s861 + $0x34] sm:$0xf]
        %v876 = vld [vmem:[%s861 + $0x38] sm:$0xf]
        %v877 = vld [vmem:[%s861 + $0x3c] sm:$0xf]
        %v894 = vunpack.c.l.b16 %v862
        %v895 = vunpack.c.l.b16 %v863
        %v896 = vunpack.c.l.b16 %v864
        %v897 = vunpack.c.l.b16 %v865
        %v898 = vunpack.c.l.b16 %v866
        %v899 = vunpack.c.l.b16 %v867
        %v900 = vunpack.c.l.b16 %v868
        %v901 = vunpack.c.l.b16 %v869
        %v902 = vunpack.c.l.b16 %v870
        %v903 = vunpack.c.l.b16 %v871
        %v904 = vunpack.c.l.b16 %v872
        %v905 = vunpack.c.l.b16 %v873
        %v906 = vunpack.c.l.b16 %v874
        %v907 = vunpack.c.l.b16 %v875
        %v908 = vunpack.c.l.b16 %v876
        %v909 = vunpack.c.l.b16 %v877
        %v910 = vpack.c.b16 %v895, %v894
        %v911 = vpack.c.b16 %v897, %v896
        %v912 = vpack.c.b16 %v899, %v898
        %v913 = vpack.c.b16 %v901, %v900
        %v914 = vpack.c.b16 %v903, %v902
        %v915 = vpack.c.b16 %v905, %v904
        %v916 = vpack.c.b16 %v907, %v906
        %v917 = vpack.c.b16 %v909, %v908
        %926 = vmatprep.subr.bf16.mxu0 0
        %927 = vmatpush1.bf16.msra.mxu0 %v917
        %928 = vmatprep.subr.bf16.mxu0 0
        %929 = vmatpush1.bf16.msra.mxu0 %v916
        %930 = vmatprep.subr.bf16.mxu0 0
        %931 = vmatpush1.bf16.msra.mxu0 %v915
        %932 = vmatprep.subr.bf16.mxu0 0
        %933 = vmatpush1.bf16.msra.mxu0 %v914
        %934 = vmatprep.subr.bf16.mxu0 0
        %935 = vmatpush1.bf16.msra.mxu0 %v913
        %936 = vmatprep.subr.bf16.mxu0 0
        %937 = vmatpush1.bf16.msra.mxu0 %v912
        %938 = vmatprep.subr.bf16.mxu0 0
        %939 = vmatpush1.bf16.msra.mxu0 %v911
        %940 = vmatprep.subr.bf16.mxu0 0
        %941 = vmatpush1.bf16.msra.mxu0 %v910
        %942 = vmatprep.subr.bf16.mxu0 0
        %943 = vmatpush2.bf16.msra.mxu0 0
        %944 = vmatprep.subr.bf16.mxu0 0
        %945 = vmatpush2.bf16.msra.mxu0 0
        %946 = vmatprep.subr.bf16.mxu0 0
        %947 = vmatpush2.bf16.msra.mxu0 0
        %948 = vmatprep.subr.bf16.mxu0 0
        %949 = vmatpush2.bf16.msra.mxu0 0
        %950 = vmatprep.subr.bf16.mxu0 0
        %951 = vmatpush2.bf16.msra.mxu0 0
        %952 = vmatprep.subr.bf16.mxu0 0
        %953 = vmatpush2.bf16.msra.mxu0 0
        %954 = vmatprep.subr.bf16.mxu0 0
        %955 = vmatpush2.bf16.msra.mxu0 0
        %956 = vmatprep.subr.bf16.mxu0 0
        %957 = vmatpush2.bf16.msra.mxu0 0
        %958 = vmatprep.mubr.bf16.mxu0 0
        %959 = vmatmul.mubr.bf16.gmra.mxu0 %v860
        %v960 = vpop.f32.mrf.mxu0
        %v961 = vadd.f32 0.0, %v960
        %v962 = vpop.f32.mrf.mxu0
        %v963 = vpop.f32.mrf.mxu0
        %v964 = vpop.f32.mrf.mxu0
        %965 = vdwg.mxu0
        %v966 = vadd.f32 %v856, %v961
        %v967 = vld [vmem:[%s859] sm:$0xf]
        %s968 = scalar_lea.vmem %s1, 448
        %v969 = vld [vmem:[%s968] sm:$0xf]
        %v970 = vld [vmem:[%s968 + $0x4] sm:$0xf]
        %v971 = vld [vmem:[%s968 + $0x8] sm:$0xf]
        %v972 = vld [vmem:[%s968 + $0xc] sm:$0xf]
        %v973 = vld [vmem:[%s968 + $0x10] sm:$0xf]
        %v974 = vld [vmem:[%s968 + $0x14] sm:$0xf]
        %v975 = vld [vmem:[%s968 + $0x18] sm:$0xf]
        %v976 = vld [vmem:[%s968 + $0x1c] sm:$0xf]
        %v977 = vld [vmem:[%s968 + $0x20] sm:$0xf]
        %v978 = vld [vmem:[%s968 + $0x24] sm:$0xf]
        %v979 = vld [vmem:[%s968 + $0x28] sm:$0xf]
        %v980 = vld [vmem:[%s968 + $0x2c] sm:$0xf]
        %v981 = vld [vmem:[%s968 + $0x30] sm:$0xf]
        %v982 = vld [vmem:[%s968 + $0x34] sm:$0xf]
        %v983 = vld [vmem:[%s968 + $0x38] sm:$0xf]
        %v984 = vld [vmem:[%s968 + $0x3c] sm:$0xf]
        %v986 = vunpack.c.l.b16 %v967
        %v987 = vpack.c.b16 %v986, %v986
        %v989 = vshrl.u32 %v987, 16
        %v991 = vshll.u32 %v987, 16
        %v993 = vrot.slane %v991, 1
        %v994 = vor.u32 %v989, %v993
        %v1012 = vunpack.c.l.b16 %v969
        %v1013 = vunpack.c.l.b16 %v970
        %v1014 = vunpack.c.l.b16 %v971
        %v1015 = vunpack.c.l.b16 %v972
        %v1016 = vunpack.c.l.b16 %v973
        %v1017 = vunpack.c.l.b16 %v974
        %v1018 = vunpack.c.l.b16 %v975
        %v1019 = vunpack.c.l.b16 %v976
        %v1020 = vunpack.c.l.b16 %v977
        %v1021 = vunpack.c.l.b16 %v978
        %v1022 = vunpack.c.l.b16 %v979
        %v1023 = vunpack.c.l.b16 %v980
        %v1024 = vunpack.c.l.b16 %v981
        %v1025 = vunpack.c.l.b16 %v982
        %v1026 = vunpack.c.l.b16 %v983
        %v1027 = vunpack.c.l.b16 %v984
        %v1028 = vpack.c.b16 %v1013, %v1012
        %v1029 = vpack.c.b16 %v1015, %v1014
        %v1030 = vpack.c.b16 %v1017, %v1016
        %v1031 = vpack.c.b16 %v1019, %v1018
        %v1032 = vpack.c.b16 %v1021, %v1020
        %v1033 = vpack.c.b16 %v1023, %v1022
        %v1034 = vpack.c.b16 %v1025, %v1024
        %v1035 = vpack.c.b16 %v1027, %v1026
        %1044 = vmatprep.subr.bf16.mxu0 0
        %1045 = vmatpush1.bf16.msra.mxu0 %v1035
        %1046 = vmatprep.subr.bf16.mxu0 0
        %1047 = vmatpush1.bf16.msra.mxu0 %v1034
        %1048 = vmatprep.subr.bf16.mxu0 0
        %1049 = vmatpush1.bf16.msra.mxu0 %v1033
        %1050 = vmatprep.subr.bf16.mxu0 0
        %1051 = vmatpush1.bf16.msra.mxu0 %v1032
        %1052 = vmatprep.subr.bf16.mxu0 0
        %1053 = vmatpush1.bf16.msra.mxu0 %v1031
        %1054 = vmatprep.subr.bf16.mxu0 0
        %1055 = vmatpush1.bf16.msra.mxu0 %v1030
        %1056 = vmatprep.subr.bf16.mxu0 0
        %1057 = vmatpush1.bf16.msra.mxu0 %v1029
        %1058 = vmatprep.subr.bf16.mxu0 0
        %1059 = vmatpush1.bf16.msra.mxu0 %v1028
        %1060 = vmatprep.subr.bf16.mxu0 0
        %1061 = vmatpush2.bf16.msra.mxu0 0
        %1062 = vmatprep.subr.bf16.mxu0 0
        %1063 = vmatpush2.bf16.msra.mxu0 0
        %1064 = vmatprep.subr.bf16.mxu0 0
        %1065 = vmatpush2.bf16.msra.mxu0 0
        %1066 = vmatprep.subr.bf16.mxu0 0
        %1067 = vmatpush2.bf16.msra.mxu0 0
        %1068 = vmatprep.subr.bf16.mxu0 0
        %1069 = vmatpush2.bf16.msra.mxu0 0
        %1070 = vmatprep.subr.bf16.mxu0 0
        %1071 = vmatpush2.bf16.msra.mxu0 0
        %1072 = vmatprep.subr.bf16.mxu0 0
        %1073 = vmatpush2.bf16.msra.mxu0 0
        %1074 = vmatprep.subr.bf16.mxu0 0
        %1075 = vmatpush2.bf16.msra.mxu0 0
        %1076 = vmatprep.mubr.bf16.mxu0 0
        %1077 = vmatmul.mubr.bf16.gmra.mxu0 %v994
        %v1078 = vpop.f32.mrf.mxu0
        %v1079 = vadd.f32 0.0, %v1078
        %v1080 = vpop.f32.mrf.mxu0
        %v1081 = vpop.f32.mrf.mxu0
        %v1082 = vpop.f32.mrf.mxu0
        %1083 = vdwg.mxu0
        %v1084 = vadd.f32 %v966, %v1079
        %v1085 = vld [vmem:[%s859] sm:$0xe]
        %s1086 = scalar_lea.vmem %s1, 512
        %v1087 = vld [vmem:[%s1086] sm:$0xf]
        %v1088 = vld [vmem:[%s1086 + $0x4] sm:$0xf]
        %v1089 = vld [vmem:[%s1086 + $0x8] sm:$0xf]
        %v1090 = vld [vmem:[%s1086 + $0xc] sm:$0xf]
        %v1091 = vld [vmem:[%s1086 + $0x10] sm:$0xf]
        %v1092 = vld [vmem:[%s1086 + $0x14] sm:$0xf]
        %v1093 = vld [vmem:[%s1086 + $0x18] sm:$0xf]
        %v1094 = vld [vmem:[%s1086 + $0x1c] sm:$0xf]
        %v1095 = vld [vmem:[%s1086 + $0x20] sm:$0xf]
        %v1096 = vld [vmem:[%s1086 + $0x24] sm:$0xf]
        %v1097 = vld [vmem:[%s1086 + $0x28] sm:$0xf]
        %v1098 = vld [vmem:[%s1086 + $0x2c] sm:$0xf]
        %v1099 = vld [vmem:[%s1086 + $0x30] sm:$0xf]
        %v1100 = vld [vmem:[%s1086 + $0x34] sm:$0xf]
        %v1101 = vld [vmem:[%s1086 + $0x38] sm:$0xf]
        %v1102 = vld [vmem:[%s1086 + $0x3c] sm:$0xf]
        %v1104 = vunpack.c.l.b16 %v1085
        %v1105 = vpack.c.b16 %v1104, %v1104
        %v1106 = vrot.slane %v1105, 1
        %v1124 = vunpack.c.l.b16 %v1087
        %v1125 = vunpack.c.l.b16 %v1088
        %v1126 = vunpack.c.l.b16 %v1089
        %v1127 = vunpack.c.l.b16 %v1090
        %v1128 = vunpack.c.l.b16 %v1091
        %v1129 = vunpack.c.l.b16 %v1092
        %v1130 = vunpack.c.l.b16 %v1093
        %v1131 = vunpack.c.l.b16 %v1094
        %v1132 = vunpack.c.l.b16 %v1095
        %v1133 = vunpack.c.l.b16 %v1096
        %v1134 = vunpack.c.l.b16 %v1097
        %v1135 = vunpack.c.l.b16 %v1098
        %v1136 = vunpack.c.l.b16 %v1099
        %v1137 = vunpack.c.l.b16 %v1100
        %v1138 = vunpack.c.l.b16 %v1101
        %v1139 = vunpack.c.l.b16 %v1102
        %v1140 = vpack.c.b16 %v1125, %v1124
        %v1141 = vpack.c.b16 %v1127, %v1126
        %v1142 = vpack.c.b16 %v1129, %v1128
        %v1143 = vpack.c.b16 %v1131, %v1130
        %v1144 = vpack.c.b16 %v1133, %v1132
        %v1145 = vpack.c.b16 %v1135, %v1134
        %v1146 = vpack.c.b16 %v1137, %v1136
        %v1147 = vpack.c.b16 %v1139, %v1138
        %1156 = vmatprep.subr.bf16.mxu0 0
        %1157 = vmatpush1.bf16.msra.mxu0 %v1147
        %1158 = vmatprep.subr.bf16.mxu0 0
        %1159 = vmatpush1.bf16.msra.mxu0 %v1146
        %1160 = vmatprep.subr.bf16.mxu0 0
        %1161 = vmatpush1.bf16.msra.mxu0 %v1145
        %1162 = vmatprep.subr.bf16.mxu0 0
        %1163 = vmatpush1.bf16.msra.mxu0 %v1144
        %1164 = vmatprep.subr.bf16.mxu0 0
        %1165 = vmatpush1.bf16.msra.mxu0 %v1143
        %1166 = vmatprep.subr.bf16.mxu0 0
        %1167 = vmatpush1.bf16.msra.mxu0 %v1142
        %1168 = vmatprep.subr.bf16.mxu0 0
        %1169 = vmatpush1.bf16.msra.mxu0 %v1141
        %1170 = vmatprep.subr.bf16.mxu0 0
        %1171 = vmatpush1.bf16.msra.mxu0 %v1140
        %1172 = vmatprep.subr.bf16.mxu0 0
        %1173 = vmatpush2.bf16.msra.mxu0 0
        %1174 = vmatprep.subr.bf16.mxu0 0
        %1175 = vmatpush2.bf16.msra.mxu0 0
        %1176 = vmatprep.subr.bf16.mxu0 0
        %1177 = vmatpush2.bf16.msra.mxu0 0
        %1178 = vmatprep.subr.bf16.mxu0 0
        %1179 = vmatpush2.bf16.msra.mxu0 0
        %1180 = vmatprep.subr.bf16.mxu0 0
        %1181 = vmatpush2.bf16.msra.mxu0 0
        %1182 = vmatprep.subr.bf16.mxu0 0
        %1183 = vmatpush2.bf16.msra.mxu0 0
        %1184 = vmatprep.subr.bf16.mxu0 0
        %1185 = vmatpush2.bf16.msra.mxu0 0
        %1186 = vmatprep.subr.bf16.mxu0 0
        %1187 = vmatpush2.bf16.msra.mxu0 0
        %1188 = vmatprep.mubr.bf16.mxu0 0
        %1189 = vmatmul.mubr.bf16.gmra.mxu0 %v1106
        %v1190 = vpop.f32.mrf.mxu0
        %v1191 = vadd.f32 0.0, %v1190
        %v1192 = vpop.f32.mrf.mxu0
        %v1193 = vpop.f32.mrf.mxu0
        %v1194 = vpop.f32.mrf.mxu0
        %1195 = vdwg.mxu0
        %v1196 = vadd.f32 %v1084, %v1191
        %v1197 = vlaneseq
        %v1198 = vshrl.u32 %v1197, 7
        %v1199 = vsub.s32 0, %v1198
        %v1200 = vrot.slane %v172, %v1199
        %v1201 = vadd.f32 %v1196, %v1200
        %v1202 = vmax.f32 %v1201, 0.0
        %v1203 = vlaneseq
        %v1204 = vshrl.u32 %v1203, 7
        %v1205 = vsub.s32 0, %v1204
        %v1206 = vrot.slane %v173, %v1205
        %v1207 = vmul.f32 %v1202, %v1206
        %v1208 = vlaneseq
        %v1209 = vshrl.u32 %v1208, 7
        %v1210 = vsub.s32 0, %v1209
        %v1211 = vrot.slane %v174, %v1210
        %v1212 = vadd.f32 %v1207, %v1211
        %v1213 = vpack.c.bf16 %v1212, %v1212
        %s1214 = smul.addr %s176, 4
        %s1215 = scalar_lea.vmem %s170, %s1214
        %1216 = vst [vmem:[%s1215] sm:$0x7] %v1213
      $region37: #{mnist_net_forward.8} parent=31 // loop_footer
        %s180 = sadd.s32 1, %s176
      $region38: #{mnist_net_forward.8} parent=31 // loop_footer_branch
        %175 = sbr.rel target = $region34
      $region39: #{mnist_net_forward.8} parent=31 // loop_exit
        _
      %p1217 = scmp.lt.s32.totalorder %s14, 1
      %s1218 = scalar_select %p1217, %s14, 1
      %s1219 = smul.addr %s1218, 6
      %s1220 = smul.addr %s1219, 4
      %s1221 = scalar_lea.vmem %s3, %s1220
      // Predicated region
      $region40: #{mnist_net_forward.8} parent=31 // pred_check
        %p1222 = pneg %p100
      $region41: #{mnist_net_forward.8} parent=31 // pred_check_branch
        %1224 = sbr.rel (%p1222) target = $region43
      $region42: #{mnist_net_forward.8} parent=31 // pred_region
        _
      $region43: #{mnist_net_forward.8} parent=31 // pred_fallthru
        _
    $region32: #{mnist_net_forward.8} parent=5 // pred_fallthru
      _
    %p1225 = scmp.le.s32.totalorder 2, %s9
    // Predicated region
    $region44: #{mnist_net_forward.8} parent=5 // pred_check
      %p1226 = pneg %p1225
    $region45: #{mnist_net_forward.8} parent=5 // pred_check_branch
      %1228 = sbr.rel (%p1226) target = $region47
    $region46: #{mnist_net_forward.8} parent=5 // pred_region
      %s1229 = ssub.s32 %s9, 2
      // Predicated region
      $region48: #{mnist_net_forward.8} parent=46 // pred_check
        %p1230 = pneg %p106
      $region49: #{mnist_net_forward.8} parent=46 // pred_check_branch
        %1232 = sbr.rel (%p1230) target = $region51
      $region50: #{mnist_net_forward.8} parent=46 // pred_region
        %p1233 = scmp.lt.s32.totalorder %s15, 1
        %s1234 = scalar_select %p1233, %s15, 1
        %s1235 = smul.addr %s1234, 6
        %s1236 = smul.addr %s1235, 4
        %s1237 = scalar_lea.vmem %s3, %s1236
      $region51: #{mnist_net_forward.8} parent=46 // pred_fallthru
        _
    $region47: #{mnist_net_forward.8} parent=5 // pred_fallthru
      _
  $region6: #{mnist_net_forward.8} parent=0 // loop_footer
    %s13 = sadd.s32 1, %s9
  $region7: #{mnist_net_forward.8} parent=0 // loop_footer_branch
    %8 = sbr.rel target = $region3
  $region8: #{mnist_net_forward.8} parent=0 // loop_exit
    _

// kernel: mnist_net_forward.9
$region0: #{mnist_net_forward.9}
  #allocation0 [shape = 'u32[]', space=smem, size = 0x4, offset = 0x4, fixed_abs, tag = 'smem constant byte address 0x4 - core index']
  #allocation1 [shape = 'u32[144,128]{1,0:T(1,128)}', space=vmem, size = 0x12000, scoped, tag = 'internal scratch']
  %s0 = inlined_call_operand.vmem [shape: bf16[2,1152], index: 0, kind: input, shape index: {}]
  %s1 = inlined_call_operand.vmem [shape: bf16[1152,128], index: 1, kind: input, shape index: {}]
  %s2 = inlined_call_operand.vmem [shape: bf16[128,128], index: 2, kind: input, shape index: {}]
  %s3 = inlined_call_operand.vmem [shape: bf16[128,128], index: 3, kind: input, shape index: {}]
  %s4 = inlined_call_operand.vmem [shape: bf16[128,128], index: 4, kind: input, shape index: {}]
  %s5 = inlined_call_operand.vmem [shape: f32[8,128], index: 5, kind: input, shape index: {}]
  %s6 = inlined_call_operand.hbm [shape: f32[2,128], index: 6, kind: output, shape index: {}]
  %s7 = sld [smem:[#allocation0]]
  $region34: #{mnist_net_forward.9} parent=0
    _
  %s9 = ssub.s32 1, %s7
  %s10 = scalar_select 0, %s9, %s7
  $region1: #{mnist_net_forward.9} parent=0
    #allocation2 [shape = 'u8[1024]{0}', space=vmem, size = 0x400, scoped, tag = 'output window, operand 0, single buffered']
    #allocation3 [shape = 's32[1]{0}', space=sflag, size = 0x4, scoped, tag = 'scoped memory for mnist_net_forward.9']
    %11 = vsyncpa [#allocation3], 0
    // Predicated region
    $region2: #{mnist_net_forward.9} parent=1 // pred_check
      _
    $region3: #{mnist_net_forward.9} parent=1 // pred_check_branch
      %13 = sbr.rel (0) target = $region5
    $region4: #{mnist_net_forward.9} parent=1 // pred_region
      _
    $region5: #{mnist_net_forward.9} parent=1 // pred_fallthru
      _
    // Predicated region
    $region6: #{mnist_net_forward.9} parent=1 // pred_check
      _
    $region7: #{mnist_net_forward.9} parent=1 // pred_check_branch
      %15 = sbr.rel (0) target = $region9
    $region8: #{mnist_net_forward.9} parent=1 // pred_region
      _
    $region9: #{mnist_net_forward.9} parent=1 // pred_fallthru
      _
    // Predicated region
    $region10: #{mnist_net_forward.9} parent=1 // pred_check
      _
    $region11: #{mnist_net_forward.9} parent=1 // pred_check_branch
      %17 = sbr.rel (0) target = $region13
    $region12: #{mnist_net_forward.9} parent=1 // pred_region
      _
    $region13: #{mnist_net_forward.9} parent=1 // pred_fallthru
      _
    // Predicated region
    $region14: #{mnist_net_forward.9} parent=1 // pred_check
      _
    $region15: #{mnist_net_forward.9} parent=1 // pred_check_branch
      %19 = sbr.rel (0) target = $region17
    $region16: #{mnist_net_forward.9} parent=1 // pred_region
      _
    $region17: #{mnist_net_forward.9} parent=1 // pred_fallthru
      _
    // Predicated region
    $region18: #{mnist_net_forward.9} parent=1 // pred_check
      _
    $region19: #{mnist_net_forward.9} parent=1 // pred_check_branch
      %21 = sbr.rel (0) target = $region21
    $region20: #{mnist_net_forward.9} parent=1 // pred_region
      _
    $region21: #{mnist_net_forward.9} parent=1 // pred_fallthru
      _
    // Predicated region
    $region22: #{mnist_net_forward.9} parent=1 // pred_check
      _
    $region23: #{mnist_net_forward.9} parent=1 // pred_check_branch
      %23 = sbr.rel (0) target = $region25
    $region24: #{mnist_net_forward.9} parent=1 // pred_region
      _
    $region25: #{mnist_net_forward.9} parent=1 // pred_fallthru
      _
    %v25 = vld [vmem:[%s5] sm:$0x1]
    %v26 = vld [vmem:[%s5 + $0x1] sm:$0x1]
    %v27 = vld [vmem:[%s5 + $0x2] sm:$0x1]
    %v28 = vld [vmem:[%s5 + $0x3] sm:$0x1]
    %v29 = vld [vmem:[%s5 + $0x4] sm:$0x1]
    %v30 = vld [vmem:[%s5 + $0x5] sm:$0x1]
    %v31 = vld [vmem:[%s5 + $0x6] sm:$0x1]
    %v32 = vld [vmem:[%s5 + $0x7] sm:$0x1]
    %v33 = vld [vmem:[%s0] sm:$0xff]
    %v34 = vld [vmem:[%s0 + $0x8] sm:$0x1]
    %v35 = vld [vmem:[%s1] sm:$0xf]
    %v36 = vld [vmem:[%s1 + $0x4] sm:$0xf]
    %v37 = vld [vmem:[%s1 + $0x8] sm:$0xf]
    %v38 = vld [vmem:[%s1 + $0xc] sm:$0xf]
    %v39 = vld [vmem:[%s1 + $0x10] sm:$0xf]
    %v40 = vld [vmem:[%s1 + $0x14] sm:$0xf]
    %v41 = vld [vmem:[%s1 + $0x18] sm:$0xf]
    %v42 = vld [vmem:[%s1 + $0x1c] sm:$0xf]
    %v43 = vld [vmem:[%s1 + $0x20] sm:$0xf]
    %v44 = vld [vmem:[%s1 + $0x24] sm:$0xf]
    %v45 = vld [vmem:[%s1 + $0x28] sm:$0xf]
    %v46 = vld [vmem:[%s1 + $0x2c] sm:$0xf]
    %v47 = vld [vmem:[%s1 + $0x30] sm:$0xf]
    %v48 = vld [vmem:[%s1 + $0x34] sm:$0xf]
    %v49 = vld [vmem:[%s1 + $0x38] sm:$0xf]
    %v50 = vld [vmem:[%s1 + $0x3c] sm:$0xf]
    %v51 = vld [vmem:[%s1 + $0x40] sm:$0xf]
    %v52 = vld [vmem:[%s1 + $0x44] sm:$0xf]
    %v53 = vld [vmem:[%s1 + $0x48] sm:$0xf]
    %v54 = vld [vmem:[%s1 + $0x4c] sm:$0xf]
    %v55 = vld [vmem:[%s1 + $0x50] sm:$0xf]
    %v56 = vld [vmem:[%s1 + $0x54] sm:$0xf]
    %v57 = vld [vmem:[%s1 + $0x58] sm:$0xf]
    %v58 = vld [vmem:[%s1 + $0x5c] sm:$0xf]
    %v59 = vld [vmem:[%s1 + $0x60] sm:$0xf]
    %v60 = vld [vmem:[%s1 + $0x64] sm:$0xf]
    %v61 = vld [vmem:[%s1 + $0x68] sm:$0xf]
    %v62 = vld [vmem:[%s1 + $0x6c] sm:$0xf]
    %v63 = vld [vmem:[%s1 + $0x70] sm:$0xf]
    %v64 = vld [vmem:[%s1 + $0x74] sm:$0xf]
    %v65 = vld [vmem:[%s1 + $0x78] sm:$0xf]
    %v66 = vld [vmem:[%s1 + $0x7c] sm:$0xf]
    %v67 = vld [vmem:[%s1 + $0x80] sm:$0xf]
    %v68 = vld [vmem:[%s1 + $0x84] sm:$0xf]
    %v69 = vld [vmem:[%s1 + $0x88] sm:$0xf]
    %v70 = vld [vmem:[%s1 + $0x8c] sm:$0xf]
    %v71 = vld [vmem:[%s1 + $0x90] sm:$0xf]
    %v72 = vld [vmem:[%s1 + $0x94] sm:$0xf]
    %v73 = vld [vmem:[%s1 + $0x98] sm:$0xf]
    %v74 = vld [vmem:[%s1 + $0x9c] sm:$0xf]
    %v75 = vld [vmem:[%s1 + $0xa0] sm:$0xf]
    %v76 = vld [vmem:[%s1 + $0xa4] sm:$0xf]
    %v77 = vld [vmem:[%s1 + $0xa8] sm:$0xf]
    %v78 = vld [vmem:[%s1 + $0xac] sm:$0xf]
    %v79 = vld [vmem:[%s1 + $0xb0] sm:$0xf]
    %v80 = vld [vmem:[%s1 + $0xb4] sm:$0xf]
    %v81 = vld [vmem:[%s1 + $0xb8] sm:$0xf]
    %v82 = vld [vmem:[%s1 + $0xbc] sm:$0xf]
    %v83 = vld [vmem:[%s1 + $0xc0] sm:$0xf]
    %v84 = vld [vmem:[%s1 + $0xc4] sm:$0xf]
    %v85 = vld [vmem:[%s1 + $0xc8] sm:$0xf]
    %v86 = vld [vmem:[%s1 + $0xcc] sm:$0xf]
    %v87 = vld [vmem:[%s1 + $0xd0] sm:$0xf]
    %v88 = vld [vmem:[%s1 + $0xd4] sm:$0xf]
    %v89 = vld [vmem:[%s1 + $0xd8] sm:$0xf]
    %v90 = vld [vmem:[%s1 + $0xdc] sm:$0xf]
    %v91 = vld [vmem:[%s1 + $0xe0] sm:$0xf]
    %v92 = vld [vmem:[%s1 + $0xe4] sm:$0xf]
    %v93 = vld [vmem:[%s1 + $0xe8] sm:$0xf]
    %v94 = vld [vmem:[%s1 + $0xec] sm:$0xf]
    %v95 = vld [vmem:[%s1 + $0xf0] sm:$0xf]
    %v96 = vld [vmem:[%s1 + $0xf4] sm:$0xf]
    %v97 = vld [vmem:[%s1 + $0xf8] sm:$0xf]
    %v98 = vld [vmem:[%s1 + $0xfc] sm:$0xf]
    %v99 = vld [vmem:[%s1 + $0x100] sm:$0xf]
    %v100 = vld [vmem:[%s1 + $0x104] sm:$0xf]
    %v101 = vld [vmem:[%s1 + $0x108] sm:$0xf]
    %v102 = vld [vmem:[%s1 + $0x10c] sm:$0xf]
    %v103 = vld [vmem:[%s1 + $0x110] sm:$0xf]
    %v104 = vld [vmem:[%s1 + $0x114] sm:$0xf]
    %v105 = vld [vmem:[%s1 + $0x118] sm:$0xf]
    %v106 = vld [vmem:[%s1 + $0x11c] sm:$0xf]
    %v107 = vld [vmem:[%s1 + $0x120] sm:$0xf]
    %v108 = vld [vmem:[%s1 + $0x124] sm:$0xf]
    %v109 = vld [vmem:[%s1 + $0x128] sm:$0xf]
    %v110 = vld [vmem:[%s1 + $0x12c] sm:$0xf]
    %v111 = vld [vmem:[%s1 + $0x130] sm:$0xf]
    %v112 = vld [vmem:[%s1 + $0x134] sm:$0xf]
    %v113 = vld [vmem:[%s1 + $0x138] sm:$0xf]
    %v114 = vld [vmem:[%s1 + $0x13c] sm:$0xf]
    %v115 = vld [vmem:[%s1 + $0x140] sm:$0xf]
    %v116 = vld [vmem:[%s1 + $0x144] sm:$0xf]
    %v117 = vld [vmem:[%s1 + $0x148] sm:$0xf]
    %v118 = vld [vmem:[%s1 + $0x14c] sm:$0xf]
    %v119 = vld [vmem:[%s1 + $0x150] sm:$0xf]
    %v120 = vld [vmem:[%s1 + $0x154] sm:$0xf]
    %v121 = vld [vmem:[%s1 + $0x158] sm:$0xf]
    %v122 = vld [vmem:[%s1 + $0x15c] sm:$0xf]
    %v123 = vld [vmem:[%s1 + $0x160] sm:$0xf]
    %v124 = vld [vmem:[%s1 + $0x164] sm:$0xf]
    %v125 = vld [vmem:[%s1 + $0x168] sm:$0xf]
    %v126 = vld [vmem:[%s1 + $0x16c] sm:$0xf]
    %v127 = vld [vmem:[%s1 + $0x170] sm:$0xf]
    %v128 = vld [vmem:[%s1 + $0x174] sm:$0xf]
    %v129 = vld [vmem:[%s1 + $0x178] sm:$0xf]
    %v130 = vld [vmem:[%s1 + $0x17c] sm:$0xf]
    %v131 = vld [vmem:[%s1 + $0x180] sm:$0xf]
    %v132 = vld [vmem:[%s1 + $0x184] sm:$0xf]
    %v133 = vld [vmem:[%s1 + $0x188] sm:$0xf]
    %v134 = vld [vmem:[%s1 + $0x18c] sm:$0xf]
    %v135 = vld [vmem:[%s1 + $0x190] sm:$0xf]
    %v136 = vld [vmem:[%s1 + $0x194] sm:$0xf]
    %v137 = vld [vmem:[%s1 + $0x198] sm:$0xf]
    %v138 = vld [vmem:[%s1 + $0x19c] sm:$0xf]
    %v139 = vld [vmem:[%s1 + $0x1a0] sm:$0xf]
    %v140 = vld [vmem:[%s1 + $0x1a4] sm:$0xf]
    %v141 = vld [vmem:[%s1 + $0x1a8] sm:$0xf]
    %v142 = vld [vmem:[%s1 + $0x1ac] sm:$0xf]
    %v143 = vld [vmem:[%s1 + $0x1b0] sm:$0xf]
    %v144 = vld [vmem:[%s1 + $0x1b4] sm:$0xf]
    %v145 = vld [vmem:[%s1 + $0x1b8] sm:$0xf]
    %v146 = vld [vmem:[%s1 + $0x1bc] sm:$0xf]
    %v147 = vld [vmem:[%s1 + $0x1c0] sm:$0xf]
    %v148 = vld [vmem:[%s1 + $0x1c4] sm:$0xf]
    %v149 = vld [vmem:[%s1 + $0x1c8] sm:$0xf]
    %v150 = vld [vmem:[%s1 + $0x1cc] sm:$0xf]
    %v151 = vld [vmem:[%s1 + $0x1d0] sm:$0xf]
    %v152 = vld [vmem:[%s1 + $0x1d4] sm:$0xf]
    %v153 = vld [vmem:[%s1 + $0x1d8] sm:$0xf]
    %v154 = vld [vmem:[%s1 + $0x1dc] sm:$0xf]
    %v155 = vld [vmem:[%s1 + $0x1e0] sm:$0xf]
    %v156 = vld [vmem:[%s1 + $0x1e4] sm:$0xf]
    %v157 = vld [vmem:[%s1 + $0x1e8] sm:$0xf]
    %v158 = vld [vmem:[%s1 + $0x1ec] sm:$0xf]
    %v159 = vld [vmem:[%s1 + $0x1f0] sm:$0xf]
    %v160 = vld [vmem:[%s1 + $0x1f4] sm:$0xf]
    %v161 = vld [vmem:[%s1 + $0x1f8] sm:$0xf]
    %v162 = vld [vmem:[%s1 + $0x1fc] sm:$0xf]
    %v163 = vld [vmem:[%s1 + $0x200] sm:$0xf]
    %v164 = vld [vmem:[%s1 + $0x204] sm:$0xf]
    %v165 = vld [vmem:[%s1 + $0x208] sm:$0xf]
    %v166 = vld [vmem:[%s1 + $0x20c] sm:$0xf]
    %v167 = vld [vmem:[%s1 + $0x210] sm:$0xf]
    %v168 = vld [vmem:[%s1 + $0x214] sm:$0xf]
    %v169 = vld [vmem:[%s1 + $0x218] sm:$0xf]
    %v170 = vld [vmem:[%s1 + $0x21c] sm:$0xf]
    %v171 = vld [vmem:[%s1 + $0x220] sm:$0xf]
    %v172 = vld [vmem:[%s1 + $0x224] sm:$0xf]
    %v173 = vld [vmem:[%s1 + $0x228] sm:$0xf]
    %v174 = vld [vmem:[%s1 + $0x22c] sm:$0xf]
    %v175 = vld [vmem:[%s1 + $0x230] sm:$0xf]
    %v176 = vld [vmem:[%s1 + $0x234] sm:$0xf]
    %v177 = vld [vmem:[%s1 + $0x238] sm:$0xf]
    %v178 = vld [vmem:[%s1 + $0x23c] sm:$0xf]
    %v179 = vlaneseq
    %v180 = vshrl.u32 %v179, 7
    %v181 = vsub.s32 0, %v180
    %v182 = vrot.slane %v25, %v181
    %v185 = vcombine.high %v33, %v33
    %v187 = vunpack.c.l.s4 1966171168
    %v188 = vunpack.c.0.s8 %v187
    %v189 = vlaneseq
    %v190 = vshrl.u32 %v189, 7
    %v191 = vsub.s32 %v188, %v190
    %v192 = vrot.slane %v33, %v191
    %v194 = vunpack.c.l.s4 1966171168
    %v195 = vunpack.c.0.s8 %v194
    %v196 = vlaneseq
    %v197 = vshrl.u32 %v196, 7
    %v198 = vsub.s32 %v195, %v197
    %v199 = vrot.slane %v185, %v198
    %v200 = vcombine.high %v192, %v192
    %v201 = vcombine.high %v199, %v199
    %v203 = vunpack.c.l.s4 1966171168
    %v204 = vunpack.c.0.s8 %v203
    %v205 = vlaneseq
    %v206 = vshrl.u32 %v205, 7
    %v207 = vsub.s32 %v204, %v206
    %v208 = vrot.slane %v192, %v207
    %v210 = vunpack.c.l.s4 1966171168
    %v211 = vunpack.c.0.s8 %v210
    %v212 = vlaneseq
    %v213 = vshrl.u32 %v212, 7
    %v214 = vsub.s32 %v211, %v213
    %v215 = vrot.slane %v199, %v214
    %v217 = vunpack.c.l.s4 1966171168
    %v218 = vunpack.c.0.s8 %v217
    %v219 = vlaneseq
    %v220 = vshrl.u32 %v219, 7
    %v221 = vsub.s32 %v218, %v220
    %v222 = vrot.slane %v200, %v221
    %v224 = vunpack.c.l.s4 1966171168
    %v225 = vunpack.c.0.s8 %v224
    %v226 = vlaneseq
    %v227 = vshrl.u32 %v226, 7
    %v228 = vsub.s32 %v225, %v227
    %v229 = vrot.slane %v201, %v228
    %v230 = vcombine.high %v208, %v208
    %v231 = vcombine.high %v215, %v215
    %v232 = vcombine.high %v222, %v222
    %v233 = vcombine.high %v229, %v229
    %v235 = vunpack.c.l.s4 1966171168
    %v236 = vunpack.c.0.s8 %v235
    %v237 = vlaneseq
    %v238 = vshrl.u32 %v237, 7
    %v239 = vsub.s32 %v236, %v238
    %v240 = vrot.slane %v34, %v239
    %v242 = vunpack.c.l.s4 1966171168
    %v243 = vunpack.c.0.s8 %v242
    %v244 = vlaneseq
    %v245 = vshrl.u32 %v244, 7
    %v246 = vsub.s32 %v243, %v245
    %v247 = vrot.slane %v240, %v246
    %v401 = vunpack.c.l.b16 %v35
    %v402 = vunpack.c.l.b16 %v36
    %v403 = vunpack.c.l.b16 %v37
    %v404 = vunpack.c.l.b16 %v38
    %v405 = vunpack.c.l.b16 %v39
    %v406 = vunpack.c.l.b16 %v40
    %v407 = vunpack.c.l.b16 %v41
    %v408 = vunpack.c.l.b16 %v42
    %v409 = vunpack.c.l.b16 %v43
    %v410 = vunpack.c.l.b16 %v44
    %v411 = vunpack.c.l.b16 %v45
    %v412 = vunpack.c.l.b16 %v46
    %v413 = vunpack.c.l.b16 %v47
    %v414 = vunpack.c.l.b16 %v48
    %v415 = vunpack.c.l.b16 %v49
    %v416 = vunpack.c.l.b16 %v50
    %v417 = vunpack.c.l.b16 %v51
    %v418 = vunpack.c.l.b16 %v52
    %v419 = vunpack.c.l.b16 %v53
    %v420 = vunpack.c.l.b16 %v54
    %v421 = vunpack.c.l.b16 %v55
    %v422 = vunpack.c.l.b16 %v56
    %v423 = vunpack.c.l.b16 %v57
    %v424 = vunpack.c.l.b16 %v58
    %v425 = vunpack.c.l.b16 %v59
    %v426 = vunpack.c.l.b16 %v60
    %v427 = vunpack.c.l.b16 %v61
    %v428 = vunpack.c.l.b16 %v62
    %v429 = vunpack.c.l.b16 %v63
    %v430 = vunpack.c.l.b16 %v64
    %v431 = vunpack.c.l.b16 %v65
    %v432 = vunpack.c.l.b16 %v66
    %v433 = vunpack.c.l.b16 %v67
    %v434 = vunpack.c.l.b16 %v68
    %v435 = vunpack.c.l.b16 %v69
    %v436 = vunpack.c.l.b16 %v70
    %v437 = vunpack.c.l.b16 %v71
    %v438 = vunpack.c.l.b16 %v72
    %v439 = vunpack.c.l.b16 %v73
    %v440 = vunpack.c.l.b16 %v74
    %v441 = vunpack.c.l.b16 %v75
    %v442 = vunpack.c.l.b16 %v76
    %v443 = vunpack.c.l.b16 %v77
    %v444 = vunpack.c.l.b16 %v78
    %v445 = vunpack.c.l.b16 %v79
    %v446 = vunpack.c.l.b16 %v80
    %v447 = vunpack.c.l.b16 %v81
    %v448 = vunpack.c.l.b16 %v82
    %v449 = vunpack.c.l.b16 %v83
    %v450 = vunpack.c.l.b16 %v84
    %v451 = vunpack.c.l.b16 %v85
    %v452 = vunpack.c.l.b16 %v86
    %v453 = vunpack.c.l.b16 %v87
    %v454 = vunpack.c.l.b16 %v88
    %v455 = vunpack.c.l.b16 %v89
    %v456 = vunpack.c.l.b16 %v90
    %v457 = vunpack.c.l.b16 %v91
    %v458 = vunpack.c.l.b16 %v92
    %v459 = vunpack.c.l.b16 %v93
    %v460 = vunpack.c.l.b16 %v94
    %v461 = vunpack.c.l.b16 %v95
    %v462 = vunpack.c.l.b16 %v96
    %v463 = vunpack.c.l.b16 %v97
    %v464 = vunpack.c.l.b16 %v98
    %v465 = vunpack.c.l.b16 %v99
    %v466 = vunpack.c.l.b16 %v100
    %v467 = vunpack.c.l.b16 %v101
    %v468 = vunpack.c.l.b16 %v102
    %v469 = vunpack.c.l.b16 %v103
    %v470 = vunpack.c.l.b16 %v104
    %v471 = vunpack.c.l.b16 %v105
    %v472 = vunpack.c.l.b16 %v106
    %v473 = vunpack.c.l.b16 %v107
    %v474 = vunpack.c.l.b16 %v108
    %v475 = vunpack.c.l.b16 %v109
    %v476 = vunpack.c.l.b16 %v110
    %v477 = vunpack.c.l.b16 %v111
    %v478 = vunpack.c.l.b16 %v112
    %v479 = vunpack.c.l.b16 %v113
    %v480 = vunpack.c.l.b16 %v114
    %v481 = vunpack.c.l.b16 %v115
    %v482 = vunpack.c.l.b16 %v116
    %v483 = vunpack.c.l.b16 %v117
    %v484 = vunpack.c.l.b16 %v118
    %v485 = vunpack.c.l.b16 %v119
    %v486 = vunpack.c.l.b16 %v120
    %v487 = vunpack.c.l.b16 %v121
    %v488 = vunpack.c.l.b16 %v122
    %v489 = vunpack.c.l.b16 %v123
    %v490 = vunpack.c.l.b16 %v124
    %v491 = vunpack.c.l.b16 %v125
    %v492 = vunpack.c.l.b16 %v126
    %v493 = vunpack.c.l.b16 %v127
    %v494 = vunpack.c.l.b16 %v128
    %v495 = vunpack.c.l.b16 %v129
    %v496 = vunpack.c.l.b16 %v130
    %v497 = vunpack.c.l.b16 %v131
    %v498 = vunpack.c.l.b16 %v132
    %v499 = vunpack.c.l.b16 %v133
    %v500 = vunpack.c.l.b16 %v134
    %v501 = vunpack.c.l.b16 %v135
    %v502 = vunpack.c.l.b16 %v136
    %v503 = vunpack.c.l.b16 %v137
    %v504 = vunpack.c.l.b16 %v138
    %v505 = vunpack.c.l.b16 %v139
    %v506 = vunpack.c.l.b16 %v140
    %v507 = vunpack.c.l.b16 %v141
    %v508 = vunpack.c.l.b16 %v142
    %v509 = vunpack.c.l.b16 %v143
    %v510 = vunpack.c.l.b16 %v144
    %v511 = vunpack.c.l.b16 %v145
    %v512 = vunpack.c.l.b16 %v146
    %v513 = vunpack.c.l.b16 %v147
    %v514 = vunpack.c.l.b16 %v148
    %v515 = vunpack.c.l.b16 %v149
    %v516 = vunpack.c.l.b16 %v150
    %v517 = vunpack.c.l.b16 %v151
    %v518 = vunpack.c.l.b16 %v152
    %v519 = vunpack.c.l.b16 %v153
    %v520 = vunpack.c.l.b16 %v154
    %v521 = vunpack.c.l.b16 %v155
    %v522 = vunpack.c.l.b16 %v156
    %v523 = vunpack.c.l.b16 %v157
    %v524 = vunpack.c.l.b16 %v158
    %v525 = vunpack.c.l.b16 %v159
    %v526 = vunpack.c.l.b16 %v160
    %v527 = vunpack.c.l.b16 %v161
    %v528 = vunpack.c.l.b16 %v162
    %v529 = vunpack.c.l.b16 %v163
    %v530 = vunpack.c.l.b16 %v164
    %v531 = vunpack.c.l.b16 %v165
    %v532 = vunpack.c.l.b16 %v166
    %v533 = vunpack.c.l.b16 %v167
    %v534 = vunpack.c.l.b16 %v168
    %v535 = vunpack.c.l.b16 %v169
    %v536 = vunpack.c.l.b16 %v170
    %v537 = vunpack.c.l.b16 %v171
    %v538 = vunpack.c.l.b16 %v172
    %v539 = vunpack.c.l.b16 %v173
    %v540 = vunpack.c.l.b16 %v174
    %v541 = vunpack.c.l.b16 %v175
    %v542 = vunpack.c.l.b16 %v176
    %v543 = vunpack.c.l.b16 %v177
    %v544 = vunpack.c.l.b16 %v178
    %v545 = vpack.c.b16 %v402, %v401
    %v546 = vpack.c.b16 %v404, %v403
    %v547 = vpack.c.b16 %v406, %v405
    %v548 = vpack.c.b16 %v408, %v407
    %v549 = vpack.c.b16 %v410, %v409
    %v550 = vpack.c.b16 %v412, %v411
    %v551 = vpack.c.b16 %v414, %v413
    %v552 = vpack.c.b16 %v416, %v415
    %v553 = vpack.c.b16 %v418, %v417
    %v554 = vpack.c.b16 %v420, %v419
    %v555 = vpack.c.b16 %v422, %v421
    %v556 = vpack.c.b16 %v424, %v423
    %v557 = vpack.c.b16 %v426, %v425
    %v558 = vpack.c.b16 %v428, %v427
    %v559 = vpack.c.b16 %v430, %v429
    %v560 = vpack.c.b16 %v432, %v431
    %v561 = vpack.c.b16 %v434, %v433
    %v562 = vpack.c.b16 %v436, %v435
    %v563 = vpack.c.b16 %v438, %v437
    %v564 = vpack.c.b16 %v440, %v439
    %v565 = vpack.c.b16 %v442, %v441
    %v566 = vpack.c.b16 %v444, %v443
    %v567 = vpack.c.b16 %v446, %v445
    %v568 = vpack.c.b16 %v448, %v447
    %v569 = vpack.c.b16 %v450, %v449
    %v570 = vpack.c.b16 %v452, %v451
    %v571 = vpack.c.b16 %v454, %v453
    %v572 = vpack.c.b16 %v456, %v455
    %v573 = vpack.c.b16 %v458, %v457
    %v574 = vpack.c.b16 %v460, %v459
    %v575 = vpack.c.b16 %v462, %v461
    %v576 = vpack.c.b16 %v464, %v463
    %v577 = vpack.c.b16 %v466, %v465
    %v578 = vpack.c.b16 %v468, %v467
    %v579 = vpack.c.b16 %v470, %v469
    %v580 = vpack.c.b16 %v472, %v471
    %v581 = vpack.c.b16 %v474, %v473
    %v582 = vpack.c.b16 %v476, %v475
    %v583 = vpack.c.b16 %v478, %v477
    %v584 = vpack.c.b16 %v480, %v479
    %v585 = vpack.c.b16 %v482, %v481
    %v586 = vpack.c.b16 %v484, %v483
    %v587 = vpack.c.b16 %v486, %v485
    %v588 = vpack.c.b16 %v488, %v487
    %v589 = vpack.c.b16 %v490, %v489
    %v590 = vpack.c.b16 %v492, %v491
    %v591 = vpack.c.b16 %v494, %v493
    %v592 = vpack.c.b16 %v496, %v495
    %v593 = vpack.c.b16 %v498, %v497
    %v594 = vpack.c.b16 %v500, %v499
    %v595 = vpack.c.b16 %v502, %v501
    %v596 = vpack.c.b16 %v504, %v503
    %v597 = vpack.c.b16 %v506, %v505
    %v598 = vpack.c.b16 %v508, %v507
    %v599 = vpack.c.b16 %v510, %v509
    %v600 = vpack.c.b16 %v512, %v511
    %v601 = vpack.c.b16 %v514, %v513
    %v602 = vpack.c.b16 %v516, %v515
    %v603 = vpack.c.b16 %v518, %v517
    %v604 = vpack.c.b16 %v520, %v519
    %v605 = vpack.c.b16 %v522, %v521
    %v606 = vpack.c.b16 %v524, %v523
    %v607 = vpack.c.b16 %v526, %v525
    %v608 = vpack.c.b16 %v528, %v527
    %v609 = vpack.c.b16 %v530, %v529
    %v610 = vpack.c.b16 %v532, %v531
    %v611 = vpack.c.b16 %v534, %v533
    %v612 = vpack.c.b16 %v536, %v535
    %v613 = vpack.c.b16 %v538, %v537
    %v614 = vpack.c.b16 %v540, %v539
    %v615 = vpack.c.b16 %v542, %v541
    %v616 = vpack.c.b16 %v544, %v543
    %689 = vmatprep.subr.bf16.mxu0 0
    %690 = vmatpush1.bf16.msra.mxu0 %v552
    %691 = vmatprep.subr.bf16.mxu0 0
    %692 = vmatpush1.bf16.msra.mxu0 %v551
    %693 = vmatprep.subr.bf16.mxu0 0
    %694 = vmatpush1.bf16.msra.mxu0 %v550
    %695 = vmatprep.subr.bf16.mxu0 0
    %696 = vmatpush1.bf16.msra.mxu0 %v549
    %697 = vmatprep.subr.bf16.mxu0 0
    %698 = vmatpush1.bf16.msra.mxu0 %v548
    %699 = vmatprep.subr.bf16.mxu0 0
    %700 = vmatpush1.bf16.msra.mxu0 %v547
    %701 = vmatprep.subr.bf16.mxu0 0
    %702 = vmatpush1.bf16.msra.mxu0 %v546
    %703 = vmatprep.subr.bf16.mxu0 0
    %704 = vmatpush1.bf16.msra.mxu0 %v545
    %705 = vmatprep.subr.bf16.mxu0 0
    %706 = vmatpush2.bf16.msra.mxu0 %v560
    %707 = vmatprep.subr.bf16.mxu0 0
    %708 = vmatpush2.bf16.msra.mxu0 %v559
    %709 = vmatprep.subr.bf16.mxu0 0
    %710 = vmatpush2.bf16.msra.mxu0 %v558
    %711 = vmatprep.subr.bf16.mxu0 0
    %712 = vmatpush2.bf16.msra.mxu0 %v557
    %713 = vmatprep.subr.bf16.mxu0 0
    %714 = vmatpush2.bf16.msra.mxu0 %v556
    %715 = vmatprep.subr.bf16.mxu0 0
    %716 = vmatpush2.bf16.msra.mxu0 %v555
    %717 = vmatprep.subr.bf16.mxu0 0
    %718 = vmatpush2.bf16.msra.mxu0 %v554
    %719 = vmatprep.subr.bf16.mxu0 0
    %720 = vmatpush2.bf16.msra.mxu0 %v553
    %721 = vmatprep.mubr.bf16.mxu0 %v222
    %722 = vmatmul.mubr.bf16.gmra.mxu0 %v208
    %v723 = vpop.f32.mrf.mxu0
    %v724 = vadd.f32 %v182, %v723
    %v725 = vpop.f32.mrf.mxu0
    %v726 = vpop.f32.mrf.mxu0
    %v727 = vpop.f32.mrf.mxu0
    %728 = vdwg.mxu0
    %729 = vmatprep.subr.bf16.mxu0 0
    %730 = vmatpush1.bf16.msra.mxu0 %v568
    %731 = vmatprep.subr.bf16.mxu0 0
    %732 = vmatpush1.bf16.msra.mxu0 %v567
    %733 = vmatprep.subr.bf16.mxu0 0
    %734 = vmatpush1.bf16.msra.mxu0 %v566
    %735 = vmatprep.subr.bf16.mxu0 0
    %736 = vmatpush1.bf16.msra.mxu0 %v565
    %737 = vmatprep.subr.bf16.mxu0 0
    %738 = vmatpush1.bf16.msra.mxu0 %v564
    %739 = vmatprep.subr.bf16.mxu0 0
    %740 = vmatpush1.bf16.msra.mxu0 %v563
    %741 = vmatprep.subr.bf16.mxu0 0
    %742 = vmatpush1.bf16.msra.mxu0 %v562
    %743 = vmatprep.subr.bf16.mxu0 0
    %744 = vmatpush1.bf16.msra.mxu0 %v561
    %745 = vmatprep.subr.bf16.mxu0 0
    %746 = vmatpush2.bf16.msra.mxu0 %v576
    %747 = vmatprep.subr.bf16.mxu0 0
    %748 = vmatpush2.bf16.msra.mxu0 %v575
    %749 = vmatprep.subr.bf16.mxu0 0
    %750 = vmatpush2.bf16.msra.mxu0 %v574
    %751 = vmatprep.subr.bf16.mxu0 0
    %752 = vmatpush2.bf16.msra.mxu0 %v573
    %753 = vmatprep.subr.bf16.mxu0 0
    %754 = vmatpush2.bf16.msra.mxu0 %v572
    %755 = vmatprep.subr.bf16.mxu0 0
    %756 = vmatpush2.bf16.msra.mxu0 %v571
    %757 = vmatprep.subr.bf16.mxu0 0
    %758 = vmatpush2.bf16.msra.mxu0 %v570
    %759 = vmatprep.subr.bf16.mxu0 0
    %760 = vmatpush2.bf16.msra.mxu0 %v569
    %761 = vmatprep.mubr.bf16.mxu0 %v232
    %762 = vmatmul.mubr.bf16.gmra.mxu0 %v230
    %v763 = vpop.f32.mrf.mxu0
    %v764 = vadd.f32 %v724, %v763
    %v765 = vpop.f32.mrf.mxu0
    %v766 = vpop.f32.mrf.mxu0
    %v767 = vpop.f32.mrf.mxu0
    %768 = vdwg.mxu0
    %769 = vmatprep.subr.bf16.mxu0 0
    %770 = vmatpush1.bf16.msra.mxu0 %v584
    %771 = vmatprep.subr.bf16.mxu0 0
    %772 = vmatpush1.bf16.msra.mxu0 %v583
    %773 = vmatprep.subr.bf16.mxu0 0
    %774 = vmatpush1.bf16.msra.mxu0 %v582
    %775 = vmatprep.subr.bf16.mxu0 0
    %776 = vmatpush1.bf16.msra.mxu0 %v581
    %777 = vmatprep.subr.bf16.mxu0 0
    %778 = vmatpush1.bf16.msra.mxu0 %v580
    %779 = vmatprep.subr.bf16.mxu0 0
    %780 = vmatpush1.bf16.msra.mxu0 %v579
    %781 = vmatprep.subr.bf16.mxu0 0
    %782 = vmatpush1.bf16.msra.mxu0 %v578
    %783 = vmatprep.subr.bf16.mxu0 0
    %784 = vmatpush1.bf16.msra.mxu0 %v577
    %785 = vmatprep.subr.bf16.mxu0 0
    %786 = vmatpush2.bf16.msra.mxu0 %v592
    %787 = vmatprep.subr.bf16.mxu0 0
    %788 = vmatpush2.bf16.msra.mxu0 %v591
    %789 = vmatprep.subr.bf16.mxu0 0
    %790 = vmatpush2.bf16.msra.mxu0 %v590
    %791 = vmatprep.subr.bf16.mxu0 0
    %792 = vmatpush2.bf16.msra.mxu0 %v589
    %793 = vmatprep.subr.bf16.mxu0 0
    %794 = vmatpush2.bf16.msra.mxu0 %v588
    %795 = vmatprep.subr.bf16.mxu0 0
    %796 = vmatpush2.bf16.msra.mxu0 %v587
    %797 = vmatprep.subr.bf16.mxu0 0
    %798 = vmatpush2.bf16.msra.mxu0 %v586
    %799 = vmatprep.subr.bf16.mxu0 0
    %800 = vmatpush2.bf16.msra.mxu0 %v585
    %801 = vmatprep.mubr.bf16.mxu0 %v229
    %802 = vmatmul.mubr.bf16.gmra.mxu0 %v215
    %v803 = vpop.f32.mrf.mxu0
    %v804 = vadd.f32 %v764, %v803
    %v805 = vpop.f32.mrf.mxu0
    %v806 = vpop.f32.mrf.mxu0
    %v807 = vpop.f32.mrf.mxu0
    %808 = vdwg.mxu0
    %809 = vmatprep.subr.bf16.mxu0 0
    %810 = vmatpush1.bf16.msra.mxu0 %v600
    %811 = vmatprep.subr.bf16.mxu0 0
    %812 = vmatpush1.bf16.msra.mxu0 %v599
    %813 = vmatprep.subr.bf16.mxu0 0
    %814 = vmatpush1.bf16.msra.mxu0 %v598
    %815 = vmatprep.subr.bf16.mxu0 0
    %816 = vmatpush1.bf16.msra.mxu0 %v597
    %817 = vmatprep.subr.bf16.mxu0 0
    %818 = vmatpush1.bf16.msra.mxu0 %v596
    %819 = vmatprep.subr.bf16.mxu0 0
    %820 = vmatpush1.bf16.msra.mxu0 %v595
    %821 = vmatprep.subr.bf16.mxu0 0
    %822 = vmatpush1.bf16.msra.mxu0 %v594
    %823 = vmatprep.subr.bf16.mxu0 0
    %824 = vmatpush1.bf16.msra.mxu0 %v593
    %825 = vmatprep.subr.bf16.mxu0 0
    %826 = vmatpush2.bf16.msra.mxu0 %v608
    %827 = vmatprep.subr.bf16.mxu0 0
    %828 = vmatpush2.bf16.msra.mxu0 %v607
    %829 = vmatprep.subr.bf16.mxu0 0
    %830 = vmatpush2.bf16.msra.mxu0 %v606
    %831 = vmatprep.subr.bf16.mxu0 0
    %832 = vmatpush2.bf16.msra.mxu0 %v605
    %833 = vmatprep.subr.bf16.mxu0 0
    %834 = vmatpush2.bf16.msra.mxu0 %v604
    %835 = vmatprep.subr.bf16.mxu0 0
    %836 = vmatpush2.bf16.msra.mxu0 %v603
    %837 = vmatprep.subr.bf16.mxu0 0
    %838 = vmatpush2.bf16.msra.mxu0 %v602
    %839 = vmatprep.subr.bf16.mxu0 0
    %840 = vmatpush2.bf16.msra.mxu0 %v601
    %841 = vmatprep.mubr.bf16.mxu0 %v233
    %842 = vmatmul.mubr.bf16.gmra.mxu0 %v231
    %v843 = vpop.f32.mrf.mxu0
    %v844 = vadd.f32 %v804, %v843
    %v845 = vpop.f32.mrf.mxu0
    %v846 = vpop.f32.mrf.mxu0
    %v847 = vpop.f32.mrf.mxu0
    %848 = vdwg.mxu0
    %849 = vmatprep.subr.bf16.mxu0 0
    %850 = vmatpush1.bf16.msra.mxu0 %v616
    %851 = vmatprep.subr.bf16.mxu0 0
    %852 = vmatpush1.bf16.msra.mxu0 %v615
    %853 = vmatprep.subr.bf16.mxu0 0
    %854 = vmatpush1.bf16.msra.mxu0 %v614
    %855 = vmatprep.subr.bf16.mxu0 0
    %856 = vmatpush1.bf16.msra.mxu0 %v613
    %857 = vmatprep.subr.bf16.mxu0 0
    %858 = vmatpush1.bf16.msra.mxu0 %v612
    %859 = vmatprep.subr.bf16.mxu0 0
    %860 = vmatpush1.bf16.msra.mxu0 %v611
    %861 = vmatprep.subr.bf16.mxu0 0
    %862 = vmatpush1.bf16.msra.mxu0 %v610
    %863 = vmatprep.subr.bf16.mxu0 0
    %864 = vmatpush1.bf16.msra.mxu0 %v609
    %865 = vmatprep.subr.bf16.mxu0 0
    %866 = vmatpush2.bf16.msra.mxu0 0
    %867 = vmatprep.subr.bf16.mxu0 0
    %868 = vmatpush2.bf16.msra.mxu0 0
    %869 = vmatprep.subr.bf16.mxu0 0
    %870 = vmatpush2.bf16.msra.mxu0 0
    %871 = vmatprep.subr.bf16.mxu0 0
    %872 = vmatpush2.bf16.msra.mxu0 0
    %873 = vmatprep.subr.bf16.mxu0 0
    %874 = vmatpush2.bf16.msra.mxu0 0
    %875 = vmatprep.subr.bf16.mxu0 0
    %876 = vmatpush2.bf16.msra.mxu0 0
    %877 = vmatprep.subr.bf16.mxu0 0
    %878 = vmatpush2.bf16.msra.mxu0 0
    %879 = vmatprep.subr.bf16.mxu0 0
    %880 = vmatpush2.bf16.msra.mxu0 0
    %881 = vmatprep.mubr.bf16.mxu0 0
    %882 = vmatmul.mubr.bf16.gmra.mxu0 %v247
    %v883 = vpop.f32.mrf.mxu0
    %v884 = vadd.f32 %v844, %v883
    %v885 = vpop.f32.mrf.mxu0
    %v886 = vpop.f32.mrf.mxu0
    %v887 = vpop.f32.mrf.mxu0
    %888 = vdwg.mxu0
    %v889 = vmax.f32 %v884, 0.0
    %v890 = vlaneseq
    %v891 = vshrl.u32 %v890, 7
    %v892 = vsub.s32 0, %v891
    %v893 = vrot.slane %v26, %v892
    %v894 = vmul.f32 %v889, %v893
    %v895 = vlaneseq
    %v896 = vshrl.u32 %v895, 7
    %v897 = vsub.s32 0, %v896
    %v898 = vrot.slane %v27, %v897
    %v899 = vadd.f32 %v894, %v898
    %v900 = vpack.c.bf16 %v899, %v899
    %v901 = vld [vmem:[%s2] sm:$0xf]
    %v902 = vld [vmem:[%s2 + $0x4] sm:$0xf]
    %v903 = vld [vmem:[%s2 + $0x8] sm:$0xf]
    %v904 = vld [vmem:[%s2 + $0xc] sm:$0xf]
    %v905 = vld [vmem:[%s2 + $0x10] sm:$0xf]
    %v906 = vld [vmem:[%s2 + $0x14] sm:$0xf]
    %v907 = vld [vmem:[%s2 + $0x18] sm:$0xf]
    %v908 = vld [vmem:[%s2 + $0x1c] sm:$0xf]
    %v909 = vld [vmem:[%s2 + $0x20] sm:$0xf]
    %v910 = vld [vmem:[%s2 + $0x24] sm:$0xf]
    %v911 = vld [vmem:[%s2 + $0x28] sm:$0xf]
    %v912 = vld [vmem:[%s2 + $0x2c] sm:$0xf]
    %v913 = vld [vmem:[%s2 + $0x30] sm:$0xf]
    %v914 = vld [vmem:[%s2 + $0x34] sm:$0xf]
    %v915 = vld [vmem:[%s2 + $0x38] sm:$0xf]
    %v916 = vld [vmem:[%s2 + $0x3c] sm:$0xf]
    %v917 = vlaneseq
    %v918 = vshrl.u32 %v917, 7
    %v919 = vsub.s32 0, %v918
    %v920 = vrot.slane %v28, %v919
    %v937 = vunpack.c.l.b16 %v901
    %v938 = vunpack.c.l.b16 %v902
    %v939 = vunpack.c.l.b16 %v903
    %v940 = vunpack.c.l.b16 %v904
    %v941 = vunpack.c.l.b16 %v905
    %v942 = vunpack.c.l.b16 %v906
    %v943 = vunpack.c.l.b16 %v907
    %v944 = vunpack.c.l.b16 %v908
    %v945 = vunpack.c.l.b16 %v909
    %v946 = vunpack.c.l.b16 %v910
    %v947 = vunpack.c.l.b16 %v911
    %v948 = vunpack.c.l.b16 %v912
    %v949 = vunpack.c.l.b16 %v913
    %v950 = vunpack.c.l.b16 %v914
    %v951 = vunpack.c.l.b16 %v915
    %v952 = vunpack.c.l.b16 %v916
    %v953 = vpack.c.b16 %v938, %v937
    %v954 = vpack.c.b16 %v940, %v939
    %v955 = vpack.c.b16 %v942, %v941
    %v956 = vpack.c.b16 %v944, %v943
    %v957 = vpack.c.b16 %v946, %v945
    %v958 = vpack.c.b16 %v948, %v947
    %v959 = vpack.c.b16 %v950, %v949
    %v960 = vpack.c.b16 %v952, %v951
    %969 = vmatprep.subr.bf16.mxu0 0
    %970 = vmatpush1.bf16.msra.mxu0 %v960
    %971 = vmatprep.subr.bf16.mxu0 0
    %972 = vmatpush1.bf16.msra.mxu0 %v959
    %973 = vmatprep.subr.bf16.mxu0 0
    %974 = vmatpush1.bf16.msra.mxu0 %v958
    %975 = vmatprep.subr.bf16.mxu0 0
    %976 = vmatpush1.bf16.msra.mxu0 %v957
    %977 = vmatprep.subr.bf16.mxu0 0
    %978 = vmatpush1.bf16.msra.mxu0 %v956
    %979 = vmatprep.subr.bf16.mxu0 0
    %980 = vmatpush1.bf16.msra.mxu0 %v955
    %981 = vmatprep.subr.bf16.mxu0 0
    %982 = vmatpush1.bf16.msra.mxu0 %v954
    %983 = vmatprep.subr.bf16.mxu0 0
    %984 = vmatpush1.bf16.msra.mxu0 %v953
    %985 = vmatprep.subr.bf16.mxu0 0
    %986 = vmatpush2.bf16.msra.mxu0 0
    %987 = vmatprep.subr.bf16.mxu0 0
    %988 = vmatpush2.bf16.msra.mxu0 0
    %989 = vmatprep.subr.bf16.mxu0 0
    %990 = vmatpush2.bf16.msra.mxu0 0
    %991 = vmatprep.subr.bf16.mxu0 0
    %992 = vmatpush2.bf16.msra.mxu0 0
    %993 = vmatprep.subr.bf16.mxu0 0
    %994 = vmatpush2.bf16.msra.mxu0 0
    %995 = vmatprep.subr.bf16.mxu0 0
    %996 = vmatpush2.bf16.msra.mxu0 0
    %997 = vmatprep.subr.bf16.mxu0 0
    %998 = vmatpush2.bf16.msra.mxu0 0
    %999 = vmatprep.subr.bf16.mxu0 0
    %1000 = vmatpush2.bf16.msra.mxu0 0
    %1001 = vmatprep.mubr.bf16.mxu0 0
    %1002 = vmatmul.mubr.bf16.gmra.mxu0 %v900
    %v1003 = vpop.f32.mrf.mxu0
    %v1004 = vadd.f32 %v920, %v1003
    %v1005 = vpop.f32.mrf.mxu0
    %v1006 = vpop.f32.mrf.mxu0
    %v1007 = vpop.f32.mrf.mxu0
    %1008 = vdwg.mxu0
    %v1009 = vmax.f32 %v1004, 0.0
    %v1010 = vlaneseq
    %v1011 = vshrl.u32 %v1010, 7
    %v1012 = vsub.s32 0, %v1011
    %v1013 = vrot.slane %v29, %v1012
    %v1014 = vmul.f32 %v1009, %v1013
    %v1015 = vlaneseq
    %v1016 = vshrl.u32 %v1015, 7
    %v1017 = vsub.s32 0, %v1016
    %v1018 = vrot.slane %v30, %v1017
    %v1019 = vadd.f32 %v1014, %v1018
    %v1020 = vpack.c.bf16 %v1019, %v1019
    %v1021 = vld [vmem:[%s3] sm:$0xf]
    %v1022 = vld [vmem:[%s3 + $0x4] sm:$0xf]
    %v1023 = vld [vmem:[%s3 + $0x8] sm:$0xf]
    %v1024 = vld [vmem:[%s3 + $0xc] sm:$0xf]
    %v1025 = vld [vmem:[%s3 + $0x10] sm:$0xf]
    %v1026 = vld [vmem:[%s3 + $0x14] sm:$0xf]
    %v1027 = vld [vmem:[%s3 + $0x18] sm:$0xf]
    %v1028 = vld [vmem:[%s3 + $0x1c] sm:$0xf]
    %v1029 = vld [vmem:[%s3 + $0x20] sm:$0xf]
    %v1030 = vld [vmem:[%s3 + $0x24] sm:$0xf]
    %v1031 = vld [vmem:[%s3 + $0x28] sm:$0xf]
    %v1032 = vld [vmem:[%s3 + $0x2c] sm:$0xf]
    %v1033 = vld [vmem:[%s3 + $0x30] sm:$0xf]
    %v1034 = vld [vmem:[%s3 + $0x34] sm:$0xf]
    %v1035 = vld [vmem:[%s3 + $0x38] sm:$0xf]
    %v1036 = vld [vmem:[%s3 + $0x3c] sm:$0xf]
    %v1037 = vlaneseq
    %v1038 = vshrl.u32 %v1037, 7
    %v1039 = vsub.s32 0, %v1038
    %v1040 = vrot.slane %v31, %v1039
    %v1057 = vunpack.c.l.b16 %v1021
    %v1058 = vunpack.c.l.b16 %v1022
    %v1059 = vunpack.c.l.b16 %v1023
    %v1060 = vunpack.c.l.b16 %v1024
    %v1061 = vunpack.c.l.b16 %v1025
    %v1062 = vunpack.c.l.b16 %v1026
    %v1063 = vunpack.c.l.b16 %v1027
    %v1064 = vunpack.c.l.b16 %v1028
    %v1065 = vunpack.c.l.b16 %v1029
    %v1066 = vunpack.c.l.b16 %v1030
    %v1067 = vunpack.c.l.b16 %v1031
    %v1068 = vunpack.c.l.b16 %v1032
    %v1069 = vunpack.c.l.b16 %v1033
    %v1070 = vunpack.c.l.b16 %v1034
    %v1071 = vunpack.c.l.b16 %v1035
    %v1072 = vunpack.c.l.b16 %v1036
    %v1073 = vpack.c.b16 %v1058, %v1057
    %v1074 = vpack.c.b16 %v1060, %v1059
    %v1075 = vpack.c.b16 %v1062, %v1061
    %v1076 = vpack.c.b16 %v1064, %v1063
    %v1077 = vpack.c.b16 %v1066, %v1065
    %v1078 = vpack.c.b16 %v1068, %v1067
    %v1079 = vpack.c.b16 %v1070, %v1069
    %v1080 = vpack.c.b16 %v1072, %v1071
    %1089 = vmatprep.subr.bf16.mxu0 0
    %1090 = vmatpush1.bf16.msra.mxu0 %v1080
    %1091 = vmatprep.subr.bf16.mxu0 0
    %1092 = vmatpush1.bf16.msra.mxu0 %v1079
    %1093 = vmatprep.subr.bf16.mxu0 0
    %1094 = vmatpush1.bf16.msra.mxu0 %v1078
    %1095 = vmatprep.subr.bf16.mxu0 0
    %1096 = vmatpush1.bf16.msra.mxu0 %v1077
    %1097 = vmatprep.subr.bf16.mxu0 0
    %1098 = vmatpush1.bf16.msra.mxu0 %v1076
    %1099 = vmatprep.subr.bf16.mxu0 0
    %1100 = vmatpush1.bf16.msra.mxu0 %v1075
    %1101 = vmatprep.subr.bf16.mxu0 0
    %1102 = vmatpush1.bf16.msra.mxu0 %v1074
    %1103 = vmatprep.subr.bf16.mxu0 0
    %1104 = vmatpush1.bf16.msra.mxu0 %v1073
    %1105 = vmatprep.subr.bf16.mxu0 0
    %1106 = vmatpush2.bf16.msra.mxu0 0
    %1107 = vmatprep.subr.bf16.mxu0 0
    %1108 = vmatpush2.bf16.msra.mxu0 0
    %1109 = vmatprep.subr.bf16.mxu0 0
    %1110 = vmatpush2.bf16.msra.mxu0 0
    %1111 = vmatprep.subr.bf16.mxu0 0
    %1112 = vmatpush2.bf16.msra.mxu0 0
    %1113 = vmatprep.subr.bf16.mxu0 0
    %1114 = vmatpush2.bf16.msra.mxu0 0
    %1115 = vmatprep.subr.bf16.mxu0 0
    %1116 = vmatpush2.bf16.msra.mxu0 0
    %1117 = vmatprep.subr.bf16.mxu0 0
    %1118 = vmatpush2.bf16.msra.mxu0 0
    %1119 = vmatprep.subr.bf16.mxu0 0
    %1120 = vmatpush2.bf16.msra.mxu0 0
    %1121 = vmatprep.mubr.bf16.mxu0 0
    %1122 = vmatmul.mubr.bf16.gmra.mxu0 %v1020
    %v1123 = vpop.f32.mrf.mxu0
    %v1124 = vadd.f32 %v1040, %v1123
    %v1125 = vpop.f32.mrf.mxu0
    %v1126 = vpop.f32.mrf.mxu0
    %v1127 = vpop.f32.mrf.mxu0
    %1128 = vdwg.mxu0
    %v1129 = vmax.f32 %v1124, 0.0
    %v1130 = vpack.c.bf16 %v1129, %v1129
    %v1131 = vld [vmem:[%s4] sm:$0xf]
    %v1132 = vld [vmem:[%s4 + $0x4] sm:$0xf]
    %v1133 = vld [vmem:[%s4 + $0x8] sm:$0xf]
    %v1134 = vld [vmem:[%s4 + $0xc] sm:$0xf]
    %v1135 = vld [vmem:[%s4 + $0x10] sm:$0xf]
    %v1136 = vld [vmem:[%s4 + $0x14] sm:$0xf]
    %v1137 = vld [vmem:[%s4 + $0x18] sm:$0xf]
    %v1138 = vld [vmem:[%s4 + $0x1c] sm:$0xf]
    %v1139 = vld [vmem:[%s4 + $0x20] sm:$0xf]
    %v1140 = vld [vmem:[%s4 + $0x24] sm:$0xf]
    %v1141 = vld [vmem:[%s4 + $0x28] sm:$0xf]
    %v1142 = vld [vmem:[%s4 + $0x2c] sm:$0xf]
    %v1143 = vld [vmem:[%s4 + $0x30] sm:$0xf]
    %v1144 = vld [vmem:[%s4 + $0x34] sm:$0xf]
    %v1145 = vld [vmem:[%s4 + $0x38] sm:$0xf]
    %v1146 = vld [vmem:[%s4 + $0x3c] sm:$0xf]
    %v1147 = vlaneseq
    %v1148 = vshrl.u32 %v1147, 7
    %v1149 = vsub.s32 0, %v1148
    %v1150 = vrot.slane %v32, %v1149
    %v1167 = vunpack.c.l.b16 %v1131
    %v1168 = vunpack.c.l.b16 %v1132
    %v1169 = vunpack.c.l.b16 %v1133
    %v1170 = vunpack.c.l.b16 %v1134
    %v1171 = vunpack.c.l.b16 %v1135
    %v1172 = vunpack.c.l.b16 %v1136
    %v1173 = vunpack.c.l.b16 %v1137
    %v1174 = vunpack.c.l.b16 %v1138
    %v1175 = vunpack.c.l.b16 %v1139
    %v1176 = vunpack.c.l.b16 %v1140
    %v1177 = vunpack.c.l.b16 %v1141
    %v1178 = vunpack.c.l.b16 %v1142
    %v1179 = vunpack.c.l.b16 %v1143
    %v1180 = vunpack.c.l.b16 %v1144
    %v1181 = vunpack.c.l.b16 %v1145
    %v1182 = vunpack.c.l.b16 %v1146
    %v1183 = vpack.c.b16 %v1168, %v1167
    %v1184 = vpack.c.b16 %v1170, %v1169
    %v1185 = vpack.c.b16 %v1172, %v1171
    %v1186 = vpack.c.b16 %v1174, %v1173
    %v1187 = vpack.c.b16 %v1176, %v1175
    %v1188 = vpack.c.b16 %v1178, %v1177
    %v1189 = vpack.c.b16 %v1180, %v1179
    %v1190 = vpack.c.b16 %v1182, %v1181
    %1199 = vmatprep.subr.bf16.mxu0 0
    %1200 = vmatpush1.bf16.msra.mxu0 %v1190
    %1201 = vmatprep.subr.bf16.mxu0 0
    %1202 = vmatpush1.bf16.msra.mxu0 %v1189
    %1203 = vmatprep.subr.bf16.mxu0 0
    %1204 = vmatpush1.bf16.msra.mxu0 %v1188
    %1205 = vmatprep.subr.bf16.mxu0 0
    %1206 = vmatpush1.bf16.msra.mxu0 %v1187
    %1207 = vmatprep.subr.bf16.mxu0 0
    %1208 = vmatpush1.bf16.msra.mxu0 %v1186
    %1209 = vmatprep.subr.bf16.mxu0 0
    %1210 = vmatpush1.bf16.msra.mxu0 %v1185
    %1211 = vmatprep.subr.bf16.mxu0 0
    %1212 = vmatpush1.bf16.msra.mxu0 %v1184
    %1213 = vmatprep.subr.bf16.mxu0 0
    %1214 = vmatpush1.bf16.msra.mxu0 %v1183
    %1215 = vmatprep.subr.bf16.mxu0 0
    %1216 = vmatpush2.bf16.msra.mxu0 0
    %1217 = vmatprep.subr.bf16.mxu0 0
    %1218 = vmatpush2.bf16.msra.mxu0 0
    %1219 = vmatprep.subr.bf16.mxu0 0
    %1220 = vmatpush2.bf16.msra.mxu0 0
    %1221 = vmatprep.subr.bf16.mxu0 0
    %1222 = vmatpush2.bf16.msra.mxu0 0
    %1223 = vmatprep.subr.bf16.mxu0 0
    %1224 = vmatpush2.bf16.msra.mxu0 0
    %1225 = vmatprep.subr.bf16.mxu0 0
    %1226 = vmatpush2.bf16.msra.mxu0 0
    %1227 = vmatprep.subr.bf16.mxu0 0
    %1228 = vmatpush2.bf16.msra.mxu0 0
    %1229 = vmatprep.subr.bf16.mxu0 0
    %1230 = vmatpush2.bf16.msra.mxu0 0
    %1231 = vmatprep.mubr.bf16.mxu0 0
    %1232 = vmatmul.mubr.bf16.gmra.mxu0 %v1130
    %v1233 = vpop.f32.mrf.mxu0
    %v1234 = vadd.f32 %v1150, %v1233
    %v1235 = vpop.f32.mrf.mxu0
    %v1236 = vpop.f32.mrf.mxu0
    %v1237 = vpop.f32.mrf.mxu0
    %1238 = vdwg.mxu0
    %1239 = vst [vmem:[#allocation2] sm:$0x3] %v1234
    // Predicated region
    $region26: #{mnist_net_forward.9} parent=1 // pred_check
      _
    $region27: #{mnist_net_forward.9} parent=1 // pred_check_branch
      %1241 = sbr.rel (0) target = $region29
    $region28: #{mnist_net_forward.9} parent=1 // pred_region
      %s1243 = ssub.s32 32, 32
      %1244 = vsyncadd [#allocation3], %s1243
      %s1246 = sshll.u32 [#allocation2], 4
      %s1247 = int_to_ptr.vmem [resolvable:$true] %s1246
      %1249 = dma.vmem_to_hbm [thread:$0]  %s1247, 32, %s6, [#allocation3]
    $region29: #{mnist_net_forward.9} parent=1 // pred_fallthru
      _
    // Predicated region
    $region30: #{mnist_net_forward.9} parent=1 // pred_check
      _
    $region31: #{mnist_net_forward.9} parent=1 // pred_check_branch
      %1251 = sbr.rel (0) target = $region33
    $region32: #{mnist_net_forward.9} parent=1 // pred_region
      %1252 = dma.done [#allocation3], 32
    $region33: #{mnist_net_forward.9} parent=1 // pred_fallthru
      _
    %1253 = vsyncpa [#allocation3], 1

</llo_original>
